<compile_context>
chip_gen: v7x
topology: tpu7x:2x2x1
jax: 0.10.0
libtpu: 0.0.40
codegen_flags: <defaults>
</compile_context>

<pallas_src>
import jax
import jax.numpy as jnp
from jax.experimental import pallas as pl
from jax.experimental.pallas import tpu as pltpu

NUM_CLASSES = 7          # len(sources_label_map)
IN_FEATURES = 256        # d_fc1 input
HIDDEN = 128             # d_fc1 output / d_fc2 input
BN_EPS = 1e-5
LANES = 128
MAX_FOLD = 16            # cap the static fold unroll (<= 2048-lane hw tiles)


# --------------------------------------------------------------------------- #
# Kernel 1: streaming spatial mean pool over H*W (HBM-bandwidth bound phase).  #
# --------------------------------------------------------------------------- #
def _make_pool_kernel(hw, hw_tile, n_fold, inv_hw, ragged):
    def kernel(feat_ref, out_ref, acc_ref):
        hw_step = pl.program_id(1)

        @pl.when(hw_step == 0)
        def _init():
            acc_ref[...] = jnp.zeros_like(acc_ref)

        base = hw_step * hw_tile
        if ragged:
            lane = jax.lax.broadcasted_iota(jnp.int32, (1, 1, LANES), 2)

        # Per-slab ref reads accumulated straight into acc_ref: only ~1 slab is
        # live at a time, and the VPU adds stay under the next tile's DMA shadow.
        for j in range(n_fold):
            slab = feat_ref[:, :, j * LANES:(j + 1) * LANES].astype(jnp.float32)
            if ragged:
                # Edge-block contents past the true H*W extent are unspecified:
                # zero them before accumulating (replaces the old HBM jnp.pad).
                slab = jnp.where(base + j * LANES + lane < hw, slab, 0.0)
            acc_ref[...] += slab

        @pl.when(hw_step == pl.num_programs(1) - 1)
        def _finalize():
            # Finish the mean: one small cross-lane reduce, independent of H*W.
            out_ref[...] = (jnp.sum(acc_ref[...], axis=2) * inv_hw).astype(out_ref.dtype)

    return kernel


# --------------------------------------------------------------------------- #
# Kernel 2: tiny fc1 -> BN(train) -> ReLU -> fc2 -> mean CrossEntropy head.    #
# --------------------------------------------------------------------------- #
def _head_loss_kernel(pooled_ref, labels_ref, w1t_ref, gamma_ref, beta_ref,
                      w2t_ref, b2_ref, loss_ref):
    pooled = pooled_ref[...]                                           # [N, 256] f32

    # d_fc1 (bias omitted: it cancels exactly under training-mode BatchNorm)
    h = jnp.dot(pooled, w1t_ref[...], preferred_element_type=jnp.float32)  # [N, 128]

    # d_bn1: training-mode batch statistics (biased variance), eps = 1e-5
    mu = jnp.mean(h, axis=0, keepdims=True)
    var = jnp.mean((h - mu) ** 2, axis=0, keepdims=True)
    h = (h - mu) * jax.lax.rsqrt(var + BN_EPS)
    h = h * gamma_ref[...] + beta_ref[...]

    # d_relu1
    h = jnp.maximum(h, 0.0)

    # d_fc2
    logits = jnp.dot(h, w2t_ref[...], preferred_element_type=jnp.float32) + b2_ref[...]

    # CrossEntropyLoss (mean reduction), log-sum-exp stabilized.
    m = jnp.max(logits, axis=1, keepdims=True)
    lse = jnp.log(jnp.sum(jnp.exp(logits - m), axis=1, keepdims=True)) + m
    labels = labels_ref[...]                                           # [N, 1] int32
    cls = jax.lax.broadcasted_iota(jnp.int32, logits.shape, 1)
    # NOTE: an out-of-range label silently yields true_logit = 0 (no error),
    # mirroring a gather miss; callers must pass labels in [0, NUM_CLASSES).
    true_logit = jnp.sum(jnp.where(cls == labels, logits, 0.0), axis=1, keepdims=True)
    loss_ref[0, 0] = jnp.mean(lse - true_logit)


# --------------------------------------------------------------------------- #
# Wrapper                                                                      #
# --------------------------------------------------------------------------- #
def _budgets():
    """Per-buffer feature-tile byte budget and scoped-VMEM cap, per generation."""
    per_buf, vmem_cap = 6 << 20, 28 << 20          # conservative default (v5e-safe)
    try:
        cap = int(pltpu.get_tpu_info().vmem_capacity_bytes)
        kind = jax.devices()[0].device_kind.lower()
        if cap < (96 << 20):                       # v7x: 64 MiB/TC -> stay well under it
            per_buf, vmem_cap = 8 << 20, 28 << 20
        elif "v5" not in kind:                     # v6e: 128 MiB VMEM -> bigger tiles
            per_buf, vmem_cap = 8 << 20, 30 << 20
    except Exception:
        pass
    return per_buf, vmem_cap


def domain_loss(features_nchw, source_labels, params, *, hw_tile=None, n_tile=None):
    """features_nchw: [N, 256, H, W] (f32 or bf16); source_labels: [N] int -> scalar loss."""
    n, c, h, w = features_nchw.shape
    assert c == IN_FEATURES
    hw = h * w
    feat = features_nchw.reshape(n, c, hw)     # native NCHW; no HBM pad/transpose pass
    labels = source_labels.astype(jnp.int32).reshape(n, 1)
    itemsize = jnp.dtype(feat.dtype).itemsize

    # ---- N tiling: 2-way 'parallel' split (v7x dual TensorCore) when it keeps the
    # pooled-output block's sublane dim a multiple of 8; otherwise a single tile.
    if n_tile is None:
        n_tile = n // 2 if (n >= 16 and n % 16 == 0) else n
    assert n % n_tile == 0 and (n_tile == n or n_tile % 8 == 0)

    # ---- HW tiling: largest 128-multiple tile within the per-generation budget.
    per_buf, vmem_cap = _budgets()
    if hw_tile is None:
        bytes_per_hw_col = n_tile * c * itemsize
        hw_tile = (per_buf // bytes_per_hw_col) // LANES * LANES
    hw_tile = max(LANES, (hw_tile // LANES) * LANES)
    hw_tile = min(hw_tile, MAX_FOLD * LANES, pl.cdiv(hw, LANES) * LANES)
    n_fold = hw_tile // LANES
    hw_grid = pl.cdiv(hw, hw_tile)
    ragged = (hw_grid * hw_tile != hw)         # ragged last tile is masked in-kernel

    # ---- right-size the scoped VMEM request (double-buffered tile + residents + slack)
    feat_tile_bytes = n_tile * c * hw_tile * itemsize
    resident_bytes = n_tile * c * LANES * 4 + 2 * n_tile * c * 4   # acc + out buffers
    vmem_limit = int(min(2 * feat_tile_bytes + 2 * resident_bytes + (4 << 20), vmem_cap))

    pooled = pl.pallas_call(
        _make_pool_kernel(hw, hw_tile, n_fold, 1.0 / float(hw), ragged),
        out_shape=jax.ShapeDtypeStruct((n, c), jnp.float32),
        grid=(n // n_tile, hw_grid),
        in_specs=[pl.BlockSpec((n_tile, c, hw_tile), lambda i, t: (i, 0, t))],
        out_specs=pl.BlockSpec((n_tile, c), lambda i, t: (i, 0)),
        scratch_shapes=[pltpu.VMEM((n_tile, c, LANES), jnp.float32)],
        compiler_params=pltpu.CompilerParams(
            dimension_semantics=("parallel", "arbitrary"),
            vmem_limit_bytes=vmem_limit,
        ),
    )(feat)

    # Tiny epilogue on VMEM-resident operands; runs once, negligible vs the stream.
    vspec = pl.BlockSpec(memory_space=pltpu.MemorySpace.VMEM)
    loss = pl.pallas_call(
        _head_loss_kernel,
        out_shape=jax.ShapeDtypeStruct((1, 1), jnp.float32),
        in_specs=[vspec] * 7,
        out_specs=vspec,
    )(pooled, labels, params["w1t"], params["gamma"], params["beta"],
      params["w2t"], params["b2"])
    return loss[0, 0]


def init_params(key):
    k1, k2, k3, k4 = jax.random.split(key, 4)
    bound1 = 1.0 / (IN_FEATURES ** 0.5)
    bound2 = 1.0 / (HIDDEN ** 0.5)
    return {
        # stored pre-transposed / pre-broadcast so the wrapper does no reshapes
        "w1t": jax.random.uniform(k1, (IN_FEATURES, HIDDEN), jnp.float32, -bound1, bound1),
        # d_fc1 bias kept for nn.Linear interface parity; it is a mathematical no-op
        # in front of training-mode BatchNorm, so the kernels do not consume it.
        "b1": jax.random.uniform(k2, (HIDDEN,), jnp.float32, -bound1, bound1),
        "gamma": jnp.ones((1, HIDDEN), jnp.float32),
        "beta": jnp.zeros((1, HIDDEN), jnp.float32),
        "w2t": jax.random.uniform(k3, (HIDDEN, NUM_CLASSES), jnp.float32, -bound2, bound2),
        "b2": jax.random.uniform(k4, (1, NUM_CLASSES), jnp.float32, -bound2, bound2),
    }


def _reference_loss(features_nchw, source_labels, params):
    """Pure-JAX reference mirroring the PyTorch module (including the redundant b1)."""
    x = jnp.mean(features_nchw.astype(jnp.float32), axis=(2, 3))      # [N, 256]
    h = x @ params["w1t"] + params["b1"][None, :]
    mu = jnp.mean(h, axis=0, keepdims=True)
    var = jnp.mean((h - mu) ** 2, axis=0, keepdims=True)
    h = (h - mu) / jnp.sqrt(var + BN_EPS) * params["gamma"] + params["beta"]
    h = jnp.maximum(h, 0.0)
    logits = h @ params["w2t"] + params["b2"]
    lse = jax.nn.logsumexp(logits, axis=1)
    true_logit = jnp.take_along_axis(
        logits, source_labels.astype(jnp.int32)[:, None], axis=1)[:, 0]
    return jnp.mean(lse - true_logit)


if __name__ == "__main__":
    key = jax.random.PRNGKey(0)
    kf, kl, kp = jax.random.split(key, 3)

    # [N, 256, H, W] backbone features.  H*W = 384 is NOT a multiple of the forced
    # 256-lane tile, exercising the ragged-tile in-kernel masking (no HBM pad), and
    # N = 16 exercises the 2-way 'parallel' N split (grid = (2, 2)).  Features are
    # streamed as bf16 (f32 accumulator inside the kernel).
    n, h, w = 16, 16, 24
    features = jax.random.normal(kf, (n, IN_FEATURES, h, w), jnp.float32).astype(jnp.bfloat16)
    # one domain label per image (torch.cat([t['source'] for t in targets]))
    source_labels = jax.random.randint(kl, (n,), 0, NUM_CLASSES, jnp.int32)
    params = init_params(kp)

    loss = domain_loss(features, source_labels, params, hw_tile=256)
    loss = jax.block_until_ready(loss)

    ref = _reference_loss(features, source_labels, params)
    assert abs(float(loss) - float(ref)) < 1e-3, (float(loss), float(ref))
    print("KERNEL_OK")
</pallas_src>

<mosaic_0001>
module attributes {stable_mosaic.version = 11 : i64} {
  func.func @kernel(%arg0: i32, %arg1: i32, %arg2: memref<8x256x256xbf16, #tpu.memory_space<vmem>>, %arg3: memref<8x256xf32, #tpu.memory_space<vmem>>, %arg4: memref<8x256x128xf32, #tpu.memory_space<vmem>>) attributes {dimension_semantics = [#tpu.dimension_semantics<parallel>, #tpu.dimension_semantics<arbitrary>], iteration_bounds = array<i64: 2, 2>, scalar_prefetch = 0 : i64, scratch_operands = 1 : i64, tpu.core_type = #tpu.core_type<tc>, window_params = [{transform_indices = @transform_0, window_bounds = array<i64: 8, 256, 256>}, {transform_indices = @transform_1, window_bounds = array<i64: 8, 256>}]} {
    %c0_i32 = arith.constant 0 : i32
    %0 = arith.cmpi eq, %arg1, %c0_i32 : i32
    %1 = arith.extui %0 : i1 to i32
    %c0_i32_0 = arith.constant 0 : i32
    %2 = arith.cmpi ne, %1, %c0_i32_0 : i32
    scf.if %2 {
      %cst_21 = arith.constant 0.000000e+00 : f32
      %36 = vector.broadcast %cst_21 : f32 to vector<8x256x128xf32>
      %c0_22 = arith.constant 0 : index
      %c0_23 = arith.constant 0 : index
      %c0_24 = arith.constant 0 : index
      %37 = vector.load %arg4[%c0_22, %c0_23, %c0_24] : memref<8x256x128xf32, #tpu.memory_space<vmem>>, vector<8x256x128xf32>
      tpu.vector_store %arg4[%c0_22, %c0_23, %c0_24], %36 {strides = array<i32>} : memref<8x256x128xf32, #tpu.memory_space<vmem>>, vector<8x256x128xf32>,
    } else {
    }
    %c256_i32 = arith.constant 256 : i32
    %3 = arith.muli %arg1, %c256_i32 : i32
    %4 = tpu.iota {dimensions = array<i32: 2>} : vector<1x1x128xi32>
    %c0 = arith.constant 0 : index
    %c0_1 = arith.constant 0 : index
    %c0_2 = arith.constant 0 : index
    %5 = vector.load %arg2[%c0, %c0_1, %c0_2] : memref<8x256x256xbf16, #tpu.memory_space<vmem>>, vector<8x256x128xbf16>
    %6 = arith.extf %5 : vector<8x256x128xbf16> to vector<8x256x128xf32>
    %c0_i32_3 = arith.constant 0 : i32
    %7 = arith.addi %3, %c0_i32_3 : i32
    %8 = vector.broadcast %7 : i32 to vector<1x1x128xi32>
    %9 = arith.addi %8, %4 : vector<1x1x128xi32>
    %c384_i32 = arith.constant 384 : i32
    %10 = vector.broadcast %c384_i32 : i32 to vector<1x1x128xi32>
    %11 = arith.cmpi slt, %9, %10 : vector<1x1x128xi32>
    %cst = arith.constant 0.000000e+00 : f32
    %12 = vector.shape_cast %11 : vector<1x1x128xi1> to vector<1x1x128xi1>
    %13 = vector.broadcast %12 : vector<1x1x128xi1> to vector<8x256x128xi1>
    %14 = vector.broadcast %cst : f32 to vector<8x256x128xf32>
    %15 = arith.select %13, %6, %14 : vector<8x256x128xi1>, vector<8x256x128xf32>
    %c0_4 = arith.constant 0 : index
    %c0_5 = arith.constant 0 : index
    %c0_6 = arith.constant 0 : index
    %16 = vector.load %arg4[%c0_4, %c0_5, %c0_6] : memref<8x256x128xf32, #tpu.memory_space<vmem>>, vector<8x256x128xf32>
    %17 = arith.addf %16, %15 : vector<8x256x128xf32>
    %c0_7 = arith.constant 0 : index
    %c0_8 = arith.constant 0 : index
    %c0_9 = arith.constant 0 : index
    %18 = vector.load %arg4[%c0_7, %c0_8, %c0_9] : memref<8x256x128xf32, #tpu.memory_space<vmem>>, vector<8x256x128xf32>
    tpu.vector_store %arg4[%c0_7, %c0_8, %c0_9], %17 {strides = array<i32>} : memref<8x256x128xf32, #tpu.memory_space<vmem>>, vector<8x256x128xf32>,
    %c0_10 = arith.constant 0 : index
    %c0_11 = arith.constant 0 : index
    %c128 = arith.constant 128 : index
    %19 = vector.load %arg2[%c0_10, %c0_11, %c128] : memref<8x256x256xbf16, #tpu.memory_space<vmem>>, vector<8x256x128xbf16>
    %20 = arith.extf %19 : vector<8x256x128xbf16> to vector<8x256x128xf32>
    %c128_i32 = arith.constant 128 : i32
    %21 = arith.addi %3, %c128_i32 : i32
    %22 = vector.broadcast %21 : i32 to vector<1x1x128xi32>
    %23 = arith.addi %22, %4 : vector<1x1x128xi32>
    %c384_i32_12 = arith.constant 384 : i32
    %24 = vector.broadcast %c384_i32_12 : i32 to vector<1x1x128xi32>
    %25 = arith.cmpi slt, %23, %24 : vector<1x1x128xi32>
    %cst_13 = arith.constant 0.000000e+00 : f32
    %26 = vector.shape_cast %25 : vector<1x1x128xi1> to vector<1x1x128xi1>
    %27 = vector.broadcast %26 : vector<1x1x128xi1> to vector<8x256x128xi1>
    %28 = vector.broadcast %cst_13 : f32 to vector<8x256x128xf32>
    %29 = arith.select %27, %20, %28 : vector<8x256x128xi1>, vector<8x256x128xf32>
    %c0_14 = arith.constant 0 : index
    %c0_15 = arith.constant 0 : index
    %c0_16 = arith.constant 0 : index
    %30 = vector.load %arg4[%c0_14, %c0_15, %c0_16] : memref<8x256x128xf32, #tpu.memory_space<vmem>>, vector<8x256x128xf32>
    %31 = arith.addf %30, %29 : vector<8x256x128xf32>
    %c0_17 = arith.constant 0 : index
    %c0_18 = arith.constant 0 : index
    %c0_19 = arith.constant 0 : index
    %32 = vector.load %arg4[%c0_17, %c0_18, %c0_19] : memref<8x256x128xf32, #tpu.memory_space<vmem>>, vector<8x256x128xf32>
    tpu.vector_store %arg4[%c0_17, %c0_18, %c0_19], %31 {strides = array<i32>} : memref<8x256x128xf32, #tpu.memory_space<vmem>>, vector<8x256x128xf32>,
    %c1_i32 = arith.constant 1 : i32
    %33 = arith.cmpi eq, %arg1, %c1_i32 : i32
    %34 = arith.extui %33 : i1 to i32
    %c0_i32_20 = arith.constant 0 : i32
    %35 = arith.cmpi ne, %34, %c0_i32_20 : i32
    scf.if %35 {
      %c0_21 = arith.constant 0 : index
      %c0_22 = arith.constant 0 : index
      %c0_23 = arith.constant 0 : index
      %36 = vector.load %arg4[%c0_21, %c0_22, %c0_23] : memref<8x256x128xf32, #tpu.memory_space<vmem>>, vector<8x256x128xf32>
      %cst_24 = arith.constant dense<0.000000e+00> : vector<8x256xf32>
      %37 = vector.multi_reduction <add>, %36, %cst_24 [2] : vector<8x256x128xf32> to vector<8x256xf32>
      %cst_25 = arith.constant 0.00260416674 : f32
      %38 = vector.broadcast %cst_25 : f32 to vector<8x256xf32>
      %39 = arith.mulf %37, %38 : vector<8x256xf32>
      %c0_26 = arith.constant 0 : index
      %c0_27 = arith.constant 0 : index
      %40 = vector.load %arg3[%c0_26, %c0_27] : memref<8x256xf32, #tpu.memory_space<vmem>>, vector<8x256xf32>
      tpu.vector_store %arg3[%c0_26, %c0_27], %39 {strides = array<i32>} : memref<8x256xf32, #tpu.memory_space<vmem>>, vector<8x256xf32>,
    } else {
    }
    return
  }
  func.func @transform_0(%arg0: i32, %arg1: i32) -> (i32, i32, i32) {
    %c0_i32 = arith.constant 0 : i32
    %c0_i32_0 = arith.constant 0 : i32
    return %arg0, %c0_i32, %arg1 : i32, i32, i32
  }
  func.func @transform_1(%arg0: i32, %arg1: i32) -> (i32, i32) {
    %c0_i32 = arith.constant 0 : i32
    %c0_i32_0 = arith.constant 0 : i32
    return %arg0, %c0_i32 : i32, i32
  }
}

</mosaic_0001>

<llo_original>
// kernel: tpu_custom_call.1
$region0: #{tpu_custom_call.1}
  #allocation0 [shape = 'u32[]', space=smem, size = 0x4, offset = 0x4, fixed_abs, tag = 'smem constant byte address 0x4 - core index']
  #allocation1 [shape = 'u32[144,128]{1,0:T(1,128)}', space=vmem, size = 0x12000, scoped, tag = 'internal scratch']
  #allocation2 [shape = 'f32[8,256,128]{2,1,0:T(8,128)}', space=vmem, size = 0x100000, scoped, tag = 'scratch operand']
  %s0 = inlined_call_operand.hbm [shape: bf16[16,256,384], index: 0, kind: input, shape index: {}]
  %s1 = inlined_call_operand.hbm [shape: f32[16,256], index: 1, kind: output, shape index: {}]
  %s2 = sld [smem:[#allocation0]]
  $region49: #{tpu_custom_call.1} parent=0
    _
  %s4 = ssub.s32 1, %s2
  %s5 = scalar_select 0, %s4, %s2
  $region1: #{tpu_custom_call.1} parent=0
    #allocation3 [shape = 'u8[2097152]{0}', space=vmem, size = 0x200000, scoped, tag = 'input window, operand 0']
    #allocation4 [shape = 's32[2]{0}', space=sflag, size = 0x8, scoped, tag = 'scoped memory for tpu_custom_call.1']
    #allocation5 [shape = 's32[2]{0}', space=sflag, size = 0x8, scoped, tag = 'scoped memory for tpu_custom_call.1']
    #allocation6 [shape = 'u8[16384]{0}', space=vmem, size = 0x4000, scoped, tag = 'output window, operand 0']
    %6 = vsyncpa [#allocation4], 0
    %s7 = scalar_lea.sflag [#allocation4], 1
    %8 = vsyncpa %s7, 0
    %9 = vsyncpa [#allocation5], 0
    %s10 = scalar_lea.sflag [#allocation5], 1
    %11 = vsyncpa %s10, 0
    loop: start=0, step=1, limit=6
    $region2: #{tpu_custom_call.1} parent=1 // loop_pre_header
      _
    $region3: #{tpu_custom_call.1} parent=1 // loop_header
      %s13 = sphi 0, %s17
      %p14 = scmp.ge.s32.totalorder %s13, 6
      %s20 = sphi 0, %s32
      %s21 = sphi 0, %s28
      %s22 = sphi 0, %s20
      %s23 = sphi 0, %s21
      %s24 = sphi 0, %s22
      %s25 = sphi 0, %s23
      %s37 = sphi 0, %s39
      %s40 = sphi 0, %s37
      %s41 = sphi 0, %s40
      %s57 = sphi 0, %s41
      %s63 = sphi 0, %s65
      %s66 = sphi 0, %s63
      %s67 = sphi 0, %s66
      %s83 = sphi 0, %s67
    $region4: #{tpu_custom_call.1} parent=1 // loop_header_branch
      %16 = sbr.rel (%p14) target = $region8
    $region5: #{tpu_custom_call.1} parent=1 // loop_body
      %s18 = ssub.s32 %s13, 1
      %s19 = ssub.s32 %s13, 2
      %s26 = sadd.s32 1, %s21
      %p27 = scmp.ge.s32.totalorder %s26, 2
      %s28 = scalar_select %p27, 0, %s26
      %s29 = sadd.s32 1, %s20
      %s30 = scalar_select %p27, %s29, %s20
      %p31 = scmp.ge.s32.totalorder %s30, 2
      %s32 = scalar_select %p31, 0, %s30
      %s33 = ssub.s32 %s20, %s32
      %s34 = ssub.s32 %s21, %s28
      %s35 = sor.u32 %s33, %s34
      %p36 = scmp.eq.s32.totalorder %s35, 0
      %s38 = sadd.s32 %s37, 1
      %s39 = scalar_select %p36, %s37, %s38
      %p42 = pneg %p36
      %p43 = scmp.eq.s32.totalorder %s13, 3
      %p44 = por %p42, %p43
      %p45 = scmp.ne.s32.totalorder %s37, %s40
      %p46 = scmp.eq.s32.totalorder %s13, 0
      %p47 = por %p45, %p46
      %p48 = scmp.ne.s32.totalorder %s37, %s40
      %p49 = scmp.eq.s32.totalorder %s18, 3
      %p50 = por %p48, %p49
      %p51 = scmp.ne.s32.totalorder %s40, %s41
      %p52 = scmp.eq.s32.totalorder %s18, 0
      %p53 = por %p51, %p52
      %p54 = scmp.ne.s32.totalorder %s40, %s41
      %p55 = scmp.eq.s32.totalorder %s19, 3
      %p56 = por %p54, %p55
      %p58 = scmp.ne.s32.totalorder %s41, %s57
      %p59 = scmp.eq.s32.totalorder %s19, 0
      %p60 = por %p58, %p59
      %s61 = ssub.s32 %s20, %s32
      %p62 = scmp.eq.s32.totalorder %s61, 0
      %s64 = sadd.s32 %s63, 1
      %s65 = scalar_select %p62, %s63, %s64
      %p68 = pneg %p62
      %p69 = scmp.eq.s32.totalorder %s13, 3
      %p70 = por %p68, %p69
      %p71 = scmp.ne.s32.totalorder %s63, %s66
      %p72 = scmp.eq.s32.totalorder %s13, 0
      %p73 = por %p71, %p72
      %p74 = scmp.ne.s32.totalorder %s63, %s66
      %p75 = scmp.eq.s32.totalorder %s18, 3
      %p76 = por %p74, %p75
      %p77 = scmp.ne.s32.totalorder %s66, %s67
      %p78 = scmp.eq.s32.totalorder %s18, 0
      %p79 = por %p77, %p78
      %p80 = scmp.ne.s32.totalorder %s66, %s67
      %p81 = scmp.eq.s32.totalorder %s19, 3
      %p82 = por %p80, %p81
      %p84 = scmp.ne.s32.totalorder %s67, %s83
      %p85 = scmp.eq.s32.totalorder %s19, 0
      %p86 = por %p84, %p85
      %p87 = scmp.le.s32.totalorder 1, %s13
      %p88 = scmp.lt.s32.totalorder %s13, 5
      %p89 = pnand %p87, %p88
      %p90 = pneg %p89
      // Predicated region
      $region9: #{tpu_custom_call.1} parent=5 // pred_check
        _
      $region10: #{tpu_custom_call.1} parent=5 // pred_check_branch
        %92 = sbr.rel (%p89) target = $region12
      $region11: #{tpu_custom_call.1} parent=5 // pred_region
        %s93 = ssub.s32 %s13, 1
      $region12: #{tpu_custom_call.1} parent=5 // pred_fallthru
        _
      %p94 = scmp.lt.s32.totalorder %s13, 4
      // Predicated region
      $region13: #{tpu_custom_call.1} parent=5 // pred_check
        %p95 = pneg %p94
      $region14: #{tpu_custom_call.1} parent=5 // pred_check_branch
        %97 = sbr.rel (%p95) target = $region16
      $region15: #{tpu_custom_call.1} parent=5 // pred_region
        // Predicated region
        $region17: #{tpu_custom_call.1} parent=15 // pred_check
          %p98 = pneg %p47
        $region18: #{tpu_custom_call.1} parent=15 // pred_check_branch
          %100 = sbr.rel (%p98) target = $region20
        $region19: #{tpu_custom_call.1} parent=15 // pred_region
          %s101 = sand.u32 %s37, 1
          %s102 = scalar_lea.sflag [#allocation4], %s101
          %s103 = sand.u32 %s37, 1
          %s104 = smul.addr %s103, 2048
          %s105 = scalar_lea.vmem [#allocation3], %s104
          %s106 = smul.u32 8, %s20
          %s107 = smul.u32 2, %s21
          %s108 = ssub.s32 3, %s107
          %p109 = scmp.lt.s32.totalorder %s108, 2
          %s110 = scalar_select %p109, %s108, 2
          %s111 = smul.u32 16384, %s110
          %s113 = ssub.s32 32768, %s111
          %114 = vsyncadd %s102, %s113
          %p115 = scmp.ne.s32.totalorder 0, %s111
          %s116 = smul.addr %s106, 96
          %s117 = sadd.s32 %s107, %s116
          %s118 = smul.addr %s117, 64
          %s119 = scalar_lea.hbm %s0, %s118
          %s120 = smul.u32 %s110, 4
          %s121 = smul.u32 %s120, 256
          %s122 = sshll.u32 %s105, 4
          %s123 = int_to_ptr.vmem [resolvable:$true] %s122
          %s124 = sshll.u32 %s121, 4
          %128 = dma.hbm_to_vmem [thread:$0]  (%p115), %s119, %s124, %s123, %s102, 192, 128, %s120
        $region20: #{tpu_custom_call.1} parent=15 // pred_fallthru
          _
      $region16: #{tpu_custom_call.1} parent=5 // pred_fallthru
        _
      %p129 = scmp.le.s32.totalorder 1, %s13
      %p130 = scmp.lt.s32.totalorder %s13, 5
      %p131 = pnand %p129, %p130
      %p132 = pneg %p131
      // Predicated region
      $region21: #{tpu_custom_call.1} parent=5 // pred_check
        _
      $region22: #{tpu_custom_call.1} parent=5 // pred_check_branch
        %134 = sbr.rel (%p131) target = $region24
      $region23: #{tpu_custom_call.1} parent=5 // pred_region
        %s135 = ssub.s32 %s13, 1
        %s136 = sand.u32 %s40, 1
        %s137 = scalar_lea.sflag [#allocation4], %s136
        %s138 = sand.u32 %s40, 1
        %s139 = smul.addr %s138, 2048
        %s140 = scalar_lea.vmem [#allocation3], %s139
        // Predicated region
        $region25: #{tpu_custom_call.1} parent=23 // pred_check
          %p141 = pneg %p53
        $region26: #{tpu_custom_call.1} parent=23 // pred_check_branch
          %143 = sbr.rel (%p141) target = $region28
        $region27: #{tpu_custom_call.1} parent=23 // pred_region
          %144 = dma.done %s137, 32768
        $region28: #{tpu_custom_call.1} parent=23 // pred_fallthru
          _
        %s145 = sand.u32 %s40, 1
        %s146 = scalar_lea.sflag [#allocation4], %s145
        %s147 = sand.u32 %s40, 1
        %s148 = smul.addr %s147, 2048
        %s149 = scalar_lea.vmem [#allocation3], %s148
        %p150 = pneg %p53
        %p151 = pneg %p50
        %p152 = pneg %p79
        %p153 = pneg %p76
        %s154 = sand.u32 %s66, 1
        %s155 = scalar_lea.sflag [#allocation5], %s154
        %s156 = sand.u32 %s66, 1
        %s157 = smul.addr %s156, 16
        %s158 = scalar_lea.vmem [#allocation6], %s157
        %s159 = smul.u32 8, %s22
        %s160 = smul.u32 2, %s23
        %s161 = ssub.s32 3, %s160
        %p162 = scmp.lt.s32.totalorder %s161, 2
        %s163 = scalar_select %p162, %s161, 2
        %s164 = smul.u32 16384, %s163
        %p165 = scmp.eq.s32.totalorder %s23, 0
        // Predicated region
        $region29: #{tpu_custom_call.1} parent=23 // pred_check
          %p166 = pneg %p165
        $region30: #{tpu_custom_call.1} parent=23 // pred_check_branch
          %168 = sbr.rel (%p166) target = $region32
        $region31: #{tpu_custom_call.1} parent=23 // pred_region
          %169 = vst [vmem:[#allocation2] sm:$0xff] 0.0
          %170 = vst [vmem:[#allocation2 + $0x8] sm:$0xff] 0.0
          %171 = vst [vmem:[#allocation2 + $0x10] sm:$0xff] 0.0
          %172 = vst [vmem:[#allocation2 + $0x18] sm:$0xff] 0.0
          %173 = vst [vmem:[#allocation2 + $0x20] sm:$0xff] 0.0
          %174 = vst [vmem:[#allocation2 + $0x28] sm:$0xff] 0.0
          %175 = vst [vmem:[#allocation2 + $0x30] sm:$0xff] 0.0
          %176 = vst [vmem:[#allocation2 + $0x38] sm:$0xff] 0.0
          %177 = vst [vmem:[#allocation2 + $0x40] sm:$0xff] 0.0
          %178 = vst [vmem:[#allocation2 + $0x48] sm:$0xff] 0.0
          %179 = vst [vmem:[#allocation2 + $0x50] sm:$0xff] 0.0
          %180 = vst [vmem:[#allocation2 + $0x58] sm:$0xff] 0.0
          %181 = vst [vmem:[#allocation2 + $0x60] sm:$0xff] 0.0
          %182 = vst [vmem:[#allocation2 + $0x68] sm:$0xff] 0.0
          %183 = vst [vmem:[#allocation2 + $0x70] sm:$0xff] 0.0
          %184 = vst [vmem:[#allocation2 + $0x78] sm:$0xff] 0.0
          %185 = vst [vmem:[#allocation2 + $0x80] sm:$0xff] 0.0
          %186 = vst [vmem:[#allocation2 + $0x88] sm:$0xff] 0.0
          %187 = vst [vmem:[#allocation2 + $0x90] sm:$0xff] 0.0
          %188 = vst [vmem:[#allocation2 + $0x98] sm:$0xff] 0.0
          %189 = vst [vmem:[#allocation2 + $0xa0] sm:$0xff] 0.0
          %190 = vst [vmem:[#allocation2 + $0xa8] sm:$0xff] 0.0
          %191 = vst [vmem:[#allocation2 + $0xb0] sm:$0xff] 0.0
          %192 = vst [vmem:[#allocation2 + $0xb8] sm:$0xff] 0.0
          %193 = vst [vmem:[#allocation2 + $0xc0] sm:$0xff] 0.0
          %194 = vst [vmem:[#allocation2 + $0xc8] sm:$0xff] 0.0
          %195 = vst [vmem:[#allocation2 + $0xd0] sm:$0xff] 0.0
          %196 = vst [vmem:[#allocation2 + $0xd8] sm:$0xff] 0.0
          %197 = vst [vmem:[#allocation2 + $0xe0] sm:$0xff] 0.0
          %198 = vst [vmem:[#allocation2 + $0xe8] sm:$0xff] 0.0
          %199 = vst [vmem:[#allocation2 + $0xf0] sm:$0xff] 0.0
          %200 = vst [vmem:[#allocation2 + $0xf8] sm:$0xff] 0.0
          %201 = vst [vmem:[#allocation2 + $0x100] sm:$0xff] 0.0
          %202 = vst [vmem:[#allocation2 + $0x108] sm:$0xff] 0.0
          %203 = vst [vmem:[#allocation2 + $0x110] sm:$0xff] 0.0
          %204 = vst [vmem:[#allocation2 + $0x118] sm:$0xff] 0.0
          %205 = vst [vmem:[#allocation2 + $0x120] sm:$0xff] 0.0
          %206 = vst [vmem:[#allocation2 + $0x128] sm:$0xff] 0.0
          %207 = vst [vmem:[#allocation2 + $0x130] sm:$0xff] 0.0
          %208 = vst [vmem:[#allocation2 + $0x138] sm:$0xff] 0.0
          %209 = vst [vmem:[#allocation2 + $0x140] sm:$0xff] 0.0
          %210 = vst [vmem:[#allocation2 + $0x148] sm:$0xff] 0.0
          %211 = vst [vmem:[#allocation2 + $0x150] sm:$0xff] 0.0
          %212 = vst [vmem:[#allocation2 + $0x158] sm:$0xff] 0.0
          %213 = vst [vmem:[#allocation2 + $0x160] sm:$0xff] 0.0
          %214 = vst [vmem:[#allocation2 + $0x168] sm:$0xff] 0.0
          %215 = vst [vmem:[#allocation2 + $0x170] sm:$0xff] 0.0
          %216 = vst [vmem:[#allocation2 + $0x178] sm:$0xff] 0.0
          %217 = vst [vmem:[#allocation2 + $0x180] sm:$0xff] 0.0
          %218 = vst [vmem:[#allocation2 + $0x188] sm:$0xff] 0.0
          %219 = vst [vmem:[#allocation2 + $0x190] sm:$0xff] 0.0
          %220 = vst [vmem:[#allocation2 + $0x198] sm:$0xff] 0.0
          %221 = vst [vmem:[#allocation2 + $0x1a0] sm:$0xff] 0.0
          %222 = vst [vmem:[#allocation2 + $0x1a8] sm:$0xff] 0.0
          %223 = vst [vmem:[#allocation2 + $0x1b0] sm:$0xff] 0.0
          %224 = vst [vmem:[#allocation2 + $0x1b8] sm:$0xff] 0.0
          %225 = vst [vmem:[#allocation2 + $0x1c0] sm:$0xff] 0.0
          %226 = vst [vmem:[#allocation2 + $0x1c8] sm:$0xff] 0.0
          %227 = vst [vmem:[#allocation2 + $0x1d0] sm:$0xff] 0.0
          %228 = vst [vmem:[#allocation2 + $0x1d8] sm:$0xff] 0.0
          %229 = vst [vmem:[#allocation2 + $0x1e0] sm:$0xff] 0.0
          %230 = vst [vmem:[#allocation2 + $0x1e8] sm:$0xff] 0.0
          %231 = vst [vmem:[#allocation2 + $0x1f0] sm:$0xff] 0.0
          %232 = vst [vmem:[#allocation2 + $0x1f8] sm:$0xff] 0.0
          %233 = vst [vmem:[#allocation2 + $0x200] sm:$0xff] 0.0
          %234 = vst [vmem:[#allocation2 + $0x208] sm:$0xff] 0.0
          %235 = vst [vmem:[#allocation2 + $0x210] sm:$0xff] 0.0
          %236 = vst [vmem:[#allocation2 + $0x218] sm:$0xff] 0.0
          %237 = vst [vmem:[#allocation2 + $0x220] sm:$0xff] 0.0
          %238 = vst [vmem:[#allocation2 + $0x228] sm:$0xff] 0.0
          %239 = vst [vmem:[#allocation2 + $0x230] sm:$0xff] 0.0
          %240 = vst [vmem:[#allocation2 + $0x238] sm:$0xff] 0.0
          %241 = vst [vmem:[#allocation2 + $0x240] sm:$0xff] 0.0
          %242 = vst [vmem:[#allocation2 + $0x248] sm:$0xff] 0.0
          %243 = vst [vmem:[#allocation2 + $0x250] sm:$0xff] 0.0
          %244 = vst [vmem:[#allocation2 + $0x258] sm:$0xff] 0.0
          %245 = vst [vmem:[#allocation2 + $0x260] sm:$0xff] 0.0
          %246 = vst [vmem:[#allocation2 + $0x268] sm:$0xff] 0.0
          %247 = vst [vmem:[#allocation2 + $0x270] sm:$0xff] 0.0
          %248 = vst [vmem:[#allocation2 + $0x278] sm:$0xff] 0.0
          %249 = vst [vmem:[#allocation2 + $0x280] sm:$0xff] 0.0
          %250 = vst [vmem:[#allocation2 + $0x288] sm:$0xff] 0.0
          %251 = vst [vmem:[#allocation2 + $0x290] sm:$0xff] 0.0
          %252 = vst [vmem:[#allocation2 + $0x298] sm:$0xff] 0.0
          %253 = vst [vmem:[#allocation2 + $0x2a0] sm:$0xff] 0.0
          %254 = vst [vmem:[#allocation2 + $0x2a8] sm:$0xff] 0.0
          %255 = vst [vmem:[#allocation2 + $0x2b0] sm:$0xff] 0.0
          %256 = vst [vmem:[#allocation2 + $0x2b8] sm:$0xff] 0.0
          %257 = vst [vmem:[#allocation2 + $0x2c0] sm:$0xff] 0.0
          %258 = vst [vmem:[#allocation2 + $0x2c8] sm:$0xff] 0.0
          %259 = vst [vmem:[#allocation2 + $0x2d0] sm:$0xff] 0.0
          %260 = vst [vmem:[#allocation2 + $0x2d8] sm:$0xff] 0.0
          %261 = vst [vmem:[#allocation2 + $0x2e0] sm:$0xff] 0.0
          %262 = vst [vmem:[#allocation2 + $0x2e8] sm:$0xff] 0.0
          %263 = vst [vmem:[#allocation2 + $0x2f0] sm:$0xff] 0.0
          %264 = vst [vmem:[#allocation2 + $0x2f8] sm:$0xff] 0.0
          %265 = vst [vmem:[#allocation2 + $0x300] sm:$0xff] 0.0
          %266 = vst [vmem:[#allocation2 + $0x308] sm:$0xff] 0.0
          %267 = vst [vmem:[#allocation2 + $0x310] sm:$0xff] 0.0
          %268 = vst [vmem:[#allocation2 + $0x318] sm:$0xff] 0.0
          %269 = vst [vmem:[#allocation2 + $0x320] sm:$0xff] 0.0
          %270 = vst [vmem:[#allocation2 + $0x328] sm:$0xff] 0.0
          %271 = vst [vmem:[#allocation2 + $0x330] sm:$0xff] 0.0
          %272 = vst [vmem:[#allocation2 + $0x338] sm:$0xff] 0.0
          %273 = vst [vmem:[#allocation2 + $0x340] sm:$0xff] 0.0
          %274 = vst [vmem:[#allocation2 + $0x348] sm:$0xff] 0.0
          %275 = vst [vmem:[#allocation2 + $0x350] sm:$0xff] 0.0
          %276 = vst [vmem:[#allocation2 + $0x358] sm:$0xff] 0.0
          %277 = vst [vmem:[#allocation2 + $0x360] sm:$0xff] 0.0
          %278 = vst [vmem:[#allocation2 + $0x368] sm:$0xff] 0.0
          %279 = vst [vmem:[#allocation2 + $0x370] sm:$0xff] 0.0
          %280 = vst [vmem:[#allocation2 + $0x378] sm:$0xff] 0.0
          %281 = vst [vmem:[#allocation2 + $0x380] sm:$0xff] 0.0
          %282 = vst [vmem:[#allocation2 + $0x388] sm:$0xff] 0.0
          %283 = vst [vmem:[#allocation2 + $0x390] sm:$0xff] 0.0
          %284 = vst [vmem:[#allocation2 + $0x398] sm:$0xff] 0.0
          %285 = vst [vmem:[#allocation2 + $0x3a0] sm:$0xff] 0.0
          %286 = vst [vmem:[#allocation2 + $0x3a8] sm:$0xff] 0.0
          %287 = vst [vmem:[#allocation2 + $0x3b0] sm:$0xff] 0.0
          %288 = vst [vmem:[#allocation2 + $0x3b8] sm:$0xff] 0.0
          %289 = vst [vmem:[#allocation2 + $0x3c0] sm:$0xff] 0.0
          %290 = vst [vmem:[#allocation2 + $0x3c8] sm:$0xff] 0.0
          %291 = vst [vmem:[#allocation2 + $0x3d0] sm:$0xff] 0.0
          %292 = vst [vmem:[#allocation2 + $0x3d8] sm:$0xff] 0.0
          %293 = vst [vmem:[#allocation2 + $0x3e0] sm:$0xff] 0.0
          %294 = vst [vmem:[#allocation2 + $0x3e8] sm:$0xff] 0.0
          %295 = vst [vmem:[#allocation2 + $0x3f0] sm:$0xff] 0.0
          %296 = vst [vmem:[#allocation2 + $0x3f8] sm:$0xff] 0.0
          %297 = vst [vmem:[#allocation2 + $0x400] sm:$0xff] 0.0
          %298 = vst [vmem:[#allocation2 + $0x408] sm:$0xff] 0.0
          %299 = vst [vmem:[#allocation2 + $0x410] sm:$0xff] 0.0
          %300 = vst [vmem:[#allocation2 + $0x418] sm:$0xff] 0.0
          %301 = vst [vmem:[#allocation2 + $0x420] sm:$0xff] 0.0
          %302 = vst [vmem:[#allocation2 + $0x428] sm:$0xff] 0.0
          %303 = vst [vmem:[#allocation2 + $0x430] sm:$0xff] 0.0
          %304 = vst [vmem:[#allocation2 + $0x438] sm:$0xff] 0.0
          %305 = vst [vmem:[#allocation2 + $0x440] sm:$0xff] 0.0
          %306 = vst [vmem:[#allocation2 + $0x448] sm:$0xff] 0.0
          %307 = vst [vmem:[#allocation2 + $0x450] sm:$0xff] 0.0
          %308 = vst [vmem:[#allocation2 + $0x458] sm:$0xff] 0.0
          %309 = vst [vmem:[#allocation2 + $0x460] sm:$0xff] 0.0
          %310 = vst [vmem:[#allocation2 + $0x468] sm:$0xff] 0.0
          %311 = vst [vmem:[#allocation2 + $0x470] sm:$0xff] 0.0
          %312 = vst [vmem:[#allocation2 + $0x478] sm:$0xff] 0.0
          %313 = vst [vmem:[#allocation2 + $0x480] sm:$0xff] 0.0
          %314 = vst [vmem:[#allocation2 + $0x488] sm:$0xff] 0.0
          %315 = vst [vmem:[#allocation2 + $0x490] sm:$0xff] 0.0
          %316 = vst [vmem:[#allocation2 + $0x498] sm:$0xff] 0.0
          %317 = vst [vmem:[#allocation2 + $0x4a0] sm:$0xff] 0.0
          %318 = vst [vmem:[#allocation2 + $0x4a8] sm:$0xff] 0.0
          %319 = vst [vmem:[#allocation2 + $0x4b0] sm:$0xff] 0.0
          %320 = vst [vmem:[#allocation2 + $0x4b8] sm:$0xff] 0.0
          %321 = vst [vmem:[#allocation2 + $0x4c0] sm:$0xff] 0.0
          %322 = vst [vmem:[#allocation2 + $0x4c8] sm:$0xff] 0.0
          %323 = vst [vmem:[#allocation2 + $0x4d0] sm:$0xff] 0.0
          %324 = vst [vmem:[#allocation2 + $0x4d8] sm:$0xff] 0.0
          %325 = vst [vmem:[#allocation2 + $0x4e0] sm:$0xff] 0.0
          %326 = vst [vmem:[#allocation2 + $0x4e8] sm:$0xff] 0.0
          %327 = vst [vmem:[#allocation2 + $0x4f0] sm:$0xff] 0.0
          %328 = vst [vmem:[#allocation2 + $0x4f8] sm:$0xff] 0.0
          %329 = vst [vmem:[#allocation2 + $0x500] sm:$0xff] 0.0
          %330 = vst [vmem:[#allocation2 + $0x508] sm:$0xff] 0.0
          %331 = vst [vmem:[#allocation2 + $0x510] sm:$0xff] 0.0
          %332 = vst [vmem:[#allocation2 + $0x518] sm:$0xff] 0.0
          %333 = vst [vmem:[#allocation2 + $0x520] sm:$0xff] 0.0
          %334 = vst [vmem:[#allocation2 + $0x528] sm:$0xff] 0.0
          %335 = vst [vmem:[#allocation2 + $0x530] sm:$0xff] 0.0
          %336 = vst [vmem:[#allocation2 + $0x538] sm:$0xff] 0.0
          %337 = vst [vmem:[#allocation2 + $0x540] sm:$0xff] 0.0
          %338 = vst [vmem:[#allocation2 + $0x548] sm:$0xff] 0.0
          %339 = vst [vmem:[#allocation2 + $0x550] sm:$0xff] 0.0
          %340 = vst [vmem:[#allocation2 + $0x558] sm:$0xff] 0.0
          %341 = vst [vmem:[#allocation2 + $0x560] sm:$0xff] 0.0
          %342 = vst [vmem:[#allocation2 + $0x568] sm:$0xff] 0.0
          %343 = vst [vmem:[#allocation2 + $0x570] sm:$0xff] 0.0
          %344 = vst [vmem:[#allocation2 + $0x578] sm:$0xff] 0.0
          %345 = vst [vmem:[#allocation2 + $0x580] sm:$0xff] 0.0
          %346 = vst [vmem:[#allocation2 + $0x588] sm:$0xff] 0.0
          %347 = vst [vmem:[#allocation2 + $0x590] sm:$0xff] 0.0
          %348 = vst [vmem:[#allocation2 + $0x598] sm:$0xff] 0.0
          %349 = vst [vmem:[#allocation2 + $0x5a0] sm:$0xff] 0.0
          %350 = vst [vmem:[#allocation2 + $0x5a8] sm:$0xff] 0.0
          %351 = vst [vmem:[#allocation2 + $0x5b0] sm:$0xff] 0.0
          %352 = vst [vmem:[#allocation2 + $0x5b8] sm:$0xff] 0.0
          %353 = vst [vmem:[#allocation2 + $0x5c0] sm:$0xff] 0.0
          %354 = vst [vmem:[#allocation2 + $0x5c8] sm:$0xff] 0.0
          %355 = vst [vmem:[#allocation2 + $0x5d0] sm:$0xff] 0.0
          %356 = vst [vmem:[#allocation2 + $0x5d8] sm:$0xff] 0.0
          %357 = vst [vmem:[#allocation2 + $0x5e0] sm:$0xff] 0.0
          %358 = vst [vmem:[#allocation2 + $0x5e8] sm:$0xff] 0.0
          %359 = vst [vmem:[#allocation2 + $0x5f0] sm:$0xff] 0.0
          %360 = vst [vmem:[#allocation2 + $0x5f8] sm:$0xff] 0.0
          %361 = vst [vmem:[#allocation2 + $0x600] sm:$0xff] 0.0
          %362 = vst [vmem:[#allocation2 + $0x608] sm:$0xff] 0.0
          %363 = vst [vmem:[#allocation2 + $0x610] sm:$0xff] 0.0
          %364 = vst [vmem:[#allocation2 + $0x618] sm:$0xff] 0.0
          %365 = vst [vmem:[#allocation2 + $0x620] sm:$0xff] 0.0
          %366 = vst [vmem:[#allocation2 + $0x628] sm:$0xff] 0.0
          %367 = vst [vmem:[#allocation2 + $0x630] sm:$0xff] 0.0
          %368 = vst [vmem:[#allocation2 + $0x638] sm:$0xff] 0.0
          %369 = vst [vmem:[#allocation2 + $0x640] sm:$0xff] 0.0
          %370 = vst [vmem:[#allocation2 + $0x648] sm:$0xff] 0.0
          %371 = vst [vmem:[#allocation2 + $0x650] sm:$0xff] 0.0
          %372 = vst [vmem:[#allocation2 + $0x658] sm:$0xff] 0.0
          %373 = vst [vmem:[#allocation2 + $0x660] sm:$0xff] 0.0
          %374 = vst [vmem:[#allocation2 + $0x668] sm:$0xff] 0.0
          %375 = vst [vmem:[#allocation2 + $0x670] sm:$0xff] 0.0
          %376 = vst [vmem:[#allocation2 + $0x678] sm:$0xff] 0.0
          %377 = vst [vmem:[#allocation2 + $0x680] sm:$0xff] 0.0
          %378 = vst [vmem:[#allocation2 + $0x688] sm:$0xff] 0.0
          %379 = vst [vmem:[#allocation2 + $0x690] sm:$0xff] 0.0
          %380 = vst [vmem:[#allocation2 + $0x698] sm:$0xff] 0.0
          %381 = vst [vmem:[#allocation2 + $0x6a0] sm:$0xff] 0.0
          %382 = vst [vmem:[#allocation2 + $0x6a8] sm:$0xff] 0.0
          %383 = vst [vmem:[#allocation2 + $0x6b0] sm:$0xff] 0.0
          %384 = vst [vmem:[#allocation2 + $0x6b8] sm:$0xff] 0.0
          %385 = vst [vmem:[#allocation2 + $0x6c0] sm:$0xff] 0.0
          %386 = vst [vmem:[#allocation2 + $0x6c8] sm:$0xff] 0.0
          %387 = vst [vmem:[#allocation2 + $0x6d0] sm:$0xff] 0.0
          %388 = vst [vmem:[#allocation2 + $0x6d8] sm:$0xff] 0.0
          %389 = vst [vmem:[#allocation2 + $0x6e0] sm:$0xff] 0.0
          %390 = vst [vmem:[#allocation2 + $0x6e8] sm:$0xff] 0.0
          %391 = vst [vmem:[#allocation2 + $0x6f0] sm:$0xff] 0.0
          %392 = vst [vmem:[#allocation2 + $0x6f8] sm:$0xff] 0.0
          %393 = vst [vmem:[#allocation2 + $0x700] sm:$0xff] 0.0
          %394 = vst [vmem:[#allocation2 + $0x708] sm:$0xff] 0.0
          %395 = vst [vmem:[#allocation2 + $0x710] sm:$0xff] 0.0
          %396 = vst [vmem:[#allocation2 + $0x718] sm:$0xff] 0.0
          %397 = vst [vmem:[#allocation2 + $0x720] sm:$0xff] 0.0
          %398 = vst [vmem:[#allocation2 + $0x728] sm:$0xff] 0.0
          %399 = vst [vmem:[#allocation2 + $0x730] sm:$0xff] 0.0
          %400 = vst [vmem:[#allocation2 + $0x738] sm:$0xff] 0.0
          %401 = vst [vmem:[#allocation2 + $0x740] sm:$0xff] 0.0
          %402 = vst [vmem:[#allocation2 + $0x748] sm:$0xff] 0.0
          %403 = vst [vmem:[#allocation2 + $0x750] sm:$0xff] 0.0
          %404 = vst [vmem:[#allocation2 + $0x758] sm:$0xff] 0.0
          %405 = vst [vmem:[#allocation2 + $0x760] sm:$0xff] 0.0
          %406 = vst [vmem:[#allocation2 + $0x768] sm:$0xff] 0.0
          %407 = vst [vmem:[#allocation2 + $0x770] sm:$0xff] 0.0
          %408 = vst [vmem:[#allocation2 + $0x778] sm:$0xff] 0.0
          %409 = vst [vmem:[#allocation2 + $0x780] sm:$0xff] 0.0
          %410 = vst [vmem:[#allocation2 + $0x788] sm:$0xff] 0.0
          %411 = vst [vmem:[#allocation2 + $0x790] sm:$0xff] 0.0
          %412 = vst [vmem:[#allocation2 + $0x798] sm:$0xff] 0.0
          %413 = vst [vmem:[#allocation2 + $0x7a0] sm:$0xff] 0.0
          %414 = vst [vmem:[#allocation2 + $0x7a8] sm:$0xff] 0.0
          %415 = vst [vmem:[#allocation2 + $0x7b0] sm:$0xff] 0.0
          %416 = vst [vmem:[#allocation2 + $0x7b8] sm:$0xff] 0.0
          %417 = vst [vmem:[#allocation2 + $0x7c0] sm:$0xff] 0.0
          %418 = vst [vmem:[#allocation2 + $0x7c8] sm:$0xff] 0.0
          %419 = vst [vmem:[#allocation2 + $0x7d0] sm:$0xff] 0.0
          %420 = vst [vmem:[#allocation2 + $0x7d8] sm:$0xff] 0.0
          %421 = vst [vmem:[#allocation2 + $0x7e0] sm:$0xff] 0.0
          %422 = vst [vmem:[#allocation2 + $0x7e8] sm:$0xff] 0.0
          %423 = vst [vmem:[#allocation2 + $0x7f0] sm:$0xff] 0.0
          %424 = vst [vmem:[#allocation2 + $0x7f8] sm:$0xff] 0.0
        $region32: #{tpu_custom_call.1} parent=23 // pred_fallthru
          _
        %s425 = smul.u32 %s23, 256
        %v426 = vlaneseq
        %v427 = vand.u32 %v426, 127
        %v428 = vld [vmem:[%s140] sm:$0xf]
        %v429 = vld [vmem:[%s140 + $0x8] sm:$0xf]
        %v430 = vld [vmem:[%s140 + $0x10] sm:$0xf]
        %v431 = vld [vmem:[%s140 + $0x18] sm:$0xf]
        %v432 = vld [vmem:[%s140 + $0x20] sm:$0xf]
        %v433 = vld [vmem:[%s140 + $0x28] sm:$0xf]
        %v434 = vld [vmem:[%s140 + $0x30] sm:$0xf]
        %v435 = vld [vmem:[%s140 + $0x38] sm:$0xf]
        %v436 = vld [vmem:[%s140 + $0x40] sm:$0xf]
        %v437 = vld [vmem:[%s140 + $0x48] sm:$0xf]
        %v438 = vld [vmem:[%s140 + $0x50] sm:$0xf]
        %v439 = vld [vmem:[%s140 + $0x58] sm:$0xf]
        %v440 = vld [vmem:[%s140 + $0x60] sm:$0xf]
        %v441 = vld [vmem:[%s140 + $0x68] sm:$0xf]
        %v442 = vld [vmem:[%s140 + $0x70] sm:$0xf]
        %v443 = vld [vmem:[%s140 + $0x78] sm:$0xf]
        %v444 = vld [vmem:[%s140 + $0x80] sm:$0xf]
        %v445 = vld [vmem:[%s140 + $0x88] sm:$0xf]
        %v446 = vld [vmem:[%s140 + $0x90] sm:$0xf]
        %v447 = vld [vmem:[%s140 + $0x98] sm:$0xf]
        %v448 = vld [vmem:[%s140 + $0xa0] sm:$0xf]
        %v449 = vld [vmem:[%s140 + $0xa8] sm:$0xf]
        %v450 = vld [vmem:[%s140 + $0xb0] sm:$0xf]
        %v451 = vld [vmem:[%s140 + $0xb8] sm:$0xf]
        %v452 = vld [vmem:[%s140 + $0xc0] sm:$0xf]
        %v453 = vld [vmem:[%s140 + $0xc8] sm:$0xf]
        %v454 = vld [vmem:[%s140 + $0xd0] sm:$0xf]
        %v455 = vld [vmem:[%s140 + $0xd8] sm:$0xf]
        %v456 = vld [vmem:[%s140 + $0xe0] sm:$0xf]
        %v457 = vld [vmem:[%s140 + $0xe8] sm:$0xf]
        %v458 = vld [vmem:[%s140 + $0xf0] sm:$0xf]
        %v459 = vld [vmem:[%s140 + $0xf8] sm:$0xf]
        %v460 = vld [vmem:[%s140 + $0x100] sm:$0xf]
        %v461 = vld [vmem:[%s140 + $0x108] sm:$0xf]
        %v462 = vld [vmem:[%s140 + $0x110] sm:$0xf]
        %v463 = vld [vmem:[%s140 + $0x118] sm:$0xf]
        %v464 = vld [vmem:[%s140 + $0x120] sm:$0xf]
        %v465 = vld [vmem:[%s140 + $0x128] sm:$0xf]
        %v466 = vld [vmem:[%s140 + $0x130] sm:$0xf]
        %v467 = vld [vmem:[%s140 + $0x138] sm:$0xf]
        %v468 = vld [vmem:[%s140 + $0x140] sm:$0xf]
        %v469 = vld [vmem:[%s140 + $0x148] sm:$0xf]
        %v470 = vld [vmem:[%s140 + $0x150] sm:$0xf]
        %v471 = vld [vmem:[%s140 + $0x158] sm:$0xf]
        %v472 = vld [vmem:[%s140 + $0x160] sm:$0xf]
        %v473 = vld [vmem:[%s140 + $0x168] sm:$0xf]
        %v474 = vld [vmem:[%s140 + $0x170] sm:$0xf]
        %v475 = vld [vmem:[%s140 + $0x178] sm:$0xf]
        %v476 = vld [vmem:[%s140 + $0x180] sm:$0xf]
        %v477 = vld [vmem:[%s140 + $0x188] sm:$0xf]
        %v478 = vld [vmem:[%s140 + $0x190] sm:$0xf]
        %v479 = vld [vmem:[%s140 + $0x198] sm:$0xf]
        %v480 = vld [vmem:[%s140 + $0x1a0] sm:$0xf]
        %v481 = vld [vmem:[%s140 + $0x1a8] sm:$0xf]
        %v482 = vld [vmem:[%s140 + $0x1b0] sm:$0xf]
        %v483 = vld [vmem:[%s140 + $0x1b8] sm:$0xf]
        %v484 = vld [vmem:[%s140 + $0x1c0] sm:$0xf]
        %v485 = vld [vmem:[%s140 + $0x1c8] sm:$0xf]
        %v486 = vld [vmem:[%s140 + $0x1d0] sm:$0xf]
        %v487 = vld [vmem:[%s140 + $0x1d8] sm:$0xf]
        %v488 = vld [vmem:[%s140 + $0x1e0] sm:$0xf]
        %v489 = vld [vmem:[%s140 + $0x1e8] sm:$0xf]
        %v490 = vld [vmem:[%s140 + $0x1f0] sm:$0xf]
        %v491 = vld [vmem:[%s140 + $0x1f8] sm:$0xf]
        %v492 = vld [vmem:[%s140 + $0x200] sm:$0xf]
        %v493 = vld [vmem:[%s140 + $0x208] sm:$0xf]
        %v494 = vld [vmem:[%s140 + $0x210] sm:$0xf]
        %v495 = vld [vmem:[%s140 + $0x218] sm:$0xf]
        %v496 = vld [vmem:[%s140 + $0x220] sm:$0xf]
        %v497 = vld [vmem:[%s140 + $0x228] sm:$0xf]
        %v498 = vld [vmem:[%s140 + $0x230] sm:$0xf]
        %v499 = vld [vmem:[%s140 + $0x238] sm:$0xf]
        %v500 = vld [vmem:[%s140 + $0x240] sm:$0xf]
        %v501 = vld [vmem:[%s140 + $0x248] sm:$0xf]
        %v502 = vld [vmem:[%s140 + $0x250] sm:$0xf]
        %v503 = vld [vmem:[%s140 + $0x258] sm:$0xf]
        %v504 = vld [vmem:[%s140 + $0x260] sm:$0xf]
        %v505 = vld [vmem:[%s140 + $0x268] sm:$0xf]
        %v506 = vld [vmem:[%s140 + $0x270] sm:$0xf]
        %v507 = vld [vmem:[%s140 + $0x278] sm:$0xf]
        %v508 = vld [vmem:[%s140 + $0x280] sm:$0xf]
        %v509 = vld [vmem:[%s140 + $0x288] sm:$0xf]
        %v510 = vld [vmem:[%s140 + $0x290] sm:$0xf]
        %v511 = vld [vmem:[%s140 + $0x298] sm:$0xf]
        %v512 = vld [vmem:[%s140 + $0x2a0] sm:$0xf]
        %v513 = vld [vmem:[%s140 + $0x2a8] sm:$0xf]
        %v514 = vld [vmem:[%s140 + $0x2b0] sm:$0xf]
        %v515 = vld [vmem:[%s140 + $0x2b8] sm:$0xf]
        %v516 = vld [vmem:[%s140 + $0x2c0] sm:$0xf]
        %v517 = vld [vmem:[%s140 + $0x2c8] sm:$0xf]
        %v518 = vld [vmem:[%s140 + $0x2d0] sm:$0xf]
        %v519 = vld [vmem:[%s140 + $0x2d8] sm:$0xf]
        %v520 = vld [vmem:[%s140 + $0x2e0] sm:$0xf]
        %v521 = vld [vmem:[%s140 + $0x2e8] sm:$0xf]
        %v522 = vld [vmem:[%s140 + $0x2f0] sm:$0xf]
        %v523 = vld [vmem:[%s140 + $0x2f8] sm:$0xf]
        %v524 = vld [vmem:[%s140 + $0x300] sm:$0xf]
        %v525 = vld [vmem:[%s140 + $0x308] sm:$0xf]
        %v526 = vld [vmem:[%s140 + $0x310] sm:$0xf]
        %v527 = vld [vmem:[%s140 + $0x318] sm:$0xf]
        %v528 = vld [vmem:[%s140 + $0x320] sm:$0xf]
        %v529 = vld [vmem:[%s140 + $0x328] sm:$0xf]
        %v530 = vld [vmem:[%s140 + $0x330] sm:$0xf]
        %v531 = vld [vmem:[%s140 + $0x338] sm:$0xf]
        %v532 = vld [vmem:[%s140 + $0x340] sm:$0xf]
        %v533 = vld [vmem:[%s140 + $0x348] sm:$0xf]
        %v534 = vld [vmem:[%s140 + $0x350] sm:$0xf]
        %v535 = vld [vmem:[%s140 + $0x358] sm:$0xf]
        %v536 = vld [vmem:[%s140 + $0x360] sm:$0xf]
        %v537 = vld [vmem:[%s140 + $0x368] sm:$0xf]
        %v538 = vld [vmem:[%s140 + $0x370] sm:$0xf]
        %v539 = vld [vmem:[%s140 + $0x378] sm:$0xf]
        %v540 = vld [vmem:[%s140 + $0x380] sm:$0xf]
        %v541 = vld [vmem:[%s140 + $0x388] sm:$0xf]
        %v542 = vld [vmem:[%s140 + $0x390] sm:$0xf]
        %v543 = vld [vmem:[%s140 + $0x398] sm:$0xf]
        %v544 = vld [vmem:[%s140 + $0x3a0] sm:$0xf]
        %v545 = vld [vmem:[%s140 + $0x3a8] sm:$0xf]
        %v546 = vld [vmem:[%s140 + $0x3b0] sm:$0xf]
        %v547 = vld [vmem:[%s140 + $0x3b8] sm:$0xf]
        %v548 = vld [vmem:[%s140 + $0x3c0] sm:$0xf]
        %v549 = vld [vmem:[%s140 + $0x3c8] sm:$0xf]
        %v550 = vld [vmem:[%s140 + $0x3d0] sm:$0xf]
        %v551 = vld [vmem:[%s140 + $0x3d8] sm:$0xf]
        %v552 = vld [vmem:[%s140 + $0x3e0] sm:$0xf]
        %v553 = vld [vmem:[%s140 + $0x3e8] sm:$0xf]
        %v554 = vld [vmem:[%s140 + $0x3f0] sm:$0xf]
        %v555 = vld [vmem:[%s140 + $0x3f8] sm:$0xf]
        %v556 = vld [vmem:[%s140 + $0x400] sm:$0xf]
        %v557 = vld [vmem:[%s140 + $0x408] sm:$0xf]
        %v558 = vld [vmem:[%s140 + $0x410] sm:$0xf]
        %v559 = vld [vmem:[%s140 + $0x418] sm:$0xf]
        %v560 = vld [vmem:[%s140 + $0x420] sm:$0xf]
        %v561 = vld [vmem:[%s140 + $0x428] sm:$0xf]
        %v562 = vld [vmem:[%s140 + $0x430] sm:$0xf]
        %v563 = vld [vmem:[%s140 + $0x438] sm:$0xf]
        %v564 = vld [vmem:[%s140 + $0x440] sm:$0xf]
        %v565 = vld [vmem:[%s140 + $0x448] sm:$0xf]
        %v566 = vld [vmem:[%s140 + $0x450] sm:$0xf]
        %v567 = vld [vmem:[%s140 + $0x458] sm:$0xf]
        %v568 = vld [vmem:[%s140 + $0x460] sm:$0xf]
        %v569 = vld [vmem:[%s140 + $0x468] sm:$0xf]
        %v570 = vld [vmem:[%s140 + $0x470] sm:$0xf]
        %v571 = vld [vmem:[%s140 + $0x478] sm:$0xf]
        %v572 = vld [vmem:[%s140 + $0x480] sm:$0xf]
        %v573 = vld [vmem:[%s140 + $0x488] sm:$0xf]
        %v574 = vld [vmem:[%s140 + $0x490] sm:$0xf]
        %v575 = vld [vmem:[%s140 + $0x498] sm:$0xf]
        %v576 = vld [vmem:[%s140 + $0x4a0] sm:$0xf]
        %v577 = vld [vmem:[%s140 + $0x4a8] sm:$0xf]
        %v578 = vld [vmem:[%s140 + $0x4b0] sm:$0xf]
        %v579 = vld [vmem:[%s140 + $0x4b8] sm:$0xf]
        %v580 = vld [vmem:[%s140 + $0x4c0] sm:$0xf]
        %v581 = vld [vmem:[%s140 + $0x4c8] sm:$0xf]
        %v582 = vld [vmem:[%s140 + $0x4d0] sm:$0xf]
        %v583 = vld [vmem:[%s140 + $0x4d8] sm:$0xf]
        %v584 = vld [vmem:[%s140 + $0x4e0] sm:$0xf]
        %v585 = vld [vmem:[%s140 + $0x4e8] sm:$0xf]
        %v586 = vld [vmem:[%s140 + $0x4f0] sm:$0xf]
        %v587 = vld [vmem:[%s140 + $0x4f8] sm:$0xf]
        %v588 = vld [vmem:[%s140 + $0x500] sm:$0xf]
        %v589 = vld [vmem:[%s140 + $0x508] sm:$0xf]
        %v590 = vld [vmem:[%s140 + $0x510] sm:$0xf]
        %v591 = vld [vmem:[%s140 + $0x518] sm:$0xf]
        %v592 = vld [vmem:[%s140 + $0x520] sm:$0xf]
        %v593 = vld [vmem:[%s140 + $0x528] sm:$0xf]
        %v594 = vld [vmem:[%s140 + $0x530] sm:$0xf]
        %v595 = vld [vmem:[%s140 + $0x538] sm:$0xf]
        %v596 = vld [vmem:[%s140 + $0x540] sm:$0xf]
        %v597 = vld [vmem:[%s140 + $0x548] sm:$0xf]
        %v598 = vld [vmem:[%s140 + $0x550] sm:$0xf]
        %v599 = vld [vmem:[%s140 + $0x558] sm:$0xf]
        %v600 = vld [vmem:[%s140 + $0x560] sm:$0xf]
        %v601 = vld [vmem:[%s140 + $0x568] sm:$0xf]
        %v602 = vld [vmem:[%s140 + $0x570] sm:$0xf]
        %v603 = vld [vmem:[%s140 + $0x578] sm:$0xf]
        %v604 = vld [vmem:[%s140 + $0x580] sm:$0xf]
        %v605 = vld [vmem:[%s140 + $0x588] sm:$0xf]
        %v606 = vld [vmem:[%s140 + $0x590] sm:$0xf]
        %v607 = vld [vmem:[%s140 + $0x598] sm:$0xf]
        %v608 = vld [vmem:[%s140 + $0x5a0] sm:$0xf]
        %v609 = vld [vmem:[%s140 + $0x5a8] sm:$0xf]
        %v610 = vld [vmem:[%s140 + $0x5b0] sm:$0xf]
        %v611 = vld [vmem:[%s140 + $0x5b8] sm:$0xf]
        %v612 = vld [vmem:[%s140 + $0x5c0] sm:$0xf]
        %v613 = vld [vmem:[%s140 + $0x5c8] sm:$0xf]
        %v614 = vld [vmem:[%s140 + $0x5d0] sm:$0xf]
        %v615 = vld [vmem:[%s140 + $0x5d8] sm:$0xf]
        %v616 = vld [vmem:[%s140 + $0x5e0] sm:$0xf]
        %v617 = vld [vmem:[%s140 + $0x5e8] sm:$0xf]
        %v618 = vld [vmem:[%s140 + $0x5f0] sm:$0xf]
        %v619 = vld [vmem:[%s140 + $0x5f8] sm:$0xf]
        %v620 = vld [vmem:[%s140 + $0x600] sm:$0xf]
        %v621 = vld [vmem:[%s140 + $0x608] sm:$0xf]
        %v622 = vld [vmem:[%s140 + $0x610] sm:$0xf]
        %v623 = vld [vmem:[%s140 + $0x618] sm:$0xf]
        %v624 = vld [vmem:[%s140 + $0x620] sm:$0xf]
        %v625 = vld [vmem:[%s140 + $0x628] sm:$0xf]
        %v626 = vld [vmem:[%s140 + $0x630] sm:$0xf]
        %v627 = vld [vmem:[%s140 + $0x638] sm:$0xf]
        %v628 = vld [vmem:[%s140 + $0x640] sm:$0xf]
        %v629 = vld [vmem:[%s140 + $0x648] sm:$0xf]
        %v630 = vld [vmem:[%s140 + $0x650] sm:$0xf]
        %v631 = vld [vmem:[%s140 + $0x658] sm:$0xf]
        %v632 = vld [vmem:[%s140 + $0x660] sm:$0xf]
        %v633 = vld [vmem:[%s140 + $0x668] sm:$0xf]
        %v634 = vld [vmem:[%s140 + $0x670] sm:$0xf]
        %v635 = vld [vmem:[%s140 + $0x678] sm:$0xf]
        %v636 = vld [vmem:[%s140 + $0x680] sm:$0xf]
        %v637 = vld [vmem:[%s140 + $0x688] sm:$0xf]
        %v638 = vld [vmem:[%s140 + $0x690] sm:$0xf]
        %v639 = vld [vmem:[%s140 + $0x698] sm:$0xf]
        %v640 = vld [vmem:[%s140 + $0x6a0] sm:$0xf]
        %v641 = vld [vmem:[%s140 + $0x6a8] sm:$0xf]
        %v642 = vld [vmem:[%s140 + $0x6b0] sm:$0xf]
        %v643 = vld [vmem:[%s140 + $0x6b8] sm:$0xf]
        %v644 = vld [vmem:[%s140 + $0x6c0] sm:$0xf]
        %v645 = vld [vmem:[%s140 + $0x6c8] sm:$0xf]
        %v646 = vld [vmem:[%s140 + $0x6d0] sm:$0xf]
        %v647 = vld [vmem:[%s140 + $0x6d8] sm:$0xf]
        %v648 = vld [vmem:[%s140 + $0x6e0] sm:$0xf]
        %v649 = vld [vmem:[%s140 + $0x6e8] sm:$0xf]
        %v650 = vld [vmem:[%s140 + $0x6f0] sm:$0xf]
        %v651 = vld [vmem:[%s140 + $0x6f8] sm:$0xf]
        %v652 = vld [vmem:[%s140 + $0x700] sm:$0xf]
        %v653 = vld [vmem:[%s140 + $0x708] sm:$0xf]
        %v654 = vld [vmem:[%s140 + $0x710] sm:$0xf]
        %v655 = vld [vmem:[%s140 + $0x718] sm:$0xf]
        %v656 = vld [vmem:[%s140 + $0x720] sm:$0xf]
        %v657 = vld [vmem:[%s140 + $0x728] sm:$0xf]
        %v658 = vld [vmem:[%s140 + $0x730] sm:$0xf]
        %v659 = vld [vmem:[%s140 + $0x738] sm:$0xf]
        %v660 = vld [vmem:[%s140 + $0x740] sm:$0xf]
        %v661 = vld [vmem:[%s140 + $0x748] sm:$0xf]
        %v662 = vld [vmem:[%s140 + $0x750] sm:$0xf]
        %v663 = vld [vmem:[%s140 + $0x758] sm:$0xf]
        %v664 = vld [vmem:[%s140 + $0x760] sm:$0xf]
        %v665 = vld [vmem:[%s140 + $0x768] sm:$0xf]
        %v666 = vld [vmem:[%s140 + $0x770] sm:$0xf]
        %v667 = vld [vmem:[%s140 + $0x778] sm:$0xf]
        %v668 = vld [vmem:[%s140 + $0x780] sm:$0xf]
        %v669 = vld [vmem:[%s140 + $0x788] sm:$0xf]
        %v670 = vld [vmem:[%s140 + $0x790] sm:$0xf]
        %v671 = vld [vmem:[%s140 + $0x798] sm:$0xf]
        %v672 = vld [vmem:[%s140 + $0x7a0] sm:$0xf]
        %v673 = vld [vmem:[%s140 + $0x7a8] sm:$0xf]
        %v674 = vld [vmem:[%s140 + $0x7b0] sm:$0xf]
        %v675 = vld [vmem:[%s140 + $0x7b8] sm:$0xf]
        %v676 = vld [vmem:[%s140 + $0x7c0] sm:$0xf]
        %v677 = vld [vmem:[%s140 + $0x7c8] sm:$0xf]
        %v678 = vld [vmem:[%s140 + $0x7d0] sm:$0xf]
        %v679 = vld [vmem:[%s140 + $0x7d8] sm:$0xf]
        %v680 = vld [vmem:[%s140 + $0x7e0] sm:$0xf]
        %v681 = vld [vmem:[%s140 + $0x7e8] sm:$0xf]
        %v682 = vld [vmem:[%s140 + $0x7f0] sm:$0xf]
        %v683 = vld [vmem:[%s140 + $0x7f8] sm:$0xf]
        %v684 = vunpack.c.l.bf16 %v428
        %v685 = vunpack.c.l.bf16 %v429
        %v686 = vunpack.c.l.bf16 %v430
        %v687 = vunpack.c.l.bf16 %v431
        %v688 = vunpack.c.l.bf16 %v432
        %v689 = vunpack.c.l.bf16 %v433
        %v690 = vunpack.c.l.bf16 %v434
        %v691 = vunpack.c.l.bf16 %v435
        %v692 = vunpack.c.l.bf16 %v436
        %v693 = vunpack.c.l.bf16 %v437
        %v694 = vunpack.c.l.bf16 %v438
        %v695 = vunpack.c.l.bf16 %v439
        %v696 = vunpack.c.l.bf16 %v440
        %v697 = vunpack.c.l.bf16 %v441
        %v698 = vunpack.c.l.bf16 %v442
        %v699 = vunpack.c.l.bf16 %v443
        %v700 = vunpack.c.l.bf16 %v444
        %v701 = vunpack.c.l.bf16 %v445
        %v702 = vunpack.c.l.bf16 %v446
        %v703 = vunpack.c.l.bf16 %v447
        %v704 = vunpack.c.l.bf16 %v448
        %v705 = vunpack.c.l.bf16 %v449
        %v706 = vunpack.c.l.bf16 %v450
        %v707 = vunpack.c.l.bf16 %v451
        %v708 = vunpack.c.l.bf16 %v452
        %v709 = vunpack.c.l.bf16 %v453
        %v710 = vunpack.c.l.bf16 %v454
        %v711 = vunpack.c.l.bf16 %v455
        %v712 = vunpack.c.l.bf16 %v456
        %v713 = vunpack.c.l.bf16 %v457
        %v714 = vunpack.c.l.bf16 %v458
        %v715 = vunpack.c.l.bf16 %v459
        %v716 = vunpack.c.l.bf16 %v460
        %v717 = vunpack.c.l.bf16 %v461
        %v718 = vunpack.c.l.bf16 %v462
        %v719 = vunpack.c.l.bf16 %v463
        %v720 = vunpack.c.l.bf16 %v464
        %v721 = vunpack.c.l.bf16 %v465
        %v722 = vunpack.c.l.bf16 %v466
        %v723 = vunpack.c.l.bf16 %v467
        %v724 = vunpack.c.l.bf16 %v468
        %v725 = vunpack.c.l.bf16 %v469
        %v726 = vunpack.c.l.bf16 %v470
        %v727 = vunpack.c.l.bf16 %v471
        %v728 = vunpack.c.l.bf16 %v472
        %v729 = vunpack.c.l.bf16 %v473
        %v730 = vunpack.c.l.bf16 %v474
        %v731 = vunpack.c.l.bf16 %v475
        %v732 = vunpack.c.l.bf16 %v476
        %v733 = vunpack.c.l.bf16 %v477
        %v734 = vunpack.c.l.bf16 %v478
        %v735 = vunpack.c.l.bf16 %v479
        %v736 = vunpack.c.l.bf16 %v480
        %v737 = vunpack.c.l.bf16 %v481
        %v738 = vunpack.c.l.bf16 %v482
        %v739 = vunpack.c.l.bf16 %v483
        %v740 = vunpack.c.l.bf16 %v484
        %v741 = vunpack.c.l.bf16 %v485
        %v742 = vunpack.c.l.bf16 %v486
        %v743 = vunpack.c.l.bf16 %v487
        %v744 = vunpack.c.l.bf16 %v488
        %v745 = vunpack.c.l.bf16 %v489
        %v746 = vunpack.c.l.bf16 %v490
        %v747 = vunpack.c.l.bf16 %v491
        %v748 = vunpack.c.l.bf16 %v492
        %v749 = vunpack.c.l.bf16 %v493
        %v750 = vunpack.c.l.bf16 %v494
        %v751 = vunpack.c.l.bf16 %v495
        %v752 = vunpack.c.l.bf16 %v496
        %v753 = vunpack.c.l.bf16 %v497
        %v754 = vunpack.c.l.bf16 %v498
        %v755 = vunpack.c.l.bf16 %v499
        %v756 = vunpack.c.l.bf16 %v500
        %v757 = vunpack.c.l.bf16 %v501
        %v758 = vunpack.c.l.bf16 %v502
        %v759 = vunpack.c.l.bf16 %v503
        %v760 = vunpack.c.l.bf16 %v504
        %v761 = vunpack.c.l.bf16 %v505
        %v762 = vunpack.c.l.bf16 %v506
        %v763 = vunpack.c.l.bf16 %v507
        %v764 = vunpack.c.l.bf16 %v508
        %v765 = vunpack.c.l.bf16 %v509
        %v766 = vunpack.c.l.bf16 %v510
        %v767 = vunpack.c.l.bf16 %v511
        %v768 = vunpack.c.l.bf16 %v512
        %v769 = vunpack.c.l.bf16 %v513
        %v770 = vunpack.c.l.bf16 %v514
        %v771 = vunpack.c.l.bf16 %v515
        %v772 = vunpack.c.l.bf16 %v516
        %v773 = vunpack.c.l.bf16 %v517
        %v774 = vunpack.c.l.bf16 %v518
        %v775 = vunpack.c.l.bf16 %v519
        %v776 = vunpack.c.l.bf16 %v520
        %v777 = vunpack.c.l.bf16 %v521
        %v778 = vunpack.c.l.bf16 %v522
        %v779 = vunpack.c.l.bf16 %v523
        %v780 = vunpack.c.l.bf16 %v524
        %v781 = vunpack.c.l.bf16 %v525
        %v782 = vunpack.c.l.bf16 %v526
        %v783 = vunpack.c.l.bf16 %v527
        %v784 = vunpack.c.l.bf16 %v528
        %v785 = vunpack.c.l.bf16 %v529
        %v786 = vunpack.c.l.bf16 %v530
        %v787 = vunpack.c.l.bf16 %v531
        %v788 = vunpack.c.l.bf16 %v532
        %v789 = vunpack.c.l.bf16 %v533
        %v790 = vunpack.c.l.bf16 %v534
        %v791 = vunpack.c.l.bf16 %v535
        %v792 = vunpack.c.l.bf16 %v536
        %v793 = vunpack.c.l.bf16 %v537
        %v794 = vunpack.c.l.bf16 %v538
        %v795 = vunpack.c.l.bf16 %v539
        %v796 = vunpack.c.l.bf16 %v540
        %v797 = vunpack.c.l.bf16 %v541
        %v798 = vunpack.c.l.bf16 %v542
        %v799 = vunpack.c.l.bf16 %v543
        %v800 = vunpack.c.l.bf16 %v544
        %v801 = vunpack.c.l.bf16 %v545
        %v802 = vunpack.c.l.bf16 %v546
        %v803 = vunpack.c.l.bf16 %v547
        %v804 = vunpack.c.l.bf16 %v548
        %v805 = vunpack.c.l.bf16 %v549
        %v806 = vunpack.c.l.bf16 %v550
        %v807 = vunpack.c.l.bf16 %v551
        %v808 = vunpack.c.l.bf16 %v552
        %v809 = vunpack.c.l.bf16 %v553
        %v810 = vunpack.c.l.bf16 %v554
        %v811 = vunpack.c.l.bf16 %v555
        %v812 = vunpack.c.l.bf16 %v556
        %v813 = vunpack.c.l.bf16 %v557
        %v814 = vunpack.c.l.bf16 %v558
        %v815 = vunpack.c.l.bf16 %v559
        %v816 = vunpack.c.l.bf16 %v560
        %v817 = vunpack.c.l.bf16 %v561
        %v818 = vunpack.c.l.bf16 %v562
        %v819 = vunpack.c.l.bf16 %v563
        %v820 = vunpack.c.l.bf16 %v564
        %v821 = vunpack.c.l.bf16 %v565
        %v822 = vunpack.c.l.bf16 %v566
        %v823 = vunpack.c.l.bf16 %v567
        %v824 = vunpack.c.l.bf16 %v568
        %v825 = vunpack.c.l.bf16 %v569
        %v826 = vunpack.c.l.bf16 %v570
        %v827 = vunpack.c.l.bf16 %v571
        %v828 = vunpack.c.l.bf16 %v572
        %v829 = vunpack.c.l.bf16 %v573
        %v830 = vunpack.c.l.bf16 %v574
        %v831 = vunpack.c.l.bf16 %v575
        %v832 = vunpack.c.l.bf16 %v576
        %v833 = vunpack.c.l.bf16 %v577
        %v834 = vunpack.c.l.bf16 %v578
        %v835 = vunpack.c.l.bf16 %v579
        %v836 = vunpack.c.l.bf16 %v580
        %v837 = vunpack.c.l.bf16 %v581
        %v838 = vunpack.c.l.bf16 %v582
        %v839 = vunpack.c.l.bf16 %v583
        %v840 = vunpack.c.l.bf16 %v584
        %v841 = vunpack.c.l.bf16 %v585
        %v842 = vunpack.c.l.bf16 %v586
        %v843 = vunpack.c.l.bf16 %v587
        %v844 = vunpack.c.l.bf16 %v588
        %v845 = vunpack.c.l.bf16 %v589
        %v846 = vunpack.c.l.bf16 %v590
        %v847 = vunpack.c.l.bf16 %v591
        %v848 = vunpack.c.l.bf16 %v592
        %v849 = vunpack.c.l.bf16 %v593
        %v850 = vunpack.c.l.bf16 %v594
        %v851 = vunpack.c.l.bf16 %v595
        %v852 = vunpack.c.l.bf16 %v596
        %v853 = vunpack.c.l.bf16 %v597
        %v854 = vunpack.c.l.bf16 %v598
        %v855 = vunpack.c.l.bf16 %v599
        %v856 = vunpack.c.l.bf16 %v600
        %v857 = vunpack.c.l.bf16 %v601
        %v858 = vunpack.c.l.bf16 %v602
        %v859 = vunpack.c.l.bf16 %v603
        %v860 = vunpack.c.l.bf16 %v604
        %v861 = vunpack.c.l.bf16 %v605
        %v862 = vunpack.c.l.bf16 %v606
        %v863 = vunpack.c.l.bf16 %v607
        %v864 = vunpack.c.l.bf16 %v608
        %v865 = vunpack.c.l.bf16 %v609
        %v866 = vunpack.c.l.bf16 %v610
        %v867 = vunpack.c.l.bf16 %v611
        %v868 = vunpack.c.l.bf16 %v612
        %v869 = vunpack.c.l.bf16 %v613
        %v870 = vunpack.c.l.bf16 %v614
        %v871 = vunpack.c.l.bf16 %v615
        %v872 = vunpack.c.l.bf16 %v616
        %v873 = vunpack.c.l.bf16 %v617
        %v874 = vunpack.c.l.bf16 %v618
        %v875 = vunpack.c.l.bf16 %v619
        %v876 = vunpack.c.l.bf16 %v620
        %v877 = vunpack.c.l.bf16 %v621
        %v878 = vunpack.c.l.bf16 %v622
        %v879 = vunpack.c.l.bf16 %v623
        %v880 = vunpack.c.l.bf16 %v624
        %v881 = vunpack.c.l.bf16 %v625
        %v882 = vunpack.c.l.bf16 %v626
        %v883 = vunpack.c.l.bf16 %v627
        %v884 = vunpack.c.l.bf16 %v628
        %v885 = vunpack.c.l.bf16 %v629
        %v886 = vunpack.c.l.bf16 %v630
        %v887 = vunpack.c.l.bf16 %v631
        %v888 = vunpack.c.l.bf16 %v632
        %v889 = vunpack.c.l.bf16 %v633
        %v890 = vunpack.c.l.bf16 %v634
        %v891 = vunpack.c.l.bf16 %v635
        %v892 = vunpack.c.l.bf16 %v636
        %v893 = vunpack.c.l.bf16 %v637
        %v894 = vunpack.c.l.bf16 %v638
        %v895 = vunpack.c.l.bf16 %v639
        %v896 = vunpack.c.l.bf16 %v640
        %v897 = vunpack.c.l.bf16 %v641
        %v898 = vunpack.c.l.bf16 %v642
        %v899 = vunpack.c.l.bf16 %v643
        %v900 = vunpack.c.l.bf16 %v644
        %v901 = vunpack.c.l.bf16 %v645
        %v902 = vunpack.c.l.bf16 %v646
        %v903 = vunpack.c.l.bf16 %v647
        %v904 = vunpack.c.l.bf16 %v648
        %v905 = vunpack.c.l.bf16 %v649
        %v906 = vunpack.c.l.bf16 %v650
        %v907 = vunpack.c.l.bf16 %v651
        %v908 = vunpack.c.l.bf16 %v652
        %v909 = vunpack.c.l.bf16 %v653
        %v910 = vunpack.c.l.bf16 %v654
        %v911 = vunpack.c.l.bf16 %v655
        %v912 = vunpack.c.l.bf16 %v656
        %v913 = vunpack.c.l.bf16 %v657
        %v914 = vunpack.c.l.bf16 %v658
        %v915 = vunpack.c.l.bf16 %v659
        %v916 = vunpack.c.l.bf16 %v660
        %v917 = vunpack.c.l.bf16 %v661
        %v918 = vunpack.c.l.bf16 %v662
        %v919 = vunpack.c.l.bf16 %v663
        %v920 = vunpack.c.l.bf16 %v664
        %v921 = vunpack.c.l.bf16 %v665
        %v922 = vunpack.c.l.bf16 %v666
        %v923 = vunpack.c.l.bf16 %v667
        %v924 = vunpack.c.l.bf16 %v668
        %v925 = vunpack.c.l.bf16 %v669
        %v926 = vunpack.c.l.bf16 %v670
        %v927 = vunpack.c.l.bf16 %v671
        %v928 = vunpack.c.l.bf16 %v672
        %v929 = vunpack.c.l.bf16 %v673
        %v930 = vunpack.c.l.bf16 %v674
        %v931 = vunpack.c.l.bf16 %v675
        %v932 = vunpack.c.l.bf16 %v676
        %v933 = vunpack.c.l.bf16 %v677
        %v934 = vunpack.c.l.bf16 %v678
        %v935 = vunpack.c.l.bf16 %v679
        %v936 = vunpack.c.l.bf16 %v680
        %v937 = vunpack.c.l.bf16 %v681
        %v938 = vunpack.c.l.bf16 %v682
        %v939 = vunpack.c.l.bf16 %v683
        %v940 = vstv %s425
        %v941 = vadd.s32 %v940, %v427
        %vm942 = vcmp.lt.s32.totalorder %v941, 384
        %v943 = vsel %vm942, 1, 0
        %vm944 = vcmp.eq.s32.totalorder %v943, 1
        %v945 = vsel %vm944, %v684, 0.0
        %v946 = vsel %vm944, %v685, 0.0
        %v947 = vsel %vm944, %v686, 0.0
        %v948 = vsel %vm944, %v687, 0.0
        %v949 = vsel %vm944, %v688, 0.0
        %v950 = vsel %vm944, %v689, 0.0
        %v951 = vsel %vm944, %v690, 0.0
        %v952 = vsel %vm944, %v691, 0.0
        %v953 = vsel %vm944, %v692, 0.0
        %v954 = vsel %vm944, %v693, 0.0
        %v955 = vsel %vm944, %v694, 0.0
        %v956 = vsel %vm944, %v695, 0.0
        %v957 = vsel %vm944, %v696, 0.0
        %v958 = vsel %vm944, %v697, 0.0
        %v959 = vsel %vm944, %v698, 0.0
        %v960 = vsel %vm944, %v699, 0.0
        %v961 = vsel %vm944, %v700, 0.0
        %v962 = vsel %vm944, %v701, 0.0
        %v963 = vsel %vm944, %v702, 0.0
        %v964 = vsel %vm944, %v703, 0.0
        %v965 = vsel %vm944, %v704, 0.0
        %v966 = vsel %vm944, %v705, 0.0
        %v967 = vsel %vm944, %v706, 0.0
        %v968 = vsel %vm944, %v707, 0.0
        %v969 = vsel %vm944, %v708, 0.0
        %v970 = vsel %vm944, %v709, 0.0
        %v971 = vsel %vm944, %v710, 0.0
        %v972 = vsel %vm944, %v711, 0.0
        %v973 = vsel %vm944, %v712, 0.0
        %v974 = vsel %vm944, %v713, 0.0
        %v975 = vsel %vm944, %v714, 0.0
        %v976 = vsel %vm944, %v715, 0.0
        %v977 = vsel %vm944, %v716, 0.0
        %v978 = vsel %vm944, %v717, 0.0
        %v979 = vsel %vm944, %v718, 0.0
        %v980 = vsel %vm944, %v719, 0.0
        %v981 = vsel %vm944, %v720, 0.0
        %v982 = vsel %vm944, %v721, 0.0
        %v983 = vsel %vm944, %v722, 0.0
        %v984 = vsel %vm944, %v723, 0.0
        %v985 = vsel %vm944, %v724, 0.0
        %v986 = vsel %vm944, %v725, 0.0
        %v987 = vsel %vm944, %v726, 0.0
        %v988 = vsel %vm944, %v727, 0.0
        %v989 = vsel %vm944, %v728, 0.0
        %v990 = vsel %vm944, %v729, 0.0
        %v991 = vsel %vm944, %v730, 0.0
        %v992 = vsel %vm944, %v731, 0.0
        %v993 = vsel %vm944, %v732, 0.0
        %v994 = vsel %vm944, %v733, 0.0
        %v995 = vsel %vm944, %v734, 0.0
        %v996 = vsel %vm944, %v735, 0.0
        %v997 = vsel %vm944, %v736, 0.0
        %v998 = vsel %vm944, %v737, 0.0
        %v999 = vsel %vm944, %v738, 0.0
        %v1000 = vsel %vm944, %v739, 0.0
        %v1001 = vsel %vm944, %v740, 0.0
        %v1002 = vsel %vm944, %v741, 0.0
        %v1003 = vsel %vm944, %v742, 0.0
        %v1004 = vsel %vm944, %v743, 0.0
        %v1005 = vsel %vm944, %v744, 0.0
        %v1006 = vsel %vm944, %v745, 0.0
        %v1007 = vsel %vm944, %v746, 0.0
        %v1008 = vsel %vm944, %v747, 0.0
        %v1009 = vsel %vm944, %v748, 0.0
        %v1010 = vsel %vm944, %v749, 0.0
        %v1011 = vsel %vm944, %v750, 0.0
        %v1012 = vsel %vm944, %v751, 0.0
        %v1013 = vsel %vm944, %v752, 0.0
        %v1014 = vsel %vm944, %v753, 0.0
        %v1015 = vsel %vm944, %v754, 0.0
        %v1016 = vsel %vm944, %v755, 0.0
        %v1017 = vsel %vm944, %v756, 0.0
        %v1018 = vsel %vm944, %v757, 0.0
        %v1019 = vsel %vm944, %v758, 0.0
        %v1020 = vsel %vm944, %v759, 0.0
        %v1021 = vsel %vm944, %v760, 0.0
        %v1022 = vsel %vm944, %v761, 0.0
        %v1023 = vsel %vm944, %v762, 0.0
        %v1024 = vsel %vm944, %v763, 0.0
        %v1025 = vsel %vm944, %v764, 0.0
        %v1026 = vsel %vm944, %v765, 0.0
        %v1027 = vsel %vm944, %v766, 0.0
        %v1028 = vsel %vm944, %v767, 0.0
        %v1029 = vsel %vm944, %v768, 0.0
        %v1030 = vsel %vm944, %v769, 0.0
        %v1031 = vsel %vm944, %v770, 0.0
        %v1032 = vsel %vm944, %v771, 0.0
        %v1033 = vsel %vm944, %v772, 0.0
        %v1034 = vsel %vm944, %v773, 0.0
        %v1035 = vsel %vm944, %v774, 0.0
        %v1036 = vsel %vm944, %v775, 0.0
        %v1037 = vsel %vm944, %v776, 0.0
        %v1038 = vsel %vm944, %v777, 0.0
        %v1039 = vsel %vm944, %v778, 0.0
        %v1040 = vsel %vm944, %v779, 0.0
        %v1041 = vsel %vm944, %v780, 0.0
        %v1042 = vsel %vm944, %v781, 0.0
        %v1043 = vsel %vm944, %v782, 0.0
        %v1044 = vsel %vm944, %v783, 0.0
        %v1045 = vsel %vm944, %v784, 0.0
        %v1046 = vsel %vm944, %v785, 0.0
        %v1047 = vsel %vm944, %v786, 0.0
        %v1048 = vsel %vm944, %v787, 0.0
        %v1049 = vsel %vm944, %v788, 0.0
        %v1050 = vsel %vm944, %v789, 0.0
        %v1051 = vsel %vm944, %v790, 0.0
        %v1052 = vsel %vm944, %v791, 0.0
        %v1053 = vsel %vm944, %v792, 0.0
        %v1054 = vsel %vm944, %v793, 0.0
        %v1055 = vsel %vm944, %v794, 0.0
        %v1056 = vsel %vm944, %v795, 0.0
        %v1057 = vsel %vm944, %v796, 0.0
        %v1058 = vsel %vm944, %v797, 0.0
        %v1059 = vsel %vm944, %v798, 0.0
        %v1060 = vsel %vm944, %v799, 0.0
        %v1061 = vsel %vm944, %v800, 0.0
        %v1062 = vsel %vm944, %v801, 0.0
        %v1063 = vsel %vm944, %v802, 0.0
        %v1064 = vsel %vm944, %v803, 0.0
        %v1065 = vsel %vm944, %v804, 0.0
        %v1066 = vsel %vm944, %v805, 0.0
        %v1067 = vsel %vm944, %v806, 0.0
        %v1068 = vsel %vm944, %v807, 0.0
        %v1069 = vsel %vm944, %v808, 0.0
        %v1070 = vsel %vm944, %v809, 0.0
        %v1071 = vsel %vm944, %v810, 0.0
        %v1072 = vsel %vm944, %v811, 0.0
        %v1073 = vsel %vm944, %v812, 0.0
        %v1074 = vsel %vm944, %v813, 0.0
        %v1075 = vsel %vm944, %v814, 0.0
        %v1076 = vsel %vm944, %v815, 0.0
        %v1077 = vsel %vm944, %v816, 0.0
        %v1078 = vsel %vm944, %v817, 0.0
        %v1079 = vsel %vm944, %v818, 0.0
        %v1080 = vsel %vm944, %v819, 0.0
        %v1081 = vsel %vm944, %v820, 0.0
        %v1082 = vsel %vm944, %v821, 0.0
        %v1083 = vsel %vm944, %v822, 0.0
        %v1084 = vsel %vm944, %v823, 0.0
        %v1085 = vsel %vm944, %v824, 0.0
        %v1086 = vsel %vm944, %v825, 0.0
        %v1087 = vsel %vm944, %v826, 0.0
        %v1088 = vsel %vm944, %v827, 0.0
        %v1089 = vsel %vm944, %v828, 0.0
        %v1090 = vsel %vm944, %v829, 0.0
        %v1091 = vsel %vm944, %v830, 0.0
        %v1092 = vsel %vm944, %v831, 0.0
        %v1093 = vsel %vm944, %v832, 0.0
        %v1094 = vsel %vm944, %v833, 0.0
        %v1095 = vsel %vm944, %v834, 0.0
        %v1096 = vsel %vm944, %v835, 0.0
        %v1097 = vsel %vm944, %v836, 0.0
        %v1098 = vsel %vm944, %v837, 0.0
        %v1099 = vsel %vm944, %v838, 0.0
        %v1100 = vsel %vm944, %v839, 0.0
        %v1101 = vsel %vm944, %v840, 0.0
        %v1102 = vsel %vm944, %v841, 0.0
        %v1103 = vsel %vm944, %v842, 0.0
        %v1104 = vsel %vm944, %v843, 0.0
        %v1105 = vsel %vm944, %v844, 0.0
        %v1106 = vsel %vm944, %v845, 0.0
        %v1107 = vsel %vm944, %v846, 0.0
        %v1108 = vsel %vm944, %v847, 0.0
        %v1109 = vsel %vm944, %v848, 0.0
        %v1110 = vsel %vm944, %v849, 0.0
        %v1111 = vsel %vm944, %v850, 0.0
        %v1112 = vsel %vm944, %v851, 0.0
        %v1113 = vsel %vm944, %v852, 0.0
        %v1114 = vsel %vm944, %v853, 0.0
        %v1115 = vsel %vm944, %v854, 0.0
        %v1116 = vsel %vm944, %v855, 0.0
        %v1117 = vsel %vm944, %v856, 0.0
        %v1118 = vsel %vm944, %v857, 0.0
        %v1119 = vsel %vm944, %v858, 0.0
        %v1120 = vsel %vm944, %v859, 0.0
        %v1121 = vsel %vm944, %v860, 0.0
        %v1122 = vsel %vm944, %v861, 0.0
        %v1123 = vsel %vm944, %v862, 0.0
        %v1124 = vsel %vm944, %v863, 0.0
        %v1125 = vsel %vm944, %v864, 0.0
        %v1126 = vsel %vm944, %v865, 0.0
        %v1127 = vsel %vm944, %v866, 0.0
        %v1128 = vsel %vm944, %v867, 0.0
        %v1129 = vsel %vm944, %v868, 0.0
        %v1130 = vsel %vm944, %v869, 0.0
        %v1131 = vsel %vm944, %v870, 0.0
        %v1132 = vsel %vm944, %v871, 0.0
        %v1133 = vsel %vm944, %v872, 0.0
        %v1134 = vsel %vm944, %v873, 0.0
        %v1135 = vsel %vm944, %v874, 0.0
        %v1136 = vsel %vm944, %v875, 0.0
        %v1137 = vsel %vm944, %v876, 0.0
        %v1138 = vsel %vm944, %v877, 0.0
        %v1139 = vsel %vm944, %v878, 0.0
        %v1140 = vsel %vm944, %v879, 0.0
        %v1141 = vsel %vm944, %v880, 0.0
        %v1142 = vsel %vm944, %v881, 0.0
        %v1143 = vsel %vm944, %v882, 0.0
        %v1144 = vsel %vm944, %v883, 0.0
        %v1145 = vsel %vm944, %v884, 0.0
        %v1146 = vsel %vm944, %v885, 0.0
        %v1147 = vsel %vm944, %v886, 0.0
        %v1148 = vsel %vm944, %v887, 0.0
        %v1149 = vsel %vm944, %v888, 0.0
        %v1150 = vsel %vm944, %v889, 0.0
        %v1151 = vsel %vm944, %v890, 0.0
        %v1152 = vsel %vm944, %v891, 0.0
        %v1153 = vsel %vm944, %v892, 0.0
        %v1154 = vsel %vm944, %v893, 0.0
        %v1155 = vsel %vm944, %v894, 0.0
        %v1156 = vsel %vm944, %v895, 0.0
        %v1157 = vsel %vm944, %v896, 0.0
        %v1158 = vsel %vm944, %v897, 0.0
        %v1159 = vsel %vm944, %v898, 0.0
        %v1160 = vsel %vm944, %v899, 0.0
        %v1161 = vsel %vm944, %v900, 0.0
        %v1162 = vsel %vm944, %v901, 0.0
        %v1163 = vsel %vm944, %v902, 0.0
        %v1164 = vsel %vm944, %v903, 0.0
        %v1165 = vsel %vm944, %v904, 0.0
        %v1166 = vsel %vm944, %v905, 0.0
        %v1167 = vsel %vm944, %v906, 0.0
        %v1168 = vsel %vm944, %v907, 0.0
        %v1169 = vsel %vm944, %v908, 0.0
        %v1170 = vsel %vm944, %v909, 0.0
        %v1171 = vsel %vm944, %v910, 0.0
        %v1172 = vsel %vm944, %v911, 0.0
        %v1173 = vsel %vm944, %v912, 0.0
        %v1174 = vsel %vm944, %v913, 0.0
        %v1175 = vsel %vm944, %v914, 0.0
        %v1176 = vsel %vm944, %v915, 0.0
        %v1177 = vsel %vm944, %v916, 0.0
        %v1178 = vsel %vm944, %v917, 0.0
        %v1179 = vsel %vm944, %v918, 0.0
        %v1180 = vsel %vm944, %v919, 0.0
        %v1181 = vsel %vm944, %v920, 0.0
        %v1182 = vsel %vm944, %v921, 0.0
        %v1183 = vsel %vm944, %v922, 0.0
        %v1184 = vsel %vm944, %v923, 0.0
        %v1185 = vsel %vm944, %v924, 0.0
        %v1186 = vsel %vm944, %v925, 0.0
        %v1187 = vsel %vm944, %v926, 0.0
        %v1188 = vsel %vm944, %v927, 0.0
        %v1189 = vsel %vm944, %v928, 0.0
        %v1190 = vsel %vm944, %v929, 0.0
        %v1191 = vsel %vm944, %v930, 0.0
        %v1192 = vsel %vm944, %v931, 0.0
        %v1193 = vsel %vm944, %v932, 0.0
        %v1194 = vsel %vm944, %v933, 0.0
        %v1195 = vsel %vm944, %v934, 0.0
        %v1196 = vsel %vm944, %v935, 0.0
        %v1197 = vsel %vm944, %v936, 0.0
        %v1198 = vsel %vm944, %v937, 0.0
        %v1199 = vsel %vm944, %v938, 0.0
        %v1200 = vsel %vm944, %v939, 0.0
        %v1201 = vld [vmem:[#allocation2] sm:$0xff]
        %v1202 = vld [vmem:[#allocation2 + $0x8] sm:$0xff]
        %v1203 = vld [vmem:[#allocation2 + $0x10] sm:$0xff]
        %v1204 = vld [vmem:[#allocation2 + $0x18] sm:$0xff]
        %v1205 = vld [vmem:[#allocation2 + $0x20] sm:$0xff]
        %v1206 = vld [vmem:[#allocation2 + $0x28] sm:$0xff]
        %v1207 = vld [vmem:[#allocation2 + $0x30] sm:$0xff]
        %v1208 = vld [vmem:[#allocation2 + $0x38] sm:$0xff]
        %v1209 = vld [vmem:[#allocation2 + $0x40] sm:$0xff]
        %v1210 = vld [vmem:[#allocation2 + $0x48] sm:$0xff]
        %v1211 = vld [vmem:[#allocation2 + $0x50] sm:$0xff]
        %v1212 = vld [vmem:[#allocation2 + $0x58] sm:$0xff]
        %v1213 = vld [vmem:[#allocation2 + $0x60] sm:$0xff]
        %v1214 = vld [vmem:[#allocation2 + $0x68] sm:$0xff]
        %v1215 = vld [vmem:[#allocation2 + $0x70] sm:$0xff]
        %v1216 = vld [vmem:[#allocation2 + $0x78] sm:$0xff]
        %v1217 = vld [vmem:[#allocation2 + $0x80] sm:$0xff]
        %v1218 = vld [vmem:[#allocation2 + $0x88] sm:$0xff]
        %v1219 = vld [vmem:[#allocation2 + $0x90] sm:$0xff]
        %v1220 = vld [vmem:[#allocation2 + $0x98] sm:$0xff]
        %v1221 = vld [vmem:[#allocation2 + $0xa0] sm:$0xff]
        %v1222 = vld [vmem:[#allocation2 + $0xa8] sm:$0xff]
        %v1223 = vld [vmem:[#allocation2 + $0xb0] sm:$0xff]
        %v1224 = vld [vmem:[#allocation2 + $0xb8] sm:$0xff]
        %v1225 = vld [vmem:[#allocation2 + $0xc0] sm:$0xff]
        %v1226 = vld [vmem:[#allocation2 + $0xc8] sm:$0xff]
        %v1227 = vld [vmem:[#allocation2 + $0xd0] sm:$0xff]
        %v1228 = vld [vmem:[#allocation2 + $0xd8] sm:$0xff]
        %v1229 = vld [vmem:[#allocation2 + $0xe0] sm:$0xff]
        %v1230 = vld [vmem:[#allocation2 + $0xe8] sm:$0xff]
        %v1231 = vld [vmem:[#allocation2 + $0xf0] sm:$0xff]
        %v1232 = vld [vmem:[#allocation2 + $0xf8] sm:$0xff]
        %v1233 = vld [vmem:[#allocation2 + $0x100] sm:$0xff]
        %v1234 = vld [vmem:[#allocation2 + $0x108] sm:$0xff]
        %v1235 = vld [vmem:[#allocation2 + $0x110] sm:$0xff]
        %v1236 = vld [vmem:[#allocation2 + $0x118] sm:$0xff]
        %v1237 = vld [vmem:[#allocation2 + $0x120] sm:$0xff]
        %v1238 = vld [vmem:[#allocation2 + $0x128] sm:$0xff]
        %v1239 = vld [vmem:[#allocation2 + $0x130] sm:$0xff]
        %v1240 = vld [vmem:[#allocation2 + $0x138] sm:$0xff]
        %v1241 = vld [vmem:[#allocation2 + $0x140] sm:$0xff]
        %v1242 = vld [vmem:[#allocation2 + $0x148] sm:$0xff]
        %v1243 = vld [vmem:[#allocation2 + $0x150] sm:$0xff]
        %v1244 = vld [vmem:[#allocation2 + $0x158] sm:$0xff]
        %v1245 = vld [vmem:[#allocation2 + $0x160] sm:$0xff]
        %v1246 = vld [vmem:[#allocation2 + $0x168] sm:$0xff]
        %v1247 = vld [vmem:[#allocation2 + $0x170] sm:$0xff]
        %v1248 = vld [vmem:[#allocation2 + $0x178] sm:$0xff]
        %v1249 = vld [vmem:[#allocation2 + $0x180] sm:$0xff]
        %v1250 = vld [vmem:[#allocation2 + $0x188] sm:$0xff]
        %v1251 = vld [vmem:[#allocation2 + $0x190] sm:$0xff]
        %v1252 = vld [vmem:[#allocation2 + $0x198] sm:$0xff]
        %v1253 = vld [vmem:[#allocation2 + $0x1a0] sm:$0xff]
        %v1254 = vld [vmem:[#allocation2 + $0x1a8] sm:$0xff]
        %v1255 = vld [vmem:[#allocation2 + $0x1b0] sm:$0xff]
        %v1256 = vld [vmem:[#allocation2 + $0x1b8] sm:$0xff]
        %v1257 = vld [vmem:[#allocation2 + $0x1c0] sm:$0xff]
        %v1258 = vld [vmem:[#allocation2 + $0x1c8] sm:$0xff]
        %v1259 = vld [vmem:[#allocation2 + $0x1d0] sm:$0xff]
        %v1260 = vld [vmem:[#allocation2 + $0x1d8] sm:$0xff]
        %v1261 = vld [vmem:[#allocation2 + $0x1e0] sm:$0xff]
        %v1262 = vld [vmem:[#allocation2 + $0x1e8] sm:$0xff]
        %v1263 = vld [vmem:[#allocation2 + $0x1f0] sm:$0xff]
        %v1264 = vld [vmem:[#allocation2 + $0x1f8] sm:$0xff]
        %v1265 = vld [vmem:[#allocation2 + $0x200] sm:$0xff]
        %v1266 = vld [vmem:[#allocation2 + $0x208] sm:$0xff]
        %v1267 = vld [vmem:[#allocation2 + $0x210] sm:$0xff]
        %v1268 = vld [vmem:[#allocation2 + $0x218] sm:$0xff]
        %v1269 = vld [vmem:[#allocation2 + $0x220] sm:$0xff]
        %v1270 = vld [vmem:[#allocation2 + $0x228] sm:$0xff]
        %v1271 = vld [vmem:[#allocation2 + $0x230] sm:$0xff]
        %v1272 = vld [vmem:[#allocation2 + $0x238] sm:$0xff]
        %v1273 = vld [vmem:[#allocation2 + $0x240] sm:$0xff]
        %v1274 = vld [vmem:[#allocation2 + $0x248] sm:$0xff]
        %v1275 = vld [vmem:[#allocation2 + $0x250] sm:$0xff]
        %v1276 = vld [vmem:[#allocation2 + $0x258] sm:$0xff]
        %v1277 = vld [vmem:[#allocation2 + $0x260] sm:$0xff]
        %v1278 = vld [vmem:[#allocation2 + $0x268] sm:$0xff]
        %v1279 = vld [vmem:[#allocation2 + $0x270] sm:$0xff]
        %v1280 = vld [vmem:[#allocation2 + $0x278] sm:$0xff]
        %v1281 = vld [vmem:[#allocation2 + $0x280] sm:$0xff]
        %v1282 = vld [vmem:[#allocation2 + $0x288] sm:$0xff]
        %v1283 = vld [vmem:[#allocation2 + $0x290] sm:$0xff]
        %v1284 = vld [vmem:[#allocation2 + $0x298] sm:$0xff]
        %v1285 = vld [vmem:[#allocation2 + $0x2a0] sm:$0xff]
        %v1286 = vld [vmem:[#allocation2 + $0x2a8] sm:$0xff]
        %v1287 = vld [vmem:[#allocation2 + $0x2b0] sm:$0xff]
        %v1288 = vld [vmem:[#allocation2 + $0x2b8] sm:$0xff]
        %v1289 = vld [vmem:[#allocation2 + $0x2c0] sm:$0xff]
        %v1290 = vld [vmem:[#allocation2 + $0x2c8] sm:$0xff]
        %v1291 = vld [vmem:[#allocation2 + $0x2d0] sm:$0xff]
        %v1292 = vld [vmem:[#allocation2 + $0x2d8] sm:$0xff]
        %v1293 = vld [vmem:[#allocation2 + $0x2e0] sm:$0xff]
        %v1294 = vld [vmem:[#allocation2 + $0x2e8] sm:$0xff]
        %v1295 = vld [vmem:[#allocation2 + $0x2f0] sm:$0xff]
        %v1296 = vld [vmem:[#allocation2 + $0x2f8] sm:$0xff]
        %v1297 = vld [vmem:[#allocation2 + $0x300] sm:$0xff]
        %v1298 = vld [vmem:[#allocation2 + $0x308] sm:$0xff]
        %v1299 = vld [vmem:[#allocation2 + $0x310] sm:$0xff]
        %v1300 = vld [vmem:[#allocation2 + $0x318] sm:$0xff]
        %v1301 = vld [vmem:[#allocation2 + $0x320] sm:$0xff]
        %v1302 = vld [vmem:[#allocation2 + $0x328] sm:$0xff]
        %v1303 = vld [vmem:[#allocation2 + $0x330] sm:$0xff]
        %v1304 = vld [vmem:[#allocation2 + $0x338] sm:$0xff]
        %v1305 = vld [vmem:[#allocation2 + $0x340] sm:$0xff]
        %v1306 = vld [vmem:[#allocation2 + $0x348] sm:$0xff]
        %v1307 = vld [vmem:[#allocation2 + $0x350] sm:$0xff]
        %v1308 = vld [vmem:[#allocation2 + $0x358] sm:$0xff]
        %v1309 = vld [vmem:[#allocation2 + $0x360] sm:$0xff]
        %v1310 = vld [vmem:[#allocation2 + $0x368] sm:$0xff]
        %v1311 = vld [vmem:[#allocation2 + $0x370] sm:$0xff]
        %v1312 = vld [vmem:[#allocation2 + $0x378] sm:$0xff]
        %v1313 = vld [vmem:[#allocation2 + $0x380] sm:$0xff]
        %v1314 = vld [vmem:[#allocation2 + $0x388] sm:$0xff]
        %v1315 = vld [vmem:[#allocation2 + $0x390] sm:$0xff]
        %v1316 = vld [vmem:[#allocation2 + $0x398] sm:$0xff]
        %v1317 = vld [vmem:[#allocation2 + $0x3a0] sm:$0xff]
        %v1318 = vld [vmem:[#allocation2 + $0x3a8] sm:$0xff]
        %v1319 = vld [vmem:[#allocation2 + $0x3b0] sm:$0xff]
        %v1320 = vld [vmem:[#allocation2 + $0x3b8] sm:$0xff]
        %v1321 = vld [vmem:[#allocation2 + $0x3c0] sm:$0xff]
        %v1322 = vld [vmem:[#allocation2 + $0x3c8] sm:$0xff]
        %v1323 = vld [vmem:[#allocation2 + $0x3d0] sm:$0xff]
        %v1324 = vld [vmem:[#allocation2 + $0x3d8] sm:$0xff]
        %v1325 = vld [vmem:[#allocation2 + $0x3e0] sm:$0xff]
        %v1326 = vld [vmem:[#allocation2 + $0x3e8] sm:$0xff]
        %v1327 = vld [vmem:[#allocation2 + $0x3f0] sm:$0xff]
        %v1328 = vld [vmem:[#allocation2 + $0x3f8] sm:$0xff]
        %v1329 = vld [vmem:[#allocation2 + $0x400] sm:$0xff]
        %v1330 = vld [vmem:[#allocation2 + $0x408] sm:$0xff]
        %v1331 = vld [vmem:[#allocation2 + $0x410] sm:$0xff]
        %v1332 = vld [vmem:[#allocation2 + $0x418] sm:$0xff]
        %v1333 = vld [vmem:[#allocation2 + $0x420] sm:$0xff]
        %v1334 = vld [vmem:[#allocation2 + $0x428] sm:$0xff]
        %v1335 = vld [vmem:[#allocation2 + $0x430] sm:$0xff]
        %v1336 = vld [vmem:[#allocation2 + $0x438] sm:$0xff]
        %v1337 = vld [vmem:[#allocation2 + $0x440] sm:$0xff]
        %v1338 = vld [vmem:[#allocation2 + $0x448] sm:$0xff]
        %v1339 = vld [vmem:[#allocation2 + $0x450] sm:$0xff]
        %v1340 = vld [vmem:[#allocation2 + $0x458] sm:$0xff]
        %v1341 = vld [vmem:[#allocation2 + $0x460] sm:$0xff]
        %v1342 = vld [vmem:[#allocation2 + $0x468] sm:$0xff]
        %v1343 = vld [vmem:[#allocation2 + $0x470] sm:$0xff]
        %v1344 = vld [vmem:[#allocation2 + $0x478] sm:$0xff]
        %v1345 = vld [vmem:[#allocation2 + $0x480] sm:$0xff]
        %v1346 = vld [vmem:[#allocation2 + $0x488] sm:$0xff]
        %v1347 = vld [vmem:[#allocation2 + $0x490] sm:$0xff]
        %v1348 = vld [vmem:[#allocation2 + $0x498] sm:$0xff]
        %v1349 = vld [vmem:[#allocation2 + $0x4a0] sm:$0xff]
        %v1350 = vld [vmem:[#allocation2 + $0x4a8] sm:$0xff]
        %v1351 = vld [vmem:[#allocation2 + $0x4b0] sm:$0xff]
        %v1352 = vld [vmem:[#allocation2 + $0x4b8] sm:$0xff]
        %v1353 = vld [vmem:[#allocation2 + $0x4c0] sm:$0xff]
        %v1354 = vld [vmem:[#allocation2 + $0x4c8] sm:$0xff]
        %v1355 = vld [vmem:[#allocation2 + $0x4d0] sm:$0xff]
        %v1356 = vld [vmem:[#allocation2 + $0x4d8] sm:$0xff]
        %v1357 = vld [vmem:[#allocation2 + $0x4e0] sm:$0xff]
        %v1358 = vld [vmem:[#allocation2 + $0x4e8] sm:$0xff]
        %v1359 = vld [vmem:[#allocation2 + $0x4f0] sm:$0xff]
        %v1360 = vld [vmem:[#allocation2 + $0x4f8] sm:$0xff]
        %v1361 = vld [vmem:[#allocation2 + $0x500] sm:$0xff]
        %v1362 = vld [vmem:[#allocation2 + $0x508] sm:$0xff]
        %v1363 = vld [vmem:[#allocation2 + $0x510] sm:$0xff]
        %v1364 = vld [vmem:[#allocation2 + $0x518] sm:$0xff]
        %v1365 = vld [vmem:[#allocation2 + $0x520] sm:$0xff]
        %v1366 = vld [vmem:[#allocation2 + $0x528] sm:$0xff]
        %v1367 = vld [vmem:[#allocation2 + $0x530] sm:$0xff]
        %v1368 = vld [vmem:[#allocation2 + $0x538] sm:$0xff]
        %v1369 = vld [vmem:[#allocation2 + $0x540] sm:$0xff]
        %v1370 = vld [vmem:[#allocation2 + $0x548] sm:$0xff]
        %v1371 = vld [vmem:[#allocation2 + $0x550] sm:$0xff]
        %v1372 = vld [vmem:[#allocation2 + $0x558] sm:$0xff]
        %v1373 = vld [vmem:[#allocation2 + $0x560] sm:$0xff]
        %v1374 = vld [vmem:[#allocation2 + $0x568] sm:$0xff]
        %v1375 = vld [vmem:[#allocation2 + $0x570] sm:$0xff]
        %v1376 = vld [vmem:[#allocation2 + $0x578] sm:$0xff]
        %v1377 = vld [vmem:[#allocation2 + $0x580] sm:$0xff]
        %v1378 = vld [vmem:[#allocation2 + $0x588] sm:$0xff]
        %v1379 = vld [vmem:[#allocation2 + $0x590] sm:$0xff]
        %v1380 = vld [vmem:[#allocation2 + $0x598] sm:$0xff]
        %v1381 = vld [vmem:[#allocation2 + $0x5a0] sm:$0xff]
        %v1382 = vld [vmem:[#allocation2 + $0x5a8] sm:$0xff]
        %v1383 = vld [vmem:[#allocation2 + $0x5b0] sm:$0xff]
        %v1384 = vld [vmem:[#allocation2 + $0x5b8] sm:$0xff]
        %v1385 = vld [vmem:[#allocation2 + $0x5c0] sm:$0xff]
        %v1386 = vld [vmem:[#allocation2 + $0x5c8] sm:$0xff]
        %v1387 = vld [vmem:[#allocation2 + $0x5d0] sm:$0xff]
        %v1388 = vld [vmem:[#allocation2 + $0x5d8] sm:$0xff]
        %v1389 = vld [vmem:[#allocation2 + $0x5e0] sm:$0xff]
        %v1390 = vld [vmem:[#allocation2 + $0x5e8] sm:$0xff]
        %v1391 = vld [vmem:[#allocation2 + $0x5f0] sm:$0xff]
        %v1392 = vld [vmem:[#allocation2 + $0x5f8] sm:$0xff]
        %v1393 = vld [vmem:[#allocation2 + $0x600] sm:$0xff]
        %v1394 = vld [vmem:[#allocation2 + $0x608] sm:$0xff]
        %v1395 = vld [vmem:[#allocation2 + $0x610] sm:$0xff]
        %v1396 = vld [vmem:[#allocation2 + $0x618] sm:$0xff]
        %v1397 = vld [vmem:[#allocation2 + $0x620] sm:$0xff]
        %v1398 = vld [vmem:[#allocation2 + $0x628] sm:$0xff]
        %v1399 = vld [vmem:[#allocation2 + $0x630] sm:$0xff]
        %v1400 = vld [vmem:[#allocation2 + $0x638] sm:$0xff]
        %v1401 = vld [vmem:[#allocation2 + $0x640] sm:$0xff]
        %v1402 = vld [vmem:[#allocation2 + $0x648] sm:$0xff]
        %v1403 = vld [vmem:[#allocation2 + $0x650] sm:$0xff]
        %v1404 = vld [vmem:[#allocation2 + $0x658] sm:$0xff]
        %v1405 = vld [vmem:[#allocation2 + $0x660] sm:$0xff]
        %v1406 = vld [vmem:[#allocation2 + $0x668] sm:$0xff]
        %v1407 = vld [vmem:[#allocation2 + $0x670] sm:$0xff]
        %v1408 = vld [vmem:[#allocation2 + $0x678] sm:$0xff]
        %v1409 = vld [vmem:[#allocation2 + $0x680] sm:$0xff]
        %v1410 = vld [vmem:[#allocation2 + $0x688] sm:$0xff]
        %v1411 = vld [vmem:[#allocation2 + $0x690] sm:$0xff]
        %v1412 = vld [vmem:[#allocation2 + $0x698] sm:$0xff]
        %v1413 = vld [vmem:[#allocation2 + $0x6a0] sm:$0xff]
        %v1414 = vld [vmem:[#allocation2 + $0x6a8] sm:$0xff]
        %v1415 = vld [vmem:[#allocation2 + $0x6b0] sm:$0xff]
        %v1416 = vld [vmem:[#allocation2 + $0x6b8] sm:$0xff]
        %v1417 = vld [vmem:[#allocation2 + $0x6c0] sm:$0xff]
        %v1418 = vld [vmem:[#allocation2 + $0x6c8] sm:$0xff]
        %v1419 = vld [vmem:[#allocation2 + $0x6d0] sm:$0xff]
        %v1420 = vld [vmem:[#allocation2 + $0x6d8] sm:$0xff]
        %v1421 = vld [vmem:[#allocation2 + $0x6e0] sm:$0xff]
        %v1422 = vld [vmem:[#allocation2 + $0x6e8] sm:$0xff]
        %v1423 = vld [vmem:[#allocation2 + $0x6f0] sm:$0xff]
        %v1424 = vld [vmem:[#allocation2 + $0x6f8] sm:$0xff]
        %v1425 = vld [vmem:[#allocation2 + $0x700] sm:$0xff]
        %v1426 = vld [vmem:[#allocation2 + $0x708] sm:$0xff]
        %v1427 = vld [vmem:[#allocation2 + $0x710] sm:$0xff]
        %v1428 = vld [vmem:[#allocation2 + $0x718] sm:$0xff]
        %v1429 = vld [vmem:[#allocation2 + $0x720] sm:$0xff]
        %v1430 = vld [vmem:[#allocation2 + $0x728] sm:$0xff]
        %v1431 = vld [vmem:[#allocation2 + $0x730] sm:$0xff]
        %v1432 = vld [vmem:[#allocation2 + $0x738] sm:$0xff]
        %v1433 = vld [vmem:[#allocation2 + $0x740] sm:$0xff]
        %v1434 = vld [vmem:[#allocation2 + $0x748] sm:$0xff]
        %v1435 = vld [vmem:[#allocation2 + $0x750] sm:$0xff]
        %v1436 = vld [vmem:[#allocation2 + $0x758] sm:$0xff]
        %v1437 = vld [vmem:[#allocation2 + $0x760] sm:$0xff]
        %v1438 = vld [vmem:[#allocation2 + $0x768] sm:$0xff]
        %v1439 = vld [vmem:[#allocation2 + $0x770] sm:$0xff]
        %v1440 = vld [vmem:[#allocation2 + $0x778] sm:$0xff]
        %v1441 = vld [vmem:[#allocation2 + $0x780] sm:$0xff]
        %v1442 = vld [vmem:[#allocation2 + $0x788] sm:$0xff]
        %v1443 = vld [vmem:[#allocation2 + $0x790] sm:$0xff]
        %v1444 = vld [vmem:[#allocation2 + $0x798] sm:$0xff]
        %v1445 = vld [vmem:[#allocation2 + $0x7a0] sm:$0xff]
        %v1446 = vld [vmem:[#allocation2 + $0x7a8] sm:$0xff]
        %v1447 = vld [vmem:[#allocation2 + $0x7b0] sm:$0xff]
        %v1448 = vld [vmem:[#allocation2 + $0x7b8] sm:$0xff]
        %v1449 = vld [vmem:[#allocation2 + $0x7c0] sm:$0xff]
        %v1450 = vld [vmem:[#allocation2 + $0x7c8] sm:$0xff]
        %v1451 = vld [vmem:[#allocation2 + $0x7d0] sm:$0xff]
        %v1452 = vld [vmem:[#allocation2 + $0x7d8] sm:$0xff]
        %v1453 = vld [vmem:[#allocation2 + $0x7e0] sm:$0xff]
        %v1454 = vld [vmem:[#allocation2 + $0x7e8] sm:$0xff]
        %v1455 = vld [vmem:[#allocation2 + $0x7f0] sm:$0xff]
        %v1456 = vld [vmem:[#allocation2 + $0x7f8] sm:$0xff]
        %v1457 = vadd.f32 %v1201, %v945
        %v1458 = vadd.f32 %v1202, %v946
        %v1459 = vadd.f32 %v1203, %v947
        %v1460 = vadd.f32 %v1204, %v948
        %v1461 = vadd.f32 %v1205, %v949
        %v1462 = vadd.f32 %v1206, %v950
        %v1463 = vadd.f32 %v1207, %v951
        %v1464 = vadd.f32 %v1208, %v952
        %v1465 = vadd.f32 %v1209, %v953
        %v1466 = vadd.f32 %v1210, %v954
        %v1467 = vadd.f32 %v1211, %v955
        %v1468 = vadd.f32 %v1212, %v956
        %v1469 = vadd.f32 %v1213, %v957
        %v1470 = vadd.f32 %v1214, %v958
        %v1471 = vadd.f32 %v1215, %v959
        %v1472 = vadd.f32 %v1216, %v960
        %v1473 = vadd.f32 %v1217, %v961
        %v1474 = vadd.f32 %v1218, %v962
        %v1475 = vadd.f32 %v1219, %v963
        %v1476 = vadd.f32 %v1220, %v964
        %v1477 = vadd.f32 %v1221, %v965
        %v1478 = vadd.f32 %v1222, %v966
        %v1479 = vadd.f32 %v1223, %v967
        %v1480 = vadd.f32 %v1224, %v968
        %v1481 = vadd.f32 %v1225, %v969
        %v1482 = vadd.f32 %v1226, %v970
        %v1483 = vadd.f32 %v1227, %v971
        %v1484 = vadd.f32 %v1228, %v972
        %v1485 = vadd.f32 %v1229, %v973
        %v1486 = vadd.f32 %v1230, %v974
        %v1487 = vadd.f32 %v1231, %v975
        %v1488 = vadd.f32 %v1232, %v976
        %v1489 = vadd.f32 %v1233, %v977
        %v1490 = vadd.f32 %v1234, %v978
        %v1491 = vadd.f32 %v1235, %v979
        %v1492 = vadd.f32 %v1236, %v980
        %v1493 = vadd.f32 %v1237, %v981
        %v1494 = vadd.f32 %v1238, %v982
        %v1495 = vadd.f32 %v1239, %v983
        %v1496 = vadd.f32 %v1240, %v984
        %v1497 = vadd.f32 %v1241, %v985
        %v1498 = vadd.f32 %v1242, %v986
        %v1499 = vadd.f32 %v1243, %v987
        %v1500 = vadd.f32 %v1244, %v988
        %v1501 = vadd.f32 %v1245, %v989
        %v1502 = vadd.f32 %v1246, %v990
        %v1503 = vadd.f32 %v1247, %v991
        %v1504 = vadd.f32 %v1248, %v992
        %v1505 = vadd.f32 %v1249, %v993
        %v1506 = vadd.f32 %v1250, %v994
        %v1507 = vadd.f32 %v1251, %v995
        %v1508 = vadd.f32 %v1252, %v996
        %v1509 = vadd.f32 %v1253, %v997
        %v1510 = vadd.f32 %v1254, %v998
        %v1511 = vadd.f32 %v1255, %v999
        %v1512 = vadd.f32 %v1256, %v1000
        %v1513 = vadd.f32 %v1257, %v1001
        %v1514 = vadd.f32 %v1258, %v1002
        %v1515 = vadd.f32 %v1259, %v1003
        %v1516 = vadd.f32 %v1260, %v1004
        %v1517 = vadd.f32 %v1261, %v1005
        %v1518 = vadd.f32 %v1262, %v1006
        %v1519 = vadd.f32 %v1263, %v1007
        %v1520 = vadd.f32 %v1264, %v1008
        %v1521 = vadd.f32 %v1265, %v1009
        %v1522 = vadd.f32 %v1266, %v1010
        %v1523 = vadd.f32 %v1267, %v1011
        %v1524 = vadd.f32 %v1268, %v1012
        %v1525 = vadd.f32 %v1269, %v1013
        %v1526 = vadd.f32 %v1270, %v1014
        %v1527 = vadd.f32 %v1271, %v1015
        %v1528 = vadd.f32 %v1272, %v1016
        %v1529 = vadd.f32 %v1273, %v1017
        %v1530 = vadd.f32 %v1274, %v1018
        %v1531 = vadd.f32 %v1275, %v1019
        %v1532 = vadd.f32 %v1276, %v1020
        %v1533 = vadd.f32 %v1277, %v1021
        %v1534 = vadd.f32 %v1278, %v1022
        %v1535 = vadd.f32 %v1279, %v1023
        %v1536 = vadd.f32 %v1280, %v1024
        %v1537 = vadd.f32 %v1281, %v1025
        %v1538 = vadd.f32 %v1282, %v1026
        %v1539 = vadd.f32 %v1283, %v1027
        %v1540 = vadd.f32 %v1284, %v1028
        %v1541 = vadd.f32 %v1285, %v1029
        %v1542 = vadd.f32 %v1286, %v1030
        %v1543 = vadd.f32 %v1287, %v1031
        %v1544 = vadd.f32 %v1288, %v1032
        %v1545 = vadd.f32 %v1289, %v1033
        %v1546 = vadd.f32 %v1290, %v1034
        %v1547 = vadd.f32 %v1291, %v1035
        %v1548 = vadd.f32 %v1292, %v1036
        %v1549 = vadd.f32 %v1293, %v1037
        %v1550 = vadd.f32 %v1294, %v1038
        %v1551 = vadd.f32 %v1295, %v1039
        %v1552 = vadd.f32 %v1296, %v1040
        %v1553 = vadd.f32 %v1297, %v1041
        %v1554 = vadd.f32 %v1298, %v1042
        %v1555 = vadd.f32 %v1299, %v1043
        %v1556 = vadd.f32 %v1300, %v1044
        %v1557 = vadd.f32 %v1301, %v1045
        %v1558 = vadd.f32 %v1302, %v1046
        %v1559 = vadd.f32 %v1303, %v1047
        %v1560 = vadd.f32 %v1304, %v1048
        %v1561 = vadd.f32 %v1305, %v1049
        %v1562 = vadd.f32 %v1306, %v1050
        %v1563 = vadd.f32 %v1307, %v1051
        %v1564 = vadd.f32 %v1308, %v1052
        %v1565 = vadd.f32 %v1309, %v1053
        %v1566 = vadd.f32 %v1310, %v1054
        %v1567 = vadd.f32 %v1311, %v1055
        %v1568 = vadd.f32 %v1312, %v1056
        %v1569 = vadd.f32 %v1313, %v1057
        %v1570 = vadd.f32 %v1314, %v1058
        %v1571 = vadd.f32 %v1315, %v1059
        %v1572 = vadd.f32 %v1316, %v1060
        %v1573 = vadd.f32 %v1317, %v1061
        %v1574 = vadd.f32 %v1318, %v1062
        %v1575 = vadd.f32 %v1319, %v1063
        %v1576 = vadd.f32 %v1320, %v1064
        %v1577 = vadd.f32 %v1321, %v1065
        %v1578 = vadd.f32 %v1322, %v1066
        %v1579 = vadd.f32 %v1323, %v1067
        %v1580 = vadd.f32 %v1324, %v1068
        %v1581 = vadd.f32 %v1325, %v1069
        %v1582 = vadd.f32 %v1326, %v1070
        %v1583 = vadd.f32 %v1327, %v1071
        %v1584 = vadd.f32 %v1328, %v1072
        %v1585 = vadd.f32 %v1329, %v1073
        %v1586 = vadd.f32 %v1330, %v1074
        %v1587 = vadd.f32 %v1331, %v1075
        %v1588 = vadd.f32 %v1332, %v1076
        %v1589 = vadd.f32 %v1333, %v1077
        %v1590 = vadd.f32 %v1334, %v1078
        %v1591 = vadd.f32 %v1335, %v1079
        %v1592 = vadd.f32 %v1336, %v1080
        %v1593 = vadd.f32 %v1337, %v1081
        %v1594 = vadd.f32 %v1338, %v1082
        %v1595 = vadd.f32 %v1339, %v1083
        %v1596 = vadd.f32 %v1340, %v1084
        %v1597 = vadd.f32 %v1341, %v1085
        %v1598 = vadd.f32 %v1342, %v1086
        %v1599 = vadd.f32 %v1343, %v1087
        %v1600 = vadd.f32 %v1344, %v1088
        %v1601 = vadd.f32 %v1345, %v1089
        %v1602 = vadd.f32 %v1346, %v1090
        %v1603 = vadd.f32 %v1347, %v1091
        %v1604 = vadd.f32 %v1348, %v1092
        %v1605 = vadd.f32 %v1349, %v1093
        %v1606 = vadd.f32 %v1350, %v1094
        %v1607 = vadd.f32 %v1351, %v1095
        %v1608 = vadd.f32 %v1352, %v1096
        %v1609 = vadd.f32 %v1353, %v1097
        %v1610 = vadd.f32 %v1354, %v1098
        %v1611 = vadd.f32 %v1355, %v1099
        %v1612 = vadd.f32 %v1356, %v1100
        %v1613 = vadd.f32 %v1357, %v1101
        %v1614 = vadd.f32 %v1358, %v1102
        %v1615 = vadd.f32 %v1359, %v1103
        %v1616 = vadd.f32 %v1360, %v1104
        %v1617 = vadd.f32 %v1361, %v1105
        %v1618 = vadd.f32 %v1362, %v1106
        %v1619 = vadd.f32 %v1363, %v1107
        %v1620 = vadd.f32 %v1364, %v1108
        %v1621 = vadd.f32 %v1365, %v1109
        %v1622 = vadd.f32 %v1366, %v1110
        %v1623 = vadd.f32 %v1367, %v1111
        %v1624 = vadd.f32 %v1368, %v1112
        %v1625 = vadd.f32 %v1369, %v1113
        %v1626 = vadd.f32 %v1370, %v1114
        %v1627 = vadd.f32 %v1371, %v1115
        %v1628 = vadd.f32 %v1372, %v1116
        %v1629 = vadd.f32 %v1373, %v1117
        %v1630 = vadd.f32 %v1374, %v1118
        %v1631 = vadd.f32 %v1375, %v1119
        %v1632 = vadd.f32 %v1376, %v1120
        %v1633 = vadd.f32 %v1377, %v1121
        %v1634 = vadd.f32 %v1378, %v1122
        %v1635 = vadd.f32 %v1379, %v1123
        %v1636 = vadd.f32 %v1380, %v1124
        %v1637 = vadd.f32 %v1381, %v1125
        %v1638 = vadd.f32 %v1382, %v1126
        %v1639 = vadd.f32 %v1383, %v1127
        %v1640 = vadd.f32 %v1384, %v1128
        %v1641 = vadd.f32 %v1385, %v1129
        %v1642 = vadd.f32 %v1386, %v1130
        %v1643 = vadd.f32 %v1387, %v1131
        %v1644 = vadd.f32 %v1388, %v1132
        %v1645 = vadd.f32 %v1389, %v1133
        %v1646 = vadd.f32 %v1390, %v1134
        %v1647 = vadd.f32 %v1391, %v1135
        %v1648 = vadd.f32 %v1392, %v1136
        %v1649 = vadd.f32 %v1393, %v1137
        %v1650 = vadd.f32 %v1394, %v1138
        %v1651 = vadd.f32 %v1395, %v1139
        %v1652 = vadd.f32 %v1396, %v1140
        %v1653 = vadd.f32 %v1397, %v1141
        %v1654 = vadd.f32 %v1398, %v1142
        %v1655 = vadd.f32 %v1399, %v1143
        %v1656 = vadd.f32 %v1400, %v1144
        %v1657 = vadd.f32 %v1401, %v1145
        %v1658 = vadd.f32 %v1402, %v1146
        %v1659 = vadd.f32 %v1403, %v1147
        %v1660 = vadd.f32 %v1404, %v1148
        %v1661 = vadd.f32 %v1405, %v1149
        %v1662 = vadd.f32 %v1406, %v1150
        %v1663 = vadd.f32 %v1407, %v1151
        %v1664 = vadd.f32 %v1408, %v1152
        %v1665 = vadd.f32 %v1409, %v1153
        %v1666 = vadd.f32 %v1410, %v1154
        %v1667 = vadd.f32 %v1411, %v1155
        %v1668 = vadd.f32 %v1412, %v1156
        %v1669 = vadd.f32 %v1413, %v1157
        %v1670 = vadd.f32 %v1414, %v1158
        %v1671 = vadd.f32 %v1415, %v1159
        %v1672 = vadd.f32 %v1416, %v1160
        %v1673 = vadd.f32 %v1417, %v1161
        %v1674 = vadd.f32 %v1418, %v1162
        %v1675 = vadd.f32 %v1419, %v1163
        %v1676 = vadd.f32 %v1420, %v1164
        %v1677 = vadd.f32 %v1421, %v1165
        %v1678 = vadd.f32 %v1422, %v1166
        %v1679 = vadd.f32 %v1423, %v1167
        %v1680 = vadd.f32 %v1424, %v1168
        %v1681 = vadd.f32 %v1425, %v1169
        %v1682 = vadd.f32 %v1426, %v1170
        %v1683 = vadd.f32 %v1427, %v1171
        %v1684 = vadd.f32 %v1428, %v1172
        %v1685 = vadd.f32 %v1429, %v1173
        %v1686 = vadd.f32 %v1430, %v1174
        %v1687 = vadd.f32 %v1431, %v1175
        %v1688 = vadd.f32 %v1432, %v1176
        %v1689 = vadd.f32 %v1433, %v1177
        %v1690 = vadd.f32 %v1434, %v1178
        %v1691 = vadd.f32 %v1435, %v1179
        %v1692 = vadd.f32 %v1436, %v1180
        %v1693 = vadd.f32 %v1437, %v1181
        %v1694 = vadd.f32 %v1438, %v1182
        %v1695 = vadd.f32 %v1439, %v1183
        %v1696 = vadd.f32 %v1440, %v1184
        %v1697 = vadd.f32 %v1441, %v1185
        %v1698 = vadd.f32 %v1442, %v1186
        %v1699 = vadd.f32 %v1443, %v1187
        %v1700 = vadd.f32 %v1444, %v1188
        %v1701 = vadd.f32 %v1445, %v1189
        %v1702 = vadd.f32 %v1446, %v1190
        %v1703 = vadd.f32 %v1447, %v1191
        %v1704 = vadd.f32 %v1448, %v1192
        %v1705 = vadd.f32 %v1449, %v1193
        %v1706 = vadd.f32 %v1450, %v1194
        %v1707 = vadd.f32 %v1451, %v1195
        %v1708 = vadd.f32 %v1452, %v1196
        %v1709 = vadd.f32 %v1453, %v1197
        %v1710 = vadd.f32 %v1454, %v1198
        %v1711 = vadd.f32 %v1455, %v1199
        %v1712 = vadd.f32 %v1456, %v1200
        %1713 = vst [vmem:[#allocation2] sm:$0xff] %v1457
        %1714 = vst [vmem:[#allocation2 + $0x8] sm:$0xff] %v1458
        %1715 = vst [vmem:[#allocation2 + $0x10] sm:$0xff] %v1459
        %1716 = vst [vmem:[#allocation2 + $0x18] sm:$0xff] %v1460
        %1717 = vst [vmem:[#allocation2 + $0x20] sm:$0xff] %v1461
        %1718 = vst [vmem:[#allocation2 + $0x28] sm:$0xff] %v1462
        %1719 = vst [vmem:[#allocation2 + $0x30] sm:$0xff] %v1463
        %1720 = vst [vmem:[#allocation2 + $0x38] sm:$0xff] %v1464
        %1721 = vst [vmem:[#allocation2 + $0x40] sm:$0xff] %v1465
        %1722 = vst [vmem:[#allocation2 + $0x48] sm:$0xff] %v1466
        %1723 = vst [vmem:[#allocation2 + $0x50] sm:$0xff] %v1467
        %1724 = vst [vmem:[#allocation2 + $0x58] sm:$0xff] %v1468
        %1725 = vst [vmem:[#allocation2 + $0x60] sm:$0xff] %v1469
        %1726 = vst [vmem:[#allocation2 + $0x68] sm:$0xff] %v1470
        %1727 = vst [vmem:[#allocation2 + $0x70] sm:$0xff] %v1471
        %1728 = vst [vmem:[#allocation2 + $0x78] sm:$0xff] %v1472
        %1729 = vst [vmem:[#allocation2 + $0x80] sm:$0xff] %v1473
        %1730 = vst [vmem:[#allocation2 + $0x88] sm:$0xff] %v1474
        %1731 = vst [vmem:[#allocation2 + $0x90] sm:$0xff] %v1475
        %1732 = vst [vmem:[#allocation2 + $0x98] sm:$0xff] %v1476
        %1733 = vst [vmem:[#allocation2 + $0xa0] sm:$0xff] %v1477
        %1734 = vst [vmem:[#allocation2 + $0xa8] sm:$0xff] %v1478
        %1735 = vst [vmem:[#allocation2 + $0xb0] sm:$0xff] %v1479
        %1736 = vst [vmem:[#allocation2 + $0xb8] sm:$0xff] %v1480
        %1737 = vst [vmem:[#allocation2 + $0xc0] sm:$0xff] %v1481
        %1738 = vst [vmem:[#allocation2 + $0xc8] sm:$0xff] %v1482
        %1739 = vst [vmem:[#allocation2 + $0xd0] sm:$0xff] %v1483
        %1740 = vst [vmem:[#allocation2 + $0xd8] sm:$0xff] %v1484
        %1741 = vst [vmem:[#allocation2 + $0xe0] sm:$0xff] %v1485
        %1742 = vst [vmem:[#allocation2 + $0xe8] sm:$0xff] %v1486
        %1743 = vst [vmem:[#allocation2 + $0xf0] sm:$0xff] %v1487
        %1744 = vst [vmem:[#allocation2 + $0xf8] sm:$0xff] %v1488
        %1745 = vst [vmem:[#allocation2 + $0x100] sm:$0xff] %v1489
        %1746 = vst [vmem:[#allocation2 + $0x108] sm:$0xff] %v1490
        %1747 = vst [vmem:[#allocation2 + $0x110] sm:$0xff] %v1491
        %1748 = vst [vmem:[#allocation2 + $0x118] sm:$0xff] %v1492
        %1749 = vst [vmem:[#allocation2 + $0x120] sm:$0xff] %v1493
        %1750 = vst [vmem:[#allocation2 + $0x128] sm:$0xff] %v1494
        %1751 = vst [vmem:[#allocation2 + $0x130] sm:$0xff] %v1495
        %1752 = vst [vmem:[#allocation2 + $0x138] sm:$0xff] %v1496
        %1753 = vst [vmem:[#allocation2 + $0x140] sm:$0xff] %v1497
        %1754 = vst [vmem:[#allocation2 + $0x148] sm:$0xff] %v1498
        %1755 = vst [vmem:[#allocation2 + $0x150] sm:$0xff] %v1499
        %1756 = vst [vmem:[#allocation2 + $0x158] sm:$0xff] %v1500
        %1757 = vst [vmem:[#allocation2 + $0x160] sm:$0xff] %v1501
        %1758 = vst [vmem:[#allocation2 + $0x168] sm:$0xff] %v1502
        %1759 = vst [vmem:[#allocation2 + $0x170] sm:$0xff] %v1503
        %1760 = vst [vmem:[#allocation2 + $0x178] sm:$0xff] %v1504
        %1761 = vst [vmem:[#allocation2 + $0x180] sm:$0xff] %v1505
        %1762 = vst [vmem:[#allocation2 + $0x188] sm:$0xff] %v1506
        %1763 = vst [vmem:[#allocation2 + $0x190] sm:$0xff] %v1507
        %1764 = vst [vmem:[#allocation2 + $0x198] sm:$0xff] %v1508
        %1765 = vst [vmem:[#allocation2 + $0x1a0] sm:$0xff] %v1509
        %1766 = vst [vmem:[#allocation2 + $0x1a8] sm:$0xff] %v1510
        %1767 = vst [vmem:[#allocation2 + $0x1b0] sm:$0xff] %v1511
        %1768 = vst [vmem:[#allocation2 + $0x1b8] sm:$0xff] %v1512
        %1769 = vst [vmem:[#allocation2 + $0x1c0] sm:$0xff] %v1513
        %1770 = vst [vmem:[#allocation2 + $0x1c8] sm:$0xff] %v1514
        %1771 = vst [vmem:[#allocation2 + $0x1d0] sm:$0xff] %v1515
        %1772 = vst [vmem:[#allocation2 + $0x1d8] sm:$0xff] %v1516
        %1773 = vst [vmem:[#allocation2 + $0x1e0] sm:$0xff] %v1517
        %1774 = vst [vmem:[#allocation2 + $0x1e8] sm:$0xff] %v1518
        %1775 = vst [vmem:[#allocation2 + $0x1f0] sm:$0xff] %v1519
        %1776 = vst [vmem:[#allocation2 + $0x1f8] sm:$0xff] %v1520
        %1777 = vst [vmem:[#allocation2 + $0x200] sm:$0xff] %v1521
        %1778 = vst [vmem:[#allocation2 + $0x208] sm:$0xff] %v1522
        %1779 = vst [vmem:[#allocation2 + $0x210] sm:$0xff] %v1523
        %1780 = vst [vmem:[#allocation2 + $0x218] sm:$0xff] %v1524
        %1781 = vst [vmem:[#allocation2 + $0x220] sm:$0xff] %v1525
        %1782 = vst [vmem:[#allocation2 + $0x228] sm:$0xff] %v1526
        %1783 = vst [vmem:[#allocation2 + $0x230] sm:$0xff] %v1527
        %1784 = vst [vmem:[#allocation2 + $0x238] sm:$0xff] %v1528
        %1785 = vst [vmem:[#allocation2 + $0x240] sm:$0xff] %v1529
        %1786 = vst [vmem:[#allocation2 + $0x248] sm:$0xff] %v1530
        %1787 = vst [vmem:[#allocation2 + $0x250] sm:$0xff] %v1531
        %1788 = vst [vmem:[#allocation2 + $0x258] sm:$0xff] %v1532
        %1789 = vst [vmem:[#allocation2 + $0x260] sm:$0xff] %v1533
        %1790 = vst [vmem:[#allocation2 + $0x268] sm:$0xff] %v1534
        %1791 = vst [vmem:[#allocation2 + $0x270] sm:$0xff] %v1535
        %1792 = vst [vmem:[#allocation2 + $0x278] sm:$0xff] %v1536
        %1793 = vst [vmem:[#allocation2 + $0x280] sm:$0xff] %v1537
        %1794 = vst [vmem:[#allocation2 + $0x288] sm:$0xff] %v1538
        %1795 = vst [vmem:[#allocation2 + $0x290] sm:$0xff] %v1539
        %1796 = vst [vmem:[#allocation2 + $0x298] sm:$0xff] %v1540
        %1797 = vst [vmem:[#allocation2 + $0x2a0] sm:$0xff] %v1541
        %1798 = vst [vmem:[#allocation2 + $0x2a8] sm:$0xff] %v1542
        %1799 = vst [vmem:[#allocation2 + $0x2b0] sm:$0xff] %v1543
        %1800 = vst [vmem:[#allocation2 + $0x2b8] sm:$0xff] %v1544
        %1801 = vst [vmem:[#allocation2 + $0x2c0] sm:$0xff] %v1545
        %1802 = vst [vmem:[#allocation2 + $0x2c8] sm:$0xff] %v1546
        %1803 = vst [vmem:[#allocation2 + $0x2d0] sm:$0xff] %v1547
        %1804 = vst [vmem:[#allocation2 + $0x2d8] sm:$0xff] %v1548
        %1805 = vst [vmem:[#allocation2 + $0x2e0] sm:$0xff] %v1549
        %1806 = vst [vmem:[#allocation2 + $0x2e8] sm:$0xff] %v1550
        %1807 = vst [vmem:[#allocation2 + $0x2f0] sm:$0xff] %v1551
        %1808 = vst [vmem:[#allocation2 + $0x2f8] sm:$0xff] %v1552
        %1809 = vst [vmem:[#allocation2 + $0x300] sm:$0xff] %v1553
        %1810 = vst [vmem:[#allocation2 + $0x308] sm:$0xff] %v1554
        %1811 = vst [vmem:[#allocation2 + $0x310] sm:$0xff] %v1555
        %1812 = vst [vmem:[#allocation2 + $0x318] sm:$0xff] %v1556
        %1813 = vst [vmem:[#allocation2 + $0x320] sm:$0xff] %v1557
        %1814 = vst [vmem:[#allocation2 + $0x328] sm:$0xff] %v1558
        %1815 = vst [vmem:[#allocation2 + $0x330] sm:$0xff] %v1559
        %1816 = vst [vmem:[#allocation2 + $0x338] sm:$0xff] %v1560
        %1817 = vst [vmem:[#allocation2 + $0x340] sm:$0xff] %v1561
        %1818 = vst [vmem:[#allocation2 + $0x348] sm:$0xff] %v1562
        %1819 = vst [vmem:[#allocation2 + $0x350] sm:$0xff] %v1563
        %1820 = vst [vmem:[#allocation2 + $0x358] sm:$0xff] %v1564
        %1821 = vst [vmem:[#allocation2 + $0x360] sm:$0xff] %v1565
        %1822 = vst [vmem:[#allocation2 + $0x368] sm:$0xff] %v1566
        %1823 = vst [vmem:[#allocation2 + $0x370] sm:$0xff] %v1567
        %1824 = vst [vmem:[#allocation2 + $0x378] sm:$0xff] %v1568
        %1825 = vst [vmem:[#allocation2 + $0x380] sm:$0xff] %v1569
        %1826 = vst [vmem:[#allocation2 + $0x388] sm:$0xff] %v1570
        %1827 = vst [vmem:[#allocation2 + $0x390] sm:$0xff] %v1571
        %1828 = vst [vmem:[#allocation2 + $0x398] sm:$0xff] %v1572
        %1829 = vst [vmem:[#allocation2 + $0x3a0] sm:$0xff] %v1573
        %1830 = vst [vmem:[#allocation2 + $0x3a8] sm:$0xff] %v1574
        %1831 = vst [vmem:[#allocation2 + $0x3b0] sm:$0xff] %v1575
        %1832 = vst [vmem:[#allocation2 + $0x3b8] sm:$0xff] %v1576
        %1833 = vst [vmem:[#allocation2 + $0x3c0] sm:$0xff] %v1577
        %1834 = vst [vmem:[#allocation2 + $0x3c8] sm:$0xff] %v1578
        %1835 = vst [vmem:[#allocation2 + $0x3d0] sm:$0xff] %v1579
        %1836 = vst [vmem:[#allocation2 + $0x3d8] sm:$0xff] %v1580
        %1837 = vst [vmem:[#allocation2 + $0x3e0] sm:$0xff] %v1581
        %1838 = vst [vmem:[#allocation2 + $0x3e8] sm:$0xff] %v1582
        %1839 = vst [vmem:[#allocation2 + $0x3f0] sm:$0xff] %v1583
        %1840 = vst [vmem:[#allocation2 + $0x3f8] sm:$0xff] %v1584
        %1841 = vst [vmem:[#allocation2 + $0x400] sm:$0xff] %v1585
        %1842 = vst [vmem:[#allocation2 + $0x408] sm:$0xff] %v1586
        %1843 = vst [vmem:[#allocation2 + $0x410] sm:$0xff] %v1587
        %1844 = vst [vmem:[#allocation2 + $0x418] sm:$0xff] %v1588
        %1845 = vst [vmem:[#allocation2 + $0x420] sm:$0xff] %v1589
        %1846 = vst [vmem:[#allocation2 + $0x428] sm:$0xff] %v1590
        %1847 = vst [vmem:[#allocation2 + $0x430] sm:$0xff] %v1591
        %1848 = vst [vmem:[#allocation2 + $0x438] sm:$0xff] %v1592
        %1849 = vst [vmem:[#allocation2 + $0x440] sm:$0xff] %v1593
        %1850 = vst [vmem:[#allocation2 + $0x448] sm:$0xff] %v1594
        %1851 = vst [vmem:[#allocation2 + $0x450] sm:$0xff] %v1595
        %1852 = vst [vmem:[#allocation2 + $0x458] sm:$0xff] %v1596
        %1853 = vst [vmem:[#allocation2 + $0x460] sm:$0xff] %v1597
        %1854 = vst [vmem:[#allocation2 + $0x468] sm:$0xff] %v1598
        %1855 = vst [vmem:[#allocation2 + $0x470] sm:$0xff] %v1599
        %1856 = vst [vmem:[#allocation2 + $0x478] sm:$0xff] %v1600
        %1857 = vst [vmem:[#allocation2 + $0x480] sm:$0xff] %v1601
        %1858 = vst [vmem:[#allocation2 + $0x488] sm:$0xff] %v1602
        %1859 = vst [vmem:[#allocation2 + $0x490] sm:$0xff] %v1603
        %1860 = vst [vmem:[#allocation2 + $0x498] sm:$0xff] %v1604
        %1861 = vst [vmem:[#allocation2 + $0x4a0] sm:$0xff] %v1605
        %1862 = vst [vmem:[#allocation2 + $0x4a8] sm:$0xff] %v1606
        %1863 = vst [vmem:[#allocation2 + $0x4b0] sm:$0xff] %v1607
        %1864 = vst [vmem:[#allocation2 + $0x4b8] sm:$0xff] %v1608
        %1865 = vst [vmem:[#allocation2 + $0x4c0] sm:$0xff] %v1609
        %1866 = vst [vmem:[#allocation2 + $0x4c8] sm:$0xff] %v1610
        %1867 = vst [vmem:[#allocation2 + $0x4d0] sm:$0xff] %v1611
        %1868 = vst [vmem:[#allocation2 + $0x4d8] sm:$0xff] %v1612
        %1869 = vst [vmem:[#allocation2 + $0x4e0] sm:$0xff] %v1613
        %1870 = vst [vmem:[#allocation2 + $0x4e8] sm:$0xff] %v1614
        %1871 = vst [vmem:[#allocation2 + $0x4f0] sm:$0xff] %v1615
        %1872 = vst [vmem:[#allocation2 + $0x4f8] sm:$0xff] %v1616
        %1873 = vst [vmem:[#allocation2 + $0x500] sm:$0xff] %v1617
        %1874 = vst [vmem:[#allocation2 + $0x508] sm:$0xff] %v1618
        %1875 = vst [vmem:[#allocation2 + $0x510] sm:$0xff] %v1619
        %1876 = vst [vmem:[#allocation2 + $0x518] sm:$0xff] %v1620
        %1877 = vst [vmem:[#allocation2 + $0x520] sm:$0xff] %v1621
        %1878 = vst [vmem:[#allocation2 + $0x528] sm:$0xff] %v1622
        %1879 = vst [vmem:[#allocation2 + $0x530] sm:$0xff] %v1623
        %1880 = vst [vmem:[#allocation2 + $0x538] sm:$0xff] %v1624
        %1881 = vst [vmem:[#allocation2 + $0x540] sm:$0xff] %v1625
        %1882 = vst [vmem:[#allocation2 + $0x548] sm:$0xff] %v1626
        %1883 = vst [vmem:[#allocation2 + $0x550] sm:$0xff] %v1627
        %1884 = vst [vmem:[#allocation2 + $0x558] sm:$0xff] %v1628
        %1885 = vst [vmem:[#allocation2 + $0x560] sm:$0xff] %v1629
        %1886 = vst [vmem:[#allocation2 + $0x568] sm:$0xff] %v1630
        %1887 = vst [vmem:[#allocation2 + $0x570] sm:$0xff] %v1631
        %1888 = vst [vmem:[#allocation2 + $0x578] sm:$0xff] %v1632
        %1889 = vst [vmem:[#allocation2 + $0x580] sm:$0xff] %v1633
        %1890 = vst [vmem:[#allocation2 + $0x588] sm:$0xff] %v1634
        %1891 = vst [vmem:[#allocation2 + $0x590] sm:$0xff] %v1635
        %1892 = vst [vmem:[#allocation2 + $0x598] sm:$0xff] %v1636
        %1893 = vst [vmem:[#allocation2 + $0x5a0] sm:$0xff] %v1637
        %1894 = vst [vmem:[#allocation2 + $0x5a8] sm:$0xff] %v1638
        %1895 = vst [vmem:[#allocation2 + $0x5b0] sm:$0xff] %v1639
        %1896 = vst [vmem:[#allocation2 + $0x5b8] sm:$0xff] %v1640
        %1897 = vst [vmem:[#allocation2 + $0x5c0] sm:$0xff] %v1641
        %1898 = vst [vmem:[#allocation2 + $0x5c8] sm:$0xff] %v1642
        %1899 = vst [vmem:[#allocation2 + $0x5d0] sm:$0xff] %v1643
        %1900 = vst [vmem:[#allocation2 + $0x5d8] sm:$0xff] %v1644
        %1901 = vst [vmem:[#allocation2 + $0x5e0] sm:$0xff] %v1645
        %1902 = vst [vmem:[#allocation2 + $0x5e8] sm:$0xff] %v1646
        %1903 = vst [vmem:[#allocation2 + $0x5f0] sm:$0xff] %v1647
        %1904 = vst [vmem:[#allocation2 + $0x5f8] sm:$0xff] %v1648
        %1905 = vst [vmem:[#allocation2 + $0x600] sm:$0xff] %v1649
        %1906 = vst [vmem:[#allocation2 + $0x608] sm:$0xff] %v1650
        %1907 = vst [vmem:[#allocation2 + $0x610] sm:$0xff] %v1651
        %1908 = vst [vmem:[#allocation2 + $0x618] sm:$0xff] %v1652
        %1909 = vst [vmem:[#allocation2 + $0x620] sm:$0xff] %v1653
        %1910 = vst [vmem:[#allocation2 + $0x628] sm:$0xff] %v1654
        %1911 = vst [vmem:[#allocation2 + $0x630] sm:$0xff] %v1655
        %1912 = vst [vmem:[#allocation2 + $0x638] sm:$0xff] %v1656
        %1913 = vst [vmem:[#allocation2 + $0x640] sm:$0xff] %v1657
        %1914 = vst [vmem:[#allocation2 + $0x648] sm:$0xff] %v1658
        %1915 = vst [vmem:[#allocation2 + $0x650] sm:$0xff] %v1659
        %1916 = vst [vmem:[#allocation2 + $0x658] sm:$0xff] %v1660
        %1917 = vst [vmem:[#allocation2 + $0x660] sm:$0xff] %v1661
        %1918 = vst [vmem:[#allocation2 + $0x668] sm:$0xff] %v1662
        %1919 = vst [vmem:[#allocation2 + $0x670] sm:$0xff] %v1663
        %1920 = vst [vmem:[#allocation2 + $0x678] sm:$0xff] %v1664
        %1921 = vst [vmem:[#allocation2 + $0x680] sm:$0xff] %v1665
        %1922 = vst [vmem:[#allocation2 + $0x688] sm:$0xff] %v1666
        %1923 = vst [vmem:[#allocation2 + $0x690] sm:$0xff] %v1667
        %1924 = vst [vmem:[#allocation2 + $0x698] sm:$0xff] %v1668
        %1925 = vst [vmem:[#allocation2 + $0x6a0] sm:$0xff] %v1669
        %1926 = vst [vmem:[#allocation2 + $0x6a8] sm:$0xff] %v1670
        %1927 = vst [vmem:[#allocation2 + $0x6b0] sm:$0xff] %v1671
        %1928 = vst [vmem:[#allocation2 + $0x6b8] sm:$0xff] %v1672
        %1929 = vst [vmem:[#allocation2 + $0x6c0] sm:$0xff] %v1673
        %1930 = vst [vmem:[#allocation2 + $0x6c8] sm:$0xff] %v1674
        %1931 = vst [vmem:[#allocation2 + $0x6d0] sm:$0xff] %v1675
        %1932 = vst [vmem:[#allocation2 + $0x6d8] sm:$0xff] %v1676
        %1933 = vst [vmem:[#allocation2 + $0x6e0] sm:$0xff] %v1677
        %1934 = vst [vmem:[#allocation2 + $0x6e8] sm:$0xff] %v1678
        %1935 = vst [vmem:[#allocation2 + $0x6f0] sm:$0xff] %v1679
        %1936 = vst [vmem:[#allocation2 + $0x6f8] sm:$0xff] %v1680
        %1937 = vst [vmem:[#allocation2 + $0x700] sm:$0xff] %v1681
        %1938 = vst [vmem:[#allocation2 + $0x708] sm:$0xff] %v1682
        %1939 = vst [vmem:[#allocation2 + $0x710] sm:$0xff] %v1683
        %1940 = vst [vmem:[#allocation2 + $0x718] sm:$0xff] %v1684
        %1941 = vst [vmem:[#allocation2 + $0x720] sm:$0xff] %v1685
        %1942 = vst [vmem:[#allocation2 + $0x728] sm:$0xff] %v1686
        %1943 = vst [vmem:[#allocation2 + $0x730] sm:$0xff] %v1687
        %1944 = vst [vmem:[#allocation2 + $0x738] sm:$0xff] %v1688
        %1945 = vst [vmem:[#allocation2 + $0x740] sm:$0xff] %v1689
        %1946 = vst [vmem:[#allocation2 + $0x748] sm:$0xff] %v1690
        %1947 = vst [vmem:[#allocation2 + $0x750] sm:$0xff] %v1691
        %1948 = vst [vmem:[#allocation2 + $0x758] sm:$0xff] %v1692
        %1949 = vst [vmem:[#allocation2 + $0x760] sm:$0xff] %v1693
        %1950 = vst [vmem:[#allocation2 + $0x768] sm:$0xff] %v1694
        %1951 = vst [vmem:[#allocation2 + $0x770] sm:$0xff] %v1695
        %1952 = vst [vmem:[#allocation2 + $0x778] sm:$0xff] %v1696
        %1953 = vst [vmem:[#allocation2 + $0x780] sm:$0xff] %v1697
        %1954 = vst [vmem:[#allocation2 + $0x788] sm:$0xff] %v1698
        %1955 = vst [vmem:[#allocation2 + $0x790] sm:$0xff] %v1699
        %1956 = vst [vmem:[#allocation2 + $0x798] sm:$0xff] %v1700
        %1957 = vst [vmem:[#allocation2 + $0x7a0] sm:$0xff] %v1701
        %1958 = vst [vmem:[#allocation2 + $0x7a8] sm:$0xff] %v1702
        %1959 = vst [vmem:[#allocation2 + $0x7b0] sm:$0xff] %v1703
        %1960 = vst [vmem:[#allocation2 + $0x7b8] sm:$0xff] %v1704
        %1961 = vst [vmem:[#allocation2 + $0x7c0] sm:$0xff] %v1705
        %1962 = vst [vmem:[#allocation2 + $0x7c8] sm:$0xff] %v1706
        %1963 = vst [vmem:[#allocation2 + $0x7d0] sm:$0xff] %v1707
        %1964 = vst [vmem:[#allocation2 + $0x7d8] sm:$0xff] %v1708
        %1965 = vst [vmem:[#allocation2 + $0x7e0] sm:$0xff] %v1709
        %1966 = vst [vmem:[#allocation2 + $0x7e8] sm:$0xff] %v1710
        %1967 = vst [vmem:[#allocation2 + $0x7f0] sm:$0xff] %v1711
        %1968 = vst [vmem:[#allocation2 + $0x7f8] sm:$0xff] %v1712
        %v1969 = vld [vmem:[%s140 + $0x4] sm:$0xf]
        %v1970 = vld [vmem:[%s140 + $0xc] sm:$0xf]
        %v1971 = vld [vmem:[%s140 + $0x14] sm:$0xf]
        %v1972 = vld [vmem:[%s140 + $0x1c] sm:$0xf]
        %v1973 = vld [vmem:[%s140 + $0x24] sm:$0xf]
        %v1974 = vld [vmem:[%s140 + $0x2c] sm:$0xf]
        %v1975 = vld [vmem:[%s140 + $0x34] sm:$0xf]
        %v1976 = vld [vmem:[%s140 + $0x3c] sm:$0xf]
        %v1977 = vld [vmem:[%s140 + $0x44] sm:$0xf]
        %v1978 = vld [vmem:[%s140 + $0x4c] sm:$0xf]
        %v1979 = vld [vmem:[%s140 + $0x54] sm:$0xf]
        %v1980 = vld [vmem:[%s140 + $0x5c] sm:$0xf]
        %v1981 = vld [vmem:[%s140 + $0x64] sm:$0xf]
        %v1982 = vld [vmem:[%s140 + $0x6c] sm:$0xf]
        %v1983 = vld [vmem:[%s140 + $0x74] sm:$0xf]
        %v1984 = vld [vmem:[%s140 + $0x7c] sm:$0xf]
        %v1985 = vld [vmem:[%s140 + $0x84] sm:$0xf]
        %v1986 = vld [vmem:[%s140 + $0x8c] sm:$0xf]
        %v1987 = vld [vmem:[%s140 + $0x94] sm:$0xf]
        %v1988 = vld [vmem:[%s140 + $0x9c] sm:$0xf]
        %v1989 = vld [vmem:[%s140 + $0xa4] sm:$0xf]
        %v1990 = vld [vmem:[%s140 + $0xac] sm:$0xf]
        %v1991 = vld [vmem:[%s140 + $0xb4] sm:$0xf]
        %v1992 = vld [vmem:[%s140 + $0xbc] sm:$0xf]
        %v1993 = vld [vmem:[%s140 + $0xc4] sm:$0xf]
        %v1994 = vld [vmem:[%s140 + $0xcc] sm:$0xf]
        %v1995 = vld [vmem:[%s140 + $0xd4] sm:$0xf]
        %v1996 = vld [vmem:[%s140 + $0xdc] sm:$0xf]
        %v1997 = vld [vmem:[%s140 + $0xe4] sm:$0xf]
        %v1998 = vld [vmem:[%s140 + $0xec] sm:$0xf]
        %v1999 = vld [vmem:[%s140 + $0xf4] sm:$0xf]
        %v2000 = vld [vmem:[%s140 + $0xfc] sm:$0xf]
        %v2001 = vld [vmem:[%s140 + $0x104] sm:$0xf]
        %v2002 = vld [vmem:[%s140 + $0x10c] sm:$0xf]
        %v2003 = vld [vmem:[%s140 + $0x114] sm:$0xf]
        %v2004 = vld [vmem:[%s140 + $0x11c] sm:$0xf]
        %v2005 = vld [vmem:[%s140 + $0x124] sm:$0xf]
        %v2006 = vld [vmem:[%s140 + $0x12c] sm:$0xf]
        %v2007 = vld [vmem:[%s140 + $0x134] sm:$0xf]
        %v2008 = vld [vmem:[%s140 + $0x13c] sm:$0xf]
        %v2009 = vld [vmem:[%s140 + $0x144] sm:$0xf]
        %v2010 = vld [vmem:[%s140 + $0x14c] sm:$0xf]
        %v2011 = vld [vmem:[%s140 + $0x154] sm:$0xf]
        %v2012 = vld [vmem:[%s140 + $0x15c] sm:$0xf]
        %v2013 = vld [vmem:[%s140 + $0x164] sm:$0xf]
        %v2014 = vld [vmem:[%s140 + $0x16c] sm:$0xf]
        %v2015 = vld [vmem:[%s140 + $0x174] sm:$0xf]
        %v2016 = vld [vmem:[%s140 + $0x17c] sm:$0xf]
        %v2017 = vld [vmem:[%s140 + $0x184] sm:$0xf]
        %v2018 = vld [vmem:[%s140 + $0x18c] sm:$0xf]
        %v2019 = vld [vmem:[%s140 + $0x194] sm:$0xf]
        %v2020 = vld [vmem:[%s140 + $0x19c] sm:$0xf]
        %v2021 = vld [vmem:[%s140 + $0x1a4] sm:$0xf]
        %v2022 = vld [vmem:[%s140 + $0x1ac] sm:$0xf]
        %v2023 = vld [vmem:[%s140 + $0x1b4] sm:$0xf]
        %v2024 = vld [vmem:[%s140 + $0x1bc] sm:$0xf]
        %v2025 = vld [vmem:[%s140 + $0x1c4] sm:$0xf]
        %v2026 = vld [vmem:[%s140 + $0x1cc] sm:$0xf]
        %v2027 = vld [vmem:[%s140 + $0x1d4] sm:$0xf]
        %v2028 = vld [vmem:[%s140 + $0x1dc] sm:$0xf]
        %v2029 = vld [vmem:[%s140 + $0x1e4] sm:$0xf]
        %v2030 = vld [vmem:[%s140 + $0x1ec] sm:$0xf]
        %v2031 = vld [vmem:[%s140 + $0x1f4] sm:$0xf]
        %v2032 = vld [vmem:[%s140 + $0x1fc] sm:$0xf]
        %v2033 = vld [vmem:[%s140 + $0x204] sm:$0xf]
        %v2034 = vld [vmem:[%s140 + $0x20c] sm:$0xf]
        %v2035 = vld [vmem:[%s140 + $0x214] sm:$0xf]
        %v2036 = vld [vmem:[%s140 + $0x21c] sm:$0xf]
        %v2037 = vld [vmem:[%s140 + $0x224] sm:$0xf]
        %v2038 = vld [vmem:[%s140 + $0x22c] sm:$0xf]
        %v2039 = vld [vmem:[%s140 + $0x234] sm:$0xf]
        %v2040 = vld [vmem:[%s140 + $0x23c] sm:$0xf]
        %v2041 = vld [vmem:[%s140 + $0x244] sm:$0xf]
        %v2042 = vld [vmem:[%s140 + $0x24c] sm:$0xf]
        %v2043 = vld [vmem:[%s140 + $0x254] sm:$0xf]
        %v2044 = vld [vmem:[%s140 + $0x25c] sm:$0xf]
        %v2045 = vld [vmem:[%s140 + $0x264] sm:$0xf]
        %v2046 = vld [vmem:[%s140 + $0x26c] sm:$0xf]
        %v2047 = vld [vmem:[%s140 + $0x274] sm:$0xf]
        %v2048 = vld [vmem:[%s140 + $0x27c] sm:$0xf]
        %v2049 = vld [vmem:[%s140 + $0x284] sm:$0xf]
        %v2050 = vld [vmem:[%s140 + $0x28c] sm:$0xf]
        %v2051 = vld [vmem:[%s140 + $0x294] sm:$0xf]
        %v2052 = vld [vmem:[%s140 + $0x29c] sm:$0xf]
        %v2053 = vld [vmem:[%s140 + $0x2a4] sm:$0xf]
        %v2054 = vld [vmem:[%s140 + $0x2ac] sm:$0xf]
        %v2055 = vld [vmem:[%s140 + $0x2b4] sm:$0xf]
        %v2056 = vld [vmem:[%s140 + $0x2bc] sm:$0xf]
        %v2057 = vld [vmem:[%s140 + $0x2c4] sm:$0xf]
        %v2058 = vld [vmem:[%s140 + $0x2cc] sm:$0xf]
        %v2059 = vld [vmem:[%s140 + $0x2d4] sm:$0xf]
        %v2060 = vld [vmem:[%s140 + $0x2dc] sm:$0xf]
        %v2061 = vld [vmem:[%s140 + $0x2e4] sm:$0xf]
        %v2062 = vld [vmem:[%s140 + $0x2ec] sm:$0xf]
        %v2063 = vld [vmem:[%s140 + $0x2f4] sm:$0xf]
        %v2064 = vld [vmem:[%s140 + $0x2fc] sm:$0xf]
        %v2065 = vld [vmem:[%s140 + $0x304] sm:$0xf]
        %v2066 = vld [vmem:[%s140 + $0x30c] sm:$0xf]
        %v2067 = vld [vmem:[%s140 + $0x314] sm:$0xf]
        %v2068 = vld [vmem:[%s140 + $0x31c] sm:$0xf]
        %v2069 = vld [vmem:[%s140 + $0x324] sm:$0xf]
        %v2070 = vld [vmem:[%s140 + $0x32c] sm:$0xf]
        %v2071 = vld [vmem:[%s140 + $0x334] sm:$0xf]
        %v2072 = vld [vmem:[%s140 + $0x33c] sm:$0xf]
        %v2073 = vld [vmem:[%s140 + $0x344] sm:$0xf]
        %v2074 = vld [vmem:[%s140 + $0x34c] sm:$0xf]
        %v2075 = vld [vmem:[%s140 + $0x354] sm:$0xf]
        %v2076 = vld [vmem:[%s140 + $0x35c] sm:$0xf]
        %v2077 = vld [vmem:[%s140 + $0x364] sm:$0xf]
        %v2078 = vld [vmem:[%s140 + $0x36c] sm:$0xf]
        %v2079 = vld [vmem:[%s140 + $0x374] sm:$0xf]
        %v2080 = vld [vmem:[%s140 + $0x37c] sm:$0xf]
        %v2081 = vld [vmem:[%s140 + $0x384] sm:$0xf]
        %v2082 = vld [vmem:[%s140 + $0x38c] sm:$0xf]
        %v2083 = vld [vmem:[%s140 + $0x394] sm:$0xf]
        %v2084 = vld [vmem:[%s140 + $0x39c] sm:$0xf]
        %v2085 = vld [vmem:[%s140 + $0x3a4] sm:$0xf]
        %v2086 = vld [vmem:[%s140 + $0x3ac] sm:$0xf]
        %v2087 = vld [vmem:[%s140 + $0x3b4] sm:$0xf]
        %v2088 = vld [vmem:[%s140 + $0x3bc] sm:$0xf]
        %v2089 = vld [vmem:[%s140 + $0x3c4] sm:$0xf]
        %v2090 = vld [vmem:[%s140 + $0x3cc] sm:$0xf]
        %v2091 = vld [vmem:[%s140 + $0x3d4] sm:$0xf]
        %v2092 = vld [vmem:[%s140 + $0x3dc] sm:$0xf]
        %v2093 = vld [vmem:[%s140 + $0x3e4] sm:$0xf]
        %v2094 = vld [vmem:[%s140 + $0x3ec] sm:$0xf]
        %v2095 = vld [vmem:[%s140 + $0x3f4] sm:$0xf]
        %v2096 = vld [vmem:[%s140 + $0x3fc] sm:$0xf]
        %v2097 = vld [vmem:[%s140 + $0x404] sm:$0xf]
        %v2098 = vld [vmem:[%s140 + $0x40c] sm:$0xf]
        %v2099 = vld [vmem:[%s140 + $0x414] sm:$0xf]
        %v2100 = vld [vmem:[%s140 + $0x41c] sm:$0xf]
        %v2101 = vld [vmem:[%s140 + $0x424] sm:$0xf]
        %v2102 = vld [vmem:[%s140 + $0x42c] sm:$0xf]
        %v2103 = vld [vmem:[%s140 + $0x434] sm:$0xf]
        %v2104 = vld [vmem:[%s140 + $0x43c] sm:$0xf]
        %v2105 = vld [vmem:[%s140 + $0x444] sm:$0xf]
        %v2106 = vld [vmem:[%s140 + $0x44c] sm:$0xf]
        %v2107 = vld [vmem:[%s140 + $0x454] sm:$0xf]
        %v2108 = vld [vmem:[%s140 + $0x45c] sm:$0xf]
        %v2109 = vld [vmem:[%s140 + $0x464] sm:$0xf]
        %v2110 = vld [vmem:[%s140 + $0x46c] sm:$0xf]
        %v2111 = vld [vmem:[%s140 + $0x474] sm:$0xf]
        %v2112 = vld [vmem:[%s140 + $0x47c] sm:$0xf]
        %v2113 = vld [vmem:[%s140 + $0x484] sm:$0xf]
        %v2114 = vld [vmem:[%s140 + $0x48c] sm:$0xf]
        %v2115 = vld [vmem:[%s140 + $0x494] sm:$0xf]
        %v2116 = vld [vmem:[%s140 + $0x49c] sm:$0xf]
        %v2117 = vld [vmem:[%s140 + $0x4a4] sm:$0xf]
        %v2118 = vld [vmem:[%s140 + $0x4ac] sm:$0xf]
        %v2119 = vld [vmem:[%s140 + $0x4b4] sm:$0xf]
        %v2120 = vld [vmem:[%s140 + $0x4bc] sm:$0xf]
        %v2121 = vld [vmem:[%s140 + $0x4c4] sm:$0xf]
        %v2122 = vld [vmem:[%s140 + $0x4cc] sm:$0xf]
        %v2123 = vld [vmem:[%s140 + $0x4d4] sm:$0xf]
        %v2124 = vld [vmem:[%s140 + $0x4dc] sm:$0xf]
        %v2125 = vld [vmem:[%s140 + $0x4e4] sm:$0xf]
        %v2126 = vld [vmem:[%s140 + $0x4ec] sm:$0xf]
        %v2127 = vld [vmem:[%s140 + $0x4f4] sm:$0xf]
        %v2128 = vld [vmem:[%s140 + $0x4fc] sm:$0xf]
        %v2129 = vld [vmem:[%s140 + $0x504] sm:$0xf]
        %v2130 = vld [vmem:[%s140 + $0x50c] sm:$0xf]
        %v2131 = vld [vmem:[%s140 + $0x514] sm:$0xf]
        %v2132 = vld [vmem:[%s140 + $0x51c] sm:$0xf]
        %v2133 = vld [vmem:[%s140 + $0x524] sm:$0xf]
        %v2134 = vld [vmem:[%s140 + $0x52c] sm:$0xf]
        %v2135 = vld [vmem:[%s140 + $0x534] sm:$0xf]
        %v2136 = vld [vmem:[%s140 + $0x53c] sm:$0xf]
        %v2137 = vld [vmem:[%s140 + $0x544] sm:$0xf]
        %v2138 = vld [vmem:[%s140 + $0x54c] sm:$0xf]
        %v2139 = vld [vmem:[%s140 + $0x554] sm:$0xf]
        %v2140 = vld [vmem:[%s140 + $0x55c] sm:$0xf]
        %v2141 = vld [vmem:[%s140 + $0x564] sm:$0xf]
        %v2142 = vld [vmem:[%s140 + $0x56c] sm:$0xf]
        %v2143 = vld [vmem:[%s140 + $0x574] sm:$0xf]
        %v2144 = vld [vmem:[%s140 + $0x57c] sm:$0xf]
        %v2145 = vld [vmem:[%s140 + $0x584] sm:$0xf]
        %v2146 = vld [vmem:[%s140 + $0x58c] sm:$0xf]
        %v2147 = vld [vmem:[%s140 + $0x594] sm:$0xf]
        %v2148 = vld [vmem:[%s140 + $0x59c] sm:$0xf]
        %v2149 = vld [vmem:[%s140 + $0x5a4] sm:$0xf]
        %v2150 = vld [vmem:[%s140 + $0x5ac] sm:$0xf]
        %v2151 = vld [vmem:[%s140 + $0x5b4] sm:$0xf]
        %v2152 = vld [vmem:[%s140 + $0x5bc] sm:$0xf]
        %v2153 = vld [vmem:[%s140 + $0x5c4] sm:$0xf]
        %v2154 = vld [vmem:[%s140 + $0x5cc] sm:$0xf]
        %v2155 = vld [vmem:[%s140 + $0x5d4] sm:$0xf]
        %v2156 = vld [vmem:[%s140 + $0x5dc] sm:$0xf]
        %v2157 = vld [vmem:[%s140 + $0x5e4] sm:$0xf]
        %v2158 = vld [vmem:[%s140 + $0x5ec] sm:$0xf]
        %v2159 = vld [vmem:[%s140 + $0x5f4] sm:$0xf]
        %v2160 = vld [vmem:[%s140 + $0x5fc] sm:$0xf]
        %v2161 = vld [vmem:[%s140 + $0x604] sm:$0xf]
        %v2162 = vld [vmem:[%s140 + $0x60c] sm:$0xf]
        %v2163 = vld [vmem:[%s140 + $0x614] sm:$0xf]
        %v2164 = vld [vmem:[%s140 + $0x61c] sm:$0xf]
        %v2165 = vld [vmem:[%s140 + $0x624] sm:$0xf]
        %v2166 = vld [vmem:[%s140 + $0x62c] sm:$0xf]
        %v2167 = vld [vmem:[%s140 + $0x634] sm:$0xf]
        %v2168 = vld [vmem:[%s140 + $0x63c] sm:$0xf]
        %v2169 = vld [vmem:[%s140 + $0x644] sm:$0xf]
        %v2170 = vld [vmem:[%s140 + $0x64c] sm:$0xf]
        %v2171 = vld [vmem:[%s140 + $0x654] sm:$0xf]
        %v2172 = vld [vmem:[%s140 + $0x65c] sm:$0xf]
        %v2173 = vld [vmem:[%s140 + $0x664] sm:$0xf]
        %v2174 = vld [vmem:[%s140 + $0x66c] sm:$0xf]
        %v2175 = vld [vmem:[%s140 + $0x674] sm:$0xf]
        %v2176 = vld [vmem:[%s140 + $0x67c] sm:$0xf]
        %v2177 = vld [vmem:[%s140 + $0x684] sm:$0xf]
        %v2178 = vld [vmem:[%s140 + $0x68c] sm:$0xf]
        %v2179 = vld [vmem:[%s140 + $0x694] sm:$0xf]
        %v2180 = vld [vmem:[%s140 + $0x69c] sm:$0xf]
        %v2181 = vld [vmem:[%s140 + $0x6a4] sm:$0xf]
        %v2182 = vld [vmem:[%s140 + $0x6ac] sm:$0xf]
        %v2183 = vld [vmem:[%s140 + $0x6b4] sm:$0xf]
        %v2184 = vld [vmem:[%s140 + $0x6bc] sm:$0xf]
        %v2185 = vld [vmem:[%s140 + $0x6c4] sm:$0xf]
        %v2186 = vld [vmem:[%s140 + $0x6cc] sm:$0xf]
        %v2187 = vld [vmem:[%s140 + $0x6d4] sm:$0xf]
        %v2188 = vld [vmem:[%s140 + $0x6dc] sm:$0xf]
        %v2189 = vld [vmem:[%s140 + $0x6e4] sm:$0xf]
        %v2190 = vld [vmem:[%s140 + $0x6ec] sm:$0xf]
        %v2191 = vld [vmem:[%s140 + $0x6f4] sm:$0xf]
        %v2192 = vld [vmem:[%s140 + $0x6fc] sm:$0xf]
        %v2193 = vld [vmem:[%s140 + $0x704] sm:$0xf]
        %v2194 = vld [vmem:[%s140 + $0x70c] sm:$0xf]
        %v2195 = vld [vmem:[%s140 + $0x714] sm:$0xf]
        %v2196 = vld [vmem:[%s140 + $0x71c] sm:$0xf]
        %v2197 = vld [vmem:[%s140 + $0x724] sm:$0xf]
        %v2198 = vld [vmem:[%s140 + $0x72c] sm:$0xf]
        %v2199 = vld [vmem:[%s140 + $0x734] sm:$0xf]
        %v2200 = vld [vmem:[%s140 + $0x73c] sm:$0xf]
        %v2201 = vld [vmem:[%s140 + $0x744] sm:$0xf]
        %v2202 = vld [vmem:[%s140 + $0x74c] sm:$0xf]
        %v2203 = vld [vmem:[%s140 + $0x754] sm:$0xf]
        %v2204 = vld [vmem:[%s140 + $0x75c] sm:$0xf]
        %v2205 = vld [vmem:[%s140 + $0x764] sm:$0xf]
        %v2206 = vld [vmem:[%s140 + $0x76c] sm:$0xf]
        %v2207 = vld [vmem:[%s140 + $0x774] sm:$0xf]
        %v2208 = vld [vmem:[%s140 + $0x77c] sm:$0xf]
        %v2209 = vld [vmem:[%s140 + $0x784] sm:$0xf]
        %v2210 = vld [vmem:[%s140 + $0x78c] sm:$0xf]
        %v2211 = vld [vmem:[%s140 + $0x794] sm:$0xf]
        %v2212 = vld [vmem:[%s140 + $0x79c] sm:$0xf]
        %v2213 = vld [vmem:[%s140 + $0x7a4] sm:$0xf]
        %v2214 = vld [vmem:[%s140 + $0x7ac] sm:$0xf]
        %v2215 = vld [vmem:[%s140 + $0x7b4] sm:$0xf]
        %v2216 = vld [vmem:[%s140 + $0x7bc] sm:$0xf]
        %v2217 = vld [vmem:[%s140 + $0x7c4] sm:$0xf]
        %v2218 = vld [vmem:[%s140 + $0x7cc] sm:$0xf]
        %v2219 = vld [vmem:[%s140 + $0x7d4] sm:$0xf]
        %v2220 = vld [vmem:[%s140 + $0x7dc] sm:$0xf]
        %v2221 = vld [vmem:[%s140 + $0x7e4] sm:$0xf]
        %v2222 = vld [vmem:[%s140 + $0x7ec] sm:$0xf]
        %v2223 = vld [vmem:[%s140 + $0x7f4] sm:$0xf]
        %v2224 = vld [vmem:[%s140 + $0x7fc] sm:$0xf]
        %v2225 = vunpack.c.l.bf16 %v1969
        %v2226 = vunpack.c.l.bf16 %v1970
        %v2227 = vunpack.c.l.bf16 %v1971
        %v2228 = vunpack.c.l.bf16 %v1972
        %v2229 = vunpack.c.l.bf16 %v1973
        %v2230 = vunpack.c.l.bf16 %v1974
        %v2231 = vunpack.c.l.bf16 %v1975
        %v2232 = vunpack.c.l.bf16 %v1976
        %v2233 = vunpack.c.l.bf16 %v1977
        %v2234 = vunpack.c.l.bf16 %v1978
        %v2235 = vunpack.c.l.bf16 %v1979
        %v2236 = vunpack.c.l.bf16 %v1980
        %v2237 = vunpack.c.l.bf16 %v1981
        %v2238 = vunpack.c.l.bf16 %v1982
        %v2239 = vunpack.c.l.bf16 %v1983
        %v2240 = vunpack.c.l.bf16 %v1984
        %v2241 = vunpack.c.l.bf16 %v1985
        %v2242 = vunpack.c.l.bf16 %v1986
        %v2243 = vunpack.c.l.bf16 %v1987
        %v2244 = vunpack.c.l.bf16 %v1988
        %v2245 = vunpack.c.l.bf16 %v1989
        %v2246 = vunpack.c.l.bf16 %v1990
        %v2247 = vunpack.c.l.bf16 %v1991
        %v2248 = vunpack.c.l.bf16 %v1992
        %v2249 = vunpack.c.l.bf16 %v1993
        %v2250 = vunpack.c.l.bf16 %v1994
        %v2251 = vunpack.c.l.bf16 %v1995
        %v2252 = vunpack.c.l.bf16 %v1996
        %v2253 = vunpack.c.l.bf16 %v1997
        %v2254 = vunpack.c.l.bf16 %v1998
        %v2255 = vunpack.c.l.bf16 %v1999
        %v2256 = vunpack.c.l.bf16 %v2000
        %v2257 = vunpack.c.l.bf16 %v2001
        %v2258 = vunpack.c.l.bf16 %v2002
        %v2259 = vunpack.c.l.bf16 %v2003
        %v2260 = vunpack.c.l.bf16 %v2004
        %v2261 = vunpack.c.l.bf16 %v2005
        %v2262 = vunpack.c.l.bf16 %v2006
        %v2263 = vunpack.c.l.bf16 %v2007
        %v2264 = vunpack.c.l.bf16 %v2008
        %v2265 = vunpack.c.l.bf16 %v2009
        %v2266 = vunpack.c.l.bf16 %v2010
        %v2267 = vunpack.c.l.bf16 %v2011
        %v2268 = vunpack.c.l.bf16 %v2012
        %v2269 = vunpack.c.l.bf16 %v2013
        %v2270 = vunpack.c.l.bf16 %v2014
        %v2271 = vunpack.c.l.bf16 %v2015
        %v2272 = vunpack.c.l.bf16 %v2016
        %v2273 = vunpack.c.l.bf16 %v2017
        %v2274 = vunpack.c.l.bf16 %v2018
        %v2275 = vunpack.c.l.bf16 %v2019
        %v2276 = vunpack.c.l.bf16 %v2020
        %v2277 = vunpack.c.l.bf16 %v2021
        %v2278 = vunpack.c.l.bf16 %v2022
        %v2279 = vunpack.c.l.bf16 %v2023
        %v2280 = vunpack.c.l.bf16 %v2024
        %v2281 = vunpack.c.l.bf16 %v2025
        %v2282 = vunpack.c.l.bf16 %v2026
        %v2283 = vunpack.c.l.bf16 %v2027
        %v2284 = vunpack.c.l.bf16 %v2028
        %v2285 = vunpack.c.l.bf16 %v2029
        %v2286 = vunpack.c.l.bf16 %v2030
        %v2287 = vunpack.c.l.bf16 %v2031
        %v2288 = vunpack.c.l.bf16 %v2032
        %v2289 = vunpack.c.l.bf16 %v2033
        %v2290 = vunpack.c.l.bf16 %v2034
        %v2291 = vunpack.c.l.bf16 %v2035
        %v2292 = vunpack.c.l.bf16 %v2036
        %v2293 = vunpack.c.l.bf16 %v2037
        %v2294 = vunpack.c.l.bf16 %v2038
        %v2295 = vunpack.c.l.bf16 %v2039
        %v2296 = vunpack.c.l.bf16 %v2040
        %v2297 = vunpack.c.l.bf16 %v2041
        %v2298 = vunpack.c.l.bf16 %v2042
        %v2299 = vunpack.c.l.bf16 %v2043
        %v2300 = vunpack.c.l.bf16 %v2044
        %v2301 = vunpack.c.l.bf16 %v2045
        %v2302 = vunpack.c.l.bf16 %v2046
        %v2303 = vunpack.c.l.bf16 %v2047
        %v2304 = vunpack.c.l.bf16 %v2048
        %v2305 = vunpack.c.l.bf16 %v2049
        %v2306 = vunpack.c.l.bf16 %v2050
        %v2307 = vunpack.c.l.bf16 %v2051
        %v2308 = vunpack.c.l.bf16 %v2052
        %v2309 = vunpack.c.l.bf16 %v2053
        %v2310 = vunpack.c.l.bf16 %v2054
        %v2311 = vunpack.c.l.bf16 %v2055
        %v2312 = vunpack.c.l.bf16 %v2056
        %v2313 = vunpack.c.l.bf16 %v2057
        %v2314 = vunpack.c.l.bf16 %v2058
        %v2315 = vunpack.c.l.bf16 %v2059
        %v2316 = vunpack.c.l.bf16 %v2060
        %v2317 = vunpack.c.l.bf16 %v2061
        %v2318 = vunpack.c.l.bf16 %v2062
        %v2319 = vunpack.c.l.bf16 %v2063
        %v2320 = vunpack.c.l.bf16 %v2064
        %v2321 = vunpack.c.l.bf16 %v2065
        %v2322 = vunpack.c.l.bf16 %v2066
        %v2323 = vunpack.c.l.bf16 %v2067
        %v2324 = vunpack.c.l.bf16 %v2068
        %v2325 = vunpack.c.l.bf16 %v2069
        %v2326 = vunpack.c.l.bf16 %v2070
        %v2327 = vunpack.c.l.bf16 %v2071
        %v2328 = vunpack.c.l.bf16 %v2072
        %v2329 = vunpack.c.l.bf16 %v2073
        %v2330 = vunpack.c.l.bf16 %v2074
        %v2331 = vunpack.c.l.bf16 %v2075
        %v2332 = vunpack.c.l.bf16 %v2076
        %v2333 = vunpack.c.l.bf16 %v2077
        %v2334 = vunpack.c.l.bf16 %v2078
        %v2335 = vunpack.c.l.bf16 %v2079
        %v2336 = vunpack.c.l.bf16 %v2080
        %v2337 = vunpack.c.l.bf16 %v2081
        %v2338 = vunpack.c.l.bf16 %v2082
        %v2339 = vunpack.c.l.bf16 %v2083
        %v2340 = vunpack.c.l.bf16 %v2084
        %v2341 = vunpack.c.l.bf16 %v2085
        %v2342 = vunpack.c.l.bf16 %v2086
        %v2343 = vunpack.c.l.bf16 %v2087
        %v2344 = vunpack.c.l.bf16 %v2088
        %v2345 = vunpack.c.l.bf16 %v2089
        %v2346 = vunpack.c.l.bf16 %v2090
        %v2347 = vunpack.c.l.bf16 %v2091
        %v2348 = vunpack.c.l.bf16 %v2092
        %v2349 = vunpack.c.l.bf16 %v2093
        %v2350 = vunpack.c.l.bf16 %v2094
        %v2351 = vunpack.c.l.bf16 %v2095
        %v2352 = vunpack.c.l.bf16 %v2096
        %v2353 = vunpack.c.l.bf16 %v2097
        %v2354 = vunpack.c.l.bf16 %v2098
        %v2355 = vunpack.c.l.bf16 %v2099
        %v2356 = vunpack.c.l.bf16 %v2100
        %v2357 = vunpack.c.l.bf16 %v2101
        %v2358 = vunpack.c.l.bf16 %v2102
        %v2359 = vunpack.c.l.bf16 %v2103
        %v2360 = vunpack.c.l.bf16 %v2104
        %v2361 = vunpack.c.l.bf16 %v2105
        %v2362 = vunpack.c.l.bf16 %v2106
        %v2363 = vunpack.c.l.bf16 %v2107
        %v2364 = vunpack.c.l.bf16 %v2108
        %v2365 = vunpack.c.l.bf16 %v2109
        %v2366 = vunpack.c.l.bf16 %v2110
        %v2367 = vunpack.c.l.bf16 %v2111
        %v2368 = vunpack.c.l.bf16 %v2112
        %v2369 = vunpack.c.l.bf16 %v2113
        %v2370 = vunpack.c.l.bf16 %v2114
        %v2371 = vunpack.c.l.bf16 %v2115
        %v2372 = vunpack.c.l.bf16 %v2116
        %v2373 = vunpack.c.l.bf16 %v2117
        %v2374 = vunpack.c.l.bf16 %v2118
        %v2375 = vunpack.c.l.bf16 %v2119
        %v2376 = vunpack.c.l.bf16 %v2120
        %v2377 = vunpack.c.l.bf16 %v2121
        %v2378 = vunpack.c.l.bf16 %v2122
        %v2379 = vunpack.c.l.bf16 %v2123
        %v2380 = vunpack.c.l.bf16 %v2124
        %v2381 = vunpack.c.l.bf16 %v2125
        %v2382 = vunpack.c.l.bf16 %v2126
        %v2383 = vunpack.c.l.bf16 %v2127
        %v2384 = vunpack.c.l.bf16 %v2128
        %v2385 = vunpack.c.l.bf16 %v2129
        %v2386 = vunpack.c.l.bf16 %v2130
        %v2387 = vunpack.c.l.bf16 %v2131
        %v2388 = vunpack.c.l.bf16 %v2132
        %v2389 = vunpack.c.l.bf16 %v2133
        %v2390 = vunpack.c.l.bf16 %v2134
        %v2391 = vunpack.c.l.bf16 %v2135
        %v2392 = vunpack.c.l.bf16 %v2136
        %v2393 = vunpack.c.l.bf16 %v2137
        %v2394 = vunpack.c.l.bf16 %v2138
        %v2395 = vunpack.c.l.bf16 %v2139
        %v2396 = vunpack.c.l.bf16 %v2140
        %v2397 = vunpack.c.l.bf16 %v2141
        %v2398 = vunpack.c.l.bf16 %v2142
        %v2399 = vunpack.c.l.bf16 %v2143
        %v2400 = vunpack.c.l.bf16 %v2144
        %v2401 = vunpack.c.l.bf16 %v2145
        %v2402 = vunpack.c.l.bf16 %v2146
        %v2403 = vunpack.c.l.bf16 %v2147
        %v2404 = vunpack.c.l.bf16 %v2148
        %v2405 = vunpack.c.l.bf16 %v2149
        %v2406 = vunpack.c.l.bf16 %v2150
        %v2407 = vunpack.c.l.bf16 %v2151
        %v2408 = vunpack.c.l.bf16 %v2152
        %v2409 = vunpack.c.l.bf16 %v2153
        %v2410 = vunpack.c.l.bf16 %v2154
        %v2411 = vunpack.c.l.bf16 %v2155
        %v2412 = vunpack.c.l.bf16 %v2156
        %v2413 = vunpack.c.l.bf16 %v2157
        %v2414 = vunpack.c.l.bf16 %v2158
        %v2415 = vunpack.c.l.bf16 %v2159
        %v2416 = vunpack.c.l.bf16 %v2160
        %v2417 = vunpack.c.l.bf16 %v2161
        %v2418 = vunpack.c.l.bf16 %v2162
        %v2419 = vunpack.c.l.bf16 %v2163
        %v2420 = vunpack.c.l.bf16 %v2164
        %v2421 = vunpack.c.l.bf16 %v2165
        %v2422 = vunpack.c.l.bf16 %v2166
        %v2423 = vunpack.c.l.bf16 %v2167
        %v2424 = vunpack.c.l.bf16 %v2168
        %v2425 = vunpack.c.l.bf16 %v2169
        %v2426 = vunpack.c.l.bf16 %v2170
        %v2427 = vunpack.c.l.bf16 %v2171
        %v2428 = vunpack.c.l.bf16 %v2172
        %v2429 = vunpack.c.l.bf16 %v2173
        %v2430 = vunpack.c.l.bf16 %v2174
        %v2431 = vunpack.c.l.bf16 %v2175
        %v2432 = vunpack.c.l.bf16 %v2176
        %v2433 = vunpack.c.l.bf16 %v2177
        %v2434 = vunpack.c.l.bf16 %v2178
        %v2435 = vunpack.c.l.bf16 %v2179
        %v2436 = vunpack.c.l.bf16 %v2180
        %v2437 = vunpack.c.l.bf16 %v2181
        %v2438 = vunpack.c.l.bf16 %v2182
        %v2439 = vunpack.c.l.bf16 %v2183
        %v2440 = vunpack.c.l.bf16 %v2184
        %v2441 = vunpack.c.l.bf16 %v2185
        %v2442 = vunpack.c.l.bf16 %v2186
        %v2443 = vunpack.c.l.bf16 %v2187
        %v2444 = vunpack.c.l.bf16 %v2188
        %v2445 = vunpack.c.l.bf16 %v2189
        %v2446 = vunpack.c.l.bf16 %v2190
        %v2447 = vunpack.c.l.bf16 %v2191
        %v2448 = vunpack.c.l.bf16 %v2192
        %v2449 = vunpack.c.l.bf16 %v2193
        %v2450 = vunpack.c.l.bf16 %v2194
        %v2451 = vunpack.c.l.bf16 %v2195
        %v2452 = vunpack.c.l.bf16 %v2196
        %v2453 = vunpack.c.l.bf16 %v2197
        %v2454 = vunpack.c.l.bf16 %v2198
        %v2455 = vunpack.c.l.bf16 %v2199
        %v2456 = vunpack.c.l.bf16 %v2200
        %v2457 = vunpack.c.l.bf16 %v2201
        %v2458 = vunpack.c.l.bf16 %v2202
        %v2459 = vunpack.c.l.bf16 %v2203
        %v2460 = vunpack.c.l.bf16 %v2204
        %v2461 = vunpack.c.l.bf16 %v2205
        %v2462 = vunpack.c.l.bf16 %v2206
        %v2463 = vunpack.c.l.bf16 %v2207
        %v2464 = vunpack.c.l.bf16 %v2208
        %v2465 = vunpack.c.l.bf16 %v2209
        %v2466 = vunpack.c.l.bf16 %v2210
        %v2467 = vunpack.c.l.bf16 %v2211
        %v2468 = vunpack.c.l.bf16 %v2212
        %v2469 = vunpack.c.l.bf16 %v2213
        %v2470 = vunpack.c.l.bf16 %v2214
        %v2471 = vunpack.c.l.bf16 %v2215
        %v2472 = vunpack.c.l.bf16 %v2216
        %v2473 = vunpack.c.l.bf16 %v2217
        %v2474 = vunpack.c.l.bf16 %v2218
        %v2475 = vunpack.c.l.bf16 %v2219
        %v2476 = vunpack.c.l.bf16 %v2220
        %v2477 = vunpack.c.l.bf16 %v2221
        %v2478 = vunpack.c.l.bf16 %v2222
        %v2479 = vunpack.c.l.bf16 %v2223
        %v2480 = vunpack.c.l.bf16 %v2224
        %s2481 = sadd.s32 %s425, 128
        %v2482 = vstv %s2481
        %v2483 = vadd.s32 %v2482, %v427
        %vm2484 = vcmp.lt.s32.totalorder %v2483, 384
        %v2485 = vsel %vm2484, 1, 0
        %vm2486 = vcmp.eq.s32.totalorder %v2485, 1
        %v2487 = vsel %vm2486, %v2225, 0.0
        %v2488 = vsel %vm2486, %v2226, 0.0
        %v2489 = vsel %vm2486, %v2227, 0.0
        %v2490 = vsel %vm2486, %v2228, 0.0
        %v2491 = vsel %vm2486, %v2229, 0.0
        %v2492 = vsel %vm2486, %v2230, 0.0
        %v2493 = vsel %vm2486, %v2231, 0.0
        %v2494 = vsel %vm2486, %v2232, 0.0
        %v2495 = vsel %vm2486, %v2233, 0.0
        %v2496 = vsel %vm2486, %v2234, 0.0
        %v2497 = vsel %vm2486, %v2235, 0.0
        %v2498 = vsel %vm2486, %v2236, 0.0
        %v2499 = vsel %vm2486, %v2237, 0.0
        %v2500 = vsel %vm2486, %v2238, 0.0
        %v2501 = vsel %vm2486, %v2239, 0.0
        %v2502 = vsel %vm2486, %v2240, 0.0
        %v2503 = vsel %vm2486, %v2241, 0.0
        %v2504 = vsel %vm2486, %v2242, 0.0
        %v2505 = vsel %vm2486, %v2243, 0.0
        %v2506 = vsel %vm2486, %v2244, 0.0
        %v2507 = vsel %vm2486, %v2245, 0.0
        %v2508 = vsel %vm2486, %v2246, 0.0
        %v2509 = vsel %vm2486, %v2247, 0.0
        %v2510 = vsel %vm2486, %v2248, 0.0
        %v2511 = vsel %vm2486, %v2249, 0.0
        %v2512 = vsel %vm2486, %v2250, 0.0
        %v2513 = vsel %vm2486, %v2251, 0.0
        %v2514 = vsel %vm2486, %v2252, 0.0
        %v2515 = vsel %vm2486, %v2253, 0.0
        %v2516 = vsel %vm2486, %v2254, 0.0
        %v2517 = vsel %vm2486, %v2255, 0.0
        %v2518 = vsel %vm2486, %v2256, 0.0
        %v2519 = vsel %vm2486, %v2257, 0.0
        %v2520 = vsel %vm2486, %v2258, 0.0
        %v2521 = vsel %vm2486, %v2259, 0.0
        %v2522 = vsel %vm2486, %v2260, 0.0
        %v2523 = vsel %vm2486, %v2261, 0.0
        %v2524 = vsel %vm2486, %v2262, 0.0
        %v2525 = vsel %vm2486, %v2263, 0.0
        %v2526 = vsel %vm2486, %v2264, 0.0
        %v2527 = vsel %vm2486, %v2265, 0.0
        %v2528 = vsel %vm2486, %v2266, 0.0
        %v2529 = vsel %vm2486, %v2267, 0.0
        %v2530 = vsel %vm2486, %v2268, 0.0
        %v2531 = vsel %vm2486, %v2269, 0.0
        %v2532 = vsel %vm2486, %v2270, 0.0
        %v2533 = vsel %vm2486, %v2271, 0.0
        %v2534 = vsel %vm2486, %v2272, 0.0
        %v2535 = vsel %vm2486, %v2273, 0.0
        %v2536 = vsel %vm2486, %v2274, 0.0
        %v2537 = vsel %vm2486, %v2275, 0.0
        %v2538 = vsel %vm2486, %v2276, 0.0
        %v2539 = vsel %vm2486, %v2277, 0.0
        %v2540 = vsel %vm2486, %v2278, 0.0
        %v2541 = vsel %vm2486, %v2279, 0.0
        %v2542 = vsel %vm2486, %v2280, 0.0
        %v2543 = vsel %vm2486, %v2281, 0.0
        %v2544 = vsel %vm2486, %v2282, 0.0
        %v2545 = vsel %vm2486, %v2283, 0.0
        %v2546 = vsel %vm2486, %v2284, 0.0
        %v2547 = vsel %vm2486, %v2285, 0.0
        %v2548 = vsel %vm2486, %v2286, 0.0
        %v2549 = vsel %vm2486, %v2287, 0.0
        %v2550 = vsel %vm2486, %v2288, 0.0
        %v2551 = vsel %vm2486, %v2289, 0.0
        %v2552 = vsel %vm2486, %v2290, 0.0
        %v2553 = vsel %vm2486, %v2291, 0.0
        %v2554 = vsel %vm2486, %v2292, 0.0
        %v2555 = vsel %vm2486, %v2293, 0.0
        %v2556 = vsel %vm2486, %v2294, 0.0
        %v2557 = vsel %vm2486, %v2295, 0.0
        %v2558 = vsel %vm2486, %v2296, 0.0
        %v2559 = vsel %vm2486, %v2297, 0.0
        %v2560 = vsel %vm2486, %v2298, 0.0
        %v2561 = vsel %vm2486, %v2299, 0.0
        %v2562 = vsel %vm2486, %v2300, 0.0
        %v2563 = vsel %vm2486, %v2301, 0.0
        %v2564 = vsel %vm2486, %v2302, 0.0
        %v2565 = vsel %vm2486, %v2303, 0.0
        %v2566 = vsel %vm2486, %v2304, 0.0
        %v2567 = vsel %vm2486, %v2305, 0.0
        %v2568 = vsel %vm2486, %v2306, 0.0
        %v2569 = vsel %vm2486, %v2307, 0.0
        %v2570 = vsel %vm2486, %v2308, 0.0
        %v2571 = vsel %vm2486, %v2309, 0.0
        %v2572 = vsel %vm2486, %v2310, 0.0
        %v2573 = vsel %vm2486, %v2311, 0.0
        %v2574 = vsel %vm2486, %v2312, 0.0
        %v2575 = vsel %vm2486, %v2313, 0.0
        %v2576 = vsel %vm2486, %v2314, 0.0
        %v2577 = vsel %vm2486, %v2315, 0.0
        %v2578 = vsel %vm2486, %v2316, 0.0
        %v2579 = vsel %vm2486, %v2317, 0.0
        %v2580 = vsel %vm2486, %v2318, 0.0
        %v2581 = vsel %vm2486, %v2319, 0.0
        %v2582 = vsel %vm2486, %v2320, 0.0
        %v2583 = vsel %vm2486, %v2321, 0.0
        %v2584 = vsel %vm2486, %v2322, 0.0
        %v2585 = vsel %vm2486, %v2323, 0.0
        %v2586 = vsel %vm2486, %v2324, 0.0
        %v2587 = vsel %vm2486, %v2325, 0.0
        %v2588 = vsel %vm2486, %v2326, 0.0
        %v2589 = vsel %vm2486, %v2327, 0.0
        %v2590 = vsel %vm2486, %v2328, 0.0
        %v2591 = vsel %vm2486, %v2329, 0.0
        %v2592 = vsel %vm2486, %v2330, 0.0
        %v2593 = vsel %vm2486, %v2331, 0.0
        %v2594 = vsel %vm2486, %v2332, 0.0
        %v2595 = vsel %vm2486, %v2333, 0.0
        %v2596 = vsel %vm2486, %v2334, 0.0
        %v2597 = vsel %vm2486, %v2335, 0.0
        %v2598 = vsel %vm2486, %v2336, 0.0
        %v2599 = vsel %vm2486, %v2337, 0.0
        %v2600 = vsel %vm2486, %v2338, 0.0
        %v2601 = vsel %vm2486, %v2339, 0.0
        %v2602 = vsel %vm2486, %v2340, 0.0
        %v2603 = vsel %vm2486, %v2341, 0.0
        %v2604 = vsel %vm2486, %v2342, 0.0
        %v2605 = vsel %vm2486, %v2343, 0.0
        %v2606 = vsel %vm2486, %v2344, 0.0
        %v2607 = vsel %vm2486, %v2345, 0.0
        %v2608 = vsel %vm2486, %v2346, 0.0
        %v2609 = vsel %vm2486, %v2347, 0.0
        %v2610 = vsel %vm2486, %v2348, 0.0
        %v2611 = vsel %vm2486, %v2349, 0.0
        %v2612 = vsel %vm2486, %v2350, 0.0
        %v2613 = vsel %vm2486, %v2351, 0.0
        %v2614 = vsel %vm2486, %v2352, 0.0
        %v2615 = vsel %vm2486, %v2353, 0.0
        %v2616 = vsel %vm2486, %v2354, 0.0
        %v2617 = vsel %vm2486, %v2355, 0.0
        %v2618 = vsel %vm2486, %v2356, 0.0
        %v2619 = vsel %vm2486, %v2357, 0.0
        %v2620 = vsel %vm2486, %v2358, 0.0
        %v2621 = vsel %vm2486, %v2359, 0.0
        %v2622 = vsel %vm2486, %v2360, 0.0
        %v2623 = vsel %vm2486, %v2361, 0.0
        %v2624 = vsel %vm2486, %v2362, 0.0
        %v2625 = vsel %vm2486, %v2363, 0.0
        %v2626 = vsel %vm2486, %v2364, 0.0
        %v2627 = vsel %vm2486, %v2365, 0.0
        %v2628 = vsel %vm2486, %v2366, 0.0
        %v2629 = vsel %vm2486, %v2367, 0.0
        %v2630 = vsel %vm2486, %v2368, 0.0
        %v2631 = vsel %vm2486, %v2369, 0.0
        %v2632 = vsel %vm2486, %v2370, 0.0
        %v2633 = vsel %vm2486, %v2371, 0.0
        %v2634 = vsel %vm2486, %v2372, 0.0
        %v2635 = vsel %vm2486, %v2373, 0.0
        %v2636 = vsel %vm2486, %v2374, 0.0
        %v2637 = vsel %vm2486, %v2375, 0.0
        %v2638 = vsel %vm2486, %v2376, 0.0
        %v2639 = vsel %vm2486, %v2377, 0.0
        %v2640 = vsel %vm2486, %v2378, 0.0
        %v2641 = vsel %vm2486, %v2379, 0.0
        %v2642 = vsel %vm2486, %v2380, 0.0
        %v2643 = vsel %vm2486, %v2381, 0.0
        %v2644 = vsel %vm2486, %v2382, 0.0
        %v2645 = vsel %vm2486, %v2383, 0.0
        %v2646 = vsel %vm2486, %v2384, 0.0
        %v2647 = vsel %vm2486, %v2385, 0.0
        %v2648 = vsel %vm2486, %v2386, 0.0
        %v2649 = vsel %vm2486, %v2387, 0.0
        %v2650 = vsel %vm2486, %v2388, 0.0
        %v2651 = vsel %vm2486, %v2389, 0.0
        %v2652 = vsel %vm2486, %v2390, 0.0
        %v2653 = vsel %vm2486, %v2391, 0.0
        %v2654 = vsel %vm2486, %v2392, 0.0
        %v2655 = vsel %vm2486, %v2393, 0.0
        %v2656 = vsel %vm2486, %v2394, 0.0
        %v2657 = vsel %vm2486, %v2395, 0.0
        %v2658 = vsel %vm2486, %v2396, 0.0
        %v2659 = vsel %vm2486, %v2397, 0.0
        %v2660 = vsel %vm2486, %v2398, 0.0
        %v2661 = vsel %vm2486, %v2399, 0.0
        %v2662 = vsel %vm2486, %v2400, 0.0
        %v2663 = vsel %vm2486, %v2401, 0.0
        %v2664 = vsel %vm2486, %v2402, 0.0
        %v2665 = vsel %vm2486, %v2403, 0.0
        %v2666 = vsel %vm2486, %v2404, 0.0
        %v2667 = vsel %vm2486, %v2405, 0.0
        %v2668 = vsel %vm2486, %v2406, 0.0
        %v2669 = vsel %vm2486, %v2407, 0.0
        %v2670 = vsel %vm2486, %v2408, 0.0
        %v2671 = vsel %vm2486, %v2409, 0.0
        %v2672 = vsel %vm2486, %v2410, 0.0
        %v2673 = vsel %vm2486, %v2411, 0.0
        %v2674 = vsel %vm2486, %v2412, 0.0
        %v2675 = vsel %vm2486, %v2413, 0.0
        %v2676 = vsel %vm2486, %v2414, 0.0
        %v2677 = vsel %vm2486, %v2415, 0.0
        %v2678 = vsel %vm2486, %v2416, 0.0
        %v2679 = vsel %vm2486, %v2417, 0.0
        %v2680 = vsel %vm2486, %v2418, 0.0
        %v2681 = vsel %vm2486, %v2419, 0.0
        %v2682 = vsel %vm2486, %v2420, 0.0
        %v2683 = vsel %vm2486, %v2421, 0.0
        %v2684 = vsel %vm2486, %v2422, 0.0
        %v2685 = vsel %vm2486, %v2423, 0.0
        %v2686 = vsel %vm2486, %v2424, 0.0
        %v2687 = vsel %vm2486, %v2425, 0.0
        %v2688 = vsel %vm2486, %v2426, 0.0
        %v2689 = vsel %vm2486, %v2427, 0.0
        %v2690 = vsel %vm2486, %v2428, 0.0
        %v2691 = vsel %vm2486, %v2429, 0.0
        %v2692 = vsel %vm2486, %v2430, 0.0
        %v2693 = vsel %vm2486, %v2431, 0.0
        %v2694 = vsel %vm2486, %v2432, 0.0
        %v2695 = vsel %vm2486, %v2433, 0.0
        %v2696 = vsel %vm2486, %v2434, 0.0
        %v2697 = vsel %vm2486, %v2435, 0.0
        %v2698 = vsel %vm2486, %v2436, 0.0
        %v2699 = vsel %vm2486, %v2437, 0.0
        %v2700 = vsel %vm2486, %v2438, 0.0
        %v2701 = vsel %vm2486, %v2439, 0.0
        %v2702 = vsel %vm2486, %v2440, 0.0
        %v2703 = vsel %vm2486, %v2441, 0.0
        %v2704 = vsel %vm2486, %v2442, 0.0
        %v2705 = vsel %vm2486, %v2443, 0.0
        %v2706 = vsel %vm2486, %v2444, 0.0
        %v2707 = vsel %vm2486, %v2445, 0.0
        %v2708 = vsel %vm2486, %v2446, 0.0
        %v2709 = vsel %vm2486, %v2447, 0.0
        %v2710 = vsel %vm2486, %v2448, 0.0
        %v2711 = vsel %vm2486, %v2449, 0.0
        %v2712 = vsel %vm2486, %v2450, 0.0
        %v2713 = vsel %vm2486, %v2451, 0.0
        %v2714 = vsel %vm2486, %v2452, 0.0
        %v2715 = vsel %vm2486, %v2453, 0.0
        %v2716 = vsel %vm2486, %v2454, 0.0
        %v2717 = vsel %vm2486, %v2455, 0.0
        %v2718 = vsel %vm2486, %v2456, 0.0
        %v2719 = vsel %vm2486, %v2457, 0.0
        %v2720 = vsel %vm2486, %v2458, 0.0
        %v2721 = vsel %vm2486, %v2459, 0.0
        %v2722 = vsel %vm2486, %v2460, 0.0
        %v2723 = vsel %vm2486, %v2461, 0.0
        %v2724 = vsel %vm2486, %v2462, 0.0
        %v2725 = vsel %vm2486, %v2463, 0.0
        %v2726 = vsel %vm2486, %v2464, 0.0
        %v2727 = vsel %vm2486, %v2465, 0.0
        %v2728 = vsel %vm2486, %v2466, 0.0
        %v2729 = vsel %vm2486, %v2467, 0.0
        %v2730 = vsel %vm2486, %v2468, 0.0
        %v2731 = vsel %vm2486, %v2469, 0.0
        %v2732 = vsel %vm2486, %v2470, 0.0
        %v2733 = vsel %vm2486, %v2471, 0.0
        %v2734 = vsel %vm2486, %v2472, 0.0
        %v2735 = vsel %vm2486, %v2473, 0.0
        %v2736 = vsel %vm2486, %v2474, 0.0
        %v2737 = vsel %vm2486, %v2475, 0.0
        %v2738 = vsel %vm2486, %v2476, 0.0
        %v2739 = vsel %vm2486, %v2477, 0.0
        %v2740 = vsel %vm2486, %v2478, 0.0
        %v2741 = vsel %vm2486, %v2479, 0.0
        %v2742 = vsel %vm2486, %v2480, 0.0
        %v2743 = vld [vmem:[#allocation2] sm:$0xff]
        %v2744 = vld [vmem:[#allocation2 + $0x8] sm:$0xff]
        %v2745 = vld [vmem:[#allocation2 + $0x10] sm:$0xff]
        %v2746 = vld [vmem:[#allocation2 + $0x18] sm:$0xff]
        %v2747 = vld [vmem:[#allocation2 + $0x20] sm:$0xff]
        %v2748 = vld [vmem:[#allocation2 + $0x28] sm:$0xff]
        %v2749 = vld [vmem:[#allocation2 + $0x30] sm:$0xff]
        %v2750 = vld [vmem:[#allocation2 + $0x38] sm:$0xff]
        %v2751 = vld [vmem:[#allocation2 + $0x40] sm:$0xff]
        %v2752 = vld [vmem:[#allocation2 + $0x48] sm:$0xff]
        %v2753 = vld [vmem:[#allocation2 + $0x50] sm:$0xff]
        %v2754 = vld [vmem:[#allocation2 + $0x58] sm:$0xff]
        %v2755 = vld [vmem:[#allocation2 + $0x60] sm:$0xff]
        %v2756 = vld [vmem:[#allocation2 + $0x68] sm:$0xff]
        %v2757 = vld [vmem:[#allocation2 + $0x70] sm:$0xff]
        %v2758 = vld [vmem:[#allocation2 + $0x78] sm:$0xff]
        %v2759 = vld [vmem:[#allocation2 + $0x80] sm:$0xff]
        %v2760 = vld [vmem:[#allocation2 + $0x88] sm:$0xff]
        %v2761 = vld [vmem:[#allocation2 + $0x90] sm:$0xff]
        %v2762 = vld [vmem:[#allocation2 + $0x98] sm:$0xff]
        %v2763 = vld [vmem:[#allocation2 + $0xa0] sm:$0xff]
        %v2764 = vld [vmem:[#allocation2 + $0xa8] sm:$0xff]
        %v2765 = vld [vmem:[#allocation2 + $0xb0] sm:$0xff]
        %v2766 = vld [vmem:[#allocation2 + $0xb8] sm:$0xff]
        %v2767 = vld [vmem:[#allocation2 + $0xc0] sm:$0xff]
        %v2768 = vld [vmem:[#allocation2 + $0xc8] sm:$0xff]
        %v2769 = vld [vmem:[#allocation2 + $0xd0] sm:$0xff]
        %v2770 = vld [vmem:[#allocation2 + $0xd8] sm:$0xff]
        %v2771 = vld [vmem:[#allocation2 + $0xe0] sm:$0xff]
        %v2772 = vld [vmem:[#allocation2 + $0xe8] sm:$0xff]
        %v2773 = vld [vmem:[#allocation2 + $0xf0] sm:$0xff]
        %v2774 = vld [vmem:[#allocation2 + $0xf8] sm:$0xff]
        %v2775 = vld [vmem:[#allocation2 + $0x100] sm:$0xff]
        %v2776 = vld [vmem:[#allocation2 + $0x108] sm:$0xff]
        %v2777 = vld [vmem:[#allocation2 + $0x110] sm:$0xff]
        %v2778 = vld [vmem:[#allocation2 + $0x118] sm:$0xff]
        %v2779 = vld [vmem:[#allocation2 + $0x120] sm:$0xff]
        %v2780 = vld [vmem:[#allocation2 + $0x128] sm:$0xff]
        %v2781 = vld [vmem:[#allocation2 + $0x130] sm:$0xff]
        %v2782 = vld [vmem:[#allocation2 + $0x138] sm:$0xff]
        %v2783 = vld [vmem:[#allocation2 + $0x140] sm:$0xff]
        %v2784 = vld [vmem:[#allocation2 + $0x148] sm:$0xff]
        %v2785 = vld [vmem:[#allocation2 + $0x150] sm:$0xff]
        %v2786 = vld [vmem:[#allocation2 + $0x158] sm:$0xff]
        %v2787 = vld [vmem:[#allocation2 + $0x160] sm:$0xff]
        %v2788 = vld [vmem:[#allocation2 + $0x168] sm:$0xff]
        %v2789 = vld [vmem:[#allocation2 + $0x170] sm:$0xff]
        %v2790 = vld [vmem:[#allocation2 + $0x178] sm:$0xff]
        %v2791 = vld [vmem:[#allocation2 + $0x180] sm:$0xff]
        %v2792 = vld [vmem:[#allocation2 + $0x188] sm:$0xff]
        %v2793 = vld [vmem:[#allocation2 + $0x190] sm:$0xff]
        %v2794 = vld [vmem:[#allocation2 + $0x198] sm:$0xff]
        %v2795 = vld [vmem:[#allocation2 + $0x1a0] sm:$0xff]
        %v2796 = vld [vmem:[#allocation2 + $0x1a8] sm:$0xff]
        %v2797 = vld [vmem:[#allocation2 + $0x1b0] sm:$0xff]
        %v2798 = vld [vmem:[#allocation2 + $0x1b8] sm:$0xff]
        %v2799 = vld [vmem:[#allocation2 + $0x1c0] sm:$0xff]
        %v2800 = vld [vmem:[#allocation2 + $0x1c8] sm:$0xff]
        %v2801 = vld [vmem:[#allocation2 + $0x1d0] sm:$0xff]
        %v2802 = vld [vmem:[#allocation2 + $0x1d8] sm:$0xff]
        %v2803 = vld [vmem:[#allocation2 + $0x1e0] sm:$0xff]
        %v2804 = vld [vmem:[#allocation2 + $0x1e8] sm:$0xff]
        %v2805 = vld [vmem:[#allocation2 + $0x1f0] sm:$0xff]
        %v2806 = vld [vmem:[#allocation2 + $0x1f8] sm:$0xff]
        %v2807 = vld [vmem:[#allocation2 + $0x200] sm:$0xff]
        %v2808 = vld [vmem:[#allocation2 + $0x208] sm:$0xff]
        %v2809 = vld [vmem:[#allocation2 + $0x210] sm:$0xff]
        %v2810 = vld [vmem:[#allocation2 + $0x218] sm:$0xff]
        %v2811 = vld [vmem:[#allocation2 + $0x220] sm:$0xff]
        %v2812 = vld [vmem:[#allocation2 + $0x228] sm:$0xff]
        %v2813 = vld [vmem:[#allocation2 + $0x230] sm:$0xff]
        %v2814 = vld [vmem:[#allocation2 + $0x238] sm:$0xff]
        %v2815 = vld [vmem:[#allocation2 + $0x240] sm:$0xff]
        %v2816 = vld [vmem:[#allocation2 + $0x248] sm:$0xff]
        %v2817 = vld [vmem:[#allocation2 + $0x250] sm:$0xff]
        %v2818 = vld [vmem:[#allocation2 + $0x258] sm:$0xff]
        %v2819 = vld [vmem:[#allocation2 + $0x260] sm:$0xff]
        %v2820 = vld [vmem:[#allocation2 + $0x268] sm:$0xff]
        %v2821 = vld [vmem:[#allocation2 + $0x270] sm:$0xff]
        %v2822 = vld [vmem:[#allocation2 + $0x278] sm:$0xff]
        %v2823 = vld [vmem:[#allocation2 + $0x280] sm:$0xff]
        %v2824 = vld [vmem:[#allocation2 + $0x288] sm:$0xff]
        %v2825 = vld [vmem:[#allocation2 + $0x290] sm:$0xff]
        %v2826 = vld [vmem:[#allocation2 + $0x298] sm:$0xff]
        %v2827 = vld [vmem:[#allocation2 + $0x2a0] sm:$0xff]
        %v2828 = vld [vmem:[#allocation2 + $0x2a8] sm:$0xff]
        %v2829 = vld [vmem:[#allocation2 + $0x2b0] sm:$0xff]
        %v2830 = vld [vmem:[#allocation2 + $0x2b8] sm:$0xff]
        %v2831 = vld [vmem:[#allocation2 + $0x2c0] sm:$0xff]
        %v2832 = vld [vmem:[#allocation2 + $0x2c8] sm:$0xff]
        %v2833 = vld [vmem:[#allocation2 + $0x2d0] sm:$0xff]
        %v2834 = vld [vmem:[#allocation2 + $0x2d8] sm:$0xff]
        %v2835 = vld [vmem:[#allocation2 + $0x2e0] sm:$0xff]
        %v2836 = vld [vmem:[#allocation2 + $0x2e8] sm:$0xff]
        %v2837 = vld [vmem:[#allocation2 + $0x2f0] sm:$0xff]
        %v2838 = vld [vmem:[#allocation2 + $0x2f8] sm:$0xff]
        %v2839 = vld [vmem:[#allocation2 + $0x300] sm:$0xff]
        %v2840 = vld [vmem:[#allocation2 + $0x308] sm:$0xff]
        %v2841 = vld [vmem:[#allocation2 + $0x310] sm:$0xff]
        %v2842 = vld [vmem:[#allocation2 + $0x318] sm:$0xff]
        %v2843 = vld [vmem:[#allocation2 + $0x320] sm:$0xff]
        %v2844 = vld [vmem:[#allocation2 + $0x328] sm:$0xff]
        %v2845 = vld [vmem:[#allocation2 + $0x330] sm:$0xff]
        %v2846 = vld [vmem:[#allocation2 + $0x338] sm:$0xff]
        %v2847 = vld [vmem:[#allocation2 + $0x340] sm:$0xff]
        %v2848 = vld [vmem:[#allocation2 + $0x348] sm:$0xff]
        %v2849 = vld [vmem:[#allocation2 + $0x350] sm:$0xff]
        %v2850 = vld [vmem:[#allocation2 + $0x358] sm:$0xff]
        %v2851 = vld [vmem:[#allocation2 + $0x360] sm:$0xff]
        %v2852 = vld [vmem:[#allocation2 + $0x368] sm:$0xff]
        %v2853 = vld [vmem:[#allocation2 + $0x370] sm:$0xff]
        %v2854 = vld [vmem:[#allocation2 + $0x378] sm:$0xff]
        %v2855 = vld [vmem:[#allocation2 + $0x380] sm:$0xff]
        %v2856 = vld [vmem:[#allocation2 + $0x388] sm:$0xff]
        %v2857 = vld [vmem:[#allocation2 + $0x390] sm:$0xff]
        %v2858 = vld [vmem:[#allocation2 + $0x398] sm:$0xff]
        %v2859 = vld [vmem:[#allocation2 + $0x3a0] sm:$0xff]
        %v2860 = vld [vmem:[#allocation2 + $0x3a8] sm:$0xff]
        %v2861 = vld [vmem:[#allocation2 + $0x3b0] sm:$0xff]
        %v2862 = vld [vmem:[#allocation2 + $0x3b8] sm:$0xff]
        %v2863 = vld [vmem:[#allocation2 + $0x3c0] sm:$0xff]
        %v2864 = vld [vmem:[#allocation2 + $0x3c8] sm:$0xff]
        %v2865 = vld [vmem:[#allocation2 + $0x3d0] sm:$0xff]
        %v2866 = vld [vmem:[#allocation2 + $0x3d8] sm:$0xff]
        %v2867 = vld [vmem:[#allocation2 + $0x3e0] sm:$0xff]
        %v2868 = vld [vmem:[#allocation2 + $0x3e8] sm:$0xff]
        %v2869 = vld [vmem:[#allocation2 + $0x3f0] sm:$0xff]
        %v2870 = vld [vmem:[#allocation2 + $0x3f8] sm:$0xff]
        %v2871 = vld [vmem:[#allocation2 + $0x400] sm:$0xff]
        %v2872 = vld [vmem:[#allocation2 + $0x408] sm:$0xff]
        %v2873 = vld [vmem:[#allocation2 + $0x410] sm:$0xff]
        %v2874 = vld [vmem:[#allocation2 + $0x418] sm:$0xff]
        %v2875 = vld [vmem:[#allocation2 + $0x420] sm:$0xff]
        %v2876 = vld [vmem:[#allocation2 + $0x428] sm:$0xff]
        %v2877 = vld [vmem:[#allocation2 + $0x430] sm:$0xff]
        %v2878 = vld [vmem:[#allocation2 + $0x438] sm:$0xff]
        %v2879 = vld [vmem:[#allocation2 + $0x440] sm:$0xff]
        %v2880 = vld [vmem:[#allocation2 + $0x448] sm:$0xff]
        %v2881 = vld [vmem:[#allocation2 + $0x450] sm:$0xff]
        %v2882 = vld [vmem:[#allocation2 + $0x458] sm:$0xff]
        %v2883 = vld [vmem:[#allocation2 + $0x460] sm:$0xff]
        %v2884 = vld [vmem:[#allocation2 + $0x468] sm:$0xff]
        %v2885 = vld [vmem:[#allocation2 + $0x470] sm:$0xff]
        %v2886 = vld [vmem:[#allocation2 + $0x478] sm:$0xff]
        %v2887 = vld [vmem:[#allocation2 + $0x480] sm:$0xff]
        %v2888 = vld [vmem:[#allocation2 + $0x488] sm:$0xff]
        %v2889 = vld [vmem:[#allocation2 + $0x490] sm:$0xff]
        %v2890 = vld [vmem:[#allocation2 + $0x498] sm:$0xff]
        %v2891 = vld [vmem:[#allocation2 + $0x4a0] sm:$0xff]
        %v2892 = vld [vmem:[#allocation2 + $0x4a8] sm:$0xff]
        %v2893 = vld [vmem:[#allocation2 + $0x4b0] sm:$0xff]
        %v2894 = vld [vmem:[#allocation2 + $0x4b8] sm:$0xff]
        %v2895 = vld [vmem:[#allocation2 + $0x4c0] sm:$0xff]
        %v2896 = vld [vmem:[#allocation2 + $0x4c8] sm:$0xff]
        %v2897 = vld [vmem:[#allocation2 + $0x4d0] sm:$0xff]
        %v2898 = vld [vmem:[#allocation2 + $0x4d8] sm:$0xff]
        %v2899 = vld [vmem:[#allocation2 + $0x4e0] sm:$0xff]
        %v2900 = vld [vmem:[#allocation2 + $0x4e8] sm:$0xff]
        %v2901 = vld [vmem:[#allocation2 + $0x4f0] sm:$0xff]
        %v2902 = vld [vmem:[#allocation2 + $0x4f8] sm:$0xff]
        %v2903 = vld [vmem:[#allocation2 + $0x500] sm:$0xff]
        %v2904 = vld [vmem:[#allocation2 + $0x508] sm:$0xff]
        %v2905 = vld [vmem:[#allocation2 + $0x510] sm:$0xff]
        %v2906 = vld [vmem:[#allocation2 + $0x518] sm:$0xff]
        %v2907 = vld [vmem:[#allocation2 + $0x520] sm:$0xff]
        %v2908 = vld [vmem:[#allocation2 + $0x528] sm:$0xff]
        %v2909 = vld [vmem:[#allocation2 + $0x530] sm:$0xff]
        %v2910 = vld [vmem:[#allocation2 + $0x538] sm:$0xff]
        %v2911 = vld [vmem:[#allocation2 + $0x540] sm:$0xff]
        %v2912 = vld [vmem:[#allocation2 + $0x548] sm:$0xff]
        %v2913 = vld [vmem:[#allocation2 + $0x550] sm:$0xff]
        %v2914 = vld [vmem:[#allocation2 + $0x558] sm:$0xff]
        %v2915 = vld [vmem:[#allocation2 + $0x560] sm:$0xff]
        %v2916 = vld [vmem:[#allocation2 + $0x568] sm:$0xff]
        %v2917 = vld [vmem:[#allocation2 + $0x570] sm:$0xff]
        %v2918 = vld [vmem:[#allocation2 + $0x578] sm:$0xff]
        %v2919 = vld [vmem:[#allocation2 + $0x580] sm:$0xff]
        %v2920 = vld [vmem:[#allocation2 + $0x588] sm:$0xff]
        %v2921 = vld [vmem:[#allocation2 + $0x590] sm:$0xff]
        %v2922 = vld [vmem:[#allocation2 + $0x598] sm:$0xff]
        %v2923 = vld [vmem:[#allocation2 + $0x5a0] sm:$0xff]
        %v2924 = vld [vmem:[#allocation2 + $0x5a8] sm:$0xff]
        %v2925 = vld [vmem:[#allocation2 + $0x5b0] sm:$0xff]
        %v2926 = vld [vmem:[#allocation2 + $0x5b8] sm:$0xff]
        %v2927 = vld [vmem:[#allocation2 + $0x5c0] sm:$0xff]
        %v2928 = vld [vmem:[#allocation2 + $0x5c8] sm:$0xff]
        %v2929 = vld [vmem:[#allocation2 + $0x5d0] sm:$0xff]
        %v2930 = vld [vmem:[#allocation2 + $0x5d8] sm:$0xff]
        %v2931 = vld [vmem:[#allocation2 + $0x5e0] sm:$0xff]
        %v2932 = vld [vmem:[#allocation2 + $0x5e8] sm:$0xff]
        %v2933 = vld [vmem:[#allocation2 + $0x5f0] sm:$0xff]
        %v2934 = vld [vmem:[#allocation2 + $0x5f8] sm:$0xff]
        %v2935 = vld [vmem:[#allocation2 + $0x600] sm:$0xff]
        %v2936 = vld [vmem:[#allocation2 + $0x608] sm:$0xff]
        %v2937 = vld [vmem:[#allocation2 + $0x610] sm:$0xff]
        %v2938 = vld [vmem:[#allocation2 + $0x618] sm:$0xff]
        %v2939 = vld [vmem:[#allocation2 + $0x620] sm:$0xff]
        %v2940 = vld [vmem:[#allocation2 + $0x628] sm:$0xff]
        %v2941 = vld [vmem:[#allocation2 + $0x630] sm:$0xff]
        %v2942 = vld [vmem:[#allocation2 + $0x638] sm:$0xff]
        %v2943 = vld [vmem:[#allocation2 + $0x640] sm:$0xff]
        %v2944 = vld [vmem:[#allocation2 + $0x648] sm:$0xff]
        %v2945 = vld [vmem:[#allocation2 + $0x650] sm:$0xff]
        %v2946 = vld [vmem:[#allocation2 + $0x658] sm:$0xff]
        %v2947 = vld [vmem:[#allocation2 + $0x660] sm:$0xff]
        %v2948 = vld [vmem:[#allocation2 + $0x668] sm:$0xff]
        %v2949 = vld [vmem:[#allocation2 + $0x670] sm:$0xff]
        %v2950 = vld [vmem:[#allocation2 + $0x678] sm:$0xff]
        %v2951 = vld [vmem:[#allocation2 + $0x680] sm:$0xff]
        %v2952 = vld [vmem:[#allocation2 + $0x688] sm:$0xff]
        %v2953 = vld [vmem:[#allocation2 + $0x690] sm:$0xff]
        %v2954 = vld [vmem:[#allocation2 + $0x698] sm:$0xff]
        %v2955 = vld [vmem:[#allocation2 + $0x6a0] sm:$0xff]
        %v2956 = vld [vmem:[#allocation2 + $0x6a8] sm:$0xff]
        %v2957 = vld [vmem:[#allocation2 + $0x6b0] sm:$0xff]
        %v2958 = vld [vmem:[#allocation2 + $0x6b8] sm:$0xff]
        %v2959 = vld [vmem:[#allocation2 + $0x6c0] sm:$0xff]
        %v2960 = vld [vmem:[#allocation2 + $0x6c8] sm:$0xff]
        %v2961 = vld [vmem:[#allocation2 + $0x6d0] sm:$0xff]
        %v2962 = vld [vmem:[#allocation2 + $0x6d8] sm:$0xff]
        %v2963 = vld [vmem:[#allocation2 + $0x6e0] sm:$0xff]
        %v2964 = vld [vmem:[#allocation2 + $0x6e8] sm:$0xff]
        %v2965 = vld [vmem:[#allocation2 + $0x6f0] sm:$0xff]
        %v2966 = vld [vmem:[#allocation2 + $0x6f8] sm:$0xff]
        %v2967 = vld [vmem:[#allocation2 + $0x700] sm:$0xff]
        %v2968 = vld [vmem:[#allocation2 + $0x708] sm:$0xff]
        %v2969 = vld [vmem:[#allocation2 + $0x710] sm:$0xff]
        %v2970 = vld [vmem:[#allocation2 + $0x718] sm:$0xff]
        %v2971 = vld [vmem:[#allocation2 + $0x720] sm:$0xff]
        %v2972 = vld [vmem:[#allocation2 + $0x728] sm:$0xff]
        %v2973 = vld [vmem:[#allocation2 + $0x730] sm:$0xff]
        %v2974 = vld [vmem:[#allocation2 + $0x738] sm:$0xff]
        %v2975 = vld [vmem:[#allocation2 + $0x740] sm:$0xff]
        %v2976 = vld [vmem:[#allocation2 + $0x748] sm:$0xff]
        %v2977 = vld [vmem:[#allocation2 + $0x750] sm:$0xff]
        %v2978 = vld [vmem:[#allocation2 + $0x758] sm:$0xff]
        %v2979 = vld [vmem:[#allocation2 + $0x760] sm:$0xff]
        %v2980 = vld [vmem:[#allocation2 + $0x768] sm:$0xff]
        %v2981 = vld [vmem:[#allocation2 + $0x770] sm:$0xff]
        %v2982 = vld [vmem:[#allocation2 + $0x778] sm:$0xff]
        %v2983 = vld [vmem:[#allocation2 + $0x780] sm:$0xff]
        %v2984 = vld [vmem:[#allocation2 + $0x788] sm:$0xff]
        %v2985 = vld [vmem:[#allocation2 + $0x790] sm:$0xff]
        %v2986 = vld [vmem:[#allocation2 + $0x798] sm:$0xff]
        %v2987 = vld [vmem:[#allocation2 + $0x7a0] sm:$0xff]
        %v2988 = vld [vmem:[#allocation2 + $0x7a8] sm:$0xff]
        %v2989 = vld [vmem:[#allocation2 + $0x7b0] sm:$0xff]
        %v2990 = vld [vmem:[#allocation2 + $0x7b8] sm:$0xff]
        %v2991 = vld [vmem:[#allocation2 + $0x7c0] sm:$0xff]
        %v2992 = vld [vmem:[#allocation2 + $0x7c8] sm:$0xff]
        %v2993 = vld [vmem:[#allocation2 + $0x7d0] sm:$0xff]
        %v2994 = vld [vmem:[#allocation2 + $0x7d8] sm:$0xff]
        %v2995 = vld [vmem:[#allocation2 + $0x7e0] sm:$0xff]
        %v2996 = vld [vmem:[#allocation2 + $0x7e8] sm:$0xff]
        %v2997 = vld [vmem:[#allocation2 + $0x7f0] sm:$0xff]
        %v2998 = vld [vmem:[#allocation2 + $0x7f8] sm:$0xff]
        %v2999 = vadd.f32 %v2743, %v2487
        %v3000 = vadd.f32 %v2744, %v2488
        %v3001 = vadd.f32 %v2745, %v2489
        %v3002 = vadd.f32 %v2746, %v2490
        %v3003 = vadd.f32 %v2747, %v2491
        %v3004 = vadd.f32 %v2748, %v2492
        %v3005 = vadd.f32 %v2749, %v2493
        %v3006 = vadd.f32 %v2750, %v2494
        %v3007 = vadd.f32 %v2751, %v2495
        %v3008 = vadd.f32 %v2752, %v2496
        %v3009 = vadd.f32 %v2753, %v2497
        %v3010 = vadd.f32 %v2754, %v2498
        %v3011 = vadd.f32 %v2755, %v2499
        %v3012 = vadd.f32 %v2756, %v2500
        %v3013 = vadd.f32 %v2757, %v2501
        %v3014 = vadd.f32 %v2758, %v2502
        %v3015 = vadd.f32 %v2759, %v2503
        %v3016 = vadd.f32 %v2760, %v2504
        %v3017 = vadd.f32 %v2761, %v2505
        %v3018 = vadd.f32 %v2762, %v2506
        %v3019 = vadd.f32 %v2763, %v2507
        %v3020 = vadd.f32 %v2764, %v2508
        %v3021 = vadd.f32 %v2765, %v2509
        %v3022 = vadd.f32 %v2766, %v2510
        %v3023 = vadd.f32 %v2767, %v2511
        %v3024 = vadd.f32 %v2768, %v2512
        %v3025 = vadd.f32 %v2769, %v2513
        %v3026 = vadd.f32 %v2770, %v2514
        %v3027 = vadd.f32 %v2771, %v2515
        %v3028 = vadd.f32 %v2772, %v2516
        %v3029 = vadd.f32 %v2773, %v2517
        %v3030 = vadd.f32 %v2774, %v2518
        %v3031 = vadd.f32 %v2775, %v2519
        %v3032 = vadd.f32 %v2776, %v2520
        %v3033 = vadd.f32 %v2777, %v2521
        %v3034 = vadd.f32 %v2778, %v2522
        %v3035 = vadd.f32 %v2779, %v2523
        %v3036 = vadd.f32 %v2780, %v2524
        %v3037 = vadd.f32 %v2781, %v2525
        %v3038 = vadd.f32 %v2782, %v2526
        %v3039 = vadd.f32 %v2783, %v2527
        %v3040 = vadd.f32 %v2784, %v2528
        %v3041 = vadd.f32 %v2785, %v2529
        %v3042 = vadd.f32 %v2786, %v2530
        %v3043 = vadd.f32 %v2787, %v2531
        %v3044 = vadd.f32 %v2788, %v2532
        %v3045 = vadd.f32 %v2789, %v2533
        %v3046 = vadd.f32 %v2790, %v2534
        %v3047 = vadd.f32 %v2791, %v2535
        %v3048 = vadd.f32 %v2792, %v2536
        %v3049 = vadd.f32 %v2793, %v2537
        %v3050 = vadd.f32 %v2794, %v2538
        %v3051 = vadd.f32 %v2795, %v2539
        %v3052 = vadd.f32 %v2796, %v2540
        %v3053 = vadd.f32 %v2797, %v2541
        %v3054 = vadd.f32 %v2798, %v2542
        %v3055 = vadd.f32 %v2799, %v2543
        %v3056 = vadd.f32 %v2800, %v2544
        %v3057 = vadd.f32 %v2801, %v2545
        %v3058 = vadd.f32 %v2802, %v2546
        %v3059 = vadd.f32 %v2803, %v2547
        %v3060 = vadd.f32 %v2804, %v2548
        %v3061 = vadd.f32 %v2805, %v2549
        %v3062 = vadd.f32 %v2806, %v2550
        %v3063 = vadd.f32 %v2807, %v2551
        %v3064 = vadd.f32 %v2808, %v2552
        %v3065 = vadd.f32 %v2809, %v2553
        %v3066 = vadd.f32 %v2810, %v2554
        %v3067 = vadd.f32 %v2811, %v2555
        %v3068 = vadd.f32 %v2812, %v2556
        %v3069 = vadd.f32 %v2813, %v2557
        %v3070 = vadd.f32 %v2814, %v2558
        %v3071 = vadd.f32 %v2815, %v2559
        %v3072 = vadd.f32 %v2816, %v2560
        %v3073 = vadd.f32 %v2817, %v2561
        %v3074 = vadd.f32 %v2818, %v2562
        %v3075 = vadd.f32 %v2819, %v2563
        %v3076 = vadd.f32 %v2820, %v2564
        %v3077 = vadd.f32 %v2821, %v2565
        %v3078 = vadd.f32 %v2822, %v2566
        %v3079 = vadd.f32 %v2823, %v2567
        %v3080 = vadd.f32 %v2824, %v2568
        %v3081 = vadd.f32 %v2825, %v2569
        %v3082 = vadd.f32 %v2826, %v2570
        %v3083 = vadd.f32 %v2827, %v2571
        %v3084 = vadd.f32 %v2828, %v2572
        %v3085 = vadd.f32 %v2829, %v2573
        %v3086 = vadd.f32 %v2830, %v2574
        %v3087 = vadd.f32 %v2831, %v2575
        %v3088 = vadd.f32 %v2832, %v2576
        %v3089 = vadd.f32 %v2833, %v2577
        %v3090 = vadd.f32 %v2834, %v2578
        %v3091 = vadd.f32 %v2835, %v2579
        %v3092 = vadd.f32 %v2836, %v2580
        %v3093 = vadd.f32 %v2837, %v2581
        %v3094 = vadd.f32 %v2838, %v2582
        %v3095 = vadd.f32 %v2839, %v2583
        %v3096 = vadd.f32 %v2840, %v2584
        %v3097 = vadd.f32 %v2841, %v2585
        %v3098 = vadd.f32 %v2842, %v2586
        %v3099 = vadd.f32 %v2843, %v2587
        %v3100 = vadd.f32 %v2844, %v2588
        %v3101 = vadd.f32 %v2845, %v2589
        %v3102 = vadd.f32 %v2846, %v2590
        %v3103 = vadd.f32 %v2847, %v2591
        %v3104 = vadd.f32 %v2848, %v2592
        %v3105 = vadd.f32 %v2849, %v2593
        %v3106 = vadd.f32 %v2850, %v2594
        %v3107 = vadd.f32 %v2851, %v2595
        %v3108 = vadd.f32 %v2852, %v2596
        %v3109 = vadd.f32 %v2853, %v2597
        %v3110 = vadd.f32 %v2854, %v2598
        %v3111 = vadd.f32 %v2855, %v2599
        %v3112 = vadd.f32 %v2856, %v2600
        %v3113 = vadd.f32 %v2857, %v2601
        %v3114 = vadd.f32 %v2858, %v2602
        %v3115 = vadd.f32 %v2859, %v2603
        %v3116 = vadd.f32 %v2860, %v2604
        %v3117 = vadd.f32 %v2861, %v2605
        %v3118 = vadd.f32 %v2862, %v2606
        %v3119 = vadd.f32 %v2863, %v2607
        %v3120 = vadd.f32 %v2864, %v2608
        %v3121 = vadd.f32 %v2865, %v2609
        %v3122 = vadd.f32 %v2866, %v2610
        %v3123 = vadd.f32 %v2867, %v2611
        %v3124 = vadd.f32 %v2868, %v2612
        %v3125 = vadd.f32 %v2869, %v2613
        %v3126 = vadd.f32 %v2870, %v2614
        %v3127 = vadd.f32 %v2871, %v2615
        %v3128 = vadd.f32 %v2872, %v2616
        %v3129 = vadd.f32 %v2873, %v2617
        %v3130 = vadd.f32 %v2874, %v2618
        %v3131 = vadd.f32 %v2875, %v2619
        %v3132 = vadd.f32 %v2876, %v2620
        %v3133 = vadd.f32 %v2877, %v2621
        %v3134 = vadd.f32 %v2878, %v2622
        %v3135 = vadd.f32 %v2879, %v2623
        %v3136 = vadd.f32 %v2880, %v2624
        %v3137 = vadd.f32 %v2881, %v2625
        %v3138 = vadd.f32 %v2882, %v2626
        %v3139 = vadd.f32 %v2883, %v2627
        %v3140 = vadd.f32 %v2884, %v2628
        %v3141 = vadd.f32 %v2885, %v2629
        %v3142 = vadd.f32 %v2886, %v2630
        %v3143 = vadd.f32 %v2887, %v2631
        %v3144 = vadd.f32 %v2888, %v2632
        %v3145 = vadd.f32 %v2889, %v2633
        %v3146 = vadd.f32 %v2890, %v2634
        %v3147 = vadd.f32 %v2891, %v2635
        %v3148 = vadd.f32 %v2892, %v2636
        %v3149 = vadd.f32 %v2893, %v2637
        %v3150 = vadd.f32 %v2894, %v2638
        %v3151 = vadd.f32 %v2895, %v2639
        %v3152 = vadd.f32 %v2896, %v2640
        %v3153 = vadd.f32 %v2897, %v2641
        %v3154 = vadd.f32 %v2898, %v2642
        %v3155 = vadd.f32 %v2899, %v2643
        %v3156 = vadd.f32 %v2900, %v2644
        %v3157 = vadd.f32 %v2901, %v2645
        %v3158 = vadd.f32 %v2902, %v2646
        %v3159 = vadd.f32 %v2903, %v2647
        %v3160 = vadd.f32 %v2904, %v2648
        %v3161 = vadd.f32 %v2905, %v2649
        %v3162 = vadd.f32 %v2906, %v2650
        %v3163 = vadd.f32 %v2907, %v2651
        %v3164 = vadd.f32 %v2908, %v2652
        %v3165 = vadd.f32 %v2909, %v2653
        %v3166 = vadd.f32 %v2910, %v2654
        %v3167 = vadd.f32 %v2911, %v2655
        %v3168 = vadd.f32 %v2912, %v2656
        %v3169 = vadd.f32 %v2913, %v2657
        %v3170 = vadd.f32 %v2914, %v2658
        %v3171 = vadd.f32 %v2915, %v2659
        %v3172 = vadd.f32 %v2916, %v2660
        %v3173 = vadd.f32 %v2917, %v2661
        %v3174 = vadd.f32 %v2918, %v2662
        %v3175 = vadd.f32 %v2919, %v2663
        %v3176 = vadd.f32 %v2920, %v2664
        %v3177 = vadd.f32 %v2921, %v2665
        %v3178 = vadd.f32 %v2922, %v2666
        %v3179 = vadd.f32 %v2923, %v2667
        %v3180 = vadd.f32 %v2924, %v2668
        %v3181 = vadd.f32 %v2925, %v2669
        %v3182 = vadd.f32 %v2926, %v2670
        %v3183 = vadd.f32 %v2927, %v2671
        %v3184 = vadd.f32 %v2928, %v2672
        %v3185 = vadd.f32 %v2929, %v2673
        %v3186 = vadd.f32 %v2930, %v2674
        %v3187 = vadd.f32 %v2931, %v2675
        %v3188 = vadd.f32 %v2932, %v2676
        %v3189 = vadd.f32 %v2933, %v2677
        %v3190 = vadd.f32 %v2934, %v2678
        %v3191 = vadd.f32 %v2935, %v2679
        %v3192 = vadd.f32 %v2936, %v2680
        %v3193 = vadd.f32 %v2937, %v2681
        %v3194 = vadd.f32 %v2938, %v2682
        %v3195 = vadd.f32 %v2939, %v2683
        %v3196 = vadd.f32 %v2940, %v2684
        %v3197 = vadd.f32 %v2941, %v2685
        %v3198 = vadd.f32 %v2942, %v2686
        %v3199 = vadd.f32 %v2943, %v2687
        %v3200 = vadd.f32 %v2944, %v2688
        %v3201 = vadd.f32 %v2945, %v2689
        %v3202 = vadd.f32 %v2946, %v2690
        %v3203 = vadd.f32 %v2947, %v2691
        %v3204 = vadd.f32 %v2948, %v2692
        %v3205 = vadd.f32 %v2949, %v2693
        %v3206 = vadd.f32 %v2950, %v2694
        %v3207 = vadd.f32 %v2951, %v2695
        %v3208 = vadd.f32 %v2952, %v2696
        %v3209 = vadd.f32 %v2953, %v2697
        %v3210 = vadd.f32 %v2954, %v2698
        %v3211 = vadd.f32 %v2955, %v2699
        %v3212 = vadd.f32 %v2956, %v2700
        %v3213 = vadd.f32 %v2957, %v2701
        %v3214 = vadd.f32 %v2958, %v2702
        %v3215 = vadd.f32 %v2959, %v2703
        %v3216 = vadd.f32 %v2960, %v2704
        %v3217 = vadd.f32 %v2961, %v2705
        %v3218 = vadd.f32 %v2962, %v2706
        %v3219 = vadd.f32 %v2963, %v2707
        %v3220 = vadd.f32 %v2964, %v2708
        %v3221 = vadd.f32 %v2965, %v2709
        %v3222 = vadd.f32 %v2966, %v2710
        %v3223 = vadd.f32 %v2967, %v2711
        %v3224 = vadd.f32 %v2968, %v2712
        %v3225 = vadd.f32 %v2969, %v2713
        %v3226 = vadd.f32 %v2970, %v2714
        %v3227 = vadd.f32 %v2971, %v2715
        %v3228 = vadd.f32 %v2972, %v2716
        %v3229 = vadd.f32 %v2973, %v2717
        %v3230 = vadd.f32 %v2974, %v2718
        %v3231 = vadd.f32 %v2975, %v2719
        %v3232 = vadd.f32 %v2976, %v2720
        %v3233 = vadd.f32 %v2977, %v2721
        %v3234 = vadd.f32 %v2978, %v2722
        %v3235 = vadd.f32 %v2979, %v2723
        %v3236 = vadd.f32 %v2980, %v2724
        %v3237 = vadd.f32 %v2981, %v2725
        %v3238 = vadd.f32 %v2982, %v2726
        %v3239 = vadd.f32 %v2983, %v2727
        %v3240 = vadd.f32 %v2984, %v2728
        %v3241 = vadd.f32 %v2985, %v2729
        %v3242 = vadd.f32 %v2986, %v2730
        %v3243 = vadd.f32 %v2987, %v2731
        %v3244 = vadd.f32 %v2988, %v2732
        %v3245 = vadd.f32 %v2989, %v2733
        %v3246 = vadd.f32 %v2990, %v2734
        %v3247 = vadd.f32 %v2991, %v2735
        %v3248 = vadd.f32 %v2992, %v2736
        %v3249 = vadd.f32 %v2993, %v2737
        %v3250 = vadd.f32 %v2994, %v2738
        %v3251 = vadd.f32 %v2995, %v2739
        %v3252 = vadd.f32 %v2996, %v2740
        %v3253 = vadd.f32 %v2997, %v2741
        %v3254 = vadd.f32 %v2998, %v2742
        %3255 = vst [vmem:[#allocation2] sm:$0xff] %v2999
        %3256 = vst [vmem:[#allocation2 + $0x8] sm:$0xff] %v3000
        %3257 = vst [vmem:[#allocation2 + $0x10] sm:$0xff] %v3001
        %3258 = vst [vmem:[#allocation2 + $0x18] sm:$0xff] %v3002
        %3259 = vst [vmem:[#allocation2 + $0x20] sm:$0xff] %v3003
        %3260 = vst [vmem:[#allocation2 + $0x28] sm:$0xff] %v3004
        %3261 = vst [vmem:[#allocation2 + $0x30] sm:$0xff] %v3005
        %3262 = vst [vmem:[#allocation2 + $0x38] sm:$0xff] %v3006
        %3263 = vst [vmem:[#allocation2 + $0x40] sm:$0xff] %v3007
        %3264 = vst [vmem:[#allocation2 + $0x48] sm:$0xff] %v3008
        %3265 = vst [vmem:[#allocation2 + $0x50] sm:$0xff] %v3009
        %3266 = vst [vmem:[#allocation2 + $0x58] sm:$0xff] %v3010
        %3267 = vst [vmem:[#allocation2 + $0x60] sm:$0xff] %v3011
        %3268 = vst [vmem:[#allocation2 + $0x68] sm:$0xff] %v3012
        %3269 = vst [vmem:[#allocation2 + $0x70] sm:$0xff] %v3013
        %3270 = vst [vmem:[#allocation2 + $0x78] sm:$0xff] %v3014
        %3271 = vst [vmem:[#allocation2 + $0x80] sm:$0xff] %v3015
        %3272 = vst [vmem:[#allocation2 + $0x88] sm:$0xff] %v3016
        %3273 = vst [vmem:[#allocation2 + $0x90] sm:$0xff] %v3017
        %3274 = vst [vmem:[#allocation2 + $0x98] sm:$0xff] %v3018
        %3275 = vst [vmem:[#allocation2 + $0xa0] sm:$0xff] %v3019
        %3276 = vst [vmem:[#allocation2 + $0xa8] sm:$0xff] %v3020
        %3277 = vst [vmem:[#allocation2 + $0xb0] sm:$0xff] %v3021
        %3278 = vst [vmem:[#allocation2 + $0xb8] sm:$0xff] %v3022
        %3279 = vst [vmem:[#allocation2 + $0xc0] sm:$0xff] %v3023
        %3280 = vst [vmem:[#allocation2 + $0xc8] sm:$0xff] %v3024
        %3281 = vst [vmem:[#allocation2 + $0xd0] sm:$0xff] %v3025
        %3282 = vst [vmem:[#allocation2 + $0xd8] sm:$0xff] %v3026
        %3283 = vst [vmem:[#allocation2 + $0xe0] sm:$0xff] %v3027
        %3284 = vst [vmem:[#allocation2 + $0xe8] sm:$0xff] %v3028
        %3285 = vst [vmem:[#allocation2 + $0xf0] sm:$0xff] %v3029
        %3286 = vst [vmem:[#allocation2 + $0xf8] sm:$0xff] %v3030
        %3287 = vst [vmem:[#allocation2 + $0x100] sm:$0xff] %v3031
        %3288 = vst [vmem:[#allocation2 + $0x108] sm:$0xff] %v3032
        %3289 = vst [vmem:[#allocation2 + $0x110] sm:$0xff] %v3033
        %3290 = vst [vmem:[#allocation2 + $0x118] sm:$0xff] %v3034
        %3291 = vst [vmem:[#allocation2 + $0x120] sm:$0xff] %v3035
        %3292 = vst [vmem:[#allocation2 + $0x128] sm:$0xff] %v3036
        %3293 = vst [vmem:[#allocation2 + $0x130] sm:$0xff] %v3037
        %3294 = vst [vmem:[#allocation2 + $0x138] sm:$0xff] %v3038
        %3295 = vst [vmem:[#allocation2 + $0x140] sm:$0xff] %v3039
        %3296 = vst [vmem:[#allocation2 + $0x148] sm:$0xff] %v3040
        %3297 = vst [vmem:[#allocation2 + $0x150] sm:$0xff] %v3041
        %3298 = vst [vmem:[#allocation2 + $0x158] sm:$0xff] %v3042
        %3299 = vst [vmem:[#allocation2 + $0x160] sm:$0xff] %v3043
        %3300 = vst [vmem:[#allocation2 + $0x168] sm:$0xff] %v3044
        %3301 = vst [vmem:[#allocation2 + $0x170] sm:$0xff] %v3045
        %3302 = vst [vmem:[#allocation2 + $0x178] sm:$0xff] %v3046
        %3303 = vst [vmem:[#allocation2 + $0x180] sm:$0xff] %v3047
        %3304 = vst [vmem:[#allocation2 + $0x188] sm:$0xff] %v3048
        %3305 = vst [vmem:[#allocation2 + $0x190] sm:$0xff] %v3049
        %3306 = vst [vmem:[#allocation2 + $0x198] sm:$0xff] %v3050
        %3307 = vst [vmem:[#allocation2 + $0x1a0] sm:$0xff] %v3051
        %3308 = vst [vmem:[#allocation2 + $0x1a8] sm:$0xff] %v3052
        %3309 = vst [vmem:[#allocation2 + $0x1b0] sm:$0xff] %v3053
        %3310 = vst [vmem:[#allocation2 + $0x1b8] sm:$0xff] %v3054
        %3311 = vst [vmem:[#allocation2 + $0x1c0] sm:$0xff] %v3055
        %3312 = vst [vmem:[#allocation2 + $0x1c8] sm:$0xff] %v3056
        %3313 = vst [vmem:[#allocation2 + $0x1d0] sm:$0xff] %v3057
        %3314 = vst [vmem:[#allocation2 + $0x1d8] sm:$0xff] %v3058
        %3315 = vst [vmem:[#allocation2 + $0x1e0] sm:$0xff] %v3059
        %3316 = vst [vmem:[#allocation2 + $0x1e8] sm:$0xff] %v3060
        %3317 = vst [vmem:[#allocation2 + $0x1f0] sm:$0xff] %v3061
        %3318 = vst [vmem:[#allocation2 + $0x1f8] sm:$0xff] %v3062
        %3319 = vst [vmem:[#allocation2 + $0x200] sm:$0xff] %v3063
        %3320 = vst [vmem:[#allocation2 + $0x208] sm:$0xff] %v3064
        %3321 = vst [vmem:[#allocation2 + $0x210] sm:$0xff] %v3065
        %3322 = vst [vmem:[#allocation2 + $0x218] sm:$0xff] %v3066
        %3323 = vst [vmem:[#allocation2 + $0x220] sm:$0xff] %v3067
        %3324 = vst [vmem:[#allocation2 + $0x228] sm:$0xff] %v3068
        %3325 = vst [vmem:[#allocation2 + $0x230] sm:$0xff] %v3069
        %3326 = vst [vmem:[#allocation2 + $0x238] sm:$0xff] %v3070
        %3327 = vst [vmem:[#allocation2 + $0x240] sm:$0xff] %v3071
        %3328 = vst [vmem:[#allocation2 + $0x248] sm:$0xff] %v3072
        %3329 = vst [vmem:[#allocation2 + $0x250] sm:$0xff] %v3073
        %3330 = vst [vmem:[#allocation2 + $0x258] sm:$0xff] %v3074
        %3331 = vst [vmem:[#allocation2 + $0x260] sm:$0xff] %v3075
        %3332 = vst [vmem:[#allocation2 + $0x268] sm:$0xff] %v3076
        %3333 = vst [vmem:[#allocation2 + $0x270] sm:$0xff] %v3077
        %3334 = vst [vmem:[#allocation2 + $0x278] sm:$0xff] %v3078
        %3335 = vst [vmem:[#allocation2 + $0x280] sm:$0xff] %v3079
        %3336 = vst [vmem:[#allocation2 + $0x288] sm:$0xff] %v3080
        %3337 = vst [vmem:[#allocation2 + $0x290] sm:$0xff] %v3081
        %3338 = vst [vmem:[#allocation2 + $0x298] sm:$0xff] %v3082
        %3339 = vst [vmem:[#allocation2 + $0x2a0] sm:$0xff] %v3083
        %3340 = vst [vmem:[#allocation2 + $0x2a8] sm:$0xff] %v3084
        %3341 = vst [vmem:[#allocation2 + $0x2b0] sm:$0xff] %v3085
        %3342 = vst [vmem:[#allocation2 + $0x2b8] sm:$0xff] %v3086
        %3343 = vst [vmem:[#allocation2 + $0x2c0] sm:$0xff] %v3087
        %3344 = vst [vmem:[#allocation2 + $0x2c8] sm:$0xff] %v3088
        %3345 = vst [vmem:[#allocation2 + $0x2d0] sm:$0xff] %v3089
        %3346 = vst [vmem:[#allocation2 + $0x2d8] sm:$0xff] %v3090
        %3347 = vst [vmem:[#allocation2 + $0x2e0] sm:$0xff] %v3091
        %3348 = vst [vmem:[#allocation2 + $0x2e8] sm:$0xff] %v3092
        %3349 = vst [vmem:[#allocation2 + $0x2f0] sm:$0xff] %v3093
        %3350 = vst [vmem:[#allocation2 + $0x2f8] sm:$0xff] %v3094
        %3351 = vst [vmem:[#allocation2 + $0x300] sm:$0xff] %v3095
        %3352 = vst [vmem:[#allocation2 + $0x308] sm:$0xff] %v3096
        %3353 = vst [vmem:[#allocation2 + $0x310] sm:$0xff] %v3097
        %3354 = vst [vmem:[#allocation2 + $0x318] sm:$0xff] %v3098
        %3355 = vst [vmem:[#allocation2 + $0x320] sm:$0xff] %v3099
        %3356 = vst [vmem:[#allocation2 + $0x328] sm:$0xff] %v3100
        %3357 = vst [vmem:[#allocation2 + $0x330] sm:$0xff] %v3101
        %3358 = vst [vmem:[#allocation2 + $0x338] sm:$0xff] %v3102
        %3359 = vst [vmem:[#allocation2 + $0x340] sm:$0xff] %v3103
        %3360 = vst [vmem:[#allocation2 + $0x348] sm:$0xff] %v3104
        %3361 = vst [vmem:[#allocation2 + $0x350] sm:$0xff] %v3105
        %3362 = vst [vmem:[#allocation2 + $0x358] sm:$0xff] %v3106
        %3363 = vst [vmem:[#allocation2 + $0x360] sm:$0xff] %v3107
        %3364 = vst [vmem:[#allocation2 + $0x368] sm:$0xff] %v3108
        %3365 = vst [vmem:[#allocation2 + $0x370] sm:$0xff] %v3109
        %3366 = vst [vmem:[#allocation2 + $0x378] sm:$0xff] %v3110
        %3367 = vst [vmem:[#allocation2 + $0x380] sm:$0xff] %v3111
        %3368 = vst [vmem:[#allocation2 + $0x388] sm:$0xff] %v3112
        %3369 = vst [vmem:[#allocation2 + $0x390] sm:$0xff] %v3113
        %3370 = vst [vmem:[#allocation2 + $0x398] sm:$0xff] %v3114
        %3371 = vst [vmem:[#allocation2 + $0x3a0] sm:$0xff] %v3115
        %3372 = vst [vmem:[#allocation2 + $0x3a8] sm:$0xff] %v3116
        %3373 = vst [vmem:[#allocation2 + $0x3b0] sm:$0xff] %v3117
        %3374 = vst [vmem:[#allocation2 + $0x3b8] sm:$0xff] %v3118
        %3375 = vst [vmem:[#allocation2 + $0x3c0] sm:$0xff] %v3119
        %3376 = vst [vmem:[#allocation2 + $0x3c8] sm:$0xff] %v3120
        %3377 = vst [vmem:[#allocation2 + $0x3d0] sm:$0xff] %v3121
        %3378 = vst [vmem:[#allocation2 + $0x3d8] sm:$0xff] %v3122
        %3379 = vst [vmem:[#allocation2 + $0x3e0] sm:$0xff] %v3123
        %3380 = vst [vmem:[#allocation2 + $0x3e8] sm:$0xff] %v3124
        %3381 = vst [vmem:[#allocation2 + $0x3f0] sm:$0xff] %v3125
        %3382 = vst [vmem:[#allocation2 + $0x3f8] sm:$0xff] %v3126
        %3383 = vst [vmem:[#allocation2 + $0x400] sm:$0xff] %v3127
        %3384 = vst [vmem:[#allocation2 + $0x408] sm:$0xff] %v3128
        %3385 = vst [vmem:[#allocation2 + $0x410] sm:$0xff] %v3129
        %3386 = vst [vmem:[#allocation2 + $0x418] sm:$0xff] %v3130
        %3387 = vst [vmem:[#allocation2 + $0x420] sm:$0xff] %v3131
        %3388 = vst [vmem:[#allocation2 + $0x428] sm:$0xff] %v3132
        %3389 = vst [vmem:[#allocation2 + $0x430] sm:$0xff] %v3133
        %3390 = vst [vmem:[#allocation2 + $0x438] sm:$0xff] %v3134
        %3391 = vst [vmem:[#allocation2 + $0x440] sm:$0xff] %v3135
        %3392 = vst [vmem:[#allocation2 + $0x448] sm:$0xff] %v3136
        %3393 = vst [vmem:[#allocation2 + $0x450] sm:$0xff] %v3137
        %3394 = vst [vmem:[#allocation2 + $0x458] sm:$0xff] %v3138
        %3395 = vst [vmem:[#allocation2 + $0x460] sm:$0xff] %v3139
        %3396 = vst [vmem:[#allocation2 + $0x468] sm:$0xff] %v3140
        %3397 = vst [vmem:[#allocation2 + $0x470] sm:$0xff] %v3141
        %3398 = vst [vmem:[#allocation2 + $0x478] sm:$0xff] %v3142
        %3399 = vst [vmem:[#allocation2 + $0x480] sm:$0xff] %v3143
        %3400 = vst [vmem:[#allocation2 + $0x488] sm:$0xff] %v3144
        %3401 = vst [vmem:[#allocation2 + $0x490] sm:$0xff] %v3145
        %3402 = vst [vmem:[#allocation2 + $0x498] sm:$0xff] %v3146
        %3403 = vst [vmem:[#allocation2 + $0x4a0] sm:$0xff] %v3147
        %3404 = vst [vmem:[#allocation2 + $0x4a8] sm:$0xff] %v3148
        %3405 = vst [vmem:[#allocation2 + $0x4b0] sm:$0xff] %v3149
        %3406 = vst [vmem:[#allocation2 + $0x4b8] sm:$0xff] %v3150
        %3407 = vst [vmem:[#allocation2 + $0x4c0] sm:$0xff] %v3151
        %3408 = vst [vmem:[#allocation2 + $0x4c8] sm:$0xff] %v3152
        %3409 = vst [vmem:[#allocation2 + $0x4d0] sm:$0xff] %v3153
        %3410 = vst [vmem:[#allocation2 + $0x4d8] sm:$0xff] %v3154
        %3411 = vst [vmem:[#allocation2 + $0x4e0] sm:$0xff] %v3155
        %3412 = vst [vmem:[#allocation2 + $0x4e8] sm:$0xff] %v3156
        %3413 = vst [vmem:[#allocation2 + $0x4f0] sm:$0xff] %v3157
        %3414 = vst [vmem:[#allocation2 + $0x4f8] sm:$0xff] %v3158
        %3415 = vst [vmem:[#allocation2 + $0x500] sm:$0xff] %v3159
        %3416 = vst [vmem:[#allocation2 + $0x508] sm:$0xff] %v3160
        %3417 = vst [vmem:[#allocation2 + $0x510] sm:$0xff] %v3161
        %3418 = vst [vmem:[#allocation2 + $0x518] sm:$0xff] %v3162
        %3419 = vst [vmem:[#allocation2 + $0x520] sm:$0xff] %v3163
        %3420 = vst [vmem:[#allocation2 + $0x528] sm:$0xff] %v3164
        %3421 = vst [vmem:[#allocation2 + $0x530] sm:$0xff] %v3165
        %3422 = vst [vmem:[#allocation2 + $0x538] sm:$0xff] %v3166
        %3423 = vst [vmem:[#allocation2 + $0x540] sm:$0xff] %v3167
        %3424 = vst [vmem:[#allocation2 + $0x548] sm:$0xff] %v3168
        %3425 = vst [vmem:[#allocation2 + $0x550] sm:$0xff] %v3169
        %3426 = vst [vmem:[#allocation2 + $0x558] sm:$0xff] %v3170
        %3427 = vst [vmem:[#allocation2 + $0x560] sm:$0xff] %v3171
        %3428 = vst [vmem:[#allocation2 + $0x568] sm:$0xff] %v3172
        %3429 = vst [vmem:[#allocation2 + $0x570] sm:$0xff] %v3173
        %3430 = vst [vmem:[#allocation2 + $0x578] sm:$0xff] %v3174
        %3431 = vst [vmem:[#allocation2 + $0x580] sm:$0xff] %v3175
        %3432 = vst [vmem:[#allocation2 + $0x588] sm:$0xff] %v3176
        %3433 = vst [vmem:[#allocation2 + $0x590] sm:$0xff] %v3177
        %3434 = vst [vmem:[#allocation2 + $0x598] sm:$0xff] %v3178
        %3435 = vst [vmem:[#allocation2 + $0x5a0] sm:$0xff] %v3179
        %3436 = vst [vmem:[#allocation2 + $0x5a8] sm:$0xff] %v3180
        %3437 = vst [vmem:[#allocation2 + $0x5b0] sm:$0xff] %v3181
        %3438 = vst [vmem:[#allocation2 + $0x5b8] sm:$0xff] %v3182
        %3439 = vst [vmem:[#allocation2 + $0x5c0] sm:$0xff] %v3183
        %3440 = vst [vmem:[#allocation2 + $0x5c8] sm:$0xff] %v3184
        %3441 = vst [vmem:[#allocation2 + $0x5d0] sm:$0xff] %v3185
        %3442 = vst [vmem:[#allocation2 + $0x5d8] sm:$0xff] %v3186
        %3443 = vst [vmem:[#allocation2 + $0x5e0] sm:$0xff] %v3187
        %3444 = vst [vmem:[#allocation2 + $0x5e8] sm:$0xff] %v3188
        %3445 = vst [vmem:[#allocation2 + $0x5f0] sm:$0xff] %v3189
        %3446 = vst [vmem:[#allocation2 + $0x5f8] sm:$0xff] %v3190
        %3447 = vst [vmem:[#allocation2 + $0x600] sm:$0xff] %v3191
        %3448 = vst [vmem:[#allocation2 + $0x608] sm:$0xff] %v3192
        %3449 = vst [vmem:[#allocation2 + $0x610] sm:$0xff] %v3193
        %3450 = vst [vmem:[#allocation2 + $0x618] sm:$0xff] %v3194
        %3451 = vst [vmem:[#allocation2 + $0x620] sm:$0xff] %v3195
        %3452 = vst [vmem:[#allocation2 + $0x628] sm:$0xff] %v3196
        %3453 = vst [vmem:[#allocation2 + $0x630] sm:$0xff] %v3197
        %3454 = vst [vmem:[#allocation2 + $0x638] sm:$0xff] %v3198
        %3455 = vst [vmem:[#allocation2 + $0x640] sm:$0xff] %v3199
        %3456 = vst [vmem:[#allocation2 + $0x648] sm:$0xff] %v3200
        %3457 = vst [vmem:[#allocation2 + $0x650] sm:$0xff] %v3201
        %3458 = vst [vmem:[#allocation2 + $0x658] sm:$0xff] %v3202
        %3459 = vst [vmem:[#allocation2 + $0x660] sm:$0xff] %v3203
        %3460 = vst [vmem:[#allocation2 + $0x668] sm:$0xff] %v3204
        %3461 = vst [vmem:[#allocation2 + $0x670] sm:$0xff] %v3205
        %3462 = vst [vmem:[#allocation2 + $0x678] sm:$0xff] %v3206
        %3463 = vst [vmem:[#allocation2 + $0x680] sm:$0xff] %v3207
        %3464 = vst [vmem:[#allocation2 + $0x688] sm:$0xff] %v3208
        %3465 = vst [vmem:[#allocation2 + $0x690] sm:$0xff] %v3209
        %3466 = vst [vmem:[#allocation2 + $0x698] sm:$0xff] %v3210
        %3467 = vst [vmem:[#allocation2 + $0x6a0] sm:$0xff] %v3211
        %3468 = vst [vmem:[#allocation2 + $0x6a8] sm:$0xff] %v3212
        %3469 = vst [vmem:[#allocation2 + $0x6b0] sm:$0xff] %v3213
        %3470 = vst [vmem:[#allocation2 + $0x6b8] sm:$0xff] %v3214
        %3471 = vst [vmem:[#allocation2 + $0x6c0] sm:$0xff] %v3215
        %3472 = vst [vmem:[#allocation2 + $0x6c8] sm:$0xff] %v3216
        %3473 = vst [vmem:[#allocation2 + $0x6d0] sm:$0xff] %v3217
        %3474 = vst [vmem:[#allocation2 + $0x6d8] sm:$0xff] %v3218
        %3475 = vst [vmem:[#allocation2 + $0x6e0] sm:$0xff] %v3219
        %3476 = vst [vmem:[#allocation2 + $0x6e8] sm:$0xff] %v3220
        %3477 = vst [vmem:[#allocation2 + $0x6f0] sm:$0xff] %v3221
        %3478 = vst [vmem:[#allocation2 + $0x6f8] sm:$0xff] %v3222
        %3479 = vst [vmem:[#allocation2 + $0x700] sm:$0xff] %v3223
        %3480 = vst [vmem:[#allocation2 + $0x708] sm:$0xff] %v3224
        %3481 = vst [vmem:[#allocation2 + $0x710] sm:$0xff] %v3225
        %3482 = vst [vmem:[#allocation2 + $0x718] sm:$0xff] %v3226
        %3483 = vst [vmem:[#allocation2 + $0x720] sm:$0xff] %v3227
        %3484 = vst [vmem:[#allocation2 + $0x728] sm:$0xff] %v3228
        %3485 = vst [vmem:[#allocation2 + $0x730] sm:$0xff] %v3229
        %3486 = vst [vmem:[#allocation2 + $0x738] sm:$0xff] %v3230
        %3487 = vst [vmem:[#allocation2 + $0x740] sm:$0xff] %v3231
        %3488 = vst [vmem:[#allocation2 + $0x748] sm:$0xff] %v3232
        %3489 = vst [vmem:[#allocation2 + $0x750] sm:$0xff] %v3233
        %3490 = vst [vmem:[#allocation2 + $0x758] sm:$0xff] %v3234
        %3491 = vst [vmem:[#allocation2 + $0x760] sm:$0xff] %v3235
        %3492 = vst [vmem:[#allocation2 + $0x768] sm:$0xff] %v3236
        %3493 = vst [vmem:[#allocation2 + $0x770] sm:$0xff] %v3237
        %3494 = vst [vmem:[#allocation2 + $0x778] sm:$0xff] %v3238
        %3495 = vst [vmem:[#allocation2 + $0x780] sm:$0xff] %v3239
        %3496 = vst [vmem:[#allocation2 + $0x788] sm:$0xff] %v3240
        %3497 = vst [vmem:[#allocation2 + $0x790] sm:$0xff] %v3241
        %3498 = vst [vmem:[#allocation2 + $0x798] sm:$0xff] %v3242
        %3499 = vst [vmem:[#allocation2 + $0x7a0] sm:$0xff] %v3243
        %3500 = vst [vmem:[#allocation2 + $0x7a8] sm:$0xff] %v3244
        %3501 = vst [vmem:[#allocation2 + $0x7b0] sm:$0xff] %v3245
        %3502 = vst [vmem:[#allocation2 + $0x7b8] sm:$0xff] %v3246
        %3503 = vst [vmem:[#allocation2 + $0x7c0] sm:$0xff] %v3247
        %3504 = vst [vmem:[#allocation2 + $0x7c8] sm:$0xff] %v3248
        %3505 = vst [vmem:[#allocation2 + $0x7d0] sm:$0xff] %v3249
        %3506 = vst [vmem:[#allocation2 + $0x7d8] sm:$0xff] %v3250
        %3507 = vst [vmem:[#allocation2 + $0x7e0] sm:$0xff] %v3251
        %3508 = vst [vmem:[#allocation2 + $0x7e8] sm:$0xff] %v3252
        %3509 = vst [vmem:[#allocation2 + $0x7f0] sm:$0xff] %v3253
        %3510 = vst [vmem:[#allocation2 + $0x7f8] sm:$0xff] %v3254
        %p3511 = scmp.eq.s32.totalorder %s23, 1
        // Predicated region
        $region33: #{tpu_custom_call.1} parent=23 // pred_check
          %p3512 = pneg %p3511
        $region34: #{tpu_custom_call.1} parent=23 // pred_check_branch
          %3514 = sbr.rel (%p3512) target = $region36
        $region35: #{tpu_custom_call.1} parent=23 // pred_region
          %v3515 = vld [vmem:[#allocation2] sm:$0xff]
          %v3516 = vld [vmem:[#allocation2 + $0x8] sm:$0xff]
          %v3517 = vld [vmem:[#allocation2 + $0x10] sm:$0xff]
          %v3518 = vld [vmem:[#allocation2 + $0x18] sm:$0xff]
          %v3519 = vld [vmem:[#allocation2 + $0x20] sm:$0xff]
          %v3520 = vld [vmem:[#allocation2 + $0x28] sm:$0xff]
          %v3521 = vld [vmem:[#allocation2 + $0x30] sm:$0xff]
          %v3522 = vld [vmem:[#allocation2 + $0x38] sm:$0xff]
          %v3523 = vld [vmem:[#allocation2 + $0x40] sm:$0xff]
          %v3524 = vld [vmem:[#allocation2 + $0x48] sm:$0xff]
          %v3525 = vld [vmem:[#allocation2 + $0x50] sm:$0xff]
          %v3526 = vld [vmem:[#allocation2 + $0x58] sm:$0xff]
          %v3527 = vld [vmem:[#allocation2 + $0x60] sm:$0xff]
          %v3528 = vld [vmem:[#allocation2 + $0x68] sm:$0xff]
          %v3529 = vld [vmem:[#allocation2 + $0x70] sm:$0xff]
          %v3530 = vld [vmem:[#allocation2 + $0x78] sm:$0xff]
          %v3531 = vld [vmem:[#allocation2 + $0x80] sm:$0xff]
          %v3532 = vld [vmem:[#allocation2 + $0x88] sm:$0xff]
          %v3533 = vld [vmem:[#allocation2 + $0x90] sm:$0xff]
          %v3534 = vld [vmem:[#allocation2 + $0x98] sm:$0xff]
          %v3535 = vld [vmem:[#allocation2 + $0xa0] sm:$0xff]
          %v3536 = vld [vmem:[#allocation2 + $0xa8] sm:$0xff]
          %v3537 = vld [vmem:[#allocation2 + $0xb0] sm:$0xff]
          %v3538 = vld [vmem:[#allocation2 + $0xb8] sm:$0xff]
          %v3539 = vld [vmem:[#allocation2 + $0xc0] sm:$0xff]
          %v3540 = vld [vmem:[#allocation2 + $0xc8] sm:$0xff]
          %v3541 = vld [vmem:[#allocation2 + $0xd0] sm:$0xff]
          %v3542 = vld [vmem:[#allocation2 + $0xd8] sm:$0xff]
          %v3543 = vld [vmem:[#allocation2 + $0xe0] sm:$0xff]
          %v3544 = vld [vmem:[#allocation2 + $0xe8] sm:$0xff]
          %v3545 = vld [vmem:[#allocation2 + $0xf0] sm:$0xff]
          %v3546 = vld [vmem:[#allocation2 + $0xf8] sm:$0xff]
          %v3547 = vld [vmem:[#allocation2 + $0x100] sm:$0xff]
          %v3548 = vld [vmem:[#allocation2 + $0x108] sm:$0xff]
          %v3549 = vld [vmem:[#allocation2 + $0x110] sm:$0xff]
          %v3550 = vld [vmem:[#allocation2 + $0x118] sm:$0xff]
          %v3551 = vld [vmem:[#allocation2 + $0x120] sm:$0xff]
          %v3552 = vld [vmem:[#allocation2 + $0x128] sm:$0xff]
          %v3553 = vld [vmem:[#allocation2 + $0x130] sm:$0xff]
          %v3554 = vld [vmem:[#allocation2 + $0x138] sm:$0xff]
          %v3555 = vld [vmem:[#allocation2 + $0x140] sm:$0xff]
          %v3556 = vld [vmem:[#allocation2 + $0x148] sm:$0xff]
          %v3557 = vld [vmem:[#allocation2 + $0x150] sm:$0xff]
          %v3558 = vld [vmem:[#allocation2 + $0x158] sm:$0xff]
          %v3559 = vld [vmem:[#allocation2 + $0x160] sm:$0xff]
          %v3560 = vld [vmem:[#allocation2 + $0x168] sm:$0xff]
          %v3561 = vld [vmem:[#allocation2 + $0x170] sm:$0xff]
          %v3562 = vld [vmem:[#allocation2 + $0x178] sm:$0xff]
          %v3563 = vld [vmem:[#allocation2 + $0x180] sm:$0xff]
          %v3564 = vld [vmem:[#allocation2 + $0x188] sm:$0xff]
          %v3565 = vld [vmem:[#allocation2 + $0x190] sm:$0xff]
          %v3566 = vld [vmem:[#allocation2 + $0x198] sm:$0xff]
          %v3567 = vld [vmem:[#allocation2 + $0x1a0] sm:$0xff]
          %v3568 = vld [vmem:[#allocation2 + $0x1a8] sm:$0xff]
          %v3569 = vld [vmem:[#allocation2 + $0x1b0] sm:$0xff]
          %v3570 = vld [vmem:[#allocation2 + $0x1b8] sm:$0xff]
          %v3571 = vld [vmem:[#allocation2 + $0x1c0] sm:$0xff]
          %v3572 = vld [vmem:[#allocation2 + $0x1c8] sm:$0xff]
          %v3573 = vld [vmem:[#allocation2 + $0x1d0] sm:$0xff]
          %v3574 = vld [vmem:[#allocation2 + $0x1d8] sm:$0xff]
          %v3575 = vld [vmem:[#allocation2 + $0x1e0] sm:$0xff]
          %v3576 = vld [vmem:[#allocation2 + $0x1e8] sm:$0xff]
          %v3577 = vld [vmem:[#allocation2 + $0x1f0] sm:$0xff]
          %v3578 = vld [vmem:[#allocation2 + $0x1f8] sm:$0xff]
          %v3579 = vld [vmem:[#allocation2 + $0x200] sm:$0xff]
          %v3580 = vld [vmem:[#allocation2 + $0x208] sm:$0xff]
          %v3581 = vld [vmem:[#allocation2 + $0x210] sm:$0xff]
          %v3582 = vld [vmem:[#allocation2 + $0x218] sm:$0xff]
          %v3583 = vld [vmem:[#allocation2 + $0x220] sm:$0xff]
          %v3584 = vld [vmem:[#allocation2 + $0x228] sm:$0xff]
          %v3585 = vld [vmem:[#allocation2 + $0x230] sm:$0xff]
          %v3586 = vld [vmem:[#allocation2 + $0x238] sm:$0xff]
          %v3587 = vld [vmem:[#allocation2 + $0x240] sm:$0xff]
          %v3588 = vld [vmem:[#allocation2 + $0x248] sm:$0xff]
          %v3589 = vld [vmem:[#allocation2 + $0x250] sm:$0xff]
          %v3590 = vld [vmem:[#allocation2 + $0x258] sm:$0xff]
          %v3591 = vld [vmem:[#allocation2 + $0x260] sm:$0xff]
          %v3592 = vld [vmem:[#allocation2 + $0x268] sm:$0xff]
          %v3593 = vld [vmem:[#allocation2 + $0x270] sm:$0xff]
          %v3594 = vld [vmem:[#allocation2 + $0x278] sm:$0xff]
          %v3595 = vld [vmem:[#allocation2 + $0x280] sm:$0xff]
          %v3596 = vld [vmem:[#allocation2 + $0x288] sm:$0xff]
          %v3597 = vld [vmem:[#allocation2 + $0x290] sm:$0xff]
          %v3598 = vld [vmem:[#allocation2 + $0x298] sm:$0xff]
          %v3599 = vld [vmem:[#allocation2 + $0x2a0] sm:$0xff]
          %v3600 = vld [vmem:[#allocation2 + $0x2a8] sm:$0xff]
          %v3601 = vld [vmem:[#allocation2 + $0x2b0] sm:$0xff]
          %v3602 = vld [vmem:[#allocation2 + $0x2b8] sm:$0xff]
          %v3603 = vld [vmem:[#allocation2 + $0x2c0] sm:$0xff]
          %v3604 = vld [vmem:[#allocation2 + $0x2c8] sm:$0xff]
          %v3605 = vld [vmem:[#allocation2 + $0x2d0] sm:$0xff]
          %v3606 = vld [vmem:[#allocation2 + $0x2d8] sm:$0xff]
          %v3607 = vld [vmem:[#allocation2 + $0x2e0] sm:$0xff]
          %v3608 = vld [vmem:[#allocation2 + $0x2e8] sm:$0xff]
          %v3609 = vld [vmem:[#allocation2 + $0x2f0] sm:$0xff]
          %v3610 = vld [vmem:[#allocation2 + $0x2f8] sm:$0xff]
          %v3611 = vld [vmem:[#allocation2 + $0x300] sm:$0xff]
          %v3612 = vld [vmem:[#allocation2 + $0x308] sm:$0xff]
          %v3613 = vld [vmem:[#allocation2 + $0x310] sm:$0xff]
          %v3614 = vld [vmem:[#allocation2 + $0x318] sm:$0xff]
          %v3615 = vld [vmem:[#allocation2 + $0x320] sm:$0xff]
          %v3616 = vld [vmem:[#allocation2 + $0x328] sm:$0xff]
          %v3617 = vld [vmem:[#allocation2 + $0x330] sm:$0xff]
          %v3618 = vld [vmem:[#allocation2 + $0x338] sm:$0xff]
          %v3619 = vld [vmem:[#allocation2 + $0x340] sm:$0xff]
          %v3620 = vld [vmem:[#allocation2 + $0x348] sm:$0xff]
          %v3621 = vld [vmem:[#allocation2 + $0x350] sm:$0xff]
          %v3622 = vld [vmem:[#allocation2 + $0x358] sm:$0xff]
          %v3623 = vld [vmem:[#allocation2 + $0x360] sm:$0xff]
          %v3624 = vld [vmem:[#allocation2 + $0x368] sm:$0xff]
          %v3625 = vld [vmem:[#allocation2 + $0x370] sm:$0xff]
          %v3626 = vld [vmem:[#allocation2 + $0x378] sm:$0xff]
          %v3627 = vld [vmem:[#allocation2 + $0x380] sm:$0xff]
          %v3628 = vld [vmem:[#allocation2 + $0x388] sm:$0xff]
          %v3629 = vld [vmem:[#allocation2 + $0x390] sm:$0xff]
          %v3630 = vld [vmem:[#allocation2 + $0x398] sm:$0xff]
          %v3631 = vld [vmem:[#allocation2 + $0x3a0] sm:$0xff]
          %v3632 = vld [vmem:[#allocation2 + $0x3a8] sm:$0xff]
          %v3633 = vld [vmem:[#allocation2 + $0x3b0] sm:$0xff]
          %v3634 = vld [vmem:[#allocation2 + $0x3b8] sm:$0xff]
          %v3635 = vld [vmem:[#allocation2 + $0x3c0] sm:$0xff]
          %v3636 = vld [vmem:[#allocation2 + $0x3c8] sm:$0xff]
          %v3637 = vld [vmem:[#allocation2 + $0x3d0] sm:$0xff]
          %v3638 = vld [vmem:[#allocation2 + $0x3d8] sm:$0xff]
          %v3639 = vld [vmem:[#allocation2 + $0x3e0] sm:$0xff]
          %v3640 = vld [vmem:[#allocation2 + $0x3e8] sm:$0xff]
          %v3641 = vld [vmem:[#allocation2 + $0x3f0] sm:$0xff]
          %v3642 = vld [vmem:[#allocation2 + $0x3f8] sm:$0xff]
          %v3643 = vld [vmem:[#allocation2 + $0x400] sm:$0xff]
          %v3644 = vld [vmem:[#allocation2 + $0x408] sm:$0xff]
          %v3645 = vld [vmem:[#allocation2 + $0x410] sm:$0xff]
          %v3646 = vld [vmem:[#allocation2 + $0x418] sm:$0xff]
          %v3647 = vld [vmem:[#allocation2 + $0x420] sm:$0xff]
          %v3648 = vld [vmem:[#allocation2 + $0x428] sm:$0xff]
          %v3649 = vld [vmem:[#allocation2 + $0x430] sm:$0xff]
          %v3650 = vld [vmem:[#allocation2 + $0x438] sm:$0xff]
          %v3651 = vld [vmem:[#allocation2 + $0x440] sm:$0xff]
          %v3652 = vld [vmem:[#allocation2 + $0x448] sm:$0xff]
          %v3653 = vld [vmem:[#allocation2 + $0x450] sm:$0xff]
          %v3654 = vld [vmem:[#allocation2 + $0x458] sm:$0xff]
          %v3655 = vld [vmem:[#allocation2 + $0x460] sm:$0xff]
          %v3656 = vld [vmem:[#allocation2 + $0x468] sm:$0xff]
          %v3657 = vld [vmem:[#allocation2 + $0x470] sm:$0xff]
          %v3658 = vld [vmem:[#allocation2 + $0x478] sm:$0xff]
          %v3659 = vld [vmem:[#allocation2 + $0x480] sm:$0xff]
          %v3660 = vld [vmem:[#allocation2 + $0x488] sm:$0xff]
          %v3661 = vld [vmem:[#allocation2 + $0x490] sm:$0xff]
          %v3662 = vld [vmem:[#allocation2 + $0x498] sm:$0xff]
          %v3663 = vld [vmem:[#allocation2 + $0x4a0] sm:$0xff]
          %v3664 = vld [vmem:[#allocation2 + $0x4a8] sm:$0xff]
          %v3665 = vld [vmem:[#allocation2 + $0x4b0] sm:$0xff]
          %v3666 = vld [vmem:[#allocation2 + $0x4b8] sm:$0xff]
          %v3667 = vld [vmem:[#allocation2 + $0x4c0] sm:$0xff]
          %v3668 = vld [vmem:[#allocation2 + $0x4c8] sm:$0xff]
          %v3669 = vld [vmem:[#allocation2 + $0x4d0] sm:$0xff]
          %v3670 = vld [vmem:[#allocation2 + $0x4d8] sm:$0xff]
          %v3671 = vld [vmem:[#allocation2 + $0x4e0] sm:$0xff]
          %v3672 = vld [vmem:[#allocation2 + $0x4e8] sm:$0xff]
          %v3673 = vld [vmem:[#allocation2 + $0x4f0] sm:$0xff]
          %v3674 = vld [vmem:[#allocation2 + $0x4f8] sm:$0xff]
          %v3675 = vld [vmem:[#allocation2 + $0x500] sm:$0xff]
          %v3676 = vld [vmem:[#allocation2 + $0x508] sm:$0xff]
          %v3677 = vld [vmem:[#allocation2 + $0x510] sm:$0xff]
          %v3678 = vld [vmem:[#allocation2 + $0x518] sm:$0xff]
          %v3679 = vld [vmem:[#allocation2 + $0x520] sm:$0xff]
          %v3680 = vld [vmem:[#allocation2 + $0x528] sm:$0xff]
          %v3681 = vld [vmem:[#allocation2 + $0x530] sm:$0xff]
          %v3682 = vld [vmem:[#allocation2 + $0x538] sm:$0xff]
          %v3683 = vld [vmem:[#allocation2 + $0x540] sm:$0xff]
          %v3684 = vld [vmem:[#allocation2 + $0x548] sm:$0xff]
          %v3685 = vld [vmem:[#allocation2 + $0x550] sm:$0xff]
          %v3686 = vld [vmem:[#allocation2 + $0x558] sm:$0xff]
          %v3687 = vld [vmem:[#allocation2 + $0x560] sm:$0xff]
          %v3688 = vld [vmem:[#allocation2 + $0x568] sm:$0xff]
          %v3689 = vld [vmem:[#allocation2 + $0x570] sm:$0xff]
          %v3690 = vld [vmem:[#allocation2 + $0x578] sm:$0xff]
          %v3691 = vld [vmem:[#allocation2 + $0x580] sm:$0xff]
          %v3692 = vld [vmem:[#allocation2 + $0x588] sm:$0xff]
          %v3693 = vld [vmem:[#allocation2 + $0x590] sm:$0xff]
          %v3694 = vld [vmem:[#allocation2 + $0x598] sm:$0xff]
          %v3695 = vld [vmem:[#allocation2 + $0x5a0] sm:$0xff]
          %v3696 = vld [vmem:[#allocation2 + $0x5a8] sm:$0xff]
          %v3697 = vld [vmem:[#allocation2 + $0x5b0] sm:$0xff]
          %v3698 = vld [vmem:[#allocation2 + $0x5b8] sm:$0xff]
          %v3699 = vld [vmem:[#allocation2 + $0x5c0] sm:$0xff]
          %v3700 = vld [vmem:[#allocation2 + $0x5c8] sm:$0xff]
          %v3701 = vld [vmem:[#allocation2 + $0x5d0] sm:$0xff]
          %v3702 = vld [vmem:[#allocation2 + $0x5d8] sm:$0xff]
          %v3703 = vld [vmem:[#allocation2 + $0x5e0] sm:$0xff]
          %v3704 = vld [vmem:[#allocation2 + $0x5e8] sm:$0xff]
          %v3705 = vld [vmem:[#allocation2 + $0x5f0] sm:$0xff]
          %v3706 = vld [vmem:[#allocation2 + $0x5f8] sm:$0xff]
          %v3707 = vld [vmem:[#allocation2 + $0x600] sm:$0xff]
          %v3708 = vld [vmem:[#allocation2 + $0x608] sm:$0xff]
          %v3709 = vld [vmem:[#allocation2 + $0x610] sm:$0xff]
          %v3710 = vld [vmem:[#allocation2 + $0x618] sm:$0xff]
          %v3711 = vld [vmem:[#allocation2 + $0x620] sm:$0xff]
          %v3712 = vld [vmem:[#allocation2 + $0x628] sm:$0xff]
          %v3713 = vld [vmem:[#allocation2 + $0x630] sm:$0xff]
          %v3714 = vld [vmem:[#allocation2 + $0x638] sm:$0xff]
          %v3715 = vld [vmem:[#allocation2 + $0x640] sm:$0xff]
          %v3716 = vld [vmem:[#allocation2 + $0x648] sm:$0xff]
          %v3717 = vld [vmem:[#allocation2 + $0x650] sm:$0xff]
          %v3718 = vld [vmem:[#allocation2 + $0x658] sm:$0xff]
          %v3719 = vld [vmem:[#allocation2 + $0x660] sm:$0xff]
          %v3720 = vld [vmem:[#allocation2 + $0x668] sm:$0xff]
          %v3721 = vld [vmem:[#allocation2 + $0x670] sm:$0xff]
          %v3722 = vld [vmem:[#allocation2 + $0x678] sm:$0xff]
          %v3723 = vld [vmem:[#allocation2 + $0x680] sm:$0xff]
          %v3724 = vld [vmem:[#allocation2 + $0x688] sm:$0xff]
          %v3725 = vld [vmem:[#allocation2 + $0x690] sm:$0xff]
          %v3726 = vld [vmem:[#allocation2 + $0x698] sm:$0xff]
          %v3727 = vld [vmem:[#allocation2 + $0x6a0] sm:$0xff]
          %v3728 = vld [vmem:[#allocation2 + $0x6a8] sm:$0xff]
          %v3729 = vld [vmem:[#allocation2 + $0x6b0] sm:$0xff]
          %v3730 = vld [vmem:[#allocation2 + $0x6b8] sm:$0xff]
          %v3731 = vld [vmem:[#allocation2 + $0x6c0] sm:$0xff]
          %v3732 = vld [vmem:[#allocation2 + $0x6c8] sm:$0xff]
          %v3733 = vld [vmem:[#allocation2 + $0x6d0] sm:$0xff]
          %v3734 = vld [vmem:[#allocation2 + $0x6d8] sm:$0xff]
          %v3735 = vld [vmem:[#allocation2 + $0x6e0] sm:$0xff]
          %v3736 = vld [vmem:[#allocation2 + $0x6e8] sm:$0xff]
          %v3737 = vld [vmem:[#allocation2 + $0x6f0] sm:$0xff]
          %v3738 = vld [vmem:[#allocation2 + $0x6f8] sm:$0xff]
          %v3739 = vld [vmem:[#allocation2 + $0x700] sm:$0xff]
          %v3740 = vld [vmem:[#allocation2 + $0x708] sm:$0xff]
          %v3741 = vld [vmem:[#allocation2 + $0x710] sm:$0xff]
          %v3742 = vld [vmem:[#allocation2 + $0x718] sm:$0xff]
          %v3743 = vld [vmem:[#allocation2 + $0x720] sm:$0xff]
          %v3744 = vld [vmem:[#allocation2 + $0x728] sm:$0xff]
          %v3745 = vld [vmem:[#allocation2 + $0x730] sm:$0xff]
          %v3746 = vld [vmem:[#allocation2 + $0x738] sm:$0xff]
          %v3747 = vld [vmem:[#allocation2 + $0x740] sm:$0xff]
          %v3748 = vld [vmem:[#allocation2 + $0x748] sm:$0xff]
          %v3749 = vld [vmem:[#allocation2 + $0x750] sm:$0xff]
          %v3750 = vld [vmem:[#allocation2 + $0x758] sm:$0xff]
          %v3751 = vld [vmem:[#allocation2 + $0x760] sm:$0xff]
          %v3752 = vld [vmem:[#allocation2 + $0x768] sm:$0xff]
          %v3753 = vld [vmem:[#allocation2 + $0x770] sm:$0xff]
          %v3754 = vld [vmem:[#allocation2 + $0x778] sm:$0xff]
          %v3755 = vld [vmem:[#allocation2 + $0x780] sm:$0xff]
          %v3756 = vld [vmem:[#allocation2 + $0x788] sm:$0xff]
          %v3757 = vld [vmem:[#allocation2 + $0x790] sm:$0xff]
          %v3758 = vld [vmem:[#allocation2 + $0x798] sm:$0xff]
          %v3759 = vld [vmem:[#allocation2 + $0x7a0] sm:$0xff]
          %v3760 = vld [vmem:[#allocation2 + $0x7a8] sm:$0xff]
          %v3761 = vld [vmem:[#allocation2 + $0x7b0] sm:$0xff]
          %v3762 = vld [vmem:[#allocation2 + $0x7b8] sm:$0xff]
          %v3763 = vld [vmem:[#allocation2 + $0x7c0] sm:$0xff]
          %v3764 = vld [vmem:[#allocation2 + $0x7c8] sm:$0xff]
          %v3765 = vld [vmem:[#allocation2 + $0x7d0] sm:$0xff]
          %v3766 = vld [vmem:[#allocation2 + $0x7d8] sm:$0xff]
          %v3767 = vld [vmem:[#allocation2 + $0x7e0] sm:$0xff]
          %v3768 = vld [vmem:[#allocation2 + $0x7e8] sm:$0xff]
          %v3769 = vld [vmem:[#allocation2 + $0x7f0] sm:$0xff]
          %v3770 = vld [vmem:[#allocation2 + $0x7f8] sm:$0xff]
          %3771 = vadd.xlane.f32.xlu0 %v3515
          %v3772 = vpop.xlane.xlu0 %3771
          %3773 = vadd.xlane.f32.xlu0 %v3516
          %v3774 = vpop.xlane.xlu0 %3773
          %3775 = vadd.xlane.f32.xlu0 %v3517
          %v3776 = vpop.xlane.xlu0 %3775
          %3777 = vadd.xlane.f32.xlu0 %v3518
          %v3778 = vpop.xlane.xlu0 %3777
          %3779 = vadd.xlane.f32.xlu0 %v3519
          %v3780 = vpop.xlane.xlu0 %3779
          %3781 = vadd.xlane.f32.xlu0 %v3520
          %v3782 = vpop.xlane.xlu0 %3781
          %3783 = vadd.xlane.f32.xlu0 %v3521
          %v3784 = vpop.xlane.xlu0 %3783
          %3785 = vadd.xlane.f32.xlu0 %v3522
          %v3786 = vpop.xlane.xlu0 %3785
          %3787 = vadd.xlane.f32.xlu0 %v3523
          %v3788 = vpop.xlane.xlu0 %3787
          %3789 = vadd.xlane.f32.xlu0 %v3524
          %v3790 = vpop.xlane.xlu0 %3789
          %3791 = vadd.xlane.f32.xlu0 %v3525
          %v3792 = vpop.xlane.xlu0 %3791
          %3793 = vadd.xlane.f32.xlu0 %v3526
          %v3794 = vpop.xlane.xlu0 %3793
          %3795 = vadd.xlane.f32.xlu0 %v3527
          %v3796 = vpop.xlane.xlu0 %3795
          %3797 = vadd.xlane.f32.xlu0 %v3528
          %v3798 = vpop.xlane.xlu0 %3797
          %3799 = vadd.xlane.f32.xlu0 %v3529
          %v3800 = vpop.xlane.xlu0 %3799
          %3801 = vadd.xlane.f32.xlu0 %v3530
          %v3802 = vpop.xlane.xlu0 %3801
          %3803 = vadd.xlane.f32.xlu0 %v3531
          %v3804 = vpop.xlane.xlu0 %3803
          %3805 = vadd.xlane.f32.xlu0 %v3532
          %v3806 = vpop.xlane.xlu0 %3805
          %3807 = vadd.xlane.f32.xlu0 %v3533
          %v3808 = vpop.xlane.xlu0 %3807
          %3809 = vadd.xlane.f32.xlu0 %v3534
          %v3810 = vpop.xlane.xlu0 %3809
          %3811 = vadd.xlane.f32.xlu0 %v3535
          %v3812 = vpop.xlane.xlu0 %3811
          %3813 = vadd.xlane.f32.xlu0 %v3536
          %v3814 = vpop.xlane.xlu0 %3813
          %3815 = vadd.xlane.f32.xlu0 %v3537
          %v3816 = vpop.xlane.xlu0 %3815
          %3817 = vadd.xlane.f32.xlu0 %v3538
          %v3818 = vpop.xlane.xlu0 %3817
          %3819 = vadd.xlane.f32.xlu0 %v3539
          %v3820 = vpop.xlane.xlu0 %3819
          %3821 = vadd.xlane.f32.xlu0 %v3540
          %v3822 = vpop.xlane.xlu0 %3821
          %3823 = vadd.xlane.f32.xlu0 %v3541
          %v3824 = vpop.xlane.xlu0 %3823
          %3825 = vadd.xlane.f32.xlu0 %v3542
          %v3826 = vpop.xlane.xlu0 %3825
          %3827 = vadd.xlane.f32.xlu0 %v3543
          %v3828 = vpop.xlane.xlu0 %3827
          %3829 = vadd.xlane.f32.xlu0 %v3544
          %v3830 = vpop.xlane.xlu0 %3829
          %3831 = vadd.xlane.f32.xlu0 %v3545
          %v3832 = vpop.xlane.xlu0 %3831
          %3833 = vadd.xlane.f32.xlu0 %v3546
          %v3834 = vpop.xlane.xlu0 %3833
          %3835 = vadd.xlane.f32.xlu0 %v3547
          %v3836 = vpop.xlane.xlu0 %3835
          %3837 = vadd.xlane.f32.xlu0 %v3548
          %v3838 = vpop.xlane.xlu0 %3837
          %3839 = vadd.xlane.f32.xlu0 %v3549
          %v3840 = vpop.xlane.xlu0 %3839
          %3841 = vadd.xlane.f32.xlu0 %v3550
          %v3842 = vpop.xlane.xlu0 %3841
          %3843 = vadd.xlane.f32.xlu0 %v3551
          %v3844 = vpop.xlane.xlu0 %3843
          %3845 = vadd.xlane.f32.xlu0 %v3552
          %v3846 = vpop.xlane.xlu0 %3845
          %3847 = vadd.xlane.f32.xlu0 %v3553
          %v3848 = vpop.xlane.xlu0 %3847
          %3849 = vadd.xlane.f32.xlu0 %v3554
          %v3850 = vpop.xlane.xlu0 %3849
          %3851 = vadd.xlane.f32.xlu0 %v3555
          %v3852 = vpop.xlane.xlu0 %3851
          %3853 = vadd.xlane.f32.xlu0 %v3556
          %v3854 = vpop.xlane.xlu0 %3853
          %3855 = vadd.xlane.f32.xlu0 %v3557
          %v3856 = vpop.xlane.xlu0 %3855
          %3857 = vadd.xlane.f32.xlu0 %v3558
          %v3858 = vpop.xlane.xlu0 %3857
          %3859 = vadd.xlane.f32.xlu0 %v3559
          %v3860 = vpop.xlane.xlu0 %3859
          %3861 = vadd.xlane.f32.xlu0 %v3560
          %v3862 = vpop.xlane.xlu0 %3861
          %3863 = vadd.xlane.f32.xlu0 %v3561
          %v3864 = vpop.xlane.xlu0 %3863
          %3865 = vadd.xlane.f32.xlu0 %v3562
          %v3866 = vpop.xlane.xlu0 %3865
          %3867 = vadd.xlane.f32.xlu0 %v3563
          %v3868 = vpop.xlane.xlu0 %3867
          %3869 = vadd.xlane.f32.xlu0 %v3564
          %v3870 = vpop.xlane.xlu0 %3869
          %3871 = vadd.xlane.f32.xlu0 %v3565
          %v3872 = vpop.xlane.xlu0 %3871
          %3873 = vadd.xlane.f32.xlu0 %v3566
          %v3874 = vpop.xlane.xlu0 %3873
          %3875 = vadd.xlane.f32.xlu0 %v3567
          %v3876 = vpop.xlane.xlu0 %3875
          %3877 = vadd.xlane.f32.xlu0 %v3568
          %v3878 = vpop.xlane.xlu0 %3877
          %3879 = vadd.xlane.f32.xlu0 %v3569
          %v3880 = vpop.xlane.xlu0 %3879
          %3881 = vadd.xlane.f32.xlu0 %v3570
          %v3882 = vpop.xlane.xlu0 %3881
          %3883 = vadd.xlane.f32.xlu0 %v3571
          %v3884 = vpop.xlane.xlu0 %3883
          %3885 = vadd.xlane.f32.xlu0 %v3572
          %v3886 = vpop.xlane.xlu0 %3885
          %3887 = vadd.xlane.f32.xlu0 %v3573
          %v3888 = vpop.xlane.xlu0 %3887
          %3889 = vadd.xlane.f32.xlu0 %v3574
          %v3890 = vpop.xlane.xlu0 %3889
          %3891 = vadd.xlane.f32.xlu0 %v3575
          %v3892 = vpop.xlane.xlu0 %3891
          %3893 = vadd.xlane.f32.xlu0 %v3576
          %v3894 = vpop.xlane.xlu0 %3893
          %3895 = vadd.xlane.f32.xlu0 %v3577
          %v3896 = vpop.xlane.xlu0 %3895
          %3897 = vadd.xlane.f32.xlu0 %v3578
          %v3898 = vpop.xlane.xlu0 %3897
          %3899 = vadd.xlane.f32.xlu0 %v3579
          %v3900 = vpop.xlane.xlu0 %3899
          %3901 = vadd.xlane.f32.xlu0 %v3580
          %v3902 = vpop.xlane.xlu0 %3901
          %3903 = vadd.xlane.f32.xlu0 %v3581
          %v3904 = vpop.xlane.xlu0 %3903
          %3905 = vadd.xlane.f32.xlu0 %v3582
          %v3906 = vpop.xlane.xlu0 %3905
          %3907 = vadd.xlane.f32.xlu0 %v3583
          %v3908 = vpop.xlane.xlu0 %3907
          %3909 = vadd.xlane.f32.xlu0 %v3584
          %v3910 = vpop.xlane.xlu0 %3909
          %3911 = vadd.xlane.f32.xlu0 %v3585
          %v3912 = vpop.xlane.xlu0 %3911
          %3913 = vadd.xlane.f32.xlu0 %v3586
          %v3914 = vpop.xlane.xlu0 %3913
          %3915 = vadd.xlane.f32.xlu0 %v3587
          %v3916 = vpop.xlane.xlu0 %3915
          %3917 = vadd.xlane.f32.xlu0 %v3588
          %v3918 = vpop.xlane.xlu0 %3917
          %3919 = vadd.xlane.f32.xlu0 %v3589
          %v3920 = vpop.xlane.xlu0 %3919
          %3921 = vadd.xlane.f32.xlu0 %v3590
          %v3922 = vpop.xlane.xlu0 %3921
          %3923 = vadd.xlane.f32.xlu0 %v3591
          %v3924 = vpop.xlane.xlu0 %3923
          %3925 = vadd.xlane.f32.xlu0 %v3592
          %v3926 = vpop.xlane.xlu0 %3925
          %3927 = vadd.xlane.f32.xlu0 %v3593
          %v3928 = vpop.xlane.xlu0 %3927
          %3929 = vadd.xlane.f32.xlu0 %v3594
          %v3930 = vpop.xlane.xlu0 %3929
          %3931 = vadd.xlane.f32.xlu0 %v3595
          %v3932 = vpop.xlane.xlu0 %3931
          %3933 = vadd.xlane.f32.xlu0 %v3596
          %v3934 = vpop.xlane.xlu0 %3933
          %3935 = vadd.xlane.f32.xlu0 %v3597
          %v3936 = vpop.xlane.xlu0 %3935
          %3937 = vadd.xlane.f32.xlu0 %v3598
          %v3938 = vpop.xlane.xlu0 %3937
          %3939 = vadd.xlane.f32.xlu0 %v3599
          %v3940 = vpop.xlane.xlu0 %3939
          %3941 = vadd.xlane.f32.xlu0 %v3600
          %v3942 = vpop.xlane.xlu0 %3941
          %3943 = vadd.xlane.f32.xlu0 %v3601
          %v3944 = vpop.xlane.xlu0 %3943
          %3945 = vadd.xlane.f32.xlu0 %v3602
          %v3946 = vpop.xlane.xlu0 %3945
          %3947 = vadd.xlane.f32.xlu0 %v3603
          %v3948 = vpop.xlane.xlu0 %3947
          %3949 = vadd.xlane.f32.xlu0 %v3604
          %v3950 = vpop.xlane.xlu0 %3949
          %3951 = vadd.xlane.f32.xlu0 %v3605
          %v3952 = vpop.xlane.xlu0 %3951
          %3953 = vadd.xlane.f32.xlu0 %v3606
          %v3954 = vpop.xlane.xlu0 %3953
          %3955 = vadd.xlane.f32.xlu0 %v3607
          %v3956 = vpop.xlane.xlu0 %3955
          %3957 = vadd.xlane.f32.xlu0 %v3608
          %v3958 = vpop.xlane.xlu0 %3957
          %3959 = vadd.xlane.f32.xlu0 %v3609
          %v3960 = vpop.xlane.xlu0 %3959
          %3961 = vadd.xlane.f32.xlu0 %v3610
          %v3962 = vpop.xlane.xlu0 %3961
          %3963 = vadd.xlane.f32.xlu0 %v3611
          %v3964 = vpop.xlane.xlu0 %3963
          %3965 = vadd.xlane.f32.xlu0 %v3612
          %v3966 = vpop.xlane.xlu0 %3965
          %3967 = vadd.xlane.f32.xlu0 %v3613
          %v3968 = vpop.xlane.xlu0 %3967
          %3969 = vadd.xlane.f32.xlu0 %v3614
          %v3970 = vpop.xlane.xlu0 %3969
          %3971 = vadd.xlane.f32.xlu0 %v3615
          %v3972 = vpop.xlane.xlu0 %3971
          %3973 = vadd.xlane.f32.xlu0 %v3616
          %v3974 = vpop.xlane.xlu0 %3973
          %3975 = vadd.xlane.f32.xlu0 %v3617
          %v3976 = vpop.xlane.xlu0 %3975
          %3977 = vadd.xlane.f32.xlu0 %v3618
          %v3978 = vpop.xlane.xlu0 %3977
          %3979 = vadd.xlane.f32.xlu0 %v3619
          %v3980 = vpop.xlane.xlu0 %3979
          %3981 = vadd.xlane.f32.xlu0 %v3620
          %v3982 = vpop.xlane.xlu0 %3981
          %3983 = vadd.xlane.f32.xlu0 %v3621
          %v3984 = vpop.xlane.xlu0 %3983
          %3985 = vadd.xlane.f32.xlu0 %v3622
          %v3986 = vpop.xlane.xlu0 %3985
          %3987 = vadd.xlane.f32.xlu0 %v3623
          %v3988 = vpop.xlane.xlu0 %3987
          %3989 = vadd.xlane.f32.xlu0 %v3624
          %v3990 = vpop.xlane.xlu0 %3989
          %3991 = vadd.xlane.f32.xlu0 %v3625
          %v3992 = vpop.xlane.xlu0 %3991
          %3993 = vadd.xlane.f32.xlu0 %v3626
          %v3994 = vpop.xlane.xlu0 %3993
          %3995 = vadd.xlane.f32.xlu0 %v3627
          %v3996 = vpop.xlane.xlu0 %3995
          %3997 = vadd.xlane.f32.xlu0 %v3628
          %v3998 = vpop.xlane.xlu0 %3997
          %3999 = vadd.xlane.f32.xlu0 %v3629
          %v4000 = vpop.xlane.xlu0 %3999
          %4001 = vadd.xlane.f32.xlu0 %v3630
          %v4002 = vpop.xlane.xlu0 %4001
          %4003 = vadd.xlane.f32.xlu0 %v3631
          %v4004 = vpop.xlane.xlu0 %4003
          %4005 = vadd.xlane.f32.xlu0 %v3632
          %v4006 = vpop.xlane.xlu0 %4005
          %4007 = vadd.xlane.f32.xlu0 %v3633
          %v4008 = vpop.xlane.xlu0 %4007
          %4009 = vadd.xlane.f32.xlu0 %v3634
          %v4010 = vpop.xlane.xlu0 %4009
          %4011 = vadd.xlane.f32.xlu0 %v3635
          %v4012 = vpop.xlane.xlu0 %4011
          %4013 = vadd.xlane.f32.xlu0 %v3636
          %v4014 = vpop.xlane.xlu0 %4013
          %4015 = vadd.xlane.f32.xlu0 %v3637
          %v4016 = vpop.xlane.xlu0 %4015
          %4017 = vadd.xlane.f32.xlu0 %v3638
          %v4018 = vpop.xlane.xlu0 %4017
          %4019 = vadd.xlane.f32.xlu0 %v3639
          %v4020 = vpop.xlane.xlu0 %4019
          %4021 = vadd.xlane.f32.xlu0 %v3640
          %v4022 = vpop.xlane.xlu0 %4021
          %4023 = vadd.xlane.f32.xlu0 %v3641
          %v4024 = vpop.xlane.xlu0 %4023
          %4025 = vadd.xlane.f32.xlu0 %v3642
          %v4026 = vpop.xlane.xlu0 %4025
          %4027 = vadd.xlane.f32.xlu0 %v3643
          %v4028 = vpop.xlane.xlu0 %4027
          %4029 = vadd.xlane.f32.xlu0 %v3644
          %v4030 = vpop.xlane.xlu0 %4029
          %4031 = vadd.xlane.f32.xlu0 %v3645
          %v4032 = vpop.xlane.xlu0 %4031
          %4033 = vadd.xlane.f32.xlu0 %v3646
          %v4034 = vpop.xlane.xlu0 %4033
          %4035 = vadd.xlane.f32.xlu0 %v3647
          %v4036 = vpop.xlane.xlu0 %4035
          %4037 = vadd.xlane.f32.xlu0 %v3648
          %v4038 = vpop.xlane.xlu0 %4037
          %4039 = vadd.xlane.f32.xlu0 %v3649
          %v4040 = vpop.xlane.xlu0 %4039
          %4041 = vadd.xlane.f32.xlu0 %v3650
          %v4042 = vpop.xlane.xlu0 %4041
          %4043 = vadd.xlane.f32.xlu0 %v3651
          %v4044 = vpop.xlane.xlu0 %4043
          %4045 = vadd.xlane.f32.xlu0 %v3652
          %v4046 = vpop.xlane.xlu0 %4045
          %4047 = vadd.xlane.f32.xlu0 %v3653
          %v4048 = vpop.xlane.xlu0 %4047
          %4049 = vadd.xlane.f32.xlu0 %v3654
          %v4050 = vpop.xlane.xlu0 %4049
          %4051 = vadd.xlane.f32.xlu0 %v3655
          %v4052 = vpop.xlane.xlu0 %4051
          %4053 = vadd.xlane.f32.xlu0 %v3656
          %v4054 = vpop.xlane.xlu0 %4053
          %4055 = vadd.xlane.f32.xlu0 %v3657
          %v4056 = vpop.xlane.xlu0 %4055
          %4057 = vadd.xlane.f32.xlu0 %v3658
          %v4058 = vpop.xlane.xlu0 %4057
          %4059 = vadd.xlane.f32.xlu0 %v3659
          %v4060 = vpop.xlane.xlu0 %4059
          %4061 = vadd.xlane.f32.xlu0 %v3660
          %v4062 = vpop.xlane.xlu0 %4061
          %4063 = vadd.xlane.f32.xlu0 %v3661
          %v4064 = vpop.xlane.xlu0 %4063
          %4065 = vadd.xlane.f32.xlu0 %v3662
          %v4066 = vpop.xlane.xlu0 %4065
          %4067 = vadd.xlane.f32.xlu0 %v3663
          %v4068 = vpop.xlane.xlu0 %4067
          %4069 = vadd.xlane.f32.xlu0 %v3664
          %v4070 = vpop.xlane.xlu0 %4069
          %4071 = vadd.xlane.f32.xlu0 %v3665
          %v4072 = vpop.xlane.xlu0 %4071
          %4073 = vadd.xlane.f32.xlu0 %v3666
          %v4074 = vpop.xlane.xlu0 %4073
          %4075 = vadd.xlane.f32.xlu0 %v3667
          %v4076 = vpop.xlane.xlu0 %4075
          %4077 = vadd.xlane.f32.xlu0 %v3668
          %v4078 = vpop.xlane.xlu0 %4077
          %4079 = vadd.xlane.f32.xlu0 %v3669
          %v4080 = vpop.xlane.xlu0 %4079
          %4081 = vadd.xlane.f32.xlu0 %v3670
          %v4082 = vpop.xlane.xlu0 %4081
          %4083 = vadd.xlane.f32.xlu0 %v3671
          %v4084 = vpop.xlane.xlu0 %4083
          %4085 = vadd.xlane.f32.xlu0 %v3672
          %v4086 = vpop.xlane.xlu0 %4085
          %4087 = vadd.xlane.f32.xlu0 %v3673
          %v4088 = vpop.xlane.xlu0 %4087
          %4089 = vadd.xlane.f32.xlu0 %v3674
          %v4090 = vpop.xlane.xlu0 %4089
          %4091 = vadd.xlane.f32.xlu0 %v3675
          %v4092 = vpop.xlane.xlu0 %4091
          %4093 = vadd.xlane.f32.xlu0 %v3676
          %v4094 = vpop.xlane.xlu0 %4093
          %4095 = vadd.xlane.f32.xlu0 %v3677
          %v4096 = vpop.xlane.xlu0 %4095
          %4097 = vadd.xlane.f32.xlu0 %v3678
          %v4098 = vpop.xlane.xlu0 %4097
          %4099 = vadd.xlane.f32.xlu0 %v3679
          %v4100 = vpop.xlane.xlu0 %4099
          %4101 = vadd.xlane.f32.xlu0 %v3680
          %v4102 = vpop.xlane.xlu0 %4101
          %4103 = vadd.xlane.f32.xlu0 %v3681
          %v4104 = vpop.xlane.xlu0 %4103
          %4105 = vadd.xlane.f32.xlu0 %v3682
          %v4106 = vpop.xlane.xlu0 %4105
          %4107 = vadd.xlane.f32.xlu0 %v3683
          %v4108 = vpop.xlane.xlu0 %4107
          %4109 = vadd.xlane.f32.xlu0 %v3684
          %v4110 = vpop.xlane.xlu0 %4109
          %4111 = vadd.xlane.f32.xlu0 %v3685
          %v4112 = vpop.xlane.xlu0 %4111
          %4113 = vadd.xlane.f32.xlu0 %v3686
          %v4114 = vpop.xlane.xlu0 %4113
          %4115 = vadd.xlane.f32.xlu0 %v3687
          %v4116 = vpop.xlane.xlu0 %4115
          %4117 = vadd.xlane.f32.xlu0 %v3688
          %v4118 = vpop.xlane.xlu0 %4117
          %4119 = vadd.xlane.f32.xlu0 %v3689
          %v4120 = vpop.xlane.xlu0 %4119
          %4121 = vadd.xlane.f32.xlu0 %v3690
          %v4122 = vpop.xlane.xlu0 %4121
          %4123 = vadd.xlane.f32.xlu0 %v3691
          %v4124 = vpop.xlane.xlu0 %4123
          %4125 = vadd.xlane.f32.xlu0 %v3692
          %v4126 = vpop.xlane.xlu0 %4125
          %4127 = vadd.xlane.f32.xlu0 %v3693
          %v4128 = vpop.xlane.xlu0 %4127
          %4129 = vadd.xlane.f32.xlu0 %v3694
          %v4130 = vpop.xlane.xlu0 %4129
          %4131 = vadd.xlane.f32.xlu0 %v3695
          %v4132 = vpop.xlane.xlu0 %4131
          %4133 = vadd.xlane.f32.xlu0 %v3696
          %v4134 = vpop.xlane.xlu0 %4133
          %4135 = vadd.xlane.f32.xlu0 %v3697
          %v4136 = vpop.xlane.xlu0 %4135
          %4137 = vadd.xlane.f32.xlu0 %v3698
          %v4138 = vpop.xlane.xlu0 %4137
          %4139 = vadd.xlane.f32.xlu0 %v3699
          %v4140 = vpop.xlane.xlu0 %4139
          %4141 = vadd.xlane.f32.xlu0 %v3700
          %v4142 = vpop.xlane.xlu0 %4141
          %4143 = vadd.xlane.f32.xlu0 %v3701
          %v4144 = vpop.xlane.xlu0 %4143
          %4145 = vadd.xlane.f32.xlu0 %v3702
          %v4146 = vpop.xlane.xlu0 %4145
          %4147 = vadd.xlane.f32.xlu0 %v3703
          %v4148 = vpop.xlane.xlu0 %4147
          %4149 = vadd.xlane.f32.xlu0 %v3704
          %v4150 = vpop.xlane.xlu0 %4149
          %4151 = vadd.xlane.f32.xlu0 %v3705
          %v4152 = vpop.xlane.xlu0 %4151
          %4153 = vadd.xlane.f32.xlu0 %v3706
          %v4154 = vpop.xlane.xlu0 %4153
          %4155 = vadd.xlane.f32.xlu0 %v3707
          %v4156 = vpop.xlane.xlu0 %4155
          %4157 = vadd.xlane.f32.xlu0 %v3708
          %v4158 = vpop.xlane.xlu0 %4157
          %4159 = vadd.xlane.f32.xlu0 %v3709
          %v4160 = vpop.xlane.xlu0 %4159
          %4161 = vadd.xlane.f32.xlu0 %v3710
          %v4162 = vpop.xlane.xlu0 %4161
          %4163 = vadd.xlane.f32.xlu0 %v3711
          %v4164 = vpop.xlane.xlu0 %4163
          %4165 = vadd.xlane.f32.xlu0 %v3712
          %v4166 = vpop.xlane.xlu0 %4165
          %4167 = vadd.xlane.f32.xlu0 %v3713
          %v4168 = vpop.xlane.xlu0 %4167
          %4169 = vadd.xlane.f32.xlu0 %v3714
          %v4170 = vpop.xlane.xlu0 %4169
          %4171 = vadd.xlane.f32.xlu0 %v3715
          %v4172 = vpop.xlane.xlu0 %4171
          %4173 = vadd.xlane.f32.xlu0 %v3716
          %v4174 = vpop.xlane.xlu0 %4173
          %4175 = vadd.xlane.f32.xlu0 %v3717
          %v4176 = vpop.xlane.xlu0 %4175
          %4177 = vadd.xlane.f32.xlu0 %v3718
          %v4178 = vpop.xlane.xlu0 %4177
          %4179 = vadd.xlane.f32.xlu0 %v3719
          %v4180 = vpop.xlane.xlu0 %4179
          %4181 = vadd.xlane.f32.xlu0 %v3720
          %v4182 = vpop.xlane.xlu0 %4181
          %4183 = vadd.xlane.f32.xlu0 %v3721
          %v4184 = vpop.xlane.xlu0 %4183
          %4185 = vadd.xlane.f32.xlu0 %v3722
          %v4186 = vpop.xlane.xlu0 %4185
          %4187 = vadd.xlane.f32.xlu0 %v3723
          %v4188 = vpop.xlane.xlu0 %4187
          %4189 = vadd.xlane.f32.xlu0 %v3724
          %v4190 = vpop.xlane.xlu0 %4189
          %4191 = vadd.xlane.f32.xlu0 %v3725
          %v4192 = vpop.xlane.xlu0 %4191
          %4193 = vadd.xlane.f32.xlu0 %v3726
          %v4194 = vpop.xlane.xlu0 %4193
          %4195 = vadd.xlane.f32.xlu0 %v3727
          %v4196 = vpop.xlane.xlu0 %4195
          %4197 = vadd.xlane.f32.xlu0 %v3728
          %v4198 = vpop.xlane.xlu0 %4197
          %4199 = vadd.xlane.f32.xlu0 %v3729
          %v4200 = vpop.xlane.xlu0 %4199
          %4201 = vadd.xlane.f32.xlu0 %v3730
          %v4202 = vpop.xlane.xlu0 %4201
          %4203 = vadd.xlane.f32.xlu0 %v3731
          %v4204 = vpop.xlane.xlu0 %4203
          %4205 = vadd.xlane.f32.xlu0 %v3732
          %v4206 = vpop.xlane.xlu0 %4205
          %4207 = vadd.xlane.f32.xlu0 %v3733
          %v4208 = vpop.xlane.xlu0 %4207
          %4209 = vadd.xlane.f32.xlu0 %v3734
          %v4210 = vpop.xlane.xlu0 %4209
          %4211 = vadd.xlane.f32.xlu0 %v3735
          %v4212 = vpop.xlane.xlu0 %4211
          %4213 = vadd.xlane.f32.xlu0 %v3736
          %v4214 = vpop.xlane.xlu0 %4213
          %4215 = vadd.xlane.f32.xlu0 %v3737
          %v4216 = vpop.xlane.xlu0 %4215
          %4217 = vadd.xlane.f32.xlu0 %v3738
          %v4218 = vpop.xlane.xlu0 %4217
          %4219 = vadd.xlane.f32.xlu0 %v3739
          %v4220 = vpop.xlane.xlu0 %4219
          %4221 = vadd.xlane.f32.xlu0 %v3740
          %v4222 = vpop.xlane.xlu0 %4221
          %4223 = vadd.xlane.f32.xlu0 %v3741
          %v4224 = vpop.xlane.xlu0 %4223
          %4225 = vadd.xlane.f32.xlu0 %v3742
          %v4226 = vpop.xlane.xlu0 %4225
          %4227 = vadd.xlane.f32.xlu0 %v3743
          %v4228 = vpop.xlane.xlu0 %4227
          %4229 = vadd.xlane.f32.xlu0 %v3744
          %v4230 = vpop.xlane.xlu0 %4229
          %4231 = vadd.xlane.f32.xlu0 %v3745
          %v4232 = vpop.xlane.xlu0 %4231
          %4233 = vadd.xlane.f32.xlu0 %v3746
          %v4234 = vpop.xlane.xlu0 %4233
          %4235 = vadd.xlane.f32.xlu0 %v3747
          %v4236 = vpop.xlane.xlu0 %4235
          %4237 = vadd.xlane.f32.xlu0 %v3748
          %v4238 = vpop.xlane.xlu0 %4237
          %4239 = vadd.xlane.f32.xlu0 %v3749
          %v4240 = vpop.xlane.xlu0 %4239
          %4241 = vadd.xlane.f32.xlu0 %v3750
          %v4242 = vpop.xlane.xlu0 %4241
          %4243 = vadd.xlane.f32.xlu0 %v3751
          %v4244 = vpop.xlane.xlu0 %4243
          %4245 = vadd.xlane.f32.xlu0 %v3752
          %v4246 = vpop.xlane.xlu0 %4245
          %4247 = vadd.xlane.f32.xlu0 %v3753
          %v4248 = vpop.xlane.xlu0 %4247
          %4249 = vadd.xlane.f32.xlu0 %v3754
          %v4250 = vpop.xlane.xlu0 %4249
          %4251 = vadd.xlane.f32.xlu0 %v3755
          %v4252 = vpop.xlane.xlu0 %4251
          %4253 = vadd.xlane.f32.xlu0 %v3756
          %v4254 = vpop.xlane.xlu0 %4253
          %4255 = vadd.xlane.f32.xlu0 %v3757
          %v4256 = vpop.xlane.xlu0 %4255
          %4257 = vadd.xlane.f32.xlu0 %v3758
          %v4258 = vpop.xlane.xlu0 %4257
          %4259 = vadd.xlane.f32.xlu0 %v3759
          %v4260 = vpop.xlane.xlu0 %4259
          %4261 = vadd.xlane.f32.xlu0 %v3760
          %v4262 = vpop.xlane.xlu0 %4261
          %4263 = vadd.xlane.f32.xlu0 %v3761
          %v4264 = vpop.xlane.xlu0 %4263
          %4265 = vadd.xlane.f32.xlu0 %v3762
          %v4266 = vpop.xlane.xlu0 %4265
          %4267 = vadd.xlane.f32.xlu0 %v3763
          %v4268 = vpop.xlane.xlu0 %4267
          %4269 = vadd.xlane.f32.xlu0 %v3764
          %v4270 = vpop.xlane.xlu0 %4269
          %4271 = vadd.xlane.f32.xlu0 %v3765
          %v4272 = vpop.xlane.xlu0 %4271
          %4273 = vadd.xlane.f32.xlu0 %v3766
          %v4274 = vpop.xlane.xlu0 %4273
          %4275 = vadd.xlane.f32.xlu0 %v3767
          %v4276 = vpop.xlane.xlu0 %4275
          %4277 = vadd.xlane.f32.xlu0 %v3768
          %v4278 = vpop.xlane.xlu0 %4277
          %4279 = vadd.xlane.f32.xlu0 %v3769
          %v4280 = vpop.xlane.xlu0 %4279
          %4281 = vadd.xlane.f32.xlu0 %v3770
          %v4282 = vpop.xlane.xlu0 %4281
          %v4283 = vmul.f32 %v3772, 0.0026041667
          %v4284 = vmul.f32 %v3774, 0.0026041667
          %v4285 = vmul.f32 %v3776, 0.0026041667
          %v4286 = vmul.f32 %v3778, 0.0026041667
          %v4287 = vmul.f32 %v3780, 0.0026041667
          %v4288 = vmul.f32 %v3782, 0.0026041667
          %v4289 = vmul.f32 %v3784, 0.0026041667
          %v4290 = vmul.f32 %v3786, 0.0026041667
          %v4291 = vmul.f32 %v3788, 0.0026041667
          %v4292 = vmul.f32 %v3790, 0.0026041667
          %v4293 = vmul.f32 %v3792, 0.0026041667
          %v4294 = vmul.f32 %v3794, 0.0026041667
          %v4295 = vmul.f32 %v3796, 0.0026041667
          %v4296 = vmul.f32 %v3798, 0.0026041667
          %v4297 = vmul.f32 %v3800, 0.0026041667
          %v4298 = vmul.f32 %v3802, 0.0026041667
          %v4299 = vmul.f32 %v3804, 0.0026041667
          %v4300 = vmul.f32 %v3806, 0.0026041667
          %v4301 = vmul.f32 %v3808, 0.0026041667
          %v4302 = vmul.f32 %v3810, 0.0026041667
          %v4303 = vmul.f32 %v3812, 0.0026041667
          %v4304 = vmul.f32 %v3814, 0.0026041667
          %v4305 = vmul.f32 %v3816, 0.0026041667
          %v4306 = vmul.f32 %v3818, 0.0026041667
          %v4307 = vmul.f32 %v3820, 0.0026041667
          %v4308 = vmul.f32 %v3822, 0.0026041667
          %v4309 = vmul.f32 %v3824, 0.0026041667
          %v4310 = vmul.f32 %v3826, 0.0026041667
          %v4311 = vmul.f32 %v3828, 0.0026041667
          %v4312 = vmul.f32 %v3830, 0.0026041667
          %v4313 = vmul.f32 %v3832, 0.0026041667
          %v4314 = vmul.f32 %v3834, 0.0026041667
          %v4315 = vmul.f32 %v3836, 0.0026041667
          %v4316 = vmul.f32 %v3838, 0.0026041667
          %v4317 = vmul.f32 %v3840, 0.0026041667
          %v4318 = vmul.f32 %v3842, 0.0026041667
          %v4319 = vmul.f32 %v3844, 0.0026041667
          %v4320 = vmul.f32 %v3846, 0.0026041667
          %v4321 = vmul.f32 %v3848, 0.0026041667
          %v4322 = vmul.f32 %v3850, 0.0026041667
          %v4323 = vmul.f32 %v3852, 0.0026041667
          %v4324 = vmul.f32 %v3854, 0.0026041667
          %v4325 = vmul.f32 %v3856, 0.0026041667
          %v4326 = vmul.f32 %v3858, 0.0026041667
          %v4327 = vmul.f32 %v3860, 0.0026041667
          %v4328 = vmul.f32 %v3862, 0.0026041667
          %v4329 = vmul.f32 %v3864, 0.0026041667
          %v4330 = vmul.f32 %v3866, 0.0026041667
          %v4331 = vmul.f32 %v3868, 0.0026041667
          %v4332 = vmul.f32 %v3870, 0.0026041667
          %v4333 = vmul.f32 %v3872, 0.0026041667
          %v4334 = vmul.f32 %v3874, 0.0026041667
          %v4335 = vmul.f32 %v3876, 0.0026041667
          %v4336 = vmul.f32 %v3878, 0.0026041667
          %v4337 = vmul.f32 %v3880, 0.0026041667
          %v4338 = vmul.f32 %v3882, 0.0026041667
          %v4339 = vmul.f32 %v3884, 0.0026041667
          %v4340 = vmul.f32 %v3886, 0.0026041667
          %v4341 = vmul.f32 %v3888, 0.0026041667
          %v4342 = vmul.f32 %v3890, 0.0026041667
          %v4343 = vmul.f32 %v3892, 0.0026041667
          %v4344 = vmul.f32 %v3894, 0.0026041667
          %v4345 = vmul.f32 %v3896, 0.0026041667
          %v4346 = vmul.f32 %v3898, 0.0026041667
          %v4347 = vmul.f32 %v3900, 0.0026041667
          %v4348 = vmul.f32 %v3902, 0.0026041667
          %v4349 = vmul.f32 %v3904, 0.0026041667
          %v4350 = vmul.f32 %v3906, 0.0026041667
          %v4351 = vmul.f32 %v3908, 0.0026041667
          %v4352 = vmul.f32 %v3910, 0.0026041667
          %v4353 = vmul.f32 %v3912, 0.0026041667
          %v4354 = vmul.f32 %v3914, 0.0026041667
          %v4355 = vmul.f32 %v3916, 0.0026041667
          %v4356 = vmul.f32 %v3918, 0.0026041667
          %v4357 = vmul.f32 %v3920, 0.0026041667
          %v4358 = vmul.f32 %v3922, 0.0026041667
          %v4359 = vmul.f32 %v3924, 0.0026041667
          %v4360 = vmul.f32 %v3926, 0.0026041667
          %v4361 = vmul.f32 %v3928, 0.0026041667
          %v4362 = vmul.f32 %v3930, 0.0026041667
          %v4363 = vmul.f32 %v3932, 0.0026041667
          %v4364 = vmul.f32 %v3934, 0.0026041667
          %v4365 = vmul.f32 %v3936, 0.0026041667
          %v4366 = vmul.f32 %v3938, 0.0026041667
          %v4367 = vmul.f32 %v3940, 0.0026041667
          %v4368 = vmul.f32 %v3942, 0.0026041667
          %v4369 = vmul.f32 %v3944, 0.0026041667
          %v4370 = vmul.f32 %v3946, 0.0026041667
          %v4371 = vmul.f32 %v3948, 0.0026041667
          %v4372 = vmul.f32 %v3950, 0.0026041667
          %v4373 = vmul.f32 %v3952, 0.0026041667
          %v4374 = vmul.f32 %v3954, 0.0026041667
          %v4375 = vmul.f32 %v3956, 0.0026041667
          %v4376 = vmul.f32 %v3958, 0.0026041667
          %v4377 = vmul.f32 %v3960, 0.0026041667
          %v4378 = vmul.f32 %v3962, 0.0026041667
          %v4379 = vmul.f32 %v3964, 0.0026041667
          %v4380 = vmul.f32 %v3966, 0.0026041667
          %v4381 = vmul.f32 %v3968, 0.0026041667
          %v4382 = vmul.f32 %v3970, 0.0026041667
          %v4383 = vmul.f32 %v3972, 0.0026041667
          %v4384 = vmul.f32 %v3974, 0.0026041667
          %v4385 = vmul.f32 %v3976, 0.0026041667
          %v4386 = vmul.f32 %v3978, 0.0026041667
          %v4387 = vmul.f32 %v3980, 0.0026041667
          %v4388 = vmul.f32 %v3982, 0.0026041667
          %v4389 = vmul.f32 %v3984, 0.0026041667
          %v4390 = vmul.f32 %v3986, 0.0026041667
          %v4391 = vmul.f32 %v3988, 0.0026041667
          %v4392 = vmul.f32 %v3990, 0.0026041667
          %v4393 = vmul.f32 %v3992, 0.0026041667
          %v4394 = vmul.f32 %v3994, 0.0026041667
          %v4395 = vmul.f32 %v3996, 0.0026041667
          %v4396 = vmul.f32 %v3998, 0.0026041667
          %v4397 = vmul.f32 %v4000, 0.0026041667
          %v4398 = vmul.f32 %v4002, 0.0026041667
          %v4399 = vmul.f32 %v4004, 0.0026041667
          %v4400 = vmul.f32 %v4006, 0.0026041667
          %v4401 = vmul.f32 %v4008, 0.0026041667
          %v4402 = vmul.f32 %v4010, 0.0026041667
          %v4403 = vmul.f32 %v4012, 0.0026041667
          %v4404 = vmul.f32 %v4014, 0.0026041667
          %v4405 = vmul.f32 %v4016, 0.0026041667
          %v4406 = vmul.f32 %v4018, 0.0026041667
          %v4407 = vmul.f32 %v4020, 0.0026041667
          %v4408 = vmul.f32 %v4022, 0.0026041667
          %v4409 = vmul.f32 %v4024, 0.0026041667
          %v4410 = vmul.f32 %v4026, 0.0026041667
          %v4411 = vmul.f32 %v4028, 0.0026041667
          %v4412 = vmul.f32 %v4030, 0.0026041667
          %v4413 = vmul.f32 %v4032, 0.0026041667
          %v4414 = vmul.f32 %v4034, 0.0026041667
          %v4415 = vmul.f32 %v4036, 0.0026041667
          %v4416 = vmul.f32 %v4038, 0.0026041667
          %v4417 = vmul.f32 %v4040, 0.0026041667
          %v4418 = vmul.f32 %v4042, 0.0026041667
          %v4419 = vmul.f32 %v4044, 0.0026041667
          %v4420 = vmul.f32 %v4046, 0.0026041667
          %v4421 = vmul.f32 %v4048, 0.0026041667
          %v4422 = vmul.f32 %v4050, 0.0026041667
          %v4423 = vmul.f32 %v4052, 0.0026041667
          %v4424 = vmul.f32 %v4054, 0.0026041667
          %v4425 = vmul.f32 %v4056, 0.0026041667
          %v4426 = vmul.f32 %v4058, 0.0026041667
          %v4427 = vmul.f32 %v4060, 0.0026041667
          %v4428 = vmul.f32 %v4062, 0.0026041667
          %v4429 = vmul.f32 %v4064, 0.0026041667
          %v4430 = vmul.f32 %v4066, 0.0026041667
          %v4431 = vmul.f32 %v4068, 0.0026041667
          %v4432 = vmul.f32 %v4070, 0.0026041667
          %v4433 = vmul.f32 %v4072, 0.0026041667
          %v4434 = vmul.f32 %v4074, 0.0026041667
          %v4435 = vmul.f32 %v4076, 0.0026041667
          %v4436 = vmul.f32 %v4078, 0.0026041667
          %v4437 = vmul.f32 %v4080, 0.0026041667
          %v4438 = vmul.f32 %v4082, 0.0026041667
          %v4439 = vmul.f32 %v4084, 0.0026041667
          %v4440 = vmul.f32 %v4086, 0.0026041667
          %v4441 = vmul.f32 %v4088, 0.0026041667
          %v4442 = vmul.f32 %v4090, 0.0026041667
          %v4443 = vmul.f32 %v4092, 0.0026041667
          %v4444 = vmul.f32 %v4094, 0.0026041667
          %v4445 = vmul.f32 %v4096, 0.0026041667
          %v4446 = vmul.f32 %v4098, 0.0026041667
          %v4447 = vmul.f32 %v4100, 0.0026041667
          %v4448 = vmul.f32 %v4102, 0.0026041667
          %v4449 = vmul.f32 %v4104, 0.0026041667
          %v4450 = vmul.f32 %v4106, 0.0026041667
          %v4451 = vmul.f32 %v4108, 0.0026041667
          %v4452 = vmul.f32 %v4110, 0.0026041667
          %v4453 = vmul.f32 %v4112, 0.0026041667
          %v4454 = vmul.f32 %v4114, 0.0026041667
          %v4455 = vmul.f32 %v4116, 0.0026041667
          %v4456 = vmul.f32 %v4118, 0.0026041667
          %v4457 = vmul.f32 %v4120, 0.0026041667
          %v4458 = vmul.f32 %v4122, 0.0026041667
          %v4459 = vmul.f32 %v4124, 0.0026041667
          %v4460 = vmul.f32 %v4126, 0.0026041667
          %v4461 = vmul.f32 %v4128, 0.0026041667
          %v4462 = vmul.f32 %v4130, 0.0026041667
          %v4463 = vmul.f32 %v4132, 0.0026041667
          %v4464 = vmul.f32 %v4134, 0.0026041667
          %v4465 = vmul.f32 %v4136, 0.0026041667
          %v4466 = vmul.f32 %v4138, 0.0026041667
          %v4467 = vmul.f32 %v4140, 0.0026041667
          %v4468 = vmul.f32 %v4142, 0.0026041667
          %v4469 = vmul.f32 %v4144, 0.0026041667
          %v4470 = vmul.f32 %v4146, 0.0026041667
          %v4471 = vmul.f32 %v4148, 0.0026041667
          %v4472 = vmul.f32 %v4150, 0.0026041667
          %v4473 = vmul.f32 %v4152, 0.0026041667
          %v4474 = vmul.f32 %v4154, 0.0026041667
          %v4475 = vmul.f32 %v4156, 0.0026041667
          %v4476 = vmul.f32 %v4158, 0.0026041667
          %v4477 = vmul.f32 %v4160, 0.0026041667
          %v4478 = vmul.f32 %v4162, 0.0026041667
          %v4479 = vmul.f32 %v4164, 0.0026041667
          %v4480 = vmul.f32 %v4166, 0.0026041667
          %v4481 = vmul.f32 %v4168, 0.0026041667
          %v4482 = vmul.f32 %v4170, 0.0026041667
          %v4483 = vmul.f32 %v4172, 0.0026041667
          %v4484 = vmul.f32 %v4174, 0.0026041667
          %v4485 = vmul.f32 %v4176, 0.0026041667
          %v4486 = vmul.f32 %v4178, 0.0026041667
          %v4487 = vmul.f32 %v4180, 0.0026041667
          %v4488 = vmul.f32 %v4182, 0.0026041667
          %v4489 = vmul.f32 %v4184, 0.0026041667
          %v4490 = vmul.f32 %v4186, 0.0026041667
          %v4491 = vmul.f32 %v4188, 0.0026041667
          %v4492 = vmul.f32 %v4190, 0.0026041667
          %v4493 = vmul.f32 %v4192, 0.0026041667
          %v4494 = vmul.f32 %v4194, 0.0026041667
          %v4495 = vmul.f32 %v4196, 0.0026041667
          %v4496 = vmul.f32 %v4198, 0.0026041667
          %v4497 = vmul.f32 %v4200, 0.0026041667
          %v4498 = vmul.f32 %v4202, 0.0026041667
          %v4499 = vmul.f32 %v4204, 0.0026041667
          %v4500 = vmul.f32 %v4206, 0.0026041667
          %v4501 = vmul.f32 %v4208, 0.0026041667
          %v4502 = vmul.f32 %v4210, 0.0026041667
          %v4503 = vmul.f32 %v4212, 0.0026041667
          %v4504 = vmul.f32 %v4214, 0.0026041667
          %v4505 = vmul.f32 %v4216, 0.0026041667
          %v4506 = vmul.f32 %v4218, 0.0026041667
          %v4507 = vmul.f32 %v4220, 0.0026041667
          %v4508 = vmul.f32 %v4222, 0.0026041667
          %v4509 = vmul.f32 %v4224, 0.0026041667
          %v4510 = vmul.f32 %v4226, 0.0026041667
          %v4511 = vmul.f32 %v4228, 0.0026041667
          %v4512 = vmul.f32 %v4230, 0.0026041667
          %v4513 = vmul.f32 %v4232, 0.0026041667
          %v4514 = vmul.f32 %v4234, 0.0026041667
          %v4515 = vmul.f32 %v4236, 0.0026041667
          %v4516 = vmul.f32 %v4238, 0.0026041667
          %v4517 = vmul.f32 %v4240, 0.0026041667
          %v4518 = vmul.f32 %v4242, 0.0026041667
          %v4519 = vmul.f32 %v4244, 0.0026041667
          %v4520 = vmul.f32 %v4246, 0.0026041667
          %v4521 = vmul.f32 %v4248, 0.0026041667
          %v4522 = vmul.f32 %v4250, 0.0026041667
          %v4523 = vmul.f32 %v4252, 0.0026041667
          %v4524 = vmul.f32 %v4254, 0.0026041667
          %v4525 = vmul.f32 %v4256, 0.0026041667
          %v4526 = vmul.f32 %v4258, 0.0026041667
          %v4527 = vmul.f32 %v4260, 0.0026041667
          %v4528 = vmul.f32 %v4262, 0.0026041667
          %v4529 = vmul.f32 %v4264, 0.0026041667
          %v4530 = vmul.f32 %v4266, 0.0026041667
          %v4531 = vmul.f32 %v4268, 0.0026041667
          %v4532 = vmul.f32 %v4270, 0.0026041667
          %v4533 = vmul.f32 %v4272, 0.0026041667
          %v4534 = vmul.f32 %v4274, 0.0026041667
          %v4535 = vmul.f32 %v4276, 0.0026041667
          %v4536 = vmul.f32 %v4278, 0.0026041667
          %v4537 = vmul.f32 %v4280, 0.0026041667
          %v4538 = vmul.f32 %v4282, 0.0026041667
          %v4795 = vlaneseq
          %v4796 = vshrl.u32 %v4795, 7
          %v4797 = vsub.s32 %v427, %v4796
          %v4798 = vrot.slane %v4283, %v4797
          %v4799 = vadd.s32 %v427, 4294967288
          %v4800 = vlaneseq
          %v4801 = vshrl.u32 %v4800, 7
          %v4802 = vsub.s32 %v4799, %v4801
          %v4803 = vrot.slane %v4284, %v4802
          %vm4804 = vcmask 130112
          %v4805 = vsel %vm4804, %v4803, %v4798
          %v4806 = vadd.s32 %v427, 4294967280
          %v4807 = vlaneseq
          %v4808 = vshrl.u32 %v4807, 7
          %v4809 = vsub.s32 %v4806, %v4808
          %v4810 = vrot.slane %v4285, %v4809
          %vm4811 = vcmask 195712
          %v4812 = vsel %vm4811, %v4810, %v4805
          %v4813 = vadd.s32 %v427, 4294967272
          %v4814 = vlaneseq
          %v4815 = vshrl.u32 %v4814, 7
          %v4816 = vsub.s32 %v4813, %v4815
          %v4817 = vrot.slane %v4286, %v4816
          %vm4818 = vcmask 261312
          %v4819 = vsel %vm4818, %v4817, %v4812
          %v4820 = vadd.s32 %v427, 4294967264
          %v4821 = vlaneseq
          %v4822 = vshrl.u32 %v4821, 7
          %v4823 = vsub.s32 %v4820, %v4822
          %v4824 = vrot.slane %v4287, %v4823
          %vm4825 = vcmask 326912
          %v4826 = vsel %vm4825, %v4824, %v4819
          %v4827 = vadd.s32 %v427, 4294967256
          %v4828 = vlaneseq
          %v4829 = vshrl.u32 %v4828, 7
          %v4830 = vsub.s32 %v4827, %v4829
          %v4831 = vrot.slane %v4288, %v4830
          %vm4832 = vcmask 392512
          %v4833 = vsel %vm4832, %v4831, %v4826
          %v4834 = vadd.s32 %v427, 4294967248
          %v4835 = vlaneseq
          %v4836 = vshrl.u32 %v4835, 7
          %v4837 = vsub.s32 %v4834, %v4836
          %v4838 = vrot.slane %v4289, %v4837
          %vm4839 = vcmask 458112
          %v4840 = vsel %vm4839, %v4838, %v4833
          %v4841 = vadd.s32 %v427, 4294967240
          %v4842 = vlaneseq
          %v4843 = vshrl.u32 %v4842, 7
          %v4844 = vsub.s32 %v4841, %v4843
          %v4845 = vrot.slane %v4290, %v4844
          %vm4846 = vcmask 523712
          %v4847 = vsel %vm4846, %v4845, %v4840
          %v4848 = vadd.s32 %v427, 4294967232
          %v4849 = vlaneseq
          %v4850 = vshrl.u32 %v4849, 7
          %v4851 = vsub.s32 %v4848, %v4850
          %v4852 = vrot.slane %v4291, %v4851
          %vm4853 = vcmask 589312
          %v4854 = vsel %vm4853, %v4852, %v4847
          %v4855 = vadd.s32 %v427, 4294967224
          %v4856 = vlaneseq
          %v4857 = vshrl.u32 %v4856, 7
          %v4858 = vsub.s32 %v4855, %v4857
          %v4859 = vrot.slane %v4292, %v4858
          %vm4860 = vcmask 654912
          %v4861 = vsel %vm4860, %v4859, %v4854
          %v4862 = vadd.s32 %v427, 4294967216
          %v4863 = vlaneseq
          %v4864 = vshrl.u32 %v4863, 7
          %v4865 = vsub.s32 %v4862, %v4864
          %v4866 = vrot.slane %v4293, %v4865
          %vm4867 = vcmask 720512
          %v4868 = vsel %vm4867, %v4866, %v4861
          %v4869 = vadd.s32 %v427, 4294967208
          %v4870 = vlaneseq
          %v4871 = vshrl.u32 %v4870, 7
          %v4872 = vsub.s32 %v4869, %v4871
          %v4873 = vrot.slane %v4294, %v4872
          %vm4874 = vcmask 786112
          %v4875 = vsel %vm4874, %v4873, %v4868
          %v4876 = vadd.s32 %v427, 4294967200
          %v4877 = vlaneseq
          %v4878 = vshrl.u32 %v4877, 7
          %v4879 = vsub.s32 %v4876, %v4878
          %v4880 = vrot.slane %v4295, %v4879
          %vm4881 = vcmask 851712
          %v4882 = vsel %vm4881, %v4880, %v4875
          %v4883 = vadd.s32 %v427, 4294967192
          %v4884 = vlaneseq
          %v4885 = vshrl.u32 %v4884, 7
          %v4886 = vsub.s32 %v4883, %v4885
          %v4887 = vrot.slane %v4296, %v4886
          %vm4888 = vcmask 917312
          %v4889 = vsel %vm4888, %v4887, %v4882
          %v4890 = vadd.s32 %v427, 4294967184
          %v4891 = vlaneseq
          %v4892 = vshrl.u32 %v4891, 7
          %v4893 = vsub.s32 %v4890, %v4892
          %v4894 = vrot.slane %v4297, %v4893
          %vm4895 = vcmask 982912
          %v4896 = vsel %vm4895, %v4894, %v4889
          %v4897 = vadd.s32 %v427, 4294967176
          %v4898 = vlaneseq
          %v4899 = vshrl.u32 %v4898, 7
          %v4900 = vsub.s32 %v4897, %v4899
          %v4901 = vrot.slane %v4298, %v4900
          %vm4902 = vcmask 1048512
          %v4903 = vsel %vm4902, %v4901, %v4896
          %v4904 = vlaneseq
          %v4905 = vshrl.u32 %v4904, 7
          %v4906 = vsub.s32 %v427, %v4905
          %v4907 = vrot.slane %v4299, %v4906
          %v4908 = vlaneseq
          %v4909 = vshrl.u32 %v4908, 7
          %v4910 = vsub.s32 %v4799, %v4909
          %v4911 = vrot.slane %v4300, %v4910
          %v4912 = vsel %vm4804, %v4911, %v4907
          %v4913 = vlaneseq
          %v4914 = vshrl.u32 %v4913, 7
          %v4915 = vsub.s32 %v4806, %v4914
          %v4916 = vrot.slane %v4301, %v4915
          %v4917 = vsel %vm4811, %v4916, %v4912
          %v4918 = vlaneseq
          %v4919 = vshrl.u32 %v4918, 7
          %v4920 = vsub.s32 %v4813, %v4919
          %v4921 = vrot.slane %v4302, %v4920
          %v4922 = vsel %vm4818, %v4921, %v4917
          %v4923 = vlaneseq
          %v4924 = vshrl.u32 %v4923, 7
          %v4925 = vsub.s32 %v4820, %v4924
          %v4926 = vrot.slane %v4303, %v4925
          %v4927 = vsel %vm4825, %v4926, %v4922
          %v4928 = vlaneseq
          %v4929 = vshrl.u32 %v4928, 7
          %v4930 = vsub.s32 %v4827, %v4929
          %v4931 = vrot.slane %v4304, %v4930
          %v4932 = vsel %vm4832, %v4931, %v4927
          %v4933 = vlaneseq
          %v4934 = vshrl.u32 %v4933, 7
          %v4935 = vsub.s32 %v4834, %v4934
          %v4936 = vrot.slane %v4305, %v4935
          %v4937 = vsel %vm4839, %v4936, %v4932
          %v4938 = vlaneseq
          %v4939 = vshrl.u32 %v4938, 7
          %v4940 = vsub.s32 %v4841, %v4939
          %v4941 = vrot.slane %v4306, %v4940
          %v4942 = vsel %vm4846, %v4941, %v4937
          %v4943 = vlaneseq
          %v4944 = vshrl.u32 %v4943, 7
          %v4945 = vsub.s32 %v4848, %v4944
          %v4946 = vrot.slane %v4307, %v4945
          %v4947 = vsel %vm4853, %v4946, %v4942
          %v4948 = vlaneseq
          %v4949 = vshrl.u32 %v4948, 7
          %v4950 = vsub.s32 %v4855, %v4949
          %v4951 = vrot.slane %v4308, %v4950
          %v4952 = vsel %vm4860, %v4951, %v4947
          %v4953 = vlaneseq
          %v4954 = vshrl.u32 %v4953, 7
          %v4955 = vsub.s32 %v4862, %v4954
          %v4956 = vrot.slane %v4309, %v4955
          %v4957 = vsel %vm4867, %v4956, %v4952
          %v4958 = vlaneseq
          %v4959 = vshrl.u32 %v4958, 7
          %v4960 = vsub.s32 %v4869, %v4959
          %v4961 = vrot.slane %v4310, %v4960
          %v4962 = vsel %vm4874, %v4961, %v4957
          %v4963 = vlaneseq
          %v4964 = vshrl.u32 %v4963, 7
          %v4965 = vsub.s32 %v4876, %v4964
          %v4966 = vrot.slane %v4311, %v4965
          %v4967 = vsel %vm4881, %v4966, %v4962
          %v4968 = vlaneseq
          %v4969 = vshrl.u32 %v4968, 7
          %v4970 = vsub.s32 %v4883, %v4969
          %v4971 = vrot.slane %v4312, %v4970
          %v4972 = vsel %vm4888, %v4971, %v4967
          %v4973 = vlaneseq
          %v4974 = vshrl.u32 %v4973, 7
          %v4975 = vsub.s32 %v4890, %v4974
          %v4976 = vrot.slane %v4313, %v4975
          %v4977 = vsel %vm4895, %v4976, %v4972
          %v4978 = vlaneseq
          %v4979 = vshrl.u32 %v4978, 7
          %v4980 = vsub.s32 %v4897, %v4979
          %v4981 = vrot.slane %v4314, %v4980
          %v4982 = vsel %vm4902, %v4981, %v4977
          %v4983 = vlaneseq
          %v4984 = vshrl.u32 %v4983, 7
          %v4985 = vsub.s32 %v427, %v4984
          %v4986 = vrot.slane %v4315, %v4985
          %v4987 = vlaneseq
          %v4988 = vshrl.u32 %v4987, 7
          %v4989 = vsub.s32 %v4799, %v4988
          %v4990 = vrot.slane %v4316, %v4989
          %v4991 = vsel %vm4804, %v4990, %v4986
          %v4992 = vlaneseq
          %v4993 = vshrl.u32 %v4992, 7
          %v4994 = vsub.s32 %v4806, %v4993
          %v4995 = vrot.slane %v4317, %v4994
          %v4996 = vsel %vm4811, %v4995, %v4991
          %v4997 = vlaneseq
          %v4998 = vshrl.u32 %v4997, 7
          %v4999 = vsub.s32 %v4813, %v4998
          %v5000 = vrot.slane %v4318, %v4999
          %v5001 = vsel %vm4818, %v5000, %v4996
          %v5002 = vlaneseq
          %v5003 = vshrl.u32 %v5002, 7
          %v5004 = vsub.s32 %v4820, %v5003
          %v5005 = vrot.slane %v4319, %v5004
          %v5006 = vsel %vm4825, %v5005, %v5001
          %v5007 = vlaneseq
          %v5008 = vshrl.u32 %v5007, 7
          %v5009 = vsub.s32 %v4827, %v5008
          %v5010 = vrot.slane %v4320, %v5009
          %v5011 = vsel %vm4832, %v5010, %v5006
          %v5012 = vlaneseq
          %v5013 = vshrl.u32 %v5012, 7
          %v5014 = vsub.s32 %v4834, %v5013
          %v5015 = vrot.slane %v4321, %v5014
          %v5016 = vsel %vm4839, %v5015, %v5011
          %v5017 = vlaneseq
          %v5018 = vshrl.u32 %v5017, 7
          %v5019 = vsub.s32 %v4841, %v5018
          %v5020 = vrot.slane %v4322, %v5019
          %v5021 = vsel %vm4846, %v5020, %v5016
          %v5022 = vlaneseq
          %v5023 = vshrl.u32 %v5022, 7
          %v5024 = vsub.s32 %v4848, %v5023
          %v5025 = vrot.slane %v4323, %v5024
          %v5026 = vsel %vm4853, %v5025, %v5021
          %v5027 = vlaneseq
          %v5028 = vshrl.u32 %v5027, 7
          %v5029 = vsub.s32 %v4855, %v5028
          %v5030 = vrot.slane %v4324, %v5029
          %v5031 = vsel %vm4860, %v5030, %v5026
          %v5032 = vlaneseq
          %v5033 = vshrl.u32 %v5032, 7
          %v5034 = vsub.s32 %v4862, %v5033
          %v5035 = vrot.slane %v4325, %v5034
          %v5036 = vsel %vm4867, %v5035, %v5031
          %v5037 = vlaneseq
          %v5038 = vshrl.u32 %v5037, 7
          %v5039 = vsub.s32 %v4869, %v5038
          %v5040 = vrot.slane %v4326, %v5039
          %v5041 = vsel %vm4874, %v5040, %v5036
          %v5042 = vlaneseq
          %v5043 = vshrl.u32 %v5042, 7
          %v5044 = vsub.s32 %v4876, %v5043
          %v5045 = vrot.slane %v4327, %v5044
          %v5046 = vsel %vm4881, %v5045, %v5041
          %v5047 = vlaneseq
          %v5048 = vshrl.u32 %v5047, 7
          %v5049 = vsub.s32 %v4883, %v5048
          %v5050 = vrot.slane %v4328, %v5049
          %v5051 = vsel %vm4888, %v5050, %v5046
          %v5052 = vlaneseq
          %v5053 = vshrl.u32 %v5052, 7
          %v5054 = vsub.s32 %v4890, %v5053
          %v5055 = vrot.slane %v4329, %v5054
          %v5056 = vsel %vm4895, %v5055, %v5051
          %v5057 = vlaneseq
          %v5058 = vshrl.u32 %v5057, 7
          %v5059 = vsub.s32 %v4897, %v5058
          %v5060 = vrot.slane %v4330, %v5059
          %v5061 = vsel %vm4902, %v5060, %v5056
          %v5062 = vlaneseq
          %v5063 = vshrl.u32 %v5062, 7
          %v5064 = vsub.s32 %v427, %v5063
          %v5065 = vrot.slane %v4331, %v5064
          %v5066 = vlaneseq
          %v5067 = vshrl.u32 %v5066, 7
          %v5068 = vsub.s32 %v4799, %v5067
          %v5069 = vrot.slane %v4332, %v5068
          %v5070 = vsel %vm4804, %v5069, %v5065
          %v5071 = vlaneseq
          %v5072 = vshrl.u32 %v5071, 7
          %v5073 = vsub.s32 %v4806, %v5072
          %v5074 = vrot.slane %v4333, %v5073
          %v5075 = vsel %vm4811, %v5074, %v5070
          %v5076 = vlaneseq
          %v5077 = vshrl.u32 %v5076, 7
          %v5078 = vsub.s32 %v4813, %v5077
          %v5079 = vrot.slane %v4334, %v5078
          %v5080 = vsel %vm4818, %v5079, %v5075
          %v5081 = vlaneseq
          %v5082 = vshrl.u32 %v5081, 7
          %v5083 = vsub.s32 %v4820, %v5082
          %v5084 = vrot.slane %v4335, %v5083
          %v5085 = vsel %vm4825, %v5084, %v5080
          %v5086 = vlaneseq
          %v5087 = vshrl.u32 %v5086, 7
          %v5088 = vsub.s32 %v4827, %v5087
          %v5089 = vrot.slane %v4336, %v5088
          %v5090 = vsel %vm4832, %v5089, %v5085
          %v5091 = vlaneseq
          %v5092 = vshrl.u32 %v5091, 7
          %v5093 = vsub.s32 %v4834, %v5092
          %v5094 = vrot.slane %v4337, %v5093
          %v5095 = vsel %vm4839, %v5094, %v5090
          %v5096 = vlaneseq
          %v5097 = vshrl.u32 %v5096, 7
          %v5098 = vsub.s32 %v4841, %v5097
          %v5099 = vrot.slane %v4338, %v5098
          %v5100 = vsel %vm4846, %v5099, %v5095
          %v5101 = vlaneseq
          %v5102 = vshrl.u32 %v5101, 7
          %v5103 = vsub.s32 %v4848, %v5102
          %v5104 = vrot.slane %v4339, %v5103
          %v5105 = vsel %vm4853, %v5104, %v5100
          %v5106 = vlaneseq
          %v5107 = vshrl.u32 %v5106, 7
          %v5108 = vsub.s32 %v4855, %v5107
          %v5109 = vrot.slane %v4340, %v5108
          %v5110 = vsel %vm4860, %v5109, %v5105
          %v5111 = vlaneseq
          %v5112 = vshrl.u32 %v5111, 7
          %v5113 = vsub.s32 %v4862, %v5112
          %v5114 = vrot.slane %v4341, %v5113
          %v5115 = vsel %vm4867, %v5114, %v5110
          %v5116 = vlaneseq
          %v5117 = vshrl.u32 %v5116, 7
          %v5118 = vsub.s32 %v4869, %v5117
          %v5119 = vrot.slane %v4342, %v5118
          %v5120 = vsel %vm4874, %v5119, %v5115
          %v5121 = vlaneseq
          %v5122 = vshrl.u32 %v5121, 7
          %v5123 = vsub.s32 %v4876, %v5122
          %v5124 = vrot.slane %v4343, %v5123
          %v5125 = vsel %vm4881, %v5124, %v5120
          %v5126 = vlaneseq
          %v5127 = vshrl.u32 %v5126, 7
          %v5128 = vsub.s32 %v4883, %v5127
          %v5129 = vrot.slane %v4344, %v5128
          %v5130 = vsel %vm4888, %v5129, %v5125
          %v5131 = vlaneseq
          %v5132 = vshrl.u32 %v5131, 7
          %v5133 = vsub.s32 %v4890, %v5132
          %v5134 = vrot.slane %v4345, %v5133
          %v5135 = vsel %vm4895, %v5134, %v5130
          %v5136 = vlaneseq
          %v5137 = vshrl.u32 %v5136, 7
          %v5138 = vsub.s32 %v4897, %v5137
          %v5139 = vrot.slane %v4346, %v5138
          %v5140 = vsel %vm4902, %v5139, %v5135
          %v5141 = vlaneseq
          %v5142 = vshrl.u32 %v5141, 7
          %v5143 = vsub.s32 %v427, %v5142
          %v5144 = vrot.slane %v4347, %v5143
          %v5145 = vlaneseq
          %v5146 = vshrl.u32 %v5145, 7
          %v5147 = vsub.s32 %v4799, %v5146
          %v5148 = vrot.slane %v4348, %v5147
          %v5149 = vsel %vm4804, %v5148, %v5144
          %v5150 = vlaneseq
          %v5151 = vshrl.u32 %v5150, 7
          %v5152 = vsub.s32 %v4806, %v5151
          %v5153 = vrot.slane %v4349, %v5152
          %v5154 = vsel %vm4811, %v5153, %v5149
          %v5155 = vlaneseq
          %v5156 = vshrl.u32 %v5155, 7
          %v5157 = vsub.s32 %v4813, %v5156
          %v5158 = vrot.slane %v4350, %v5157
          %v5159 = vsel %vm4818, %v5158, %v5154
          %v5160 = vlaneseq
          %v5161 = vshrl.u32 %v5160, 7
          %v5162 = vsub.s32 %v4820, %v5161
          %v5163 = vrot.slane %v4351, %v5162
          %v5164 = vsel %vm4825, %v5163, %v5159
          %v5165 = vlaneseq
          %v5166 = vshrl.u32 %v5165, 7
          %v5167 = vsub.s32 %v4827, %v5166
          %v5168 = vrot.slane %v4352, %v5167
          %v5169 = vsel %vm4832, %v5168, %v5164
          %v5170 = vlaneseq
          %v5171 = vshrl.u32 %v5170, 7
          %v5172 = vsub.s32 %v4834, %v5171
          %v5173 = vrot.slane %v4353, %v5172
          %v5174 = vsel %vm4839, %v5173, %v5169
          %v5175 = vlaneseq
          %v5176 = vshrl.u32 %v5175, 7
          %v5177 = vsub.s32 %v4841, %v5176
          %v5178 = vrot.slane %v4354, %v5177
          %v5179 = vsel %vm4846, %v5178, %v5174
          %v5180 = vlaneseq
          %v5181 = vshrl.u32 %v5180, 7
          %v5182 = vsub.s32 %v4848, %v5181
          %v5183 = vrot.slane %v4355, %v5182
          %v5184 = vsel %vm4853, %v5183, %v5179
          %v5185 = vlaneseq
          %v5186 = vshrl.u32 %v5185, 7
          %v5187 = vsub.s32 %v4855, %v5186
          %v5188 = vrot.slane %v4356, %v5187
          %v5189 = vsel %vm4860, %v5188, %v5184
          %v5190 = vlaneseq
          %v5191 = vshrl.u32 %v5190, 7
          %v5192 = vsub.s32 %v4862, %v5191
          %v5193 = vrot.slane %v4357, %v5192
          %v5194 = vsel %vm4867, %v5193, %v5189
          %v5195 = vlaneseq
          %v5196 = vshrl.u32 %v5195, 7
          %v5197 = vsub.s32 %v4869, %v5196
          %v5198 = vrot.slane %v4358, %v5197
          %v5199 = vsel %vm4874, %v5198, %v5194
          %v5200 = vlaneseq
          %v5201 = vshrl.u32 %v5200, 7
          %v5202 = vsub.s32 %v4876, %v5201
          %v5203 = vrot.slane %v4359, %v5202
          %v5204 = vsel %vm4881, %v5203, %v5199
          %v5205 = vlaneseq
          %v5206 = vshrl.u32 %v5205, 7
          %v5207 = vsub.s32 %v4883, %v5206
          %v5208 = vrot.slane %v4360, %v5207
          %v5209 = vsel %vm4888, %v5208, %v5204
          %v5210 = vlaneseq
          %v5211 = vshrl.u32 %v5210, 7
          %v5212 = vsub.s32 %v4890, %v5211
          %v5213 = vrot.slane %v4361, %v5212
          %v5214 = vsel %vm4895, %v5213, %v5209
          %v5215 = vlaneseq
          %v5216 = vshrl.u32 %v5215, 7
          %v5217 = vsub.s32 %v4897, %v5216
          %v5218 = vrot.slane %v4362, %v5217
          %v5219 = vsel %vm4902, %v5218, %v5214
          %v5220 = vlaneseq
          %v5221 = vshrl.u32 %v5220, 7
          %v5222 = vsub.s32 %v427, %v5221
          %v5223 = vrot.slane %v4363, %v5222
          %v5224 = vlaneseq
          %v5225 = vshrl.u32 %v5224, 7
          %v5226 = vsub.s32 %v4799, %v5225
          %v5227 = vrot.slane %v4364, %v5226
          %v5228 = vsel %vm4804, %v5227, %v5223
          %v5229 = vlaneseq
          %v5230 = vshrl.u32 %v5229, 7
          %v5231 = vsub.s32 %v4806, %v5230
          %v5232 = vrot.slane %v4365, %v5231
          %v5233 = vsel %vm4811, %v5232, %v5228
          %v5234 = vlaneseq
          %v5235 = vshrl.u32 %v5234, 7
          %v5236 = vsub.s32 %v4813, %v5235
          %v5237 = vrot.slane %v4366, %v5236
          %v5238 = vsel %vm4818, %v5237, %v5233
          %v5239 = vlaneseq
          %v5240 = vshrl.u32 %v5239, 7
          %v5241 = vsub.s32 %v4820, %v5240
          %v5242 = vrot.slane %v4367, %v5241
          %v5243 = vsel %vm4825, %v5242, %v5238
          %v5244 = vlaneseq
          %v5245 = vshrl.u32 %v5244, 7
          %v5246 = vsub.s32 %v4827, %v5245
          %v5247 = vrot.slane %v4368, %v5246
          %v5248 = vsel %vm4832, %v5247, %v5243
          %v5249 = vlaneseq
          %v5250 = vshrl.u32 %v5249, 7
          %v5251 = vsub.s32 %v4834, %v5250
          %v5252 = vrot.slane %v4369, %v5251
          %v5253 = vsel %vm4839, %v5252, %v5248
          %v5254 = vlaneseq
          %v5255 = vshrl.u32 %v5254, 7
          %v5256 = vsub.s32 %v4841, %v5255
          %v5257 = vrot.slane %v4370, %v5256
          %v5258 = vsel %vm4846, %v5257, %v5253
          %v5259 = vlaneseq
          %v5260 = vshrl.u32 %v5259, 7
          %v5261 = vsub.s32 %v4848, %v5260
          %v5262 = vrot.slane %v4371, %v5261
          %v5263 = vsel %vm4853, %v5262, %v5258
          %v5264 = vlaneseq
          %v5265 = vshrl.u32 %v5264, 7
          %v5266 = vsub.s32 %v4855, %v5265
          %v5267 = vrot.slane %v4372, %v5266
          %v5268 = vsel %vm4860, %v5267, %v5263
          %v5269 = vlaneseq
          %v5270 = vshrl.u32 %v5269, 7
          %v5271 = vsub.s32 %v4862, %v5270
          %v5272 = vrot.slane %v4373, %v5271
          %v5273 = vsel %vm4867, %v5272, %v5268
          %v5274 = vlaneseq
          %v5275 = vshrl.u32 %v5274, 7
          %v5276 = vsub.s32 %v4869, %v5275
          %v5277 = vrot.slane %v4374, %v5276
          %v5278 = vsel %vm4874, %v5277, %v5273
          %v5279 = vlaneseq
          %v5280 = vshrl.u32 %v5279, 7
          %v5281 = vsub.s32 %v4876, %v5280
          %v5282 = vrot.slane %v4375, %v5281
          %v5283 = vsel %vm4881, %v5282, %v5278
          %v5284 = vlaneseq
          %v5285 = vshrl.u32 %v5284, 7
          %v5286 = vsub.s32 %v4883, %v5285
          %v5287 = vrot.slane %v4376, %v5286
          %v5288 = vsel %vm4888, %v5287, %v5283
          %v5289 = vlaneseq
          %v5290 = vshrl.u32 %v5289, 7
          %v5291 = vsub.s32 %v4890, %v5290
          %v5292 = vrot.slane %v4377, %v5291
          %v5293 = vsel %vm4895, %v5292, %v5288
          %v5294 = vlaneseq
          %v5295 = vshrl.u32 %v5294, 7
          %v5296 = vsub.s32 %v4897, %v5295
          %v5297 = vrot.slane %v4378, %v5296
          %v5298 = vsel %vm4902, %v5297, %v5293
          %v5299 = vlaneseq
          %v5300 = vshrl.u32 %v5299, 7
          %v5301 = vsub.s32 %v427, %v5300
          %v5302 = vrot.slane %v4379, %v5301
          %v5303 = vlaneseq
          %v5304 = vshrl.u32 %v5303, 7
          %v5305 = vsub.s32 %v4799, %v5304
          %v5306 = vrot.slane %v4380, %v5305
          %v5307 = vsel %vm4804, %v5306, %v5302
          %v5308 = vlaneseq
          %v5309 = vshrl.u32 %v5308, 7
          %v5310 = vsub.s32 %v4806, %v5309
          %v5311 = vrot.slane %v4381, %v5310
          %v5312 = vsel %vm4811, %v5311, %v5307
          %v5313 = vlaneseq
          %v5314 = vshrl.u32 %v5313, 7
          %v5315 = vsub.s32 %v4813, %v5314
          %v5316 = vrot.slane %v4382, %v5315
          %v5317 = vsel %vm4818, %v5316, %v5312
          %v5318 = vlaneseq
          %v5319 = vshrl.u32 %v5318, 7
          %v5320 = vsub.s32 %v4820, %v5319
          %v5321 = vrot.slane %v4383, %v5320
          %v5322 = vsel %vm4825, %v5321, %v5317
          %v5323 = vlaneseq
          %v5324 = vshrl.u32 %v5323, 7
          %v5325 = vsub.s32 %v4827, %v5324
          %v5326 = vrot.slane %v4384, %v5325
          %v5327 = vsel %vm4832, %v5326, %v5322
          %v5328 = vlaneseq
          %v5329 = vshrl.u32 %v5328, 7
          %v5330 = vsub.s32 %v4834, %v5329
          %v5331 = vrot.slane %v4385, %v5330
          %v5332 = vsel %vm4839, %v5331, %v5327
          %v5333 = vlaneseq
          %v5334 = vshrl.u32 %v5333, 7
          %v5335 = vsub.s32 %v4841, %v5334
          %v5336 = vrot.slane %v4386, %v5335
          %v5337 = vsel %vm4846, %v5336, %v5332
          %v5338 = vlaneseq
          %v5339 = vshrl.u32 %v5338, 7
          %v5340 = vsub.s32 %v4848, %v5339
          %v5341 = vrot.slane %v4387, %v5340
          %v5342 = vsel %vm4853, %v5341, %v5337
          %v5343 = vlaneseq
          %v5344 = vshrl.u32 %v5343, 7
          %v5345 = vsub.s32 %v4855, %v5344
          %v5346 = vrot.slane %v4388, %v5345
          %v5347 = vsel %vm4860, %v5346, %v5342
          %v5348 = vlaneseq
          %v5349 = vshrl.u32 %v5348, 7
          %v5350 = vsub.s32 %v4862, %v5349
          %v5351 = vrot.slane %v4389, %v5350
          %v5352 = vsel %vm4867, %v5351, %v5347
          %v5353 = vlaneseq
          %v5354 = vshrl.u32 %v5353, 7
          %v5355 = vsub.s32 %v4869, %v5354
          %v5356 = vrot.slane %v4390, %v5355
          %v5357 = vsel %vm4874, %v5356, %v5352
          %v5358 = vlaneseq
          %v5359 = vshrl.u32 %v5358, 7
          %v5360 = vsub.s32 %v4876, %v5359
          %v5361 = vrot.slane %v4391, %v5360
          %v5362 = vsel %vm4881, %v5361, %v5357
          %v5363 = vlaneseq
          %v5364 = vshrl.u32 %v5363, 7
          %v5365 = vsub.s32 %v4883, %v5364
          %v5366 = vrot.slane %v4392, %v5365
          %v5367 = vsel %vm4888, %v5366, %v5362
          %v5368 = vlaneseq
          %v5369 = vshrl.u32 %v5368, 7
          %v5370 = vsub.s32 %v4890, %v5369
          %v5371 = vrot.slane %v4393, %v5370
          %v5372 = vsel %vm4895, %v5371, %v5367
          %v5373 = vlaneseq
          %v5374 = vshrl.u32 %v5373, 7
          %v5375 = vsub.s32 %v4897, %v5374
          %v5376 = vrot.slane %v4394, %v5375
          %v5377 = vsel %vm4902, %v5376, %v5372
          %v5378 = vlaneseq
          %v5379 = vshrl.u32 %v5378, 7
          %v5380 = vsub.s32 %v427, %v5379
          %v5381 = vrot.slane %v4395, %v5380
          %v5382 = vlaneseq
          %v5383 = vshrl.u32 %v5382, 7
          %v5384 = vsub.s32 %v4799, %v5383
          %v5385 = vrot.slane %v4396, %v5384
          %v5386 = vsel %vm4804, %v5385, %v5381
          %v5387 = vlaneseq
          %v5388 = vshrl.u32 %v5387, 7
          %v5389 = vsub.s32 %v4806, %v5388
          %v5390 = vrot.slane %v4397, %v5389
          %v5391 = vsel %vm4811, %v5390, %v5386
          %v5392 = vlaneseq
          %v5393 = vshrl.u32 %v5392, 7
          %v5394 = vsub.s32 %v4813, %v5393
          %v5395 = vrot.slane %v4398, %v5394
          %v5396 = vsel %vm4818, %v5395, %v5391
          %v5397 = vlaneseq
          %v5398 = vshrl.u32 %v5397, 7
          %v5399 = vsub.s32 %v4820, %v5398
          %v5400 = vrot.slane %v4399, %v5399
          %v5401 = vsel %vm4825, %v5400, %v5396
          %v5402 = vlaneseq
          %v5403 = vshrl.u32 %v5402, 7
          %v5404 = vsub.s32 %v4827, %v5403
          %v5405 = vrot.slane %v4400, %v5404
          %v5406 = vsel %vm4832, %v5405, %v5401
          %v5407 = vlaneseq
          %v5408 = vshrl.u32 %v5407, 7
          %v5409 = vsub.s32 %v4834, %v5408
          %v5410 = vrot.slane %v4401, %v5409
          %v5411 = vsel %vm4839, %v5410, %v5406
          %v5412 = vlaneseq
          %v5413 = vshrl.u32 %v5412, 7
          %v5414 = vsub.s32 %v4841, %v5413
          %v5415 = vrot.slane %v4402, %v5414
          %v5416 = vsel %vm4846, %v5415, %v5411
          %v5417 = vlaneseq
          %v5418 = vshrl.u32 %v5417, 7
          %v5419 = vsub.s32 %v4848, %v5418
          %v5420 = vrot.slane %v4403, %v5419
          %v5421 = vsel %vm4853, %v5420, %v5416
          %v5422 = vlaneseq
          %v5423 = vshrl.u32 %v5422, 7
          %v5424 = vsub.s32 %v4855, %v5423
          %v5425 = vrot.slane %v4404, %v5424
          %v5426 = vsel %vm4860, %v5425, %v5421
          %v5427 = vlaneseq
          %v5428 = vshrl.u32 %v5427, 7
          %v5429 = vsub.s32 %v4862, %v5428
          %v5430 = vrot.slane %v4405, %v5429
          %v5431 = vsel %vm4867, %v5430, %v5426
          %v5432 = vlaneseq
          %v5433 = vshrl.u32 %v5432, 7
          %v5434 = vsub.s32 %v4869, %v5433
          %v5435 = vrot.slane %v4406, %v5434
          %v5436 = vsel %vm4874, %v5435, %v5431
          %v5437 = vlaneseq
          %v5438 = vshrl.u32 %v5437, 7
          %v5439 = vsub.s32 %v4876, %v5438
          %v5440 = vrot.slane %v4407, %v5439
          %v5441 = vsel %vm4881, %v5440, %v5436
          %v5442 = vlaneseq
          %v5443 = vshrl.u32 %v5442, 7
          %v5444 = vsub.s32 %v4883, %v5443
          %v5445 = vrot.slane %v4408, %v5444
          %v5446 = vsel %vm4888, %v5445, %v5441
          %v5447 = vlaneseq
          %v5448 = vshrl.u32 %v5447, 7
          %v5449 = vsub.s32 %v4890, %v5448
          %v5450 = vrot.slane %v4409, %v5449
          %v5451 = vsel %vm4895, %v5450, %v5446
          %v5452 = vlaneseq
          %v5453 = vshrl.u32 %v5452, 7
          %v5454 = vsub.s32 %v4897, %v5453
          %v5455 = vrot.slane %v4410, %v5454
          %v5456 = vsel %vm4902, %v5455, %v5451
          %v5457 = vlaneseq
          %v5458 = vshrl.u32 %v5457, 7
          %v5459 = vsub.s32 %v427, %v5458
          %v5460 = vrot.slane %v4411, %v5459
          %v5461 = vlaneseq
          %v5462 = vshrl.u32 %v5461, 7
          %v5463 = vsub.s32 %v4799, %v5462
          %v5464 = vrot.slane %v4412, %v5463
          %v5465 = vsel %vm4804, %v5464, %v5460
          %v5466 = vlaneseq
          %v5467 = vshrl.u32 %v5466, 7
          %v5468 = vsub.s32 %v4806, %v5467
          %v5469 = vrot.slane %v4413, %v5468
          %v5470 = vsel %vm4811, %v5469, %v5465
          %v5471 = vlaneseq
          %v5472 = vshrl.u32 %v5471, 7
          %v5473 = vsub.s32 %v4813, %v5472
          %v5474 = vrot.slane %v4414, %v5473
          %v5475 = vsel %vm4818, %v5474, %v5470
          %v5476 = vlaneseq
          %v5477 = vshrl.u32 %v5476, 7
          %v5478 = vsub.s32 %v4820, %v5477
          %v5479 = vrot.slane %v4415, %v5478
          %v5480 = vsel %vm4825, %v5479, %v5475
          %v5481 = vlaneseq
          %v5482 = vshrl.u32 %v5481, 7
          %v5483 = vsub.s32 %v4827, %v5482
          %v5484 = vrot.slane %v4416, %v5483
          %v5485 = vsel %vm4832, %v5484, %v5480
          %v5486 = vlaneseq
          %v5487 = vshrl.u32 %v5486, 7
          %v5488 = vsub.s32 %v4834, %v5487
          %v5489 = vrot.slane %v4417, %v5488
          %v5490 = vsel %vm4839, %v5489, %v5485
          %v5491 = vlaneseq
          %v5492 = vshrl.u32 %v5491, 7
          %v5493 = vsub.s32 %v4841, %v5492
          %v5494 = vrot.slane %v4418, %v5493
          %v5495 = vsel %vm4846, %v5494, %v5490
          %v5496 = vlaneseq
          %v5497 = vshrl.u32 %v5496, 7
          %v5498 = vsub.s32 %v4848, %v5497
          %v5499 = vrot.slane %v4419, %v5498
          %v5500 = vsel %vm4853, %v5499, %v5495
          %v5501 = vlaneseq
          %v5502 = vshrl.u32 %v5501, 7
          %v5503 = vsub.s32 %v4855, %v5502
          %v5504 = vrot.slane %v4420, %v5503
          %v5505 = vsel %vm4860, %v5504, %v5500
          %v5506 = vlaneseq
          %v5507 = vshrl.u32 %v5506, 7
          %v5508 = vsub.s32 %v4862, %v5507
          %v5509 = vrot.slane %v4421, %v5508
          %v5510 = vsel %vm4867, %v5509, %v5505
          %v5511 = vlaneseq
          %v5512 = vshrl.u32 %v5511, 7
          %v5513 = vsub.s32 %v4869, %v5512
          %v5514 = vrot.slane %v4422, %v5513
          %v5515 = vsel %vm4874, %v5514, %v5510
          %v5516 = vlaneseq
          %v5517 = vshrl.u32 %v5516, 7
          %v5518 = vsub.s32 %v4876, %v5517
          %v5519 = vrot.slane %v4423, %v5518
          %v5520 = vsel %vm4881, %v5519, %v5515
          %v5521 = vlaneseq
          %v5522 = vshrl.u32 %v5521, 7
          %v5523 = vsub.s32 %v4883, %v5522
          %v5524 = vrot.slane %v4424, %v5523
          %v5525 = vsel %vm4888, %v5524, %v5520
          %v5526 = vlaneseq
          %v5527 = vshrl.u32 %v5526, 7
          %v5528 = vsub.s32 %v4890, %v5527
          %v5529 = vrot.slane %v4425, %v5528
          %v5530 = vsel %vm4895, %v5529, %v5525
          %v5531 = vlaneseq
          %v5532 = vshrl.u32 %v5531, 7
          %v5533 = vsub.s32 %v4897, %v5532
          %v5534 = vrot.slane %v4426, %v5533
          %v5535 = vsel %vm4902, %v5534, %v5530
          %v5536 = vlaneseq
          %v5537 = vshrl.u32 %v5536, 7
          %v5538 = vsub.s32 %v427, %v5537
          %v5539 = vrot.slane %v4427, %v5538
          %v5540 = vlaneseq
          %v5541 = vshrl.u32 %v5540, 7
          %v5542 = vsub.s32 %v4799, %v5541
          %v5543 = vrot.slane %v4428, %v5542
          %v5544 = vsel %vm4804, %v5543, %v5539
          %v5545 = vlaneseq
          %v5546 = vshrl.u32 %v5545, 7
          %v5547 = vsub.s32 %v4806, %v5546
          %v5548 = vrot.slane %v4429, %v5547
          %v5549 = vsel %vm4811, %v5548, %v5544
          %v5550 = vlaneseq
          %v5551 = vshrl.u32 %v5550, 7
          %v5552 = vsub.s32 %v4813, %v5551
          %v5553 = vrot.slane %v4430, %v5552
          %v5554 = vsel %vm4818, %v5553, %v5549
          %v5555 = vlaneseq
          %v5556 = vshrl.u32 %v5555, 7
          %v5557 = vsub.s32 %v4820, %v5556
          %v5558 = vrot.slane %v4431, %v5557
          %v5559 = vsel %vm4825, %v5558, %v5554
          %v5560 = vlaneseq
          %v5561 = vshrl.u32 %v5560, 7
          %v5562 = vsub.s32 %v4827, %v5561
          %v5563 = vrot.slane %v4432, %v5562
          %v5564 = vsel %vm4832, %v5563, %v5559
          %v5565 = vlaneseq
          %v5566 = vshrl.u32 %v5565, 7
          %v5567 = vsub.s32 %v4834, %v5566
          %v5568 = vrot.slane %v4433, %v5567
          %v5569 = vsel %vm4839, %v5568, %v5564
          %v5570 = vlaneseq
          %v5571 = vshrl.u32 %v5570, 7
          %v5572 = vsub.s32 %v4841, %v5571
          %v5573 = vrot.slane %v4434, %v5572
          %v5574 = vsel %vm4846, %v5573, %v5569
          %v5575 = vlaneseq
          %v5576 = vshrl.u32 %v5575, 7
          %v5577 = vsub.s32 %v4848, %v5576
          %v5578 = vrot.slane %v4435, %v5577
          %v5579 = vsel %vm4853, %v5578, %v5574
          %v5580 = vlaneseq
          %v5581 = vshrl.u32 %v5580, 7
          %v5582 = vsub.s32 %v4855, %v5581
          %v5583 = vrot.slane %v4436, %v5582
          %v5584 = vsel %vm4860, %v5583, %v5579
          %v5585 = vlaneseq
          %v5586 = vshrl.u32 %v5585, 7
          %v5587 = vsub.s32 %v4862, %v5586
          %v5588 = vrot.slane %v4437, %v5587
          %v5589 = vsel %vm4867, %v5588, %v5584
          %v5590 = vlaneseq
          %v5591 = vshrl.u32 %v5590, 7
          %v5592 = vsub.s32 %v4869, %v5591
          %v5593 = vrot.slane %v4438, %v5592
          %v5594 = vsel %vm4874, %v5593, %v5589
          %v5595 = vlaneseq
          %v5596 = vshrl.u32 %v5595, 7
          %v5597 = vsub.s32 %v4876, %v5596
          %v5598 = vrot.slane %v4439, %v5597
          %v5599 = vsel %vm4881, %v5598, %v5594
          %v5600 = vlaneseq
          %v5601 = vshrl.u32 %v5600, 7
          %v5602 = vsub.s32 %v4883, %v5601
          %v5603 = vrot.slane %v4440, %v5602
          %v5604 = vsel %vm4888, %v5603, %v5599
          %v5605 = vlaneseq
          %v5606 = vshrl.u32 %v5605, 7
          %v5607 = vsub.s32 %v4890, %v5606
          %v5608 = vrot.slane %v4441, %v5607
          %v5609 = vsel %vm4895, %v5608, %v5604
          %v5610 = vlaneseq
          %v5611 = vshrl.u32 %v5610, 7
          %v5612 = vsub.s32 %v4897, %v5611
          %v5613 = vrot.slane %v4442, %v5612
          %v5614 = vsel %vm4902, %v5613, %v5609
          %v5615 = vlaneseq
          %v5616 = vshrl.u32 %v5615, 7
          %v5617 = vsub.s32 %v427, %v5616
          %v5618 = vrot.slane %v4443, %v5617
          %v5619 = vlaneseq
          %v5620 = vshrl.u32 %v5619, 7
          %v5621 = vsub.s32 %v4799, %v5620
          %v5622 = vrot.slane %v4444, %v5621
          %v5623 = vsel %vm4804, %v5622, %v5618
          %v5624 = vlaneseq
          %v5625 = vshrl.u32 %v5624, 7
          %v5626 = vsub.s32 %v4806, %v5625
          %v5627 = vrot.slane %v4445, %v5626
          %v5628 = vsel %vm4811, %v5627, %v5623
          %v5629 = vlaneseq
          %v5630 = vshrl.u32 %v5629, 7
          %v5631 = vsub.s32 %v4813, %v5630
          %v5632 = vrot.slane %v4446, %v5631
          %v5633 = vsel %vm4818, %v5632, %v5628
          %v5634 = vlaneseq
          %v5635 = vshrl.u32 %v5634, 7
          %v5636 = vsub.s32 %v4820, %v5635
          %v5637 = vrot.slane %v4447, %v5636
          %v5638 = vsel %vm4825, %v5637, %v5633
          %v5639 = vlaneseq
          %v5640 = vshrl.u32 %v5639, 7
          %v5641 = vsub.s32 %v4827, %v5640
          %v5642 = vrot.slane %v4448, %v5641
          %v5643 = vsel %vm4832, %v5642, %v5638
          %v5644 = vlaneseq
          %v5645 = vshrl.u32 %v5644, 7
          %v5646 = vsub.s32 %v4834, %v5645
          %v5647 = vrot.slane %v4449, %v5646
          %v5648 = vsel %vm4839, %v5647, %v5643
          %v5649 = vlaneseq
          %v5650 = vshrl.u32 %v5649, 7
          %v5651 = vsub.s32 %v4841, %v5650
          %v5652 = vrot.slane %v4450, %v5651
          %v5653 = vsel %vm4846, %v5652, %v5648
          %v5654 = vlaneseq
          %v5655 = vshrl.u32 %v5654, 7
          %v5656 = vsub.s32 %v4848, %v5655
          %v5657 = vrot.slane %v4451, %v5656
          %v5658 = vsel %vm4853, %v5657, %v5653
          %v5659 = vlaneseq
          %v5660 = vshrl.u32 %v5659, 7
          %v5661 = vsub.s32 %v4855, %v5660
          %v5662 = vrot.slane %v4452, %v5661
          %v5663 = vsel %vm4860, %v5662, %v5658
          %v5664 = vlaneseq
          %v5665 = vshrl.u32 %v5664, 7
          %v5666 = vsub.s32 %v4862, %v5665
          %v5667 = vrot.slane %v4453, %v5666
          %v5668 = vsel %vm4867, %v5667, %v5663
          %v5669 = vlaneseq
          %v5670 = vshrl.u32 %v5669, 7
          %v5671 = vsub.s32 %v4869, %v5670
          %v5672 = vrot.slane %v4454, %v5671
          %v5673 = vsel %vm4874, %v5672, %v5668
          %v5674 = vlaneseq
          %v5675 = vshrl.u32 %v5674, 7
          %v5676 = vsub.s32 %v4876, %v5675
          %v5677 = vrot.slane %v4455, %v5676
          %v5678 = vsel %vm4881, %v5677, %v5673
          %v5679 = vlaneseq
          %v5680 = vshrl.u32 %v5679, 7
          %v5681 = vsub.s32 %v4883, %v5680
          %v5682 = vrot.slane %v4456, %v5681
          %v5683 = vsel %vm4888, %v5682, %v5678
          %v5684 = vlaneseq
          %v5685 = vshrl.u32 %v5684, 7
          %v5686 = vsub.s32 %v4890, %v5685
          %v5687 = vrot.slane %v4457, %v5686
          %v5688 = vsel %vm4895, %v5687, %v5683
          %v5689 = vlaneseq
          %v5690 = vshrl.u32 %v5689, 7
          %v5691 = vsub.s32 %v4897, %v5690
          %v5692 = vrot.slane %v4458, %v5691
          %v5693 = vsel %vm4902, %v5692, %v5688
          %v5694 = vlaneseq
          %v5695 = vshrl.u32 %v5694, 7
          %v5696 = vsub.s32 %v427, %v5695
          %v5697 = vrot.slane %v4459, %v5696
          %v5698 = vlaneseq
          %v5699 = vshrl.u32 %v5698, 7
          %v5700 = vsub.s32 %v4799, %v5699
          %v5701 = vrot.slane %v4460, %v5700
          %v5702 = vsel %vm4804, %v5701, %v5697
          %v5703 = vlaneseq
          %v5704 = vshrl.u32 %v5703, 7
          %v5705 = vsub.s32 %v4806, %v5704
          %v5706 = vrot.slane %v4461, %v5705
          %v5707 = vsel %vm4811, %v5706, %v5702
          %v5708 = vlaneseq
          %v5709 = vshrl.u32 %v5708, 7
          %v5710 = vsub.s32 %v4813, %v5709
          %v5711 = vrot.slane %v4462, %v5710
          %v5712 = vsel %vm4818, %v5711, %v5707
          %v5713 = vlaneseq
          %v5714 = vshrl.u32 %v5713, 7
          %v5715 = vsub.s32 %v4820, %v5714
          %v5716 = vrot.slane %v4463, %v5715
          %v5717 = vsel %vm4825, %v5716, %v5712
          %v5718 = vlaneseq
          %v5719 = vshrl.u32 %v5718, 7
          %v5720 = vsub.s32 %v4827, %v5719
          %v5721 = vrot.slane %v4464, %v5720
          %v5722 = vsel %vm4832, %v5721, %v5717
          %v5723 = vlaneseq
          %v5724 = vshrl.u32 %v5723, 7
          %v5725 = vsub.s32 %v4834, %v5724
          %v5726 = vrot.slane %v4465, %v5725
          %v5727 = vsel %vm4839, %v5726, %v5722
          %v5728 = vlaneseq
          %v5729 = vshrl.u32 %v5728, 7
          %v5730 = vsub.s32 %v4841, %v5729
          %v5731 = vrot.slane %v4466, %v5730
          %v5732 = vsel %vm4846, %v5731, %v5727
          %v5733 = vlaneseq
          %v5734 = vshrl.u32 %v5733, 7
          %v5735 = vsub.s32 %v4848, %v5734
          %v5736 = vrot.slane %v4467, %v5735
          %v5737 = vsel %vm4853, %v5736, %v5732
          %v5738 = vlaneseq
          %v5739 = vshrl.u32 %v5738, 7
          %v5740 = vsub.s32 %v4855, %v5739
          %v5741 = vrot.slane %v4468, %v5740
          %v5742 = vsel %vm4860, %v5741, %v5737
          %v5743 = vlaneseq
          %v5744 = vshrl.u32 %v5743, 7
          %v5745 = vsub.s32 %v4862, %v5744
          %v5746 = vrot.slane %v4469, %v5745
          %v5747 = vsel %vm4867, %v5746, %v5742
          %v5748 = vlaneseq
          %v5749 = vshrl.u32 %v5748, 7
          %v5750 = vsub.s32 %v4869, %v5749
          %v5751 = vrot.slane %v4470, %v5750
          %v5752 = vsel %vm4874, %v5751, %v5747
          %v5753 = vlaneseq
          %v5754 = vshrl.u32 %v5753, 7
          %v5755 = vsub.s32 %v4876, %v5754
          %v5756 = vrot.slane %v4471, %v5755
          %v5757 = vsel %vm4881, %v5756, %v5752
          %v5758 = vlaneseq
          %v5759 = vshrl.u32 %v5758, 7
          %v5760 = vsub.s32 %v4883, %v5759
          %v5761 = vrot.slane %v4472, %v5760
          %v5762 = vsel %vm4888, %v5761, %v5757
          %v5763 = vlaneseq
          %v5764 = vshrl.u32 %v5763, 7
          %v5765 = vsub.s32 %v4890, %v5764
          %v5766 = vrot.slane %v4473, %v5765
          %v5767 = vsel %vm4895, %v5766, %v5762
          %v5768 = vlaneseq
          %v5769 = vshrl.u32 %v5768, 7
          %v5770 = vsub.s32 %v4897, %v5769
          %v5771 = vrot.slane %v4474, %v5770
          %v5772 = vsel %vm4902, %v5771, %v5767
          %v5773 = vlaneseq
          %v5774 = vshrl.u32 %v5773, 7
          %v5775 = vsub.s32 %v427, %v5774
          %v5776 = vrot.slane %v4475, %v5775
          %v5777 = vlaneseq
          %v5778 = vshrl.u32 %v5777, 7
          %v5779 = vsub.s32 %v4799, %v5778
          %v5780 = vrot.slane %v4476, %v5779
          %v5781 = vsel %vm4804, %v5780, %v5776
          %v5782 = vlaneseq
          %v5783 = vshrl.u32 %v5782, 7
          %v5784 = vsub.s32 %v4806, %v5783
          %v5785 = vrot.slane %v4477, %v5784
          %v5786 = vsel %vm4811, %v5785, %v5781
          %v5787 = vlaneseq
          %v5788 = vshrl.u32 %v5787, 7
          %v5789 = vsub.s32 %v4813, %v5788
          %v5790 = vrot.slane %v4478, %v5789
          %v5791 = vsel %vm4818, %v5790, %v5786
          %v5792 = vlaneseq
          %v5793 = vshrl.u32 %v5792, 7
          %v5794 = vsub.s32 %v4820, %v5793
          %v5795 = vrot.slane %v4479, %v5794
          %v5796 = vsel %vm4825, %v5795, %v5791
          %v5797 = vlaneseq
          %v5798 = vshrl.u32 %v5797, 7
          %v5799 = vsub.s32 %v4827, %v5798
          %v5800 = vrot.slane %v4480, %v5799
          %v5801 = vsel %vm4832, %v5800, %v5796
          %v5802 = vlaneseq
          %v5803 = vshrl.u32 %v5802, 7
          %v5804 = vsub.s32 %v4834, %v5803
          %v5805 = vrot.slane %v4481, %v5804
          %v5806 = vsel %vm4839, %v5805, %v5801
          %v5807 = vlaneseq
          %v5808 = vshrl.u32 %v5807, 7
          %v5809 = vsub.s32 %v4841, %v5808
          %v5810 = vrot.slane %v4482, %v5809
          %v5811 = vsel %vm4846, %v5810, %v5806
          %v5812 = vlaneseq
          %v5813 = vshrl.u32 %v5812, 7
          %v5814 = vsub.s32 %v4848, %v5813
          %v5815 = vrot.slane %v4483, %v5814
          %v5816 = vsel %vm4853, %v5815, %v5811
          %v5817 = vlaneseq
          %v5818 = vshrl.u32 %v5817, 7
          %v5819 = vsub.s32 %v4855, %v5818
          %v5820 = vrot.slane %v4484, %v5819
          %v5821 = vsel %vm4860, %v5820, %v5816
          %v5822 = vlaneseq
          %v5823 = vshrl.u32 %v5822, 7
          %v5824 = vsub.s32 %v4862, %v5823
          %v5825 = vrot.slane %v4485, %v5824
          %v5826 = vsel %vm4867, %v5825, %v5821
          %v5827 = vlaneseq
          %v5828 = vshrl.u32 %v5827, 7
          %v5829 = vsub.s32 %v4869, %v5828
          %v5830 = vrot.slane %v4486, %v5829
          %v5831 = vsel %vm4874, %v5830, %v5826
          %v5832 = vlaneseq
          %v5833 = vshrl.u32 %v5832, 7
          %v5834 = vsub.s32 %v4876, %v5833
          %v5835 = vrot.slane %v4487, %v5834
          %v5836 = vsel %vm4881, %v5835, %v5831
          %v5837 = vlaneseq
          %v5838 = vshrl.u32 %v5837, 7
          %v5839 = vsub.s32 %v4883, %v5838
          %v5840 = vrot.slane %v4488, %v5839
          %v5841 = vsel %vm4888, %v5840, %v5836
          %v5842 = vlaneseq
          %v5843 = vshrl.u32 %v5842, 7
          %v5844 = vsub.s32 %v4890, %v5843
          %v5845 = vrot.slane %v4489, %v5844
          %v5846 = vsel %vm4895, %v5845, %v5841
          %v5847 = vlaneseq
          %v5848 = vshrl.u32 %v5847, 7
          %v5849 = vsub.s32 %v4897, %v5848
          %v5850 = vrot.slane %v4490, %v5849
          %v5851 = vsel %vm4902, %v5850, %v5846
          %v5852 = vlaneseq
          %v5853 = vshrl.u32 %v5852, 7
          %v5854 = vsub.s32 %v427, %v5853
          %v5855 = vrot.slane %v4491, %v5854
          %v5856 = vlaneseq
          %v5857 = vshrl.u32 %v5856, 7
          %v5858 = vsub.s32 %v4799, %v5857
          %v5859 = vrot.slane %v4492, %v5858
          %v5860 = vsel %vm4804, %v5859, %v5855
          %v5861 = vlaneseq
          %v5862 = vshrl.u32 %v5861, 7
          %v5863 = vsub.s32 %v4806, %v5862
          %v5864 = vrot.slane %v4493, %v5863
          %v5865 = vsel %vm4811, %v5864, %v5860
          %v5866 = vlaneseq
          %v5867 = vshrl.u32 %v5866, 7
          %v5868 = vsub.s32 %v4813, %v5867
          %v5869 = vrot.slane %v4494, %v5868
          %v5870 = vsel %vm4818, %v5869, %v5865
          %v5871 = vlaneseq
          %v5872 = vshrl.u32 %v5871, 7
          %v5873 = vsub.s32 %v4820, %v5872
          %v5874 = vrot.slane %v4495, %v5873
          %v5875 = vsel %vm4825, %v5874, %v5870
          %v5876 = vlaneseq
          %v5877 = vshrl.u32 %v5876, 7
          %v5878 = vsub.s32 %v4827, %v5877
          %v5879 = vrot.slane %v4496, %v5878
          %v5880 = vsel %vm4832, %v5879, %v5875
          %v5881 = vlaneseq
          %v5882 = vshrl.u32 %v5881, 7
          %v5883 = vsub.s32 %v4834, %v5882
          %v5884 = vrot.slane %v4497, %v5883
          %v5885 = vsel %vm4839, %v5884, %v5880
          %v5886 = vlaneseq
          %v5887 = vshrl.u32 %v5886, 7
          %v5888 = vsub.s32 %v4841, %v5887
          %v5889 = vrot.slane %v4498, %v5888
          %v5890 = vsel %vm4846, %v5889, %v5885
          %v5891 = vlaneseq
          %v5892 = vshrl.u32 %v5891, 7
          %v5893 = vsub.s32 %v4848, %v5892
          %v5894 = vrot.slane %v4499, %v5893
          %v5895 = vsel %vm4853, %v5894, %v5890
          %v5896 = vlaneseq
          %v5897 = vshrl.u32 %v5896, 7
          %v5898 = vsub.s32 %v4855, %v5897
          %v5899 = vrot.slane %v4500, %v5898
          %v5900 = vsel %vm4860, %v5899, %v5895
          %v5901 = vlaneseq
          %v5902 = vshrl.u32 %v5901, 7
          %v5903 = vsub.s32 %v4862, %v5902
          %v5904 = vrot.slane %v4501, %v5903
          %v5905 = vsel %vm4867, %v5904, %v5900
          %v5906 = vlaneseq
          %v5907 = vshrl.u32 %v5906, 7
          %v5908 = vsub.s32 %v4869, %v5907
          %v5909 = vrot.slane %v4502, %v5908
          %v5910 = vsel %vm4874, %v5909, %v5905
          %v5911 = vlaneseq
          %v5912 = vshrl.u32 %v5911, 7
          %v5913 = vsub.s32 %v4876, %v5912
          %v5914 = vrot.slane %v4503, %v5913
          %v5915 = vsel %vm4881, %v5914, %v5910
          %v5916 = vlaneseq
          %v5917 = vshrl.u32 %v5916, 7
          %v5918 = vsub.s32 %v4883, %v5917
          %v5919 = vrot.slane %v4504, %v5918
          %v5920 = vsel %vm4888, %v5919, %v5915
          %v5921 = vlaneseq
          %v5922 = vshrl.u32 %v5921, 7
          %v5923 = vsub.s32 %v4890, %v5922
          %v5924 = vrot.slane %v4505, %v5923
          %v5925 = vsel %vm4895, %v5924, %v5920
          %v5926 = vlaneseq
          %v5927 = vshrl.u32 %v5926, 7
          %v5928 = vsub.s32 %v4897, %v5927
          %v5929 = vrot.slane %v4506, %v5928
          %v5930 = vsel %vm4902, %v5929, %v5925
          %v5931 = vlaneseq
          %v5932 = vshrl.u32 %v5931, 7
          %v5933 = vsub.s32 %v427, %v5932
          %v5934 = vrot.slane %v4507, %v5933
          %v5935 = vlaneseq
          %v5936 = vshrl.u32 %v5935, 7
          %v5937 = vsub.s32 %v4799, %v5936
          %v5938 = vrot.slane %v4508, %v5937
          %v5939 = vsel %vm4804, %v5938, %v5934
          %v5940 = vlaneseq
          %v5941 = vshrl.u32 %v5940, 7
          %v5942 = vsub.s32 %v4806, %v5941
          %v5943 = vrot.slane %v4509, %v5942
          %v5944 = vsel %vm4811, %v5943, %v5939
          %v5945 = vlaneseq
          %v5946 = vshrl.u32 %v5945, 7
          %v5947 = vsub.s32 %v4813, %v5946
          %v5948 = vrot.slane %v4510, %v5947
          %v5949 = vsel %vm4818, %v5948, %v5944
          %v5950 = vlaneseq
          %v5951 = vshrl.u32 %v5950, 7
          %v5952 = vsub.s32 %v4820, %v5951
          %v5953 = vrot.slane %v4511, %v5952
          %v5954 = vsel %vm4825, %v5953, %v5949
          %v5955 = vlaneseq
          %v5956 = vshrl.u32 %v5955, 7
          %v5957 = vsub.s32 %v4827, %v5956
          %v5958 = vrot.slane %v4512, %v5957
          %v5959 = vsel %vm4832, %v5958, %v5954
          %v5960 = vlaneseq
          %v5961 = vshrl.u32 %v5960, 7
          %v5962 = vsub.s32 %v4834, %v5961
          %v5963 = vrot.slane %v4513, %v5962
          %v5964 = vsel %vm4839, %v5963, %v5959
          %v5965 = vlaneseq
          %v5966 = vshrl.u32 %v5965, 7
          %v5967 = vsub.s32 %v4841, %v5966
          %v5968 = vrot.slane %v4514, %v5967
          %v5969 = vsel %vm4846, %v5968, %v5964
          %v5970 = vlaneseq
          %v5971 = vshrl.u32 %v5970, 7
          %v5972 = vsub.s32 %v4848, %v5971
          %v5973 = vrot.slane %v4515, %v5972
          %v5974 = vsel %vm4853, %v5973, %v5969
          %v5975 = vlaneseq
          %v5976 = vshrl.u32 %v5975, 7
          %v5977 = vsub.s32 %v4855, %v5976
          %v5978 = vrot.slane %v4516, %v5977
          %v5979 = vsel %vm4860, %v5978, %v5974
          %v5980 = vlaneseq
          %v5981 = vshrl.u32 %v5980, 7
          %v5982 = vsub.s32 %v4862, %v5981
          %v5983 = vrot.slane %v4517, %v5982
          %v5984 = vsel %vm4867, %v5983, %v5979
          %v5985 = vlaneseq
          %v5986 = vshrl.u32 %v5985, 7
          %v5987 = vsub.s32 %v4869, %v5986
          %v5988 = vrot.slane %v4518, %v5987
          %v5989 = vsel %vm4874, %v5988, %v5984
          %v5990 = vlaneseq
          %v5991 = vshrl.u32 %v5990, 7
          %v5992 = vsub.s32 %v4876, %v5991
          %v5993 = vrot.slane %v4519, %v5992
          %v5994 = vsel %vm4881, %v5993, %v5989
          %v5995 = vlaneseq
          %v5996 = vshrl.u32 %v5995, 7
          %v5997 = vsub.s32 %v4883, %v5996
          %v5998 = vrot.slane %v4520, %v5997
          %v5999 = vsel %vm4888, %v5998, %v5994
          %v6000 = vlaneseq
          %v6001 = vshrl.u32 %v6000, 7
          %v6002 = vsub.s32 %v4890, %v6001
          %v6003 = vrot.slane %v4521, %v6002
          %v6004 = vsel %vm4895, %v6003, %v5999
          %v6005 = vlaneseq
          %v6006 = vshrl.u32 %v6005, 7
          %v6007 = vsub.s32 %v4897, %v6006
          %v6008 = vrot.slane %v4522, %v6007
          %v6009 = vsel %vm4902, %v6008, %v6004
          %v6010 = vlaneseq
          %v6011 = vshrl.u32 %v6010, 7
          %v6012 = vsub.s32 %v427, %v6011
          %v6013 = vrot.slane %v4523, %v6012
          %v6014 = vlaneseq
          %v6015 = vshrl.u32 %v6014, 7
          %v6016 = vsub.s32 %v4799, %v6015
          %v6017 = vrot.slane %v4524, %v6016
          %v6018 = vsel %vm4804, %v6017, %v6013
          %v6019 = vlaneseq
          %v6020 = vshrl.u32 %v6019, 7
          %v6021 = vsub.s32 %v4806, %v6020
          %v6022 = vrot.slane %v4525, %v6021
          %v6023 = vsel %vm4811, %v6022, %v6018
          %v6024 = vlaneseq
          %v6025 = vshrl.u32 %v6024, 7
          %v6026 = vsub.s32 %v4813, %v6025
          %v6027 = vrot.slane %v4526, %v6026
          %v6028 = vsel %vm4818, %v6027, %v6023
          %v6029 = vlaneseq
          %v6030 = vshrl.u32 %v6029, 7
          %v6031 = vsub.s32 %v4820, %v6030
          %v6032 = vrot.slane %v4527, %v6031
          %v6033 = vsel %vm4825, %v6032, %v6028
          %v6034 = vlaneseq
          %v6035 = vshrl.u32 %v6034, 7
          %v6036 = vsub.s32 %v4827, %v6035
          %v6037 = vrot.slane %v4528, %v6036
          %v6038 = vsel %vm4832, %v6037, %v6033
          %v6039 = vlaneseq
          %v6040 = vshrl.u32 %v6039, 7
          %v6041 = vsub.s32 %v4834, %v6040
          %v6042 = vrot.slane %v4529, %v6041
          %v6043 = vsel %vm4839, %v6042, %v6038
          %v6044 = vlaneseq
          %v6045 = vshrl.u32 %v6044, 7
          %v6046 = vsub.s32 %v4841, %v6045
          %v6047 = vrot.slane %v4530, %v6046
          %v6048 = vsel %vm4846, %v6047, %v6043
          %v6049 = vlaneseq
          %v6050 = vshrl.u32 %v6049, 7
          %v6051 = vsub.s32 %v4848, %v6050
          %v6052 = vrot.slane %v4531, %v6051
          %v6053 = vsel %vm4853, %v6052, %v6048
          %v6054 = vlaneseq
          %v6055 = vshrl.u32 %v6054, 7
          %v6056 = vsub.s32 %v4855, %v6055
          %v6057 = vrot.slane %v4532, %v6056
          %v6058 = vsel %vm4860, %v6057, %v6053
          %v6059 = vlaneseq
          %v6060 = vshrl.u32 %v6059, 7
          %v6061 = vsub.s32 %v4862, %v6060
          %v6062 = vrot.slane %v4533, %v6061
          %v6063 = vsel %vm4867, %v6062, %v6058
          %v6064 = vlaneseq
          %v6065 = vshrl.u32 %v6064, 7
          %v6066 = vsub.s32 %v4869, %v6065
          %v6067 = vrot.slane %v4534, %v6066
          %v6068 = vsel %vm4874, %v6067, %v6063
          %v6069 = vlaneseq
          %v6070 = vshrl.u32 %v6069, 7
          %v6071 = vsub.s32 %v4876, %v6070
          %v6072 = vrot.slane %v4535, %v6071
          %v6073 = vsel %vm4881, %v6072, %v6068
          %v6074 = vlaneseq
          %v6075 = vshrl.u32 %v6074, 7
          %v6076 = vsub.s32 %v4883, %v6075
          %v6077 = vrot.slane %v4536, %v6076
          %v6078 = vsel %vm4888, %v6077, %v6073
          %v6079 = vlaneseq
          %v6080 = vshrl.u32 %v6079, 7
          %v6081 = vsub.s32 %v4890, %v6080
          %v6082 = vrot.slane %v4537, %v6081
          %v6083 = vsel %vm4895, %v6082, %v6078
          %v6084 = vlaneseq
          %v6085 = vshrl.u32 %v6084, 7
          %v6086 = vsub.s32 %v4897, %v6085
          %v6087 = vrot.slane %v4538, %v6086
          %v6088 = vsel %vm4902, %v6087, %v6083
          %vm6089 = vcmask 1041409
          %v6090 = vsel %vm6089, %v5061, %v4903
          %vm6091 = vcmask 1042434
          %v6092 = vsel %vm6091, %v5219, %v6090
          %vm6093 = vcmask 1043459
          %v6094 = vsel %vm6093, %v5377, %v6092
          %vm6095 = vcmask 1044484
          %v6096 = vsel %vm6095, %v5535, %v6094
          %vm6097 = vcmask 1045509
          %v6098 = vsel %vm6097, %v5693, %v6096
          %vm6099 = vcmask 1046534
          %v6100 = vsel %vm6099, %v5851, %v6098
          %vm6101 = vcmask 1047559
          %v6102 = vsel %vm6101, %v6009, %v6100
          %v6103 = vsel %vm6089, %v5140, %v4982
          %v6104 = vsel %vm6091, %v5298, %v6103
          %v6105 = vsel %vm6093, %v5456, %v6104
          %v6106 = vsel %vm6095, %v5614, %v6105
          %v6107 = vsel %vm6097, %v5772, %v6106
          %v6108 = vsel %vm6099, %v5930, %v6107
          %v6109 = vsel %vm6101, %v6088, %v6108
          %6112 = vst [vmem:[%s158] sm:$0xff] %v6102
          %6113 = vst [vmem:[%s158 + $0x8] sm:$0xff] %v6109
        $region36: #{tpu_custom_call.1} parent=23 // pred_fallthru
          _
        %s6114 = sand.u32 %s66, 1
        %s6115 = scalar_lea.sflag [#allocation5], %s6114
        %s6116 = sand.u32 %s66, 1
        %s6117 = smul.addr %s6116, 16
        %s6118 = scalar_lea.vmem [#allocation6], %s6117
        // Predicated region
        $region37: #{tpu_custom_call.1} parent=23 // pred_check
          %p6119 = pneg %p76
        $region38: #{tpu_custom_call.1} parent=23 // pred_check_branch
          %6121 = sbr.rel (%p6119) target = $region40
        $region39: #{tpu_custom_call.1} parent=23 // pred_region
          %s6123 = ssub.s32 256, 256
          %6124 = vsyncadd %s6115, %s6123
          %s6125 = smul.addr %s22, 2
          %s6126 = smul.addr %s6125, 128
          %s6127 = scalar_lea.hbm %s1, %s6126
          %s6129 = sshll.u32 %s6118, 4
          %s6130 = int_to_ptr.vmem [resolvable:$true] %s6129
          %6132 = dma.vmem_to_hbm [thread:$0]  %s6130, 256, %s6127, %s6115
        $region40: #{tpu_custom_call.1} parent=23 // pred_fallthru
          _
      $region24: #{tpu_custom_call.1} parent=5 // pred_fallthru
        _
      %p6133 = scmp.le.s32.totalorder 2, %s13
      // Predicated region
      $region41: #{tpu_custom_call.1} parent=5 // pred_check
        %p6134 = pneg %p6133
      $region42: #{tpu_custom_call.1} parent=5 // pred_check_branch
        %6136 = sbr.rel (%p6134) target = $region44
      $region43: #{tpu_custom_call.1} parent=5 // pred_region
        %s6137 = ssub.s32 %s13, 2
        // Predicated region
        $region45: #{tpu_custom_call.1} parent=43 // pred_check
          %p6138 = pneg %p82
        $region46: #{tpu_custom_call.1} parent=43 // pred_check_branch
          %6140 = sbr.rel (%p6138) target = $region48
        $region47: #{tpu_custom_call.1} parent=43 // pred_region
          %s6141 = sand.u32 %s67, 1
          %s6142 = scalar_lea.sflag [#allocation5], %s6141
          %s6143 = sand.u32 %s67, 1
          %s6144 = smul.addr %s6143, 16
          %s6145 = scalar_lea.vmem [#allocation6], %s6144
          %6146 = dma.done %s6142, 256
        $region48: #{tpu_custom_call.1} parent=43 // pred_fallthru
          _
      $region44: #{tpu_custom_call.1} parent=5 // pred_fallthru
        _
    $region6: #{tpu_custom_call.1} parent=1 // loop_footer
      %s17 = sadd.s32 1, %s13
    $region7: #{tpu_custom_call.1} parent=1 // loop_footer_branch
      %12 = sbr.rel target = $region3
    $region8: #{tpu_custom_call.1} parent=1 // loop_exit
      _
    %6147 = vsyncpa [#allocation4], 1
    %s6148 = scalar_lea.sflag [#allocation4], 1
    %6149 = vsyncpa %s6148, 1
    %6150 = vsyncpa [#allocation5], 1
    %s6151 = scalar_lea.sflag [#allocation5], 1
    %6152 = vsyncpa %s6151, 1

</llo_original>
